<compile_context>
chip_gen: v5e
topology: v5e:2x2
jax: 0.10.0
libtpu: 0.0.40
codegen_flags: <defaults>
</compile_context>

<pallas_src>
import functools

import jax
import jax.numpy as jnp
from jax.experimental import pallas as pl
from jax.experimental.pallas import tpu as pltpu

IN_FEATURES = 4096
OUT_FEATURES = 4096


def linear_add_kernel(x_ref, w_ref, y_ref, o_ref):
    # Full-K block: one MXU matmul per output tile, residual add fused,
    # single lane-dense store.  No accumulator scratch, no K revisits.
    o_ref[...] = (
        jnp.dot(x_ref[...], w_ref[...], preferred_element_type=jnp.float32)
        + y_ref[...].astype(jnp.float32)
    ).astype(o_ref.dtype)


@functools.partial(jax.jit, static_argnames=("tm", "tn"))
def linear_add(x, w_t, y, *, tm=None, tn=1024):
    """x: (M, K), w_t: (K, N) [already transposed torch weight], y: (M, N)."""
    M, K = x.shape
    K2, N = w_t.shape
    assert K == K2
    if tm is None:
        tm = M  # GEMV-shaped: keep all rows in one block, don't pad M.
    assert M % tm == 0 and N % tn == 0

    grid = (M // tm, N // tn)

    return pl.pallas_call(
        linear_add_kernel,
        out_shape=jax.ShapeDtypeStruct((M, N), x.dtype),
        grid_spec=pltpu.PrefetchScalarGridSpec(
            num_scalar_prefetch=0,
            grid=grid,
            in_specs=[
                pl.BlockSpec((tm, K), lambda i, j: (i, 0)),   # x (full K)
                pl.BlockSpec((K, tn), lambda i, j: (0, j)),   # w_t (full K)
                pl.BlockSpec((tm, tn), lambda i, j: (i, j)),  # y (residual)
            ],
            out_specs=pl.BlockSpec((tm, tn), lambda i, j: (i, j)),
        ),
        compiler_params=pltpu.CompilerParams(
            dimension_semantics=("parallel", "parallel"),
            # Double-buffered 16 MiB weight tiles (~32.5 MiB total live VMEM);
            # raise the scoped limit above the 16/32 MiB defaults but stay
            # well under v7x's 64 MiB physical VMEM.
            vmem_limit_bytes=48 * 1024 * 1024,
        ),
    )(x, w_t, y)


if __name__ == "__main__":
    key = jax.random.PRNGKey(0)
    kx, ky, kw = jax.random.split(key, 3)

    # Small batch; feature dims fixed at 4096 by the module definition.
    M = 8
    x = jax.random.normal(kx, (M, IN_FEATURES), dtype=jnp.float32)
    y = jax.random.normal(ky, (M, OUT_FEATURES), dtype=jnp.float32)

    # Deterministic torch.nn.Linear-style init: U(-1/sqrt(fan_in), 1/sqrt(fan_in)).
    bound = 1.0 / (IN_FEATURES ** 0.5)
    w = jax.random.uniform(
        kw, (OUT_FEATURES, IN_FEATURES), dtype=jnp.float32,
        minval=-bound, maxval=bound,
    )
    w_t = w.T  # (K, N) so the kernel does x @ w_t  ==  x @ W.T in torch terms

    out = linear_add(x, w_t, y)
    jax.block_until_ready(out)

    # Reference check in plain JAX.
    ref = x @ w_t + y
    assert out.shape == (M, OUT_FEATURES)
    assert jnp.allclose(out, ref, atol=1e-3, rtol=1e-3)

    print("KERNEL_OK")
</pallas_src>

<mosaic_0001>
module attributes {stable_mosaic.version = 11 : i64} {
  func.func @linear_add_kernel(%arg0: i32, %arg1: i32, %arg2: memref<8x4096xf32, #tpu.memory_space<vmem>>, %arg3: memref<4096x1024xf32, #tpu.memory_space<vmem>>, %arg4: memref<8x1024xf32, #tpu.memory_space<vmem>>, %arg5: memref<8x1024xf32, #tpu.memory_space<vmem>>) attributes {dimension_semantics = [#tpu.dimension_semantics<parallel>, #tpu.dimension_semantics<parallel>], iteration_bounds = array<i64: 1, 4>, scalar_prefetch = 0 : i64, scratch_operands = 0 : i64, tpu.core_type = #tpu.core_type<tc>, window_params = [{transform_indices = @transform_0, window_bounds = array<i64: 8, 4096>}, {transform_indices = @transform_1, window_bounds = array<i64: 4096, 1024>}, {transform_indices = @transform_2, window_bounds = array<i64: 8, 1024>}, {transform_indices = @transform_3, window_bounds = array<i64: 8, 1024>}]} {
    %c0 = arith.constant 0 : index
    %c0_0 = arith.constant 0 : index
    %0 = vector.load %arg2[%c0, %c0_0] : memref<8x4096xf32, #tpu.memory_space<vmem>>, vector<8x4096xf32>
    %c0_1 = arith.constant 0 : index
    %c0_2 = arith.constant 0 : index
    %1 = vector.load %arg3[%c0_1, %c0_2] : memref<4096x1024xf32, #tpu.memory_space<vmem>>, vector<4096x1024xf32>
    %cst = arith.constant dense<0.000000e+00> : vector<8x1024xf32>
    %2 = tpu.matmul %0, %1, %cst {dimension_numbers = #tpu.dot_dimension_numbers<[1], [0], [0], [1], [0, 0, 1, 1], [], []>} : vector<8x4096xf32>, vector<4096x1024xf32>, vector<8x1024xf32> -> vector<8x1024xf32>
    %c0_3 = arith.constant 0 : index
    %c0_4 = arith.constant 0 : index
    %3 = vector.load %arg4[%c0_3, %c0_4] : memref<8x1024xf32, #tpu.memory_space<vmem>>, vector<8x1024xf32>
    %4 = arith.addf %2, %3 : vector<8x1024xf32>
    %c0_5 = arith.constant 0 : index
    %c0_6 = arith.constant 0 : index
    %5 = vector.load %arg5[%c0_5, %c0_6] : memref<8x1024xf32, #tpu.memory_space<vmem>>, vector<8x1024xf32>
    tpu.vector_store %arg5[%c0_5, %c0_6], %4 {strides = array<i32>} : memref<8x1024xf32, #tpu.memory_space<vmem>>, vector<8x1024xf32>,
    return
  }
  func.func @transform_0(%arg0: i32, %arg1: i32) -> (i32, i32) {
    %c0_i32 = arith.constant 0 : i32
    %c0_i32_0 = arith.constant 0 : i32
    return %arg0, %c0_i32 : i32, i32
  }
  func.func @transform_1(%arg0: i32, %arg1: i32) -> (i32, i32) {
    %c0_i32 = arith.constant 0 : i32
    %c0_i32_0 = arith.constant 0 : i32
    return %c0_i32, %arg1 : i32, i32
  }
  func.func @transform_2(%arg0: i32, %arg1: i32) -> (i32, i32) {
    %c0_i32 = arith.constant 0 : i32
    return %arg0, %arg1 : i32, i32
  }
  func.func @transform_3(%arg0: i32, %arg1: i32) -> (i32, i32) {
    %c0_i32 = arith.constant 0 : i32
    return %arg0, %arg1 : i32, i32
  }
}

</mosaic_0001>

<llo_original>
// kernel: linear_add.1
$region0: #{linear_add.1}
  #allocation0 [shape = 'u32[]', space=smem, size = 0x4, offset = 0x4, fixed_abs, tag = 'smem constant byte address 0x4 - core index']
  #allocation1 [shape = 'u32[72,128]{1,0:T(1,128)}', space=vmem, size = 0x9000, scoped, tag = 'internal scratch']
  %s0 = inlined_call_operand.hbm [shape: f32[8,4096], index: 0, kind: input, shape index: {}]
  %s1 = inlined_call_operand.hbm [shape: f32[4096,4096], index: 1, kind: input, shape index: {}]
  %s2 = inlined_call_operand.hbm [shape: f32[8,4096], index: 2, kind: input, shape index: {}]
  %s3 = inlined_call_operand.hbm [shape: f32[8,4096], index: 3, kind: output, shape index: {}]
  %s4 = sld [smem:[#allocation0]]
  $region57: #{linear_add.1} parent=0
    _
  %s6 = ssub.s32 1, %s4
  %s7 = scalar_select 0, %s6, %s4
  $region1: #{linear_add.1} parent=0
    #allocation2 [shape = 'u8[131072]{0}', space=vmem, size = 0x20000, scoped, tag = 'input window, operand 0, single buffered']
    #allocation3 [shape = 's32[2]{0}', space=sflag, size = 0x8, scoped, tag = 'scoped memory for linear_add.1']
    #allocation4 [shape = 's32[2]{0}', space=sflag, size = 0x8, scoped, tag = 'scoped memory for linear_add.1']
    #allocation5 [shape = 'u8[33554432]{0}', space=vmem, size = 0x2000000, scoped, tag = 'input window, operand 1']
    #allocation6 [shape = 's32[2]{0}', space=sflag, size = 0x8, scoped, tag = 'scoped memory for linear_add.1']
    #allocation7 [shape = 'u8[65536]{0}', space=vmem, size = 0x10000, scoped, tag = 'input window, operand 2']
    #allocation8 [shape = 'u8[65536]{0}', space=vmem, size = 0x10000, scoped, tag = 'output window, operand 0']
    %8 = vsyncpa [#allocation3], 0
    %9 = vsyncpa [#allocation6], 0
    %s10 = scalar_lea.sflag [#allocation6], 1
    %11 = vsyncpa %s10, 0
    %12 = vsyncpa [#allocation4], 0
    %s13 = scalar_lea.sflag [#allocation4], 1
    %14 = vsyncpa %s13, 0
    loop: start=0, step=1, limit=6
    $region2: #{linear_add.1} parent=1 // loop_pre_header
      _
    $region3: #{linear_add.1} parent=1 // loop_header
      %s16 = sphi 0, %s20
      %p17 = scmp.ge.s32.totalorder %s16, 6
      %s23 = sphi 0, %s35
      %s24 = sphi 0, %s31
      %s25 = sphi 0, %s23
      %s26 = sphi 0, %s24
      %s27 = sphi 0, %s25
      %s28 = sphi 0, %s26
      %s38 = sphi 0, %s40
      %s41 = sphi 0, %s38
      %s42 = sphi 0, %s41
      %s58 = sphi 0, %s42
      %s64 = sphi 0, %s66
      %s67 = sphi 0, %s64
      %s68 = sphi 0, %s67
      %s84 = sphi 0, %s68
      %s92 = sphi 0, %s94
      %s95 = sphi 0, %s92
      %s96 = sphi 0, %s95
      %s112 = sphi 0, %s96
      %s120 = sphi 0, %s122
      %s123 = sphi 0, %s120
      %s124 = sphi 0, %s123
      %s140 = sphi 0, %s124
    $region4: #{linear_add.1} parent=1 // loop_header_branch
      %19 = sbr.rel (%p17) target = $region8
    $region5: #{linear_add.1} parent=1 // loop_body
      %s21 = ssub.s32 %s16, 1
      %s22 = ssub.s32 %s16, 2
      %s29 = sadd.s32 1, %s24
      %p30 = scmp.ge.s32.totalorder %s29, 4
      %s31 = scalar_select %p30, 0, %s29
      %s32 = sadd.s32 1, %s23
      %s33 = scalar_select %p30, %s32, %s23
      %p34 = scmp.ge.s32.totalorder %s33, 1
      %s35 = scalar_select %p34, 0, %s33
      %s36 = ssub.s32 %s23, %s35
      %p37 = scmp.eq.s32.totalorder %s36, 0
      %s39 = sadd.s32 %s38, 1
      %s40 = scalar_select %p37, %s38, %s39
      %p43 = pneg %p37
      %p44 = scmp.eq.s32.totalorder %s16, 3
      %p45 = por %p43, %p44
      %p46 = scmp.ne.s32.totalorder %s38, %s41
      %p47 = scmp.eq.s32.totalorder %s16, 0
      %p48 = por %p46, %p47
      %p49 = scmp.ne.s32.totalorder %s38, %s41
      %p50 = scmp.eq.s32.totalorder %s21, 3
      %p51 = por %p49, %p50
      %p52 = scmp.ne.s32.totalorder %s41, %s42
      %p53 = scmp.eq.s32.totalorder %s21, 0
      %p54 = por %p52, %p53
      %p55 = scmp.ne.s32.totalorder %s41, %s42
      %p56 = scmp.eq.s32.totalorder %s22, 3
      %p57 = por %p55, %p56
      %p59 = scmp.ne.s32.totalorder %s42, %s58
      %p60 = scmp.eq.s32.totalorder %s22, 0
      %p61 = por %p59, %p60
      %s62 = ssub.s32 %s24, %s31
      %p63 = scmp.eq.s32.totalorder %s62, 0
      %s65 = sadd.s32 %s64, 1
      %s66 = scalar_select %p63, %s64, %s65
      %p69 = pneg %p63
      %p70 = scmp.eq.s32.totalorder %s16, 3
      %p71 = por %p69, %p70
      %p72 = scmp.ne.s32.totalorder %s64, %s67
      %p73 = scmp.eq.s32.totalorder %s16, 0
      %p74 = por %p72, %p73
      %p75 = scmp.ne.s32.totalorder %s64, %s67
      %p76 = scmp.eq.s32.totalorder %s21, 3
      %p77 = por %p75, %p76
      %p78 = scmp.ne.s32.totalorder %s67, %s68
      %p79 = scmp.eq.s32.totalorder %s21, 0
      %p80 = por %p78, %p79
      %p81 = scmp.ne.s32.totalorder %s67, %s68
      %p82 = scmp.eq.s32.totalorder %s22, 3
      %p83 = por %p81, %p82
      %p85 = scmp.ne.s32.totalorder %s68, %s84
      %p86 = scmp.eq.s32.totalorder %s22, 0
      %p87 = por %p85, %p86
      %s88 = ssub.s32 %s23, %s35
      %s89 = ssub.s32 %s24, %s31
      %s90 = sor.u32 %s88, %s89
      %p91 = scmp.eq.s32.totalorder %s90, 0
      %s93 = sadd.s32 %s92, 1
      %s94 = scalar_select %p91, %s92, %s93
      %p97 = pneg %p91
      %p98 = scmp.eq.s32.totalorder %s16, 3
      %p99 = por %p97, %p98
      %p100 = scmp.ne.s32.totalorder %s92, %s95
      %p101 = scmp.eq.s32.totalorder %s16, 0
      %p102 = por %p100, %p101
      %p103 = scmp.ne.s32.totalorder %s92, %s95
      %p104 = scmp.eq.s32.totalorder %s21, 3
      %p105 = por %p103, %p104
      %p106 = scmp.ne.s32.totalorder %s95, %s96
      %p107 = scmp.eq.s32.totalorder %s21, 0
      %p108 = por %p106, %p107
      %p109 = scmp.ne.s32.totalorder %s95, %s96
      %p110 = scmp.eq.s32.totalorder %s22, 3
      %p111 = por %p109, %p110
      %p113 = scmp.ne.s32.totalorder %s96, %s112
      %p114 = scmp.eq.s32.totalorder %s22, 0
      %p115 = por %p113, %p114
      %s116 = ssub.s32 %s23, %s35
      %s117 = ssub.s32 %s24, %s31
      %s118 = sor.u32 %s116, %s117
      %p119 = scmp.eq.s32.totalorder %s118, 0
      %s121 = sadd.s32 %s120, 1
      %s122 = scalar_select %p119, %s120, %s121
      %p125 = pneg %p119
      %p126 = scmp.eq.s32.totalorder %s16, 3
      %p127 = por %p125, %p126
      %p128 = scmp.ne.s32.totalorder %s120, %s123
      %p129 = scmp.eq.s32.totalorder %s16, 0
      %p130 = por %p128, %p129
      %p131 = scmp.ne.s32.totalorder %s120, %s123
      %p132 = scmp.eq.s32.totalorder %s21, 3
      %p133 = por %p131, %p132
      %p134 = scmp.ne.s32.totalorder %s123, %s124
      %p135 = scmp.eq.s32.totalorder %s21, 0
      %p136 = por %p134, %p135
      %p137 = scmp.ne.s32.totalorder %s123, %s124
      %p138 = scmp.eq.s32.totalorder %s22, 3
      %p139 = por %p137, %p138
      %p141 = scmp.ne.s32.totalorder %s124, %s140
      %p142 = scmp.eq.s32.totalorder %s22, 0
      %p143 = por %p141, %p142
      %p144 = scmp.le.s32.totalorder 1, %s16
      %p145 = scmp.lt.s32.totalorder %s16, 5
      %p146 = pnand %p144, %p145
      %p147 = pneg %p146
      // Predicated region
      $region9: #{linear_add.1} parent=5 // pred_check
        _
      $region10: #{linear_add.1} parent=5 // pred_check_branch
        %149 = sbr.rel (%p146) target = $region12
      $region11: #{linear_add.1} parent=5 // pred_region
        %s150 = ssub.s32 %s16, 1
        // Predicated region
        $region13: #{linear_add.1} parent=11 // pred_check
          %p151 = pneg %p54
        $region14: #{linear_add.1} parent=11 // pred_check_branch
          %153 = sbr.rel (%p151) target = $region16
        $region15: #{linear_add.1} parent=11 // pred_region
          %155 = vsyncadd [#allocation3], 0
          %s156 = smul.addr %s25, 32
          %s157 = smul.addr %s156, 8
          %s158 = scalar_lea.hbm %s0, %s157
          %s160 = sshll.u32 %s158, 4
          %s161 = int_to_ptr.hbm [resolvable:$true] %s160
          %s162 = sshll.u32 [#allocation2], 4
          %s163 = int_to_ptr.vmem [resolvable:$true] %s162
          %165 = dma.hbm_to_vmem [thread:$0]  %s161, 4096, %s163, [#allocation3]
        $region16: #{linear_add.1} parent=11 // pred_fallthru
          _
      $region12: #{linear_add.1} parent=5 // pred_fallthru
        _
      %p166 = scmp.lt.s32.totalorder %s16, 4
      // Predicated region
      $region17: #{linear_add.1} parent=5 // pred_check
        %p167 = pneg %p166
      $region18: #{linear_add.1} parent=5 // pred_check_branch
        %169 = sbr.rel (%p167) target = $region20
      $region19: #{linear_add.1} parent=5 // pred_region
        // Predicated region
        $region21: #{linear_add.1} parent=19 // pred_check
          %p170 = pneg %p74
        $region22: #{linear_add.1} parent=19 // pred_check_branch
          %172 = sbr.rel (%p170) target = $region24
        $region23: #{linear_add.1} parent=19 // pred_region
          %s173 = sand.u32 %s16, 1
          %s174 = scalar_lea.sflag [#allocation6], %s173
          %s175 = sand.u32 %s64, 1
          %s176 = smul.addr %s175, 32768
          %s177 = scalar_lea.vmem [#allocation5], %s176
          %s178 = smul.u32 8, %s24
          %180 = vsyncadd %s174, 0
          %s181 = smul.addr %s178, 8
          %s182 = scalar_lea.hbm %s1, %s181
          %s183 = sshll.u32 %s182, 4
          %s184 = int_to_ptr.hbm [resolvable:$true] %s183
          %s185 = sshll.u32 %s177, 4
          %s186 = int_to_ptr.vmem [resolvable:$true] %s185
          %191 = dma.hbm_to_vmem [thread:$0]  %s184, 524288, %s186, %s174, 4096, 1024, 64
        $region24: #{linear_add.1} parent=19 // pred_fallthru
          _
        // Predicated region
        $region25: #{linear_add.1} parent=19 // pred_check
          %p192 = pneg %p102
        $region26: #{linear_add.1} parent=19 // pred_check_branch
          %194 = sbr.rel (%p192) target = $region28
        $region27: #{linear_add.1} parent=19 // pred_region
          %s195 = sand.u32 %s16, 1
          %s196 = scalar_lea.sflag [#allocation6], %s195
          %s197 = sand.u32 %s92, 1
          %s198 = smul.addr %s197, 64
          %s199 = scalar_lea.vmem [#allocation7], %s198
          %s200 = smul.u32 8, %s24
          %202 = vsyncadd %s196, 0
          %s203 = smul.addr %s23, 32
          %s204 = sadd.s32 %s200, %s203
          %s205 = smul.addr %s204, 8
          %s206 = scalar_lea.hbm %s2, %s205
          %s208 = sshll.u32 %s206, 4
          %s209 = int_to_ptr.hbm [resolvable:$true] %s208
          %s210 = sshll.u32 %s199, 4
          %s211 = int_to_ptr.vmem [resolvable:$true] %s210
          %213 = dma.hbm_to_vmem [thread:$0]  %s209, 1024, %s211, %s196
        $region28: #{linear_add.1} parent=19 // pred_fallthru
          _
      $region20: #{linear_add.1} parent=5 // pred_fallthru
        _
      %p214 = scmp.le.s32.totalorder 1, %s16
      %p215 = scmp.lt.s32.totalorder %s16, 5
      %p216 = pnand %p214, %p215
      %p217 = pneg %p216
      // Predicated region
      $region29: #{linear_add.1} parent=5 // pred_check
        _
      $region30: #{linear_add.1} parent=5 // pred_check_branch
        %219 = sbr.rel (%p216) target = $region32
      $region31: #{linear_add.1} parent=5 // pred_region
        %s220 = ssub.s32 %s16, 1
        // Predicated region
        $region33: #{linear_add.1} parent=31 // pred_check
          %p221 = pneg %p54
        $region34: #{linear_add.1} parent=31 // pred_check_branch
          %223 = sbr.rel (%p221) target = $region36
        $region35: #{linear_add.1} parent=31 // pred_region
          %225 = dma.done [#allocation3], 4096
        $region36: #{linear_add.1} parent=31 // pred_fallthru
          _
        %s226 = sand.u32 %s21, 1
        %s227 = scalar_lea.sflag [#allocation6], %s226
        %s228 = sand.u32 %s67, 1
        %s229 = smul.addr %s228, 32768
        %s230 = scalar_lea.vmem [#allocation5], %s229
        // Predicated region
        $region37: #{linear_add.1} parent=31 // pred_check
          %p231 = pneg %p80
        $region38: #{linear_add.1} parent=31 // pred_check_branch
          %233 = sbr.rel (%p231) target = $region40
        $region39: #{linear_add.1} parent=31 // pred_region
          %235 = dma.done %s227, 524288
        $region40: #{linear_add.1} parent=31 // pred_fallthru
          _
        %s236 = sand.u32 %s21, 1
        %s237 = scalar_lea.sflag [#allocation6], %s236
        %s238 = sand.u32 %s95, 1
        %s239 = smul.addr %s238, 64
        %s240 = scalar_lea.vmem [#allocation7], %s239
        // Predicated region
        $region41: #{linear_add.1} parent=31 // pred_check
          %p241 = pneg %p108
        $region42: #{linear_add.1} parent=31 // pred_check_branch
          %243 = sbr.rel (%p241) target = $region44
        $region43: #{linear_add.1} parent=31 // pred_region
          %245 = dma.done %s237, 1024
        $region44: #{linear_add.1} parent=31 // pred_fallthru
          _
        %p246 = pneg %p54
        %p247 = pneg %p51
        %s248 = sand.u32 %s21, 1
        %s249 = scalar_lea.sflag [#allocation6], %s248
        %s250 = sand.u32 %s67, 1
        %s251 = smul.addr %s250, 32768
        %s252 = scalar_lea.vmem [#allocation5], %s251
        %p253 = pneg %p80
        %p254 = pneg %p77
        %s255 = sand.u32 %s21, 1
        %s256 = scalar_lea.sflag [#allocation6], %s255
        %s257 = sand.u32 %s95, 1
        %s258 = smul.addr %s257, 64
        %s259 = scalar_lea.vmem [#allocation7], %s258
        %p260 = pneg %p108
        %p261 = pneg %p105
        %p262 = pneg %p136
        %p263 = pneg %p133
        %s264 = sand.u32 %s123, 1
        %s265 = scalar_lea.sflag [#allocation4], %s264
        %s266 = sand.u32 %s123, 1
        %s267 = smul.addr %s266, 64
        %s268 = scalar_lea.vmem [#allocation8], %s267
        %s269 = smul.u32 8, %s26
        %s270 = smul.u32 8, %s26
        %s271 = smul.u32 8, %s26
        %v272 = vld [vmem:[#allocation2] sm:$0xff]
        %v273 = vld [vmem:[#allocation2 + $0x8] sm:$0xff]
        %v274 = vld [vmem:[#allocation2 + $0x10] sm:$0xff]
        %v275 = vld [vmem:[#allocation2 + $0x18] sm:$0xff]
        %v276 = vld [vmem:[#allocation2 + $0x20] sm:$0xff]
        %v277 = vld [vmem:[#allocation2 + $0x28] sm:$0xff]
        %v278 = vld [vmem:[#allocation2 + $0x30] sm:$0xff]
        %v279 = vld [vmem:[#allocation2 + $0x38] sm:$0xff]
        %v280 = vld [vmem:[#allocation2 + $0x40] sm:$0xff]
        %v281 = vld [vmem:[#allocation2 + $0x48] sm:$0xff]
        %v282 = vld [vmem:[#allocation2 + $0x50] sm:$0xff]
        %v283 = vld [vmem:[#allocation2 + $0x58] sm:$0xff]
        %v284 = vld [vmem:[#allocation2 + $0x60] sm:$0xff]
        %v285 = vld [vmem:[#allocation2 + $0x68] sm:$0xff]
        %v286 = vld [vmem:[#allocation2 + $0x70] sm:$0xff]
        %v287 = vld [vmem:[#allocation2 + $0x78] sm:$0xff]
        %v288 = vld [vmem:[#allocation2 + $0x80] sm:$0xff]
        %v289 = vld [vmem:[#allocation2 + $0x88] sm:$0xff]
        %v290 = vld [vmem:[#allocation2 + $0x90] sm:$0xff]
        %v291 = vld [vmem:[#allocation2 + $0x98] sm:$0xff]
        %v292 = vld [vmem:[#allocation2 + $0xa0] sm:$0xff]
        %v293 = vld [vmem:[#allocation2 + $0xa8] sm:$0xff]
        %v294 = vld [vmem:[#allocation2 + $0xb0] sm:$0xff]
        %v295 = vld [vmem:[#allocation2 + $0xb8] sm:$0xff]
        %v296 = vld [vmem:[#allocation2 + $0xc0] sm:$0xff]
        %v297 = vld [vmem:[#allocation2 + $0xc8] sm:$0xff]
        %v298 = vld [vmem:[#allocation2 + $0xd0] sm:$0xff]
        %v299 = vld [vmem:[#allocation2 + $0xd8] sm:$0xff]
        %v300 = vld [vmem:[#allocation2 + $0xe0] sm:$0xff]
        %v301 = vld [vmem:[#allocation2 + $0xe8] sm:$0xff]
        %v302 = vld [vmem:[#allocation2 + $0xf0] sm:$0xff]
        %v303 = vld [vmem:[#allocation2 + $0xf8] sm:$0xff]
        %v304 = vld [vmem:[%s230] sm:$0xff]
        %v305 = vld [vmem:[%s230 + $0x8] sm:$0xff]
        %v306 = vld [vmem:[%s230 + $0x10] sm:$0xff]
        %v307 = vld [vmem:[%s230 + $0x18] sm:$0xff]
        %v308 = vld [vmem:[%s230 + $0x20] sm:$0xff]
        %v309 = vld [vmem:[%s230 + $0x28] sm:$0xff]
        %v310 = vld [vmem:[%s230 + $0x30] sm:$0xff]
        %v311 = vld [vmem:[%s230 + $0x38] sm:$0xff]
        %v312 = vld [vmem:[%s230 + $0x40] sm:$0xff]
        %v313 = vld [vmem:[%s230 + $0x48] sm:$0xff]
        %v314 = vld [vmem:[%s230 + $0x50] sm:$0xff]
        %v315 = vld [vmem:[%s230 + $0x58] sm:$0xff]
        %v316 = vld [vmem:[%s230 + $0x60] sm:$0xff]
        %v317 = vld [vmem:[%s230 + $0x68] sm:$0xff]
        %v318 = vld [vmem:[%s230 + $0x70] sm:$0xff]
        %v319 = vld [vmem:[%s230 + $0x78] sm:$0xff]
        %v320 = vld [vmem:[%s230 + $0x80] sm:$0xff]
        %v321 = vld [vmem:[%s230 + $0x88] sm:$0xff]
        %v322 = vld [vmem:[%s230 + $0x90] sm:$0xff]
        %v323 = vld [vmem:[%s230 + $0x98] sm:$0xff]
        %v324 = vld [vmem:[%s230 + $0xa0] sm:$0xff]
        %v325 = vld [vmem:[%s230 + $0xa8] sm:$0xff]
        %v326 = vld [vmem:[%s230 + $0xb0] sm:$0xff]
        %v327 = vld [vmem:[%s230 + $0xb8] sm:$0xff]
        %v328 = vld [vmem:[%s230 + $0xc0] sm:$0xff]
        %v329 = vld [vmem:[%s230 + $0xc8] sm:$0xff]
        %v330 = vld [vmem:[%s230 + $0xd0] sm:$0xff]
        %v331 = vld [vmem:[%s230 + $0xd8] sm:$0xff]
        %v332 = vld [vmem:[%s230 + $0xe0] sm:$0xff]
        %v333 = vld [vmem:[%s230 + $0xe8] sm:$0xff]
        %v334 = vld [vmem:[%s230 + $0xf0] sm:$0xff]
        %v335 = vld [vmem:[%s230 + $0xf8] sm:$0xff]
        %v336 = vld [vmem:[%s230 + $0x100] sm:$0xff]
        %v337 = vld [vmem:[%s230 + $0x108] sm:$0xff]
        %v338 = vld [vmem:[%s230 + $0x110] sm:$0xff]
        %v339 = vld [vmem:[%s230 + $0x118] sm:$0xff]
        %v340 = vld [vmem:[%s230 + $0x120] sm:$0xff]
        %v341 = vld [vmem:[%s230 + $0x128] sm:$0xff]
        %v342 = vld [vmem:[%s230 + $0x130] sm:$0xff]
        %v343 = vld [vmem:[%s230 + $0x138] sm:$0xff]
        %v344 = vld [vmem:[%s230 + $0x140] sm:$0xff]
        %v345 = vld [vmem:[%s230 + $0x148] sm:$0xff]
        %v346 = vld [vmem:[%s230 + $0x150] sm:$0xff]
        %v347 = vld [vmem:[%s230 + $0x158] sm:$0xff]
        %v348 = vld [vmem:[%s230 + $0x160] sm:$0xff]
        %v349 = vld [vmem:[%s230 + $0x168] sm:$0xff]
        %v350 = vld [vmem:[%s230 + $0x170] sm:$0xff]
        %v351 = vld [vmem:[%s230 + $0x178] sm:$0xff]
        %v352 = vld [vmem:[%s230 + $0x180] sm:$0xff]
        %v353 = vld [vmem:[%s230 + $0x188] sm:$0xff]
        %v354 = vld [vmem:[%s230 + $0x190] sm:$0xff]
        %v355 = vld [vmem:[%s230 + $0x198] sm:$0xff]
        %v356 = vld [vmem:[%s230 + $0x1a0] sm:$0xff]
        %v357 = vld [vmem:[%s230 + $0x1a8] sm:$0xff]
        %v358 = vld [vmem:[%s230 + $0x1b0] sm:$0xff]
        %v359 = vld [vmem:[%s230 + $0x1b8] sm:$0xff]
        %v360 = vld [vmem:[%s230 + $0x1c0] sm:$0xff]
        %v361 = vld [vmem:[%s230 + $0x1c8] sm:$0xff]
        %v362 = vld [vmem:[%s230 + $0x1d0] sm:$0xff]
        %v363 = vld [vmem:[%s230 + $0x1d8] sm:$0xff]
        %v364 = vld [vmem:[%s230 + $0x1e0] sm:$0xff]
        %v365 = vld [vmem:[%s230 + $0x1e8] sm:$0xff]
        %v366 = vld [vmem:[%s230 + $0x1f0] sm:$0xff]
        %v367 = vld [vmem:[%s230 + $0x1f8] sm:$0xff]
        %v368 = vld [vmem:[%s230 + $0x200] sm:$0xff]
        %v369 = vld [vmem:[%s230 + $0x208] sm:$0xff]
        %v370 = vld [vmem:[%s230 + $0x210] sm:$0xff]
        %v371 = vld [vmem:[%s230 + $0x218] sm:$0xff]
        %v372 = vld [vmem:[%s230 + $0x220] sm:$0xff]
        %v373 = vld [vmem:[%s230 + $0x228] sm:$0xff]
        %v374 = vld [vmem:[%s230 + $0x230] sm:$0xff]
        %v375 = vld [vmem:[%s230 + $0x238] sm:$0xff]
        %v376 = vld [vmem:[%s230 + $0x240] sm:$0xff]
        %v377 = vld [vmem:[%s230 + $0x248] sm:$0xff]
        %v378 = vld [vmem:[%s230 + $0x250] sm:$0xff]
        %v379 = vld [vmem:[%s230 + $0x258] sm:$0xff]
        %v380 = vld [vmem:[%s230 + $0x260] sm:$0xff]
        %v381 = vld [vmem:[%s230 + $0x268] sm:$0xff]
        %v382 = vld [vmem:[%s230 + $0x270] sm:$0xff]
        %v383 = vld [vmem:[%s230 + $0x278] sm:$0xff]
        %v384 = vld [vmem:[%s230 + $0x280] sm:$0xff]
        %v385 = vld [vmem:[%s230 + $0x288] sm:$0xff]
        %v386 = vld [vmem:[%s230 + $0x290] sm:$0xff]
        %v387 = vld [vmem:[%s230 + $0x298] sm:$0xff]
        %v388 = vld [vmem:[%s230 + $0x2a0] sm:$0xff]
        %v389 = vld [vmem:[%s230 + $0x2a8] sm:$0xff]
        %v390 = vld [vmem:[%s230 + $0x2b0] sm:$0xff]
        %v391 = vld [vmem:[%s230 + $0x2b8] sm:$0xff]
        %v392 = vld [vmem:[%s230 + $0x2c0] sm:$0xff]
        %v393 = vld [vmem:[%s230 + $0x2c8] sm:$0xff]
        %v394 = vld [vmem:[%s230 + $0x2d0] sm:$0xff]
        %v395 = vld [vmem:[%s230 + $0x2d8] sm:$0xff]
        %v396 = vld [vmem:[%s230 + $0x2e0] sm:$0xff]
        %v397 = vld [vmem:[%s230 + $0x2e8] sm:$0xff]
        %v398 = vld [vmem:[%s230 + $0x2f0] sm:$0xff]
        %v399 = vld [vmem:[%s230 + $0x2f8] sm:$0xff]
        %v400 = vld [vmem:[%s230 + $0x300] sm:$0xff]
        %v401 = vld [vmem:[%s230 + $0x308] sm:$0xff]
        %v402 = vld [vmem:[%s230 + $0x310] sm:$0xff]
        %v403 = vld [vmem:[%s230 + $0x318] sm:$0xff]
        %v404 = vld [vmem:[%s230 + $0x320] sm:$0xff]
        %v405 = vld [vmem:[%s230 + $0x328] sm:$0xff]
        %v406 = vld [vmem:[%s230 + $0x330] sm:$0xff]
        %v407 = vld [vmem:[%s230 + $0x338] sm:$0xff]
        %v408 = vld [vmem:[%s230 + $0x340] sm:$0xff]
        %v409 = vld [vmem:[%s230 + $0x348] sm:$0xff]
        %v410 = vld [vmem:[%s230 + $0x350] sm:$0xff]
        %v411 = vld [vmem:[%s230 + $0x358] sm:$0xff]
        %v412 = vld [vmem:[%s230 + $0x360] sm:$0xff]
        %v413 = vld [vmem:[%s230 + $0x368] sm:$0xff]
        %v414 = vld [vmem:[%s230 + $0x370] sm:$0xff]
        %v415 = vld [vmem:[%s230 + $0x378] sm:$0xff]
        %v416 = vld [vmem:[%s230 + $0x380] sm:$0xff]
        %v417 = vld [vmem:[%s230 + $0x388] sm:$0xff]
        %v418 = vld [vmem:[%s230 + $0x390] sm:$0xff]
        %v419 = vld [vmem:[%s230 + $0x398] sm:$0xff]
        %v420 = vld [vmem:[%s230 + $0x3a0] sm:$0xff]
        %v421 = vld [vmem:[%s230 + $0x3a8] sm:$0xff]
        %v422 = vld [vmem:[%s230 + $0x3b0] sm:$0xff]
        %v423 = vld [vmem:[%s230 + $0x3b8] sm:$0xff]
        %v424 = vld [vmem:[%s230 + $0x3c0] sm:$0xff]
        %v425 = vld [vmem:[%s230 + $0x3c8] sm:$0xff]
        %v426 = vld [vmem:[%s230 + $0x3d0] sm:$0xff]
        %v427 = vld [vmem:[%s230 + $0x3d8] sm:$0xff]
        %v428 = vld [vmem:[%s230 + $0x3e0] sm:$0xff]
        %v429 = vld [vmem:[%s230 + $0x3e8] sm:$0xff]
        %v430 = vld [vmem:[%s230 + $0x3f0] sm:$0xff]
        %v431 = vld [vmem:[%s230 + $0x3f8] sm:$0xff]
        %v432 = vld [vmem:[%s230 + $0x400] sm:$0xff]
        %v433 = vld [vmem:[%s230 + $0x408] sm:$0xff]
        %v434 = vld [vmem:[%s230 + $0x410] sm:$0xff]
        %v435 = vld [vmem:[%s230 + $0x418] sm:$0xff]
        %v436 = vld [vmem:[%s230 + $0x420] sm:$0xff]
        %v437 = vld [vmem:[%s230 + $0x428] sm:$0xff]
        %v438 = vld [vmem:[%s230 + $0x430] sm:$0xff]
        %v439 = vld [vmem:[%s230 + $0x438] sm:$0xff]
        %v440 = vld [vmem:[%s230 + $0x440] sm:$0xff]
        %v441 = vld [vmem:[%s230 + $0x448] sm:$0xff]
        %v442 = vld [vmem:[%s230 + $0x450] sm:$0xff]
        %v443 = vld [vmem:[%s230 + $0x458] sm:$0xff]
        %v444 = vld [vmem:[%s230 + $0x460] sm:$0xff]
        %v445 = vld [vmem:[%s230 + $0x468] sm:$0xff]
        %v446 = vld [vmem:[%s230 + $0x470] sm:$0xff]
        %v447 = vld [vmem:[%s230 + $0x478] sm:$0xff]
        %v448 = vld [vmem:[%s230 + $0x480] sm:$0xff]
        %v449 = vld [vmem:[%s230 + $0x488] sm:$0xff]
        %v450 = vld [vmem:[%s230 + $0x490] sm:$0xff]
        %v451 = vld [vmem:[%s230 + $0x498] sm:$0xff]
        %v452 = vld [vmem:[%s230 + $0x4a0] sm:$0xff]
        %v453 = vld [vmem:[%s230 + $0x4a8] sm:$0xff]
        %v454 = vld [vmem:[%s230 + $0x4b0] sm:$0xff]
        %v455 = vld [vmem:[%s230 + $0x4b8] sm:$0xff]
        %v456 = vld [vmem:[%s230 + $0x4c0] sm:$0xff]
        %v457 = vld [vmem:[%s230 + $0x4c8] sm:$0xff]
        %v458 = vld [vmem:[%s230 + $0x4d0] sm:$0xff]
        %v459 = vld [vmem:[%s230 + $0x4d8] sm:$0xff]
        %v460 = vld [vmem:[%s230 + $0x4e0] sm:$0xff]
        %v461 = vld [vmem:[%s230 + $0x4e8] sm:$0xff]
        %v462 = vld [vmem:[%s230 + $0x4f0] sm:$0xff]
        %v463 = vld [vmem:[%s230 + $0x4f8] sm:$0xff]
        %v464 = vld [vmem:[%s230 + $0x500] sm:$0xff]
        %v465 = vld [vmem:[%s230 + $0x508] sm:$0xff]
        %v466 = vld [vmem:[%s230 + $0x510] sm:$0xff]
        %v467 = vld [vmem:[%s230 + $0x518] sm:$0xff]
        %v468 = vld [vmem:[%s230 + $0x520] sm:$0xff]
        %v469 = vld [vmem:[%s230 + $0x528] sm:$0xff]
        %v470 = vld [vmem:[%s230 + $0x530] sm:$0xff]
        %v471 = vld [vmem:[%s230 + $0x538] sm:$0xff]
        %v472 = vld [vmem:[%s230 + $0x540] sm:$0xff]
        %v473 = vld [vmem:[%s230 + $0x548] sm:$0xff]
        %v474 = vld [vmem:[%s230 + $0x550] sm:$0xff]
        %v475 = vld [vmem:[%s230 + $0x558] sm:$0xff]
        %v476 = vld [vmem:[%s230 + $0x560] sm:$0xff]
        %v477 = vld [vmem:[%s230 + $0x568] sm:$0xff]
        %v478 = vld [vmem:[%s230 + $0x570] sm:$0xff]
        %v479 = vld [vmem:[%s230 + $0x578] sm:$0xff]
        %v480 = vld [vmem:[%s230 + $0x580] sm:$0xff]
        %v481 = vld [vmem:[%s230 + $0x588] sm:$0xff]
        %v482 = vld [vmem:[%s230 + $0x590] sm:$0xff]
        %v483 = vld [vmem:[%s230 + $0x598] sm:$0xff]
        %v484 = vld [vmem:[%s230 + $0x5a0] sm:$0xff]
        %v485 = vld [vmem:[%s230 + $0x5a8] sm:$0xff]
        %v486 = vld [vmem:[%s230 + $0x5b0] sm:$0xff]
        %v487 = vld [vmem:[%s230 + $0x5b8] sm:$0xff]
        %v488 = vld [vmem:[%s230 + $0x5c0] sm:$0xff]
        %v489 = vld [vmem:[%s230 + $0x5c8] sm:$0xff]
        %v490 = vld [vmem:[%s230 + $0x5d0] sm:$0xff]
        %v491 = vld [vmem:[%s230 + $0x5d8] sm:$0xff]
        %v492 = vld [vmem:[%s230 + $0x5e0] sm:$0xff]
        %v493 = vld [vmem:[%s230 + $0x5e8] sm:$0xff]
        %v494 = vld [vmem:[%s230 + $0x5f0] sm:$0xff]
        %v495 = vld [vmem:[%s230 + $0x5f8] sm:$0xff]
        %v496 = vld [vmem:[%s230 + $0x600] sm:$0xff]
        %v497 = vld [vmem:[%s230 + $0x608] sm:$0xff]
        %v498 = vld [vmem:[%s230 + $0x610] sm:$0xff]
        %v499 = vld [vmem:[%s230 + $0x618] sm:$0xff]
        %v500 = vld [vmem:[%s230 + $0x620] sm:$0xff]
        %v501 = vld [vmem:[%s230 + $0x628] sm:$0xff]
        %v502 = vld [vmem:[%s230 + $0x630] sm:$0xff]
        %v503 = vld [vmem:[%s230 + $0x638] sm:$0xff]
        %v504 = vld [vmem:[%s230 + $0x640] sm:$0xff]
        %v505 = vld [vmem:[%s230 + $0x648] sm:$0xff]
        %v506 = vld [vmem:[%s230 + $0x650] sm:$0xff]
        %v507 = vld [vmem:[%s230 + $0x658] sm:$0xff]
        %v508 = vld [vmem:[%s230 + $0x660] sm:$0xff]
        %v509 = vld [vmem:[%s230 + $0x668] sm:$0xff]
        %v510 = vld [vmem:[%s230 + $0x670] sm:$0xff]
        %v511 = vld [vmem:[%s230 + $0x678] sm:$0xff]
        %v512 = vld [vmem:[%s230 + $0x680] sm:$0xff]
        %v513 = vld [vmem:[%s230 + $0x688] sm:$0xff]
        %v514 = vld [vmem:[%s230 + $0x690] sm:$0xff]
        %v515 = vld [vmem:[%s230 + $0x698] sm:$0xff]
        %v516 = vld [vmem:[%s230 + $0x6a0] sm:$0xff]
        %v517 = vld [vmem:[%s230 + $0x6a8] sm:$0xff]
        %v518 = vld [vmem:[%s230 + $0x6b0] sm:$0xff]
        %v519 = vld [vmem:[%s230 + $0x6b8] sm:$0xff]
        %v520 = vld [vmem:[%s230 + $0x6c0] sm:$0xff]
        %v521 = vld [vmem:[%s230 + $0x6c8] sm:$0xff]
        %v522 = vld [vmem:[%s230 + $0x6d0] sm:$0xff]
        %v523 = vld [vmem:[%s230 + $0x6d8] sm:$0xff]
        %v524 = vld [vmem:[%s230 + $0x6e0] sm:$0xff]
        %v525 = vld [vmem:[%s230 + $0x6e8] sm:$0xff]
        %v526 = vld [vmem:[%s230 + $0x6f0] sm:$0xff]
        %v527 = vld [vmem:[%s230 + $0x6f8] sm:$0xff]
        %v528 = vld [vmem:[%s230 + $0x700] sm:$0xff]
        %v529 = vld [vmem:[%s230 + $0x708] sm:$0xff]
        %v530 = vld [vmem:[%s230 + $0x710] sm:$0xff]
        %v531 = vld [vmem:[%s230 + $0x718] sm:$0xff]
        %v532 = vld [vmem:[%s230 + $0x720] sm:$0xff]
        %v533 = vld [vmem:[%s230 + $0x728] sm:$0xff]
        %v534 = vld [vmem:[%s230 + $0x730] sm:$0xff]
        %v535 = vld [vmem:[%s230 + $0x738] sm:$0xff]
        %v536 = vld [vmem:[%s230 + $0x740] sm:$0xff]
        %v537 = vld [vmem:[%s230 + $0x748] sm:$0xff]
        %v538 = vld [vmem:[%s230 + $0x750] sm:$0xff]
        %v539 = vld [vmem:[%s230 + $0x758] sm:$0xff]
        %v540 = vld [vmem:[%s230 + $0x760] sm:$0xff]
        %v541 = vld [vmem:[%s230 + $0x768] sm:$0xff]
        %v542 = vld [vmem:[%s230 + $0x770] sm:$0xff]
        %v543 = vld [vmem:[%s230 + $0x778] sm:$0xff]
        %v544 = vld [vmem:[%s230 + $0x780] sm:$0xff]
        %v545 = vld [vmem:[%s230 + $0x788] sm:$0xff]
        %v546 = vld [vmem:[%s230 + $0x790] sm:$0xff]
        %v547 = vld [vmem:[%s230 + $0x798] sm:$0xff]
        %v548 = vld [vmem:[%s230 + $0x7a0] sm:$0xff]
        %v549 = vld [vmem:[%s230 + $0x7a8] sm:$0xff]
        %v550 = vld [vmem:[%s230 + $0x7b0] sm:$0xff]
        %v551 = vld [vmem:[%s230 + $0x7b8] sm:$0xff]
        %v552 = vld [vmem:[%s230 + $0x7c0] sm:$0xff]
        %v553 = vld [vmem:[%s230 + $0x7c8] sm:$0xff]
        %v554 = vld [vmem:[%s230 + $0x7d0] sm:$0xff]
        %v555 = vld [vmem:[%s230 + $0x7d8] sm:$0xff]
        %v556 = vld [vmem:[%s230 + $0x7e0] sm:$0xff]
        %v557 = vld [vmem:[%s230 + $0x7e8] sm:$0xff]
        %v558 = vld [vmem:[%s230 + $0x7f0] sm:$0xff]
        %v559 = vld [vmem:[%s230 + $0x7f8] sm:$0xff]
        %v560 = vld [vmem:[%s230 + $0x800] sm:$0xff]
        %v561 = vld [vmem:[%s230 + $0x808] sm:$0xff]
        %v562 = vld [vmem:[%s230 + $0x810] sm:$0xff]
        %v563 = vld [vmem:[%s230 + $0x818] sm:$0xff]
        %v564 = vld [vmem:[%s230 + $0x820] sm:$0xff]
        %v565 = vld [vmem:[%s230 + $0x828] sm:$0xff]
        %v566 = vld [vmem:[%s230 + $0x830] sm:$0xff]
        %v567 = vld [vmem:[%s230 + $0x838] sm:$0xff]
        %v568 = vld [vmem:[%s230 + $0x840] sm:$0xff]
        %v569 = vld [vmem:[%s230 + $0x848] sm:$0xff]
        %v570 = vld [vmem:[%s230 + $0x850] sm:$0xff]
        %v571 = vld [vmem:[%s230 + $0x858] sm:$0xff]
        %v572 = vld [vmem:[%s230 + $0x860] sm:$0xff]
        %v573 = vld [vmem:[%s230 + $0x868] sm:$0xff]
        %v574 = vld [vmem:[%s230 + $0x870] sm:$0xff]
        %v575 = vld [vmem:[%s230 + $0x878] sm:$0xff]
        %v576 = vld [vmem:[%s230 + $0x880] sm:$0xff]
        %v577 = vld [vmem:[%s230 + $0x888] sm:$0xff]
        %v578 = vld [vmem:[%s230 + $0x890] sm:$0xff]
        %v579 = vld [vmem:[%s230 + $0x898] sm:$0xff]
        %v580 = vld [vmem:[%s230 + $0x8a0] sm:$0xff]
        %v581 = vld [vmem:[%s230 + $0x8a8] sm:$0xff]
        %v582 = vld [vmem:[%s230 + $0x8b0] sm:$0xff]
        %v583 = vld [vmem:[%s230 + $0x8b8] sm:$0xff]
        %v584 = vld [vmem:[%s230 + $0x8c0] sm:$0xff]
        %v585 = vld [vmem:[%s230 + $0x8c8] sm:$0xff]
        %v586 = vld [vmem:[%s230 + $0x8d0] sm:$0xff]
        %v587 = vld [vmem:[%s230 + $0x8d8] sm:$0xff]
        %v588 = vld [vmem:[%s230 + $0x8e0] sm:$0xff]
        %v589 = vld [vmem:[%s230 + $0x8e8] sm:$0xff]
        %v590 = vld [vmem:[%s230 + $0x8f0] sm:$0xff]
        %v591 = vld [vmem:[%s230 + $0x8f8] sm:$0xff]
        %v592 = vld [vmem:[%s230 + $0x900] sm:$0xff]
        %v593 = vld [vmem:[%s230 + $0x908] sm:$0xff]
        %v594 = vld [vmem:[%s230 + $0x910] sm:$0xff]
        %v595 = vld [vmem:[%s230 + $0x918] sm:$0xff]
        %v596 = vld [vmem:[%s230 + $0x920] sm:$0xff]
        %v597 = vld [vmem:[%s230 + $0x928] sm:$0xff]
        %v598 = vld [vmem:[%s230 + $0x930] sm:$0xff]
        %v599 = vld [vmem:[%s230 + $0x938] sm:$0xff]
        %v600 = vld [vmem:[%s230 + $0x940] sm:$0xff]
        %v601 = vld [vmem:[%s230 + $0x948] sm:$0xff]
        %v602 = vld [vmem:[%s230 + $0x950] sm:$0xff]
        %v603 = vld [vmem:[%s230 + $0x958] sm:$0xff]
        %v604 = vld [vmem:[%s230 + $0x960] sm:$0xff]
        %v605 = vld [vmem:[%s230 + $0x968] sm:$0xff]
        %v606 = vld [vmem:[%s230 + $0x970] sm:$0xff]
        %v607 = vld [vmem:[%s230 + $0x978] sm:$0xff]
        %v608 = vld [vmem:[%s230 + $0x980] sm:$0xff]
        %v609 = vld [vmem:[%s230 + $0x988] sm:$0xff]
        %v610 = vld [vmem:[%s230 + $0x990] sm:$0xff]
        %v611 = vld [vmem:[%s230 + $0x998] sm:$0xff]
        %v612 = vld [vmem:[%s230 + $0x9a0] sm:$0xff]
        %v613 = vld [vmem:[%s230 + $0x9a8] sm:$0xff]
        %v614 = vld [vmem:[%s230 + $0x9b0] sm:$0xff]
        %v615 = vld [vmem:[%s230 + $0x9b8] sm:$0xff]
        %v616 = vld [vmem:[%s230 + $0x9c0] sm:$0xff]
        %v617 = vld [vmem:[%s230 + $0x9c8] sm:$0xff]
        %v618 = vld [vmem:[%s230 + $0x9d0] sm:$0xff]
        %v619 = vld [vmem:[%s230 + $0x9d8] sm:$0xff]
        %v620 = vld [vmem:[%s230 + $0x9e0] sm:$0xff]
        %v621 = vld [vmem:[%s230 + $0x9e8] sm:$0xff]
        %v622 = vld [vmem:[%s230 + $0x9f0] sm:$0xff]
        %v623 = vld [vmem:[%s230 + $0x9f8] sm:$0xff]
        %v624 = vld [vmem:[%s230 + $0xa00] sm:$0xff]
        %v625 = vld [vmem:[%s230 + $0xa08] sm:$0xff]
        %v626 = vld [vmem:[%s230 + $0xa10] sm:$0xff]
        %v627 = vld [vmem:[%s230 + $0xa18] sm:$0xff]
        %v628 = vld [vmem:[%s230 + $0xa20] sm:$0xff]
        %v629 = vld [vmem:[%s230 + $0xa28] sm:$0xff]
        %v630 = vld [vmem:[%s230 + $0xa30] sm:$0xff]
        %v631 = vld [vmem:[%s230 + $0xa38] sm:$0xff]
        %v632 = vld [vmem:[%s230 + $0xa40] sm:$0xff]
        %v633 = vld [vmem:[%s230 + $0xa48] sm:$0xff]
        %v634 = vld [vmem:[%s230 + $0xa50] sm:$0xff]
        %v635 = vld [vmem:[%s230 + $0xa58] sm:$0xff]
        %v636 = vld [vmem:[%s230 + $0xa60] sm:$0xff]
        %v637 = vld [vmem:[%s230 + $0xa68] sm:$0xff]
        %v638 = vld [vmem:[%s230 + $0xa70] sm:$0xff]
        %v639 = vld [vmem:[%s230 + $0xa78] sm:$0xff]
        %v640 = vld [vmem:[%s230 + $0xa80] sm:$0xff]
        %v641 = vld [vmem:[%s230 + $0xa88] sm:$0xff]
        %v642 = vld [vmem:[%s230 + $0xa90] sm:$0xff]
        %v643 = vld [vmem:[%s230 + $0xa98] sm:$0xff]
        %v644 = vld [vmem:[%s230 + $0xaa0] sm:$0xff]
        %v645 = vld [vmem:[%s230 + $0xaa8] sm:$0xff]
        %v646 = vld [vmem:[%s230 + $0xab0] sm:$0xff]
        %v647 = vld [vmem:[%s230 + $0xab8] sm:$0xff]
        %v648 = vld [vmem:[%s230 + $0xac0] sm:$0xff]
        %v649 = vld [vmem:[%s230 + $0xac8] sm:$0xff]
        %v650 = vld [vmem:[%s230 + $0xad0] sm:$0xff]
        %v651 = vld [vmem:[%s230 + $0xad8] sm:$0xff]
        %v652 = vld [vmem:[%s230 + $0xae0] sm:$0xff]
        %v653 = vld [vmem:[%s230 + $0xae8] sm:$0xff]
        %v654 = vld [vmem:[%s230 + $0xaf0] sm:$0xff]
        %v655 = vld [vmem:[%s230 + $0xaf8] sm:$0xff]
        %v656 = vld [vmem:[%s230 + $0xb00] sm:$0xff]
        %v657 = vld [vmem:[%s230 + $0xb08] sm:$0xff]
        %v658 = vld [vmem:[%s230 + $0xb10] sm:$0xff]
        %v659 = vld [vmem:[%s230 + $0xb18] sm:$0xff]
        %v660 = vld [vmem:[%s230 + $0xb20] sm:$0xff]
        %v661 = vld [vmem:[%s230 + $0xb28] sm:$0xff]
        %v662 = vld [vmem:[%s230 + $0xb30] sm:$0xff]
        %v663 = vld [vmem:[%s230 + $0xb38] sm:$0xff]
        %v664 = vld [vmem:[%s230 + $0xb40] sm:$0xff]
        %v665 = vld [vmem:[%s230 + $0xb48] sm:$0xff]
        %v666 = vld [vmem:[%s230 + $0xb50] sm:$0xff]
        %v667 = vld [vmem:[%s230 + $0xb58] sm:$0xff]
        %v668 = vld [vmem:[%s230 + $0xb60] sm:$0xff]
        %v669 = vld [vmem:[%s230 + $0xb68] sm:$0xff]
        %v670 = vld [vmem:[%s230 + $0xb70] sm:$0xff]
        %v671 = vld [vmem:[%s230 + $0xb78] sm:$0xff]
        %v672 = vld [vmem:[%s230 + $0xb80] sm:$0xff]
        %v673 = vld [vmem:[%s230 + $0xb88] sm:$0xff]
        %v674 = vld [vmem:[%s230 + $0xb90] sm:$0xff]
        %v675 = vld [vmem:[%s230 + $0xb98] sm:$0xff]
        %v676 = vld [vmem:[%s230 + $0xba0] sm:$0xff]
        %v677 = vld [vmem:[%s230 + $0xba8] sm:$0xff]
        %v678 = vld [vmem:[%s230 + $0xbb0] sm:$0xff]
        %v679 = vld [vmem:[%s230 + $0xbb8] sm:$0xff]
        %v680 = vld [vmem:[%s230 + $0xbc0] sm:$0xff]
        %v681 = vld [vmem:[%s230 + $0xbc8] sm:$0xff]
        %v682 = vld [vmem:[%s230 + $0xbd0] sm:$0xff]
        %v683 = vld [vmem:[%s230 + $0xbd8] sm:$0xff]
        %v684 = vld [vmem:[%s230 + $0xbe0] sm:$0xff]
        %v685 = vld [vmem:[%s230 + $0xbe8] sm:$0xff]
        %v686 = vld [vmem:[%s230 + $0xbf0] sm:$0xff]
        %v687 = vld [vmem:[%s230 + $0xbf8] sm:$0xff]
        %v688 = vld [vmem:[%s230 + $0xc00] sm:$0xff]
        %v689 = vld [vmem:[%s230 + $0xc08] sm:$0xff]
        %v690 = vld [vmem:[%s230 + $0xc10] sm:$0xff]
        %v691 = vld [vmem:[%s230 + $0xc18] sm:$0xff]
        %v692 = vld [vmem:[%s230 + $0xc20] sm:$0xff]
        %v693 = vld [vmem:[%s230 + $0xc28] sm:$0xff]
        %v694 = vld [vmem:[%s230 + $0xc30] sm:$0xff]
        %v695 = vld [vmem:[%s230 + $0xc38] sm:$0xff]
        %v696 = vld [vmem:[%s230 + $0xc40] sm:$0xff]
        %v697 = vld [vmem:[%s230 + $0xc48] sm:$0xff]
        %v698 = vld [vmem:[%s230 + $0xc50] sm:$0xff]
        %v699 = vld [vmem:[%s230 + $0xc58] sm:$0xff]
        %v700 = vld [vmem:[%s230 + $0xc60] sm:$0xff]
        %v701 = vld [vmem:[%s230 + $0xc68] sm:$0xff]
        %v702 = vld [vmem:[%s230 + $0xc70] sm:$0xff]
        %v703 = vld [vmem:[%s230 + $0xc78] sm:$0xff]
        %v704 = vld [vmem:[%s230 + $0xc80] sm:$0xff]
        %v705 = vld [vmem:[%s230 + $0xc88] sm:$0xff]
        %v706 = vld [vmem:[%s230 + $0xc90] sm:$0xff]
        %v707 = vld [vmem:[%s230 + $0xc98] sm:$0xff]
        %v708 = vld [vmem:[%s230 + $0xca0] sm:$0xff]
        %v709 = vld [vmem:[%s230 + $0xca8] sm:$0xff]
        %v710 = vld [vmem:[%s230 + $0xcb0] sm:$0xff]
        %v711 = vld [vmem:[%s230 + $0xcb8] sm:$0xff]
        %v712 = vld [vmem:[%s230 + $0xcc0] sm:$0xff]
        %v713 = vld [vmem:[%s230 + $0xcc8] sm:$0xff]
        %v714 = vld [vmem:[%s230 + $0xcd0] sm:$0xff]
        %v715 = vld [vmem:[%s230 + $0xcd8] sm:$0xff]
        %v716 = vld [vmem:[%s230 + $0xce0] sm:$0xff]
        %v717 = vld [vmem:[%s230 + $0xce8] sm:$0xff]
        %v718 = vld [vmem:[%s230 + $0xcf0] sm:$0xff]
        %v719 = vld [vmem:[%s230 + $0xcf8] sm:$0xff]
        %v720 = vld [vmem:[%s230 + $0xd00] sm:$0xff]
        %v721 = vld [vmem:[%s230 + $0xd08] sm:$0xff]
        %v722 = vld [vmem:[%s230 + $0xd10] sm:$0xff]
        %v723 = vld [vmem:[%s230 + $0xd18] sm:$0xff]
        %v724 = vld [vmem:[%s230 + $0xd20] sm:$0xff]
        %v725 = vld [vmem:[%s230 + $0xd28] sm:$0xff]
        %v726 = vld [vmem:[%s230 + $0xd30] sm:$0xff]
        %v727 = vld [vmem:[%s230 + $0xd38] sm:$0xff]
        %v728 = vld [vmem:[%s230 + $0xd40] sm:$0xff]
        %v729 = vld [vmem:[%s230 + $0xd48] sm:$0xff]
        %v730 = vld [vmem:[%s230 + $0xd50] sm:$0xff]
        %v731 = vld [vmem:[%s230 + $0xd58] sm:$0xff]
        %v732 = vld [vmem:[%s230 + $0xd60] sm:$0xff]
        %v733 = vld [vmem:[%s230 + $0xd68] sm:$0xff]
        %v734 = vld [vmem:[%s230 + $0xd70] sm:$0xff]
        %v735 = vld [vmem:[%s230 + $0xd78] sm:$0xff]
        %v736 = vld [vmem:[%s230 + $0xd80] sm:$0xff]
        %v737 = vld [vmem:[%s230 + $0xd88] sm:$0xff]
        %v738 = vld [vmem:[%s230 + $0xd90] sm:$0xff]
        %v739 = vld [vmem:[%s230 + $0xd98] sm:$0xff]
        %v740 = vld [vmem:[%s230 + $0xda0] sm:$0xff]
        %v741 = vld [vmem:[%s230 + $0xda8] sm:$0xff]
        %v742 = vld [vmem:[%s230 + $0xdb0] sm:$0xff]
        %v743 = vld [vmem:[%s230 + $0xdb8] sm:$0xff]
        %v744 = vld [vmem:[%s230 + $0xdc0] sm:$0xff]
        %v745 = vld [vmem:[%s230 + $0xdc8] sm:$0xff]
        %v746 = vld [vmem:[%s230 + $0xdd0] sm:$0xff]
        %v747 = vld [vmem:[%s230 + $0xdd8] sm:$0xff]
        %v748 = vld [vmem:[%s230 + $0xde0] sm:$0xff]
        %v749 = vld [vmem:[%s230 + $0xde8] sm:$0xff]
        %v750 = vld [vmem:[%s230 + $0xdf0] sm:$0xff]
        %v751 = vld [vmem:[%s230 + $0xdf8] sm:$0xff]
        %v752 = vld [vmem:[%s230 + $0xe00] sm:$0xff]
        %v753 = vld [vmem:[%s230 + $0xe08] sm:$0xff]
        %v754 = vld [vmem:[%s230 + $0xe10] sm:$0xff]
        %v755 = vld [vmem:[%s230 + $0xe18] sm:$0xff]
        %v756 = vld [vmem:[%s230 + $0xe20] sm:$0xff]
        %v757 = vld [vmem:[%s230 + $0xe28] sm:$0xff]
        %v758 = vld [vmem:[%s230 + $0xe30] sm:$0xff]
        %v759 = vld [vmem:[%s230 + $0xe38] sm:$0xff]
        %v760 = vld [vmem:[%s230 + $0xe40] sm:$0xff]
        %v761 = vld [vmem:[%s230 + $0xe48] sm:$0xff]
        %v762 = vld [vmem:[%s230 + $0xe50] sm:$0xff]
        %v763 = vld [vmem:[%s230 + $0xe58] sm:$0xff]
        %v764 = vld [vmem:[%s230 + $0xe60] sm:$0xff]
        %v765 = vld [vmem:[%s230 + $0xe68] sm:$0xff]
        %v766 = vld [vmem:[%s230 + $0xe70] sm:$0xff]
        %v767 = vld [vmem:[%s230 + $0xe78] sm:$0xff]
        %v768 = vld [vmem:[%s230 + $0xe80] sm:$0xff]
        %v769 = vld [vmem:[%s230 + $0xe88] sm:$0xff]
        %v770 = vld [vmem:[%s230 + $0xe90] sm:$0xff]
        %v771 = vld [vmem:[%s230 + $0xe98] sm:$0xff]
        %v772 = vld [vmem:[%s230 + $0xea0] sm:$0xff]
        %v773 = vld [vmem:[%s230 + $0xea8] sm:$0xff]
        %v774 = vld [vmem:[%s230 + $0xeb0] sm:$0xff]
        %v775 = vld [vmem:[%s230 + $0xeb8] sm:$0xff]
        %v776 = vld [vmem:[%s230 + $0xec0] sm:$0xff]
        %v777 = vld [vmem:[%s230 + $0xec8] sm:$0xff]
        %v778 = vld [vmem:[%s230 + $0xed0] sm:$0xff]
        %v779 = vld [vmem:[%s230 + $0xed8] sm:$0xff]
        %v780 = vld [vmem:[%s230 + $0xee0] sm:$0xff]
        %v781 = vld [vmem:[%s230 + $0xee8] sm:$0xff]
        %v782 = vld [vmem:[%s230 + $0xef0] sm:$0xff]
        %v783 = vld [vmem:[%s230 + $0xef8] sm:$0xff]
        %v784 = vld [vmem:[%s230 + $0xf00] sm:$0xff]
        %v785 = vld [vmem:[%s230 + $0xf08] sm:$0xff]
        %v786 = vld [vmem:[%s230 + $0xf10] sm:$0xff]
        %v787 = vld [vmem:[%s230 + $0xf18] sm:$0xff]
        %v788 = vld [vmem:[%s230 + $0xf20] sm:$0xff]
        %v789 = vld [vmem:[%s230 + $0xf28] sm:$0xff]
        %v790 = vld [vmem:[%s230 + $0xf30] sm:$0xff]
        %v791 = vld [vmem:[%s230 + $0xf38] sm:$0xff]
        %v792 = vld [vmem:[%s230 + $0xf40] sm:$0xff]
        %v793 = vld [vmem:[%s230 + $0xf48] sm:$0xff]
        %v794 = vld [vmem:[%s230 + $0xf50] sm:$0xff]
        %v795 = vld [vmem:[%s230 + $0xf58] sm:$0xff]
        %v796 = vld [vmem:[%s230 + $0xf60] sm:$0xff]
        %v797 = vld [vmem:[%s230 + $0xf68] sm:$0xff]
        %v798 = vld [vmem:[%s230 + $0xf70] sm:$0xff]
        %v799 = vld [vmem:[%s230 + $0xf78] sm:$0xff]
        %v800 = vld [vmem:[%s230 + $0xf80] sm:$0xff]
        %v801 = vld [vmem:[%s230 + $0xf88] sm:$0xff]
        %v802 = vld [vmem:[%s230 + $0xf90] sm:$0xff]
        %v803 = vld [vmem:[%s230 + $0xf98] sm:$0xff]
        %v804 = vld [vmem:[%s230 + $0xfa0] sm:$0xff]
        %v805 = vld [vmem:[%s230 + $0xfa8] sm:$0xff]
        %v806 = vld [vmem:[%s230 + $0xfb0] sm:$0xff]
        %v807 = vld [vmem:[%s230 + $0xfb8] sm:$0xff]
        %v808 = vld [vmem:[%s230 + $0xfc0] sm:$0xff]
        %v809 = vld [vmem:[%s230 + $0xfc8] sm:$0xff]
        %v810 = vld [vmem:[%s230 + $0xfd0] sm:$0xff]
        %v811 = vld [vmem:[%s230 + $0xfd8] sm:$0xff]
        %v812 = vld [vmem:[%s230 + $0xfe0] sm:$0xff]
        %v813 = vld [vmem:[%s230 + $0xfe8] sm:$0xff]
        %v814 = vld [vmem:[%s230 + $0xff0] sm:$0xff]
        %v815 = vld [vmem:[%s230 + $0xff8] sm:$0xff]
        %v816 = vld [vmem:[%s230 + $0x1000] sm:$0xff]
        %v817 = vld [vmem:[%s230 + $0x1008] sm:$0xff]
        %v818 = vld [vmem:[%s230 + $0x1010] sm:$0xff]
        %v819 = vld [vmem:[%s230 + $0x1018] sm:$0xff]
        %v820 = vld [vmem:[%s230 + $0x1020] sm:$0xff]
        %v821 = vld [vmem:[%s230 + $0x1028] sm:$0xff]
        %v822 = vld [vmem:[%s230 + $0x1030] sm:$0xff]
        %v823 = vld [vmem:[%s230 + $0x1038] sm:$0xff]
        %v824 = vld [vmem:[%s230 + $0x1040] sm:$0xff]
        %v825 = vld [vmem:[%s230 + $0x1048] sm:$0xff]
        %v826 = vld [vmem:[%s230 + $0x1050] sm:$0xff]
        %v827 = vld [vmem:[%s230 + $0x1058] sm:$0xff]
        %v828 = vld [vmem:[%s230 + $0x1060] sm:$0xff]
        %v829 = vld [vmem:[%s230 + $0x1068] sm:$0xff]
        %v830 = vld [vmem:[%s230 + $0x1070] sm:$0xff]
        %v831 = vld [vmem:[%s230 + $0x1078] sm:$0xff]
        %v832 = vld [vmem:[%s230 + $0x1080] sm:$0xff]
        %v833 = vld [vmem:[%s230 + $0x1088] sm:$0xff]
        %v834 = vld [vmem:[%s230 + $0x1090] sm:$0xff]
        %v835 = vld [vmem:[%s230 + $0x1098] sm:$0xff]
        %v836 = vld [vmem:[%s230 + $0x10a0] sm:$0xff]
        %v837 = vld [vmem:[%s230 + $0x10a8] sm:$0xff]
        %v838 = vld [vmem:[%s230 + $0x10b0] sm:$0xff]
        %v839 = vld [vmem:[%s230 + $0x10b8] sm:$0xff]
        %v840 = vld [vmem:[%s230 + $0x10c0] sm:$0xff]
        %v841 = vld [vmem:[%s230 + $0x10c8] sm:$0xff]
        %v842 = vld [vmem:[%s230 + $0x10d0] sm:$0xff]
        %v843 = vld [vmem:[%s230 + $0x10d8] sm:$0xff]
        %v844 = vld [vmem:[%s230 + $0x10e0] sm:$0xff]
        %v845 = vld [vmem:[%s230 + $0x10e8] sm:$0xff]
        %v846 = vld [vmem:[%s230 + $0x10f0] sm:$0xff]
        %v847 = vld [vmem:[%s230 + $0x10f8] sm:$0xff]
        %v848 = vld [vmem:[%s230 + $0x1100] sm:$0xff]
        %v849 = vld [vmem:[%s230 + $0x1108] sm:$0xff]
        %v850 = vld [vmem:[%s230 + $0x1110] sm:$0xff]
        %v851 = vld [vmem:[%s230 + $0x1118] sm:$0xff]
        %v852 = vld [vmem:[%s230 + $0x1120] sm:$0xff]
        %v853 = vld [vmem:[%s230 + $0x1128] sm:$0xff]
        %v854 = vld [vmem:[%s230 + $0x1130] sm:$0xff]
        %v855 = vld [vmem:[%s230 + $0x1138] sm:$0xff]
        %v856 = vld [vmem:[%s230 + $0x1140] sm:$0xff]
        %v857 = vld [vmem:[%s230 + $0x1148] sm:$0xff]
        %v858 = vld [vmem:[%s230 + $0x1150] sm:$0xff]
        %v859 = vld [vmem:[%s230 + $0x1158] sm:$0xff]
        %v860 = vld [vmem:[%s230 + $0x1160] sm:$0xff]
        %v861 = vld [vmem:[%s230 + $0x1168] sm:$0xff]
        %v862 = vld [vmem:[%s230 + $0x1170] sm:$0xff]
        %v863 = vld [vmem:[%s230 + $0x1178] sm:$0xff]
        %v864 = vld [vmem:[%s230 + $0x1180] sm:$0xff]
        %v865 = vld [vmem:[%s230 + $0x1188] sm:$0xff]
        %v866 = vld [vmem:[%s230 + $0x1190] sm:$0xff]
        %v867 = vld [vmem:[%s230 + $0x1198] sm:$0xff]
        %v868 = vld [vmem:[%s230 + $0x11a0] sm:$0xff]
        %v869 = vld [vmem:[%s230 + $0x11a8] sm:$0xff]
        %v870 = vld [vmem:[%s230 + $0x11b0] sm:$0xff]
        %v871 = vld [vmem:[%s230 + $0x11b8] sm:$0xff]
        %v872 = vld [vmem:[%s230 + $0x11c0] sm:$0xff]
        %v873 = vld [vmem:[%s230 + $0x11c8] sm:$0xff]
        %v874 = vld [vmem:[%s230 + $0x11d0] sm:$0xff]
        %v875 = vld [vmem:[%s230 + $0x11d8] sm:$0xff]
        %v876 = vld [vmem:[%s230 + $0x11e0] sm:$0xff]
        %v877 = vld [vmem:[%s230 + $0x11e8] sm:$0xff]
        %v878 = vld [vmem:[%s230 + $0x11f0] sm:$0xff]
        %v879 = vld [vmem:[%s230 + $0x11f8] sm:$0xff]
        %v880 = vld [vmem:[%s230 + $0x1200] sm:$0xff]
        %v881 = vld [vmem:[%s230 + $0x1208] sm:$0xff]
        %v882 = vld [vmem:[%s230 + $0x1210] sm:$0xff]
        %v883 = vld [vmem:[%s230 + $0x1218] sm:$0xff]
        %v884 = vld [vmem:[%s230 + $0x1220] sm:$0xff]
        %v885 = vld [vmem:[%s230 + $0x1228] sm:$0xff]
        %v886 = vld [vmem:[%s230 + $0x1230] sm:$0xff]
        %v887 = vld [vmem:[%s230 + $0x1238] sm:$0xff]
        %v888 = vld [vmem:[%s230 + $0x1240] sm:$0xff]
        %v889 = vld [vmem:[%s230 + $0x1248] sm:$0xff]
        %v890 = vld [vmem:[%s230 + $0x1250] sm:$0xff]
        %v891 = vld [vmem:[%s230 + $0x1258] sm:$0xff]
        %v892 = vld [vmem:[%s230 + $0x1260] sm:$0xff]
        %v893 = vld [vmem:[%s230 + $0x1268] sm:$0xff]
        %v894 = vld [vmem:[%s230 + $0x1270] sm:$0xff]
        %v895 = vld [vmem:[%s230 + $0x1278] sm:$0xff]
        %v896 = vld [vmem:[%s230 + $0x1280] sm:$0xff]
        %v897 = vld [vmem:[%s230 + $0x1288] sm:$0xff]
        %v898 = vld [vmem:[%s230 + $0x1290] sm:$0xff]
        %v899 = vld [vmem:[%s230 + $0x1298] sm:$0xff]
        %v900 = vld [vmem:[%s230 + $0x12a0] sm:$0xff]
        %v901 = vld [vmem:[%s230 + $0x12a8] sm:$0xff]
        %v902 = vld [vmem:[%s230 + $0x12b0] sm:$0xff]
        %v903 = vld [vmem:[%s230 + $0x12b8] sm:$0xff]
        %v904 = vld [vmem:[%s230 + $0x12c0] sm:$0xff]
        %v905 = vld [vmem:[%s230 + $0x12c8] sm:$0xff]
        %v906 = vld [vmem:[%s230 + $0x12d0] sm:$0xff]
        %v907 = vld [vmem:[%s230 + $0x12d8] sm:$0xff]
        %v908 = vld [vmem:[%s230 + $0x12e0] sm:$0xff]
        %v909 = vld [vmem:[%s230 + $0x12e8] sm:$0xff]
        %v910 = vld [vmem:[%s230 + $0x12f0] sm:$0xff]
        %v911 = vld [vmem:[%s230 + $0x12f8] sm:$0xff]
        %v912 = vld [vmem:[%s230 + $0x1300] sm:$0xff]
        %v913 = vld [vmem:[%s230 + $0x1308] sm:$0xff]
        %v914 = vld [vmem:[%s230 + $0x1310] sm:$0xff]
        %v915 = vld [vmem:[%s230 + $0x1318] sm:$0xff]
        %v916 = vld [vmem:[%s230 + $0x1320] sm:$0xff]
        %v917 = vld [vmem:[%s230 + $0x1328] sm:$0xff]
        %v918 = vld [vmem:[%s230 + $0x1330] sm:$0xff]
        %v919 = vld [vmem:[%s230 + $0x1338] sm:$0xff]
        %v920 = vld [vmem:[%s230 + $0x1340] sm:$0xff]
        %v921 = vld [vmem:[%s230 + $0x1348] sm:$0xff]
        %v922 = vld [vmem:[%s230 + $0x1350] sm:$0xff]
        %v923 = vld [vmem:[%s230 + $0x1358] sm:$0xff]
        %v924 = vld [vmem:[%s230 + $0x1360] sm:$0xff]
        %v925 = vld [vmem:[%s230 + $0x1368] sm:$0xff]
        %v926 = vld [vmem:[%s230 + $0x1370] sm:$0xff]
        %v927 = vld [vmem:[%s230 + $0x1378] sm:$0xff]
        %v928 = vld [vmem:[%s230 + $0x1380] sm:$0xff]
        %v929 = vld [vmem:[%s230 + $0x1388] sm:$0xff]
        %v930 = vld [vmem:[%s230 + $0x1390] sm:$0xff]
        %v931 = vld [vmem:[%s230 + $0x1398] sm:$0xff]
        %v932 = vld [vmem:[%s230 + $0x13a0] sm:$0xff]
        %v933 = vld [vmem:[%s230 + $0x13a8] sm:$0xff]
        %v934 = vld [vmem:[%s230 + $0x13b0] sm:$0xff]
        %v935 = vld [vmem:[%s230 + $0x13b8] sm:$0xff]
        %v936 = vld [vmem:[%s230 + $0x13c0] sm:$0xff]
        %v937 = vld [vmem:[%s230 + $0x13c8] sm:$0xff]
        %v938 = vld [vmem:[%s230 + $0x13d0] sm:$0xff]
        %v939 = vld [vmem:[%s230 + $0x13d8] sm:$0xff]
        %v940 = vld [vmem:[%s230 + $0x13e0] sm:$0xff]
        %v941 = vld [vmem:[%s230 + $0x13e8] sm:$0xff]
        %v942 = vld [vmem:[%s230 + $0x13f0] sm:$0xff]
        %v943 = vld [vmem:[%s230 + $0x13f8] sm:$0xff]
        %v944 = vld [vmem:[%s230 + $0x1400] sm:$0xff]
        %v945 = vld [vmem:[%s230 + $0x1408] sm:$0xff]
        %v946 = vld [vmem:[%s230 + $0x1410] sm:$0xff]
        %v947 = vld [vmem:[%s230 + $0x1418] sm:$0xff]
        %v948 = vld [vmem:[%s230 + $0x1420] sm:$0xff]
        %v949 = vld [vmem:[%s230 + $0x1428] sm:$0xff]
        %v950 = vld [vmem:[%s230 + $0x1430] sm:$0xff]
        %v951 = vld [vmem:[%s230 + $0x1438] sm:$0xff]
        %v952 = vld [vmem:[%s230 + $0x1440] sm:$0xff]
        %v953 = vld [vmem:[%s230 + $0x1448] sm:$0xff]
        %v954 = vld [vmem:[%s230 + $0x1450] sm:$0xff]
        %v955 = vld [vmem:[%s230 + $0x1458] sm:$0xff]
        %v956 = vld [vmem:[%s230 + $0x1460] sm:$0xff]
        %v957 = vld [vmem:[%s230 + $0x1468] sm:$0xff]
        %v958 = vld [vmem:[%s230 + $0x1470] sm:$0xff]
        %v959 = vld [vmem:[%s230 + $0x1478] sm:$0xff]
        %v960 = vld [vmem:[%s230 + $0x1480] sm:$0xff]
        %v961 = vld [vmem:[%s230 + $0x1488] sm:$0xff]
        %v962 = vld [vmem:[%s230 + $0x1490] sm:$0xff]
        %v963 = vld [vmem:[%s230 + $0x1498] sm:$0xff]
        %v964 = vld [vmem:[%s230 + $0x14a0] sm:$0xff]
        %v965 = vld [vmem:[%s230 + $0x14a8] sm:$0xff]
        %v966 = vld [vmem:[%s230 + $0x14b0] sm:$0xff]
        %v967 = vld [vmem:[%s230 + $0x14b8] sm:$0xff]
        %v968 = vld [vmem:[%s230 + $0x14c0] sm:$0xff]
        %v969 = vld [vmem:[%s230 + $0x14c8] sm:$0xff]
        %v970 = vld [vmem:[%s230 + $0x14d0] sm:$0xff]
        %v971 = vld [vmem:[%s230 + $0x14d8] sm:$0xff]
        %v972 = vld [vmem:[%s230 + $0x14e0] sm:$0xff]
        %v973 = vld [vmem:[%s230 + $0x14e8] sm:$0xff]
        %v974 = vld [vmem:[%s230 + $0x14f0] sm:$0xff]
        %v975 = vld [vmem:[%s230 + $0x14f8] sm:$0xff]
        %v976 = vld [vmem:[%s230 + $0x1500] sm:$0xff]
        %v977 = vld [vmem:[%s230 + $0x1508] sm:$0xff]
        %v978 = vld [vmem:[%s230 + $0x1510] sm:$0xff]
        %v979 = vld [vmem:[%s230 + $0x1518] sm:$0xff]
        %v980 = vld [vmem:[%s230 + $0x1520] sm:$0xff]
        %v981 = vld [vmem:[%s230 + $0x1528] sm:$0xff]
        %v982 = vld [vmem:[%s230 + $0x1530] sm:$0xff]
        %v983 = vld [vmem:[%s230 + $0x1538] sm:$0xff]
        %v984 = vld [vmem:[%s230 + $0x1540] sm:$0xff]
        %v985 = vld [vmem:[%s230 + $0x1548] sm:$0xff]
        %v986 = vld [vmem:[%s230 + $0x1550] sm:$0xff]
        %v987 = vld [vmem:[%s230 + $0x1558] sm:$0xff]
        %v988 = vld [vmem:[%s230 + $0x1560] sm:$0xff]
        %v989 = vld [vmem:[%s230 + $0x1568] sm:$0xff]
        %v990 = vld [vmem:[%s230 + $0x1570] sm:$0xff]
        %v991 = vld [vmem:[%s230 + $0x1578] sm:$0xff]
        %v992 = vld [vmem:[%s230 + $0x1580] sm:$0xff]
        %v993 = vld [vmem:[%s230 + $0x1588] sm:$0xff]
        %v994 = vld [vmem:[%s230 + $0x1590] sm:$0xff]
        %v995 = vld [vmem:[%s230 + $0x1598] sm:$0xff]
        %v996 = vld [vmem:[%s230 + $0x15a0] sm:$0xff]
        %v997 = vld [vmem:[%s230 + $0x15a8] sm:$0xff]
        %v998 = vld [vmem:[%s230 + $0x15b0] sm:$0xff]
        %v999 = vld [vmem:[%s230 + $0x15b8] sm:$0xff]
        %v1000 = vld [vmem:[%s230 + $0x15c0] sm:$0xff]
        %v1001 = vld [vmem:[%s230 + $0x15c8] sm:$0xff]
        %v1002 = vld [vmem:[%s230 + $0x15d0] sm:$0xff]
        %v1003 = vld [vmem:[%s230 + $0x15d8] sm:$0xff]
        %v1004 = vld [vmem:[%s230 + $0x15e0] sm:$0xff]
        %v1005 = vld [vmem:[%s230 + $0x15e8] sm:$0xff]
        %v1006 = vld [vmem:[%s230 + $0x15f0] sm:$0xff]
        %v1007 = vld [vmem:[%s230 + $0x15f8] sm:$0xff]
        %v1008 = vld [vmem:[%s230 + $0x1600] sm:$0xff]
        %v1009 = vld [vmem:[%s230 + $0x1608] sm:$0xff]
        %v1010 = vld [vmem:[%s230 + $0x1610] sm:$0xff]
        %v1011 = vld [vmem:[%s230 + $0x1618] sm:$0xff]
        %v1012 = vld [vmem:[%s230 + $0x1620] sm:$0xff]
        %v1013 = vld [vmem:[%s230 + $0x1628] sm:$0xff]
        %v1014 = vld [vmem:[%s230 + $0x1630] sm:$0xff]
        %v1015 = vld [vmem:[%s230 + $0x1638] sm:$0xff]
        %v1016 = vld [vmem:[%s230 + $0x1640] sm:$0xff]
        %v1017 = vld [vmem:[%s230 + $0x1648] sm:$0xff]
        %v1018 = vld [vmem:[%s230 + $0x1650] sm:$0xff]
        %v1019 = vld [vmem:[%s230 + $0x1658] sm:$0xff]
        %v1020 = vld [vmem:[%s230 + $0x1660] sm:$0xff]
        %v1021 = vld [vmem:[%s230 + $0x1668] sm:$0xff]
        %v1022 = vld [vmem:[%s230 + $0x1670] sm:$0xff]
        %v1023 = vld [vmem:[%s230 + $0x1678] sm:$0xff]
        %v1024 = vld [vmem:[%s230 + $0x1680] sm:$0xff]
        %v1025 = vld [vmem:[%s230 + $0x1688] sm:$0xff]
        %v1026 = vld [vmem:[%s230 + $0x1690] sm:$0xff]
        %v1027 = vld [vmem:[%s230 + $0x1698] sm:$0xff]
        %v1028 = vld [vmem:[%s230 + $0x16a0] sm:$0xff]
        %v1029 = vld [vmem:[%s230 + $0x16a8] sm:$0xff]
        %v1030 = vld [vmem:[%s230 + $0x16b0] sm:$0xff]
        %v1031 = vld [vmem:[%s230 + $0x16b8] sm:$0xff]
        %v1032 = vld [vmem:[%s230 + $0x16c0] sm:$0xff]
        %v1033 = vld [vmem:[%s230 + $0x16c8] sm:$0xff]
        %v1034 = vld [vmem:[%s230 + $0x16d0] sm:$0xff]
        %v1035 = vld [vmem:[%s230 + $0x16d8] sm:$0xff]
        %v1036 = vld [vmem:[%s230 + $0x16e0] sm:$0xff]
        %v1037 = vld [vmem:[%s230 + $0x16e8] sm:$0xff]
        %v1038 = vld [vmem:[%s230 + $0x16f0] sm:$0xff]
        %v1039 = vld [vmem:[%s230 + $0x16f8] sm:$0xff]
        %v1040 = vld [vmem:[%s230 + $0x1700] sm:$0xff]
        %v1041 = vld [vmem:[%s230 + $0x1708] sm:$0xff]
        %v1042 = vld [vmem:[%s230 + $0x1710] sm:$0xff]
        %v1043 = vld [vmem:[%s230 + $0x1718] sm:$0xff]
        %v1044 = vld [vmem:[%s230 + $0x1720] sm:$0xff]
        %v1045 = vld [vmem:[%s230 + $0x1728] sm:$0xff]
        %v1046 = vld [vmem:[%s230 + $0x1730] sm:$0xff]
        %v1047 = vld [vmem:[%s230 + $0x1738] sm:$0xff]
        %v1048 = vld [vmem:[%s230 + $0x1740] sm:$0xff]
        %v1049 = vld [vmem:[%s230 + $0x1748] sm:$0xff]
        %v1050 = vld [vmem:[%s230 + $0x1750] sm:$0xff]
        %v1051 = vld [vmem:[%s230 + $0x1758] sm:$0xff]
        %v1052 = vld [vmem:[%s230 + $0x1760] sm:$0xff]
        %v1053 = vld [vmem:[%s230 + $0x1768] sm:$0xff]
        %v1054 = vld [vmem:[%s230 + $0x1770] sm:$0xff]
        %v1055 = vld [vmem:[%s230 + $0x1778] sm:$0xff]
        %v1056 = vld [vmem:[%s230 + $0x1780] sm:$0xff]
        %v1057 = vld [vmem:[%s230 + $0x1788] sm:$0xff]
        %v1058 = vld [vmem:[%s230 + $0x1790] sm:$0xff]
        %v1059 = vld [vmem:[%s230 + $0x1798] sm:$0xff]
        %v1060 = vld [vmem:[%s230 + $0x17a0] sm:$0xff]
        %v1061 = vld [vmem:[%s230 + $0x17a8] sm:$0xff]
        %v1062 = vld [vmem:[%s230 + $0x17b0] sm:$0xff]
        %v1063 = vld [vmem:[%s230 + $0x17b8] sm:$0xff]
        %v1064 = vld [vmem:[%s230 + $0x17c0] sm:$0xff]
        %v1065 = vld [vmem:[%s230 + $0x17c8] sm:$0xff]
        %v1066 = vld [vmem:[%s230 + $0x17d0] sm:$0xff]
        %v1067 = vld [vmem:[%s230 + $0x17d8] sm:$0xff]
        %v1068 = vld [vmem:[%s230 + $0x17e0] sm:$0xff]
        %v1069 = vld [vmem:[%s230 + $0x17e8] sm:$0xff]
        %v1070 = vld [vmem:[%s230 + $0x17f0] sm:$0xff]
        %v1071 = vld [vmem:[%s230 + $0x17f8] sm:$0xff]
        %v1072 = vld [vmem:[%s230 + $0x1800] sm:$0xff]
        %v1073 = vld [vmem:[%s230 + $0x1808] sm:$0xff]
        %v1074 = vld [vmem:[%s230 + $0x1810] sm:$0xff]
        %v1075 = vld [vmem:[%s230 + $0x1818] sm:$0xff]
        %v1076 = vld [vmem:[%s230 + $0x1820] sm:$0xff]
        %v1077 = vld [vmem:[%s230 + $0x1828] sm:$0xff]
        %v1078 = vld [vmem:[%s230 + $0x1830] sm:$0xff]
        %v1079 = vld [vmem:[%s230 + $0x1838] sm:$0xff]
        %v1080 = vld [vmem:[%s230 + $0x1840] sm:$0xff]
        %v1081 = vld [vmem:[%s230 + $0x1848] sm:$0xff]
        %v1082 = vld [vmem:[%s230 + $0x1850] sm:$0xff]
        %v1083 = vld [vmem:[%s230 + $0x1858] sm:$0xff]
        %v1084 = vld [vmem:[%s230 + $0x1860] sm:$0xff]
        %v1085 = vld [vmem:[%s230 + $0x1868] sm:$0xff]
        %v1086 = vld [vmem:[%s230 + $0x1870] sm:$0xff]
        %v1087 = vld [vmem:[%s230 + $0x1878] sm:$0xff]
        %v1088 = vld [vmem:[%s230 + $0x1880] sm:$0xff]
        %v1089 = vld [vmem:[%s230 + $0x1888] sm:$0xff]
        %v1090 = vld [vmem:[%s230 + $0x1890] sm:$0xff]
        %v1091 = vld [vmem:[%s230 + $0x1898] sm:$0xff]
        %v1092 = vld [vmem:[%s230 + $0x18a0] sm:$0xff]
        %v1093 = vld [vmem:[%s230 + $0x18a8] sm:$0xff]
        %v1094 = vld [vmem:[%s230 + $0x18b0] sm:$0xff]
        %v1095 = vld [vmem:[%s230 + $0x18b8] sm:$0xff]
        %v1096 = vld [vmem:[%s230 + $0x18c0] sm:$0xff]
        %v1097 = vld [vmem:[%s230 + $0x18c8] sm:$0xff]
        %v1098 = vld [vmem:[%s230 + $0x18d0] sm:$0xff]
        %v1099 = vld [vmem:[%s230 + $0x18d8] sm:$0xff]
        %v1100 = vld [vmem:[%s230 + $0x18e0] sm:$0xff]
        %v1101 = vld [vmem:[%s230 + $0x18e8] sm:$0xff]
        %v1102 = vld [vmem:[%s230 + $0x18f0] sm:$0xff]
        %v1103 = vld [vmem:[%s230 + $0x18f8] sm:$0xff]
        %v1104 = vld [vmem:[%s230 + $0x1900] sm:$0xff]
        %v1105 = vld [vmem:[%s230 + $0x1908] sm:$0xff]
        %v1106 = vld [vmem:[%s230 + $0x1910] sm:$0xff]
        %v1107 = vld [vmem:[%s230 + $0x1918] sm:$0xff]
        %v1108 = vld [vmem:[%s230 + $0x1920] sm:$0xff]
        %v1109 = vld [vmem:[%s230 + $0x1928] sm:$0xff]
        %v1110 = vld [vmem:[%s230 + $0x1930] sm:$0xff]
        %v1111 = vld [vmem:[%s230 + $0x1938] sm:$0xff]
        %v1112 = vld [vmem:[%s230 + $0x1940] sm:$0xff]
        %v1113 = vld [vmem:[%s230 + $0x1948] sm:$0xff]
        %v1114 = vld [vmem:[%s230 + $0x1950] sm:$0xff]
        %v1115 = vld [vmem:[%s230 + $0x1958] sm:$0xff]
        %v1116 = vld [vmem:[%s230 + $0x1960] sm:$0xff]
        %v1117 = vld [vmem:[%s230 + $0x1968] sm:$0xff]
        %v1118 = vld [vmem:[%s230 + $0x1970] sm:$0xff]
        %v1119 = vld [vmem:[%s230 + $0x1978] sm:$0xff]
        %v1120 = vld [vmem:[%s230 + $0x1980] sm:$0xff]
        %v1121 = vld [vmem:[%s230 + $0x1988] sm:$0xff]
        %v1122 = vld [vmem:[%s230 + $0x1990] sm:$0xff]
        %v1123 = vld [vmem:[%s230 + $0x1998] sm:$0xff]
        %v1124 = vld [vmem:[%s230 + $0x19a0] sm:$0xff]
        %v1125 = vld [vmem:[%s230 + $0x19a8] sm:$0xff]
        %v1126 = vld [vmem:[%s230 + $0x19b0] sm:$0xff]
        %v1127 = vld [vmem:[%s230 + $0x19b8] sm:$0xff]
        %v1128 = vld [vmem:[%s230 + $0x19c0] sm:$0xff]
        %v1129 = vld [vmem:[%s230 + $0x19c8] sm:$0xff]
        %v1130 = vld [vmem:[%s230 + $0x19d0] sm:$0xff]
        %v1131 = vld [vmem:[%s230 + $0x19d8] sm:$0xff]
        %v1132 = vld [vmem:[%s230 + $0x19e0] sm:$0xff]
        %v1133 = vld [vmem:[%s230 + $0x19e8] sm:$0xff]
        %v1134 = vld [vmem:[%s230 + $0x19f0] sm:$0xff]
        %v1135 = vld [vmem:[%s230 + $0x19f8] sm:$0xff]
        %v1136 = vld [vmem:[%s230 + $0x1a00] sm:$0xff]
        %v1137 = vld [vmem:[%s230 + $0x1a08] sm:$0xff]
        %v1138 = vld [vmem:[%s230 + $0x1a10] sm:$0xff]
        %v1139 = vld [vmem:[%s230 + $0x1a18] sm:$0xff]
        %v1140 = vld [vmem:[%s230 + $0x1a20] sm:$0xff]
        %v1141 = vld [vmem:[%s230 + $0x1a28] sm:$0xff]
        %v1142 = vld [vmem:[%s230 + $0x1a30] sm:$0xff]
        %v1143 = vld [vmem:[%s230 + $0x1a38] sm:$0xff]
        %v1144 = vld [vmem:[%s230 + $0x1a40] sm:$0xff]
        %v1145 = vld [vmem:[%s230 + $0x1a48] sm:$0xff]
        %v1146 = vld [vmem:[%s230 + $0x1a50] sm:$0xff]
        %v1147 = vld [vmem:[%s230 + $0x1a58] sm:$0xff]
        %v1148 = vld [vmem:[%s230 + $0x1a60] sm:$0xff]
        %v1149 = vld [vmem:[%s230 + $0x1a68] sm:$0xff]
        %v1150 = vld [vmem:[%s230 + $0x1a70] sm:$0xff]
        %v1151 = vld [vmem:[%s230 + $0x1a78] sm:$0xff]
        %v1152 = vld [vmem:[%s230 + $0x1a80] sm:$0xff]
        %v1153 = vld [vmem:[%s230 + $0x1a88] sm:$0xff]
        %v1154 = vld [vmem:[%s230 + $0x1a90] sm:$0xff]
        %v1155 = vld [vmem:[%s230 + $0x1a98] sm:$0xff]
        %v1156 = vld [vmem:[%s230 + $0x1aa0] sm:$0xff]
        %v1157 = vld [vmem:[%s230 + $0x1aa8] sm:$0xff]
        %v1158 = vld [vmem:[%s230 + $0x1ab0] sm:$0xff]
        %v1159 = vld [vmem:[%s230 + $0x1ab8] sm:$0xff]
        %v1160 = vld [vmem:[%s230 + $0x1ac0] sm:$0xff]
        %v1161 = vld [vmem:[%s230 + $0x1ac8] sm:$0xff]
        %v1162 = vld [vmem:[%s230 + $0x1ad0] sm:$0xff]
        %v1163 = vld [vmem:[%s230 + $0x1ad8] sm:$0xff]
        %v1164 = vld [vmem:[%s230 + $0x1ae0] sm:$0xff]
        %v1165 = vld [vmem:[%s230 + $0x1ae8] sm:$0xff]
        %v1166 = vld [vmem:[%s230 + $0x1af0] sm:$0xff]
        %v1167 = vld [vmem:[%s230 + $0x1af8] sm:$0xff]
        %v1168 = vld [vmem:[%s230 + $0x1b00] sm:$0xff]
        %v1169 = vld [vmem:[%s230 + $0x1b08] sm:$0xff]
        %v1170 = vld [vmem:[%s230 + $0x1b10] sm:$0xff]
        %v1171 = vld [vmem:[%s230 + $0x1b18] sm:$0xff]
        %v1172 = vld [vmem:[%s230 + $0x1b20] sm:$0xff]
        %v1173 = vld [vmem:[%s230 + $0x1b28] sm:$0xff]
        %v1174 = vld [vmem:[%s230 + $0x1b30] sm:$0xff]
        %v1175 = vld [vmem:[%s230 + $0x1b38] sm:$0xff]
        %v1176 = vld [vmem:[%s230 + $0x1b40] sm:$0xff]
        %v1177 = vld [vmem:[%s230 + $0x1b48] sm:$0xff]
        %v1178 = vld [vmem:[%s230 + $0x1b50] sm:$0xff]
        %v1179 = vld [vmem:[%s230 + $0x1b58] sm:$0xff]
        %v1180 = vld [vmem:[%s230 + $0x1b60] sm:$0xff]
        %v1181 = vld [vmem:[%s230 + $0x1b68] sm:$0xff]
        %v1182 = vld [vmem:[%s230 + $0x1b70] sm:$0xff]
        %v1183 = vld [vmem:[%s230 + $0x1b78] sm:$0xff]
        %v1184 = vld [vmem:[%s230 + $0x1b80] sm:$0xff]
        %v1185 = vld [vmem:[%s230 + $0x1b88] sm:$0xff]
        %v1186 = vld [vmem:[%s230 + $0x1b90] sm:$0xff]
        %v1187 = vld [vmem:[%s230 + $0x1b98] sm:$0xff]
        %v1188 = vld [vmem:[%s230 + $0x1ba0] sm:$0xff]
        %v1189 = vld [vmem:[%s230 + $0x1ba8] sm:$0xff]
        %v1190 = vld [vmem:[%s230 + $0x1bb0] sm:$0xff]
        %v1191 = vld [vmem:[%s230 + $0x1bb8] sm:$0xff]
        %v1192 = vld [vmem:[%s230 + $0x1bc0] sm:$0xff]
        %v1193 = vld [vmem:[%s230 + $0x1bc8] sm:$0xff]
        %v1194 = vld [vmem:[%s230 + $0x1bd0] sm:$0xff]
        %v1195 = vld [vmem:[%s230 + $0x1bd8] sm:$0xff]
        %v1196 = vld [vmem:[%s230 + $0x1be0] sm:$0xff]
        %v1197 = vld [vmem:[%s230 + $0x1be8] sm:$0xff]
        %v1198 = vld [vmem:[%s230 + $0x1bf0] sm:$0xff]
        %v1199 = vld [vmem:[%s230 + $0x1bf8] sm:$0xff]
        %v1200 = vld [vmem:[%s230 + $0x1c00] sm:$0xff]
        %v1201 = vld [vmem:[%s230 + $0x1c08] sm:$0xff]
        %v1202 = vld [vmem:[%s230 + $0x1c10] sm:$0xff]
        %v1203 = vld [vmem:[%s230 + $0x1c18] sm:$0xff]
        %v1204 = vld [vmem:[%s230 + $0x1c20] sm:$0xff]
        %v1205 = vld [vmem:[%s230 + $0x1c28] sm:$0xff]
        %v1206 = vld [vmem:[%s230 + $0x1c30] sm:$0xff]
        %v1207 = vld [vmem:[%s230 + $0x1c38] sm:$0xff]
        %v1208 = vld [vmem:[%s230 + $0x1c40] sm:$0xff]
        %v1209 = vld [vmem:[%s230 + $0x1c48] sm:$0xff]
        %v1210 = vld [vmem:[%s230 + $0x1c50] sm:$0xff]
        %v1211 = vld [vmem:[%s230 + $0x1c58] sm:$0xff]
        %v1212 = vld [vmem:[%s230 + $0x1c60] sm:$0xff]
        %v1213 = vld [vmem:[%s230 + $0x1c68] sm:$0xff]
        %v1214 = vld [vmem:[%s230 + $0x1c70] sm:$0xff]
        %v1215 = vld [vmem:[%s230 + $0x1c78] sm:$0xff]
        %v1216 = vld [vmem:[%s230 + $0x1c80] sm:$0xff]
        %v1217 = vld [vmem:[%s230 + $0x1c88] sm:$0xff]
        %v1218 = vld [vmem:[%s230 + $0x1c90] sm:$0xff]
        %v1219 = vld [vmem:[%s230 + $0x1c98] sm:$0xff]
        %v1220 = vld [vmem:[%s230 + $0x1ca0] sm:$0xff]
        %v1221 = vld [vmem:[%s230 + $0x1ca8] sm:$0xff]
        %v1222 = vld [vmem:[%s230 + $0x1cb0] sm:$0xff]
        %v1223 = vld [vmem:[%s230 + $0x1cb8] sm:$0xff]
        %v1224 = vld [vmem:[%s230 + $0x1cc0] sm:$0xff]
        %v1225 = vld [vmem:[%s230 + $0x1cc8] sm:$0xff]
        %v1226 = vld [vmem:[%s230 + $0x1cd0] sm:$0xff]
        %v1227 = vld [vmem:[%s230 + $0x1cd8] sm:$0xff]
        %v1228 = vld [vmem:[%s230 + $0x1ce0] sm:$0xff]
        %v1229 = vld [vmem:[%s230 + $0x1ce8] sm:$0xff]
        %v1230 = vld [vmem:[%s230 + $0x1cf0] sm:$0xff]
        %v1231 = vld [vmem:[%s230 + $0x1cf8] sm:$0xff]
        %v1232 = vld [vmem:[%s230 + $0x1d00] sm:$0xff]
        %v1233 = vld [vmem:[%s230 + $0x1d08] sm:$0xff]
        %v1234 = vld [vmem:[%s230 + $0x1d10] sm:$0xff]
        %v1235 = vld [vmem:[%s230 + $0x1d18] sm:$0xff]
        %v1236 = vld [vmem:[%s230 + $0x1d20] sm:$0xff]
        %v1237 = vld [vmem:[%s230 + $0x1d28] sm:$0xff]
        %v1238 = vld [vmem:[%s230 + $0x1d30] sm:$0xff]
        %v1239 = vld [vmem:[%s230 + $0x1d38] sm:$0xff]
        %v1240 = vld [vmem:[%s230 + $0x1d40] sm:$0xff]
        %v1241 = vld [vmem:[%s230 + $0x1d48] sm:$0xff]
        %v1242 = vld [vmem:[%s230 + $0x1d50] sm:$0xff]
        %v1243 = vld [vmem:[%s230 + $0x1d58] sm:$0xff]
        %v1244 = vld [vmem:[%s230 + $0x1d60] sm:$0xff]
        %v1245 = vld [vmem:[%s230 + $0x1d68] sm:$0xff]
        %v1246 = vld [vmem:[%s230 + $0x1d70] sm:$0xff]
        %v1247 = vld [vmem:[%s230 + $0x1d78] sm:$0xff]
        %v1248 = vld [vmem:[%s230 + $0x1d80] sm:$0xff]
        %v1249 = vld [vmem:[%s230 + $0x1d88] sm:$0xff]
        %v1250 = vld [vmem:[%s230 + $0x1d90] sm:$0xff]
        %v1251 = vld [vmem:[%s230 + $0x1d98] sm:$0xff]
        %v1252 = vld [vmem:[%s230 + $0x1da0] sm:$0xff]
        %v1253 = vld [vmem:[%s230 + $0x1da8] sm:$0xff]
        %v1254 = vld [vmem:[%s230 + $0x1db0] sm:$0xff]
        %v1255 = vld [vmem:[%s230 + $0x1db8] sm:$0xff]
        %v1256 = vld [vmem:[%s230 + $0x1dc0] sm:$0xff]
        %v1257 = vld [vmem:[%s230 + $0x1dc8] sm:$0xff]
        %v1258 = vld [vmem:[%s230 + $0x1dd0] sm:$0xff]
        %v1259 = vld [vmem:[%s230 + $0x1dd8] sm:$0xff]
        %v1260 = vld [vmem:[%s230 + $0x1de0] sm:$0xff]
        %v1261 = vld [vmem:[%s230 + $0x1de8] sm:$0xff]
        %v1262 = vld [vmem:[%s230 + $0x1df0] sm:$0xff]
        %v1263 = vld [vmem:[%s230 + $0x1df8] sm:$0xff]
        %v1264 = vld [vmem:[%s230 + $0x1e00] sm:$0xff]
        %v1265 = vld [vmem:[%s230 + $0x1e08] sm:$0xff]
        %v1266 = vld [vmem:[%s230 + $0x1e10] sm:$0xff]
        %v1267 = vld [vmem:[%s230 + $0x1e18] sm:$0xff]
        %v1268 = vld [vmem:[%s230 + $0x1e20] sm:$0xff]
        %v1269 = vld [vmem:[%s230 + $0x1e28] sm:$0xff]
        %v1270 = vld [vmem:[%s230 + $0x1e30] sm:$0xff]
        %v1271 = vld [vmem:[%s230 + $0x1e38] sm:$0xff]
        %v1272 = vld [vmem:[%s230 + $0x1e40] sm:$0xff]
        %v1273 = vld [vmem:[%s230 + $0x1e48] sm:$0xff]
        %v1274 = vld [vmem:[%s230 + $0x1e50] sm:$0xff]
        %v1275 = vld [vmem:[%s230 + $0x1e58] sm:$0xff]
        %v1276 = vld [vmem:[%s230 + $0x1e60] sm:$0xff]
        %v1277 = vld [vmem:[%s230 + $0x1e68] sm:$0xff]
        %v1278 = vld [vmem:[%s230 + $0x1e70] sm:$0xff]
        %v1279 = vld [vmem:[%s230 + $0x1e78] sm:$0xff]
        %v1280 = vld [vmem:[%s230 + $0x1e80] sm:$0xff]
        %v1281 = vld [vmem:[%s230 + $0x1e88] sm:$0xff]
        %v1282 = vld [vmem:[%s230 + $0x1e90] sm:$0xff]
        %v1283 = vld [vmem:[%s230 + $0x1e98] sm:$0xff]
        %v1284 = vld [vmem:[%s230 + $0x1ea0] sm:$0xff]
        %v1285 = vld [vmem:[%s230 + $0x1ea8] sm:$0xff]
        %v1286 = vld [vmem:[%s230 + $0x1eb0] sm:$0xff]
        %v1287 = vld [vmem:[%s230 + $0x1eb8] sm:$0xff]
        %v1288 = vld [vmem:[%s230 + $0x1ec0] sm:$0xff]
        %v1289 = vld [vmem:[%s230 + $0x1ec8] sm:$0xff]
        %v1290 = vld [vmem:[%s230 + $0x1ed0] sm:$0xff]
        %v1291 = vld [vmem:[%s230 + $0x1ed8] sm:$0xff]
        %v1292 = vld [vmem:[%s230 + $0x1ee0] sm:$0xff]
        %v1293 = vld [vmem:[%s230 + $0x1ee8] sm:$0xff]
        %v1294 = vld [vmem:[%s230 + $0x1ef0] sm:$0xff]
        %v1295 = vld [vmem:[%s230 + $0x1ef8] sm:$0xff]
        %v1296 = vld [vmem:[%s230 + $0x1f00] sm:$0xff]
        %v1297 = vld [vmem:[%s230 + $0x1f08] sm:$0xff]
        %v1298 = vld [vmem:[%s230 + $0x1f10] sm:$0xff]
        %v1299 = vld [vmem:[%s230 + $0x1f18] sm:$0xff]
        %v1300 = vld [vmem:[%s230 + $0x1f20] sm:$0xff]
        %v1301 = vld [vmem:[%s230 + $0x1f28] sm:$0xff]
        %v1302 = vld [vmem:[%s230 + $0x1f30] sm:$0xff]
        %v1303 = vld [vmem:[%s230 + $0x1f38] sm:$0xff]
        %v1304 = vld [vmem:[%s230 + $0x1f40] sm:$0xff]
        %v1305 = vld [vmem:[%s230 + $0x1f48] sm:$0xff]
        %v1306 = vld [vmem:[%s230 + $0x1f50] sm:$0xff]
        %v1307 = vld [vmem:[%s230 + $0x1f58] sm:$0xff]
        %v1308 = vld [vmem:[%s230 + $0x1f60] sm:$0xff]
        %v1309 = vld [vmem:[%s230 + $0x1f68] sm:$0xff]
        %v1310 = vld [vmem:[%s230 + $0x1f70] sm:$0xff]
        %v1311 = vld [vmem:[%s230 + $0x1f78] sm:$0xff]
        %v1312 = vld [vmem:[%s230 + $0x1f80] sm:$0xff]
        %v1313 = vld [vmem:[%s230 + $0x1f88] sm:$0xff]
        %v1314 = vld [vmem:[%s230 + $0x1f90] sm:$0xff]
        %v1315 = vld [vmem:[%s230 + $0x1f98] sm:$0xff]
        %v1316 = vld [vmem:[%s230 + $0x1fa0] sm:$0xff]
        %v1317 = vld [vmem:[%s230 + $0x1fa8] sm:$0xff]
        %v1318 = vld [vmem:[%s230 + $0x1fb0] sm:$0xff]
        %v1319 = vld [vmem:[%s230 + $0x1fb8] sm:$0xff]
        %v1320 = vld [vmem:[%s230 + $0x1fc0] sm:$0xff]
        %v1321 = vld [vmem:[%s230 + $0x1fc8] sm:$0xff]
        %v1322 = vld [vmem:[%s230 + $0x1fd0] sm:$0xff]
        %v1323 = vld [vmem:[%s230 + $0x1fd8] sm:$0xff]
        %v1324 = vld [vmem:[%s230 + $0x1fe0] sm:$0xff]
        %v1325 = vld [vmem:[%s230 + $0x1fe8] sm:$0xff]
        %v1326 = vld [vmem:[%s230 + $0x1ff0] sm:$0xff]
        %v1327 = vld [vmem:[%s230 + $0x1ff8] sm:$0xff]
        %v1328 = vld [vmem:[%s230 + $0x2000] sm:$0xff]
        %v1329 = vld [vmem:[%s230 + $0x2008] sm:$0xff]
        %v1330 = vld [vmem:[%s230 + $0x2010] sm:$0xff]
        %v1331 = vld [vmem:[%s230 + $0x2018] sm:$0xff]
        %v1332 = vld [vmem:[%s230 + $0x2020] sm:$0xff]
        %v1333 = vld [vmem:[%s230 + $0x2028] sm:$0xff]
        %v1334 = vld [vmem:[%s230 + $0x2030] sm:$0xff]
        %v1335 = vld [vmem:[%s230 + $0x2038] sm:$0xff]
        %v1336 = vld [vmem:[%s230 + $0x2040] sm:$0xff]
        %v1337 = vld [vmem:[%s230 + $0x2048] sm:$0xff]
        %v1338 = vld [vmem:[%s230 + $0x2050] sm:$0xff]
        %v1339 = vld [vmem:[%s230 + $0x2058] sm:$0xff]
        %v1340 = vld [vmem:[%s230 + $0x2060] sm:$0xff]
        %v1341 = vld [vmem:[%s230 + $0x2068] sm:$0xff]
        %v1342 = vld [vmem:[%s230 + $0x2070] sm:$0xff]
        %v1343 = vld [vmem:[%s230 + $0x2078] sm:$0xff]
        %v1344 = vld [vmem:[%s230 + $0x2080] sm:$0xff]
        %v1345 = vld [vmem:[%s230 + $0x2088] sm:$0xff]
        %v1346 = vld [vmem:[%s230 + $0x2090] sm:$0xff]
        %v1347 = vld [vmem:[%s230 + $0x2098] sm:$0xff]
        %v1348 = vld [vmem:[%s230 + $0x20a0] sm:$0xff]
        %v1349 = vld [vmem:[%s230 + $0x20a8] sm:$0xff]
        %v1350 = vld [vmem:[%s230 + $0x20b0] sm:$0xff]
        %v1351 = vld [vmem:[%s230 + $0x20b8] sm:$0xff]
        %v1352 = vld [vmem:[%s230 + $0x20c0] sm:$0xff]
        %v1353 = vld [vmem:[%s230 + $0x20c8] sm:$0xff]
        %v1354 = vld [vmem:[%s230 + $0x20d0] sm:$0xff]
        %v1355 = vld [vmem:[%s230 + $0x20d8] sm:$0xff]
        %v1356 = vld [vmem:[%s230 + $0x20e0] sm:$0xff]
        %v1357 = vld [vmem:[%s230 + $0x20e8] sm:$0xff]
        %v1358 = vld [vmem:[%s230 + $0x20f0] sm:$0xff]
        %v1359 = vld [vmem:[%s230 + $0x20f8] sm:$0xff]
        %v1360 = vld [vmem:[%s230 + $0x2100] sm:$0xff]
        %v1361 = vld [vmem:[%s230 + $0x2108] sm:$0xff]
        %v1362 = vld [vmem:[%s230 + $0x2110] sm:$0xff]
        %v1363 = vld [vmem:[%s230 + $0x2118] sm:$0xff]
        %v1364 = vld [vmem:[%s230 + $0x2120] sm:$0xff]
        %v1365 = vld [vmem:[%s230 + $0x2128] sm:$0xff]
        %v1366 = vld [vmem:[%s230 + $0x2130] sm:$0xff]
        %v1367 = vld [vmem:[%s230 + $0x2138] sm:$0xff]
        %v1368 = vld [vmem:[%s230 + $0x2140] sm:$0xff]
        %v1369 = vld [vmem:[%s230 + $0x2148] sm:$0xff]
        %v1370 = vld [vmem:[%s230 + $0x2150] sm:$0xff]
        %v1371 = vld [vmem:[%s230 + $0x2158] sm:$0xff]
        %v1372 = vld [vmem:[%s230 + $0x2160] sm:$0xff]
        %v1373 = vld [vmem:[%s230 + $0x2168] sm:$0xff]
        %v1374 = vld [vmem:[%s230 + $0x2170] sm:$0xff]
        %v1375 = vld [vmem:[%s230 + $0x2178] sm:$0xff]
        %v1376 = vld [vmem:[%s230 + $0x2180] sm:$0xff]
        %v1377 = vld [vmem:[%s230 + $0x2188] sm:$0xff]
        %v1378 = vld [vmem:[%s230 + $0x2190] sm:$0xff]
        %v1379 = vld [vmem:[%s230 + $0x2198] sm:$0xff]
        %v1380 = vld [vmem:[%s230 + $0x21a0] sm:$0xff]
        %v1381 = vld [vmem:[%s230 + $0x21a8] sm:$0xff]
        %v1382 = vld [vmem:[%s230 + $0x21b0] sm:$0xff]
        %v1383 = vld [vmem:[%s230 + $0x21b8] sm:$0xff]
        %v1384 = vld [vmem:[%s230 + $0x21c0] sm:$0xff]
        %v1385 = vld [vmem:[%s230 + $0x21c8] sm:$0xff]
        %v1386 = vld [vmem:[%s230 + $0x21d0] sm:$0xff]
        %v1387 = vld [vmem:[%s230 + $0x21d8] sm:$0xff]
        %v1388 = vld [vmem:[%s230 + $0x21e0] sm:$0xff]
        %v1389 = vld [vmem:[%s230 + $0x21e8] sm:$0xff]
        %v1390 = vld [vmem:[%s230 + $0x21f0] sm:$0xff]
        %v1391 = vld [vmem:[%s230 + $0x21f8] sm:$0xff]
        %v1392 = vld [vmem:[%s230 + $0x2200] sm:$0xff]
        %v1393 = vld [vmem:[%s230 + $0x2208] sm:$0xff]
        %v1394 = vld [vmem:[%s230 + $0x2210] sm:$0xff]
        %v1395 = vld [vmem:[%s230 + $0x2218] sm:$0xff]
        %v1396 = vld [vmem:[%s230 + $0x2220] sm:$0xff]
        %v1397 = vld [vmem:[%s230 + $0x2228] sm:$0xff]
        %v1398 = vld [vmem:[%s230 + $0x2230] sm:$0xff]
        %v1399 = vld [vmem:[%s230 + $0x2238] sm:$0xff]
        %v1400 = vld [vmem:[%s230 + $0x2240] sm:$0xff]
        %v1401 = vld [vmem:[%s230 + $0x2248] sm:$0xff]
        %v1402 = vld [vmem:[%s230 + $0x2250] sm:$0xff]
        %v1403 = vld [vmem:[%s230 + $0x2258] sm:$0xff]
        %v1404 = vld [vmem:[%s230 + $0x2260] sm:$0xff]
        %v1405 = vld [vmem:[%s230 + $0x2268] sm:$0xff]
        %v1406 = vld [vmem:[%s230 + $0x2270] sm:$0xff]
        %v1407 = vld [vmem:[%s230 + $0x2278] sm:$0xff]
        %v1408 = vld [vmem:[%s230 + $0x2280] sm:$0xff]
        %v1409 = vld [vmem:[%s230 + $0x2288] sm:$0xff]
        %v1410 = vld [vmem:[%s230 + $0x2290] sm:$0xff]
        %v1411 = vld [vmem:[%s230 + $0x2298] sm:$0xff]
        %v1412 = vld [vmem:[%s230 + $0x22a0] sm:$0xff]
        %v1413 = vld [vmem:[%s230 + $0x22a8] sm:$0xff]
        %v1414 = vld [vmem:[%s230 + $0x22b0] sm:$0xff]
        %v1415 = vld [vmem:[%s230 + $0x22b8] sm:$0xff]
        %v1416 = vld [vmem:[%s230 + $0x22c0] sm:$0xff]
        %v1417 = vld [vmem:[%s230 + $0x22c8] sm:$0xff]
        %v1418 = vld [vmem:[%s230 + $0x22d0] sm:$0xff]
        %v1419 = vld [vmem:[%s230 + $0x22d8] sm:$0xff]
        %v1420 = vld [vmem:[%s230 + $0x22e0] sm:$0xff]
        %v1421 = vld [vmem:[%s230 + $0x22e8] sm:$0xff]
        %v1422 = vld [vmem:[%s230 + $0x22f0] sm:$0xff]
        %v1423 = vld [vmem:[%s230 + $0x22f8] sm:$0xff]
        %v1424 = vld [vmem:[%s230 + $0x2300] sm:$0xff]
        %v1425 = vld [vmem:[%s230 + $0x2308] sm:$0xff]
        %v1426 = vld [vmem:[%s230 + $0x2310] sm:$0xff]
        %v1427 = vld [vmem:[%s230 + $0x2318] sm:$0xff]
        %v1428 = vld [vmem:[%s230 + $0x2320] sm:$0xff]
        %v1429 = vld [vmem:[%s230 + $0x2328] sm:$0xff]
        %v1430 = vld [vmem:[%s230 + $0x2330] sm:$0xff]
        %v1431 = vld [vmem:[%s230 + $0x2338] sm:$0xff]
        %v1432 = vld [vmem:[%s230 + $0x2340] sm:$0xff]
        %v1433 = vld [vmem:[%s230 + $0x2348] sm:$0xff]
        %v1434 = vld [vmem:[%s230 + $0x2350] sm:$0xff]
        %v1435 = vld [vmem:[%s230 + $0x2358] sm:$0xff]
        %v1436 = vld [vmem:[%s230 + $0x2360] sm:$0xff]
        %v1437 = vld [vmem:[%s230 + $0x2368] sm:$0xff]
        %v1438 = vld [vmem:[%s230 + $0x2370] sm:$0xff]
        %v1439 = vld [vmem:[%s230 + $0x2378] sm:$0xff]
        %v1440 = vld [vmem:[%s230 + $0x2380] sm:$0xff]
        %v1441 = vld [vmem:[%s230 + $0x2388] sm:$0xff]
        %v1442 = vld [vmem:[%s230 + $0x2390] sm:$0xff]
        %v1443 = vld [vmem:[%s230 + $0x2398] sm:$0xff]
        %v1444 = vld [vmem:[%s230 + $0x23a0] sm:$0xff]
        %v1445 = vld [vmem:[%s230 + $0x23a8] sm:$0xff]
        %v1446 = vld [vmem:[%s230 + $0x23b0] sm:$0xff]
        %v1447 = vld [vmem:[%s230 + $0x23b8] sm:$0xff]
        %v1448 = vld [vmem:[%s230 + $0x23c0] sm:$0xff]
        %v1449 = vld [vmem:[%s230 + $0x23c8] sm:$0xff]
        %v1450 = vld [vmem:[%s230 + $0x23d0] sm:$0xff]
        %v1451 = vld [vmem:[%s230 + $0x23d8] sm:$0xff]
        %v1452 = vld [vmem:[%s230 + $0x23e0] sm:$0xff]
        %v1453 = vld [vmem:[%s230 + $0x23e8] sm:$0xff]
        %v1454 = vld [vmem:[%s230 + $0x23f0] sm:$0xff]
        %v1455 = vld [vmem:[%s230 + $0x23f8] sm:$0xff]
        %v1456 = vld [vmem:[%s230 + $0x2400] sm:$0xff]
        %v1457 = vld [vmem:[%s230 + $0x2408] sm:$0xff]
        %v1458 = vld [vmem:[%s230 + $0x2410] sm:$0xff]
        %v1459 = vld [vmem:[%s230 + $0x2418] sm:$0xff]
        %v1460 = vld [vmem:[%s230 + $0x2420] sm:$0xff]
        %v1461 = vld [vmem:[%s230 + $0x2428] sm:$0xff]
        %v1462 = vld [vmem:[%s230 + $0x2430] sm:$0xff]
        %v1463 = vld [vmem:[%s230 + $0x2438] sm:$0xff]
        %v1464 = vld [vmem:[%s230 + $0x2440] sm:$0xff]
        %v1465 = vld [vmem:[%s230 + $0x2448] sm:$0xff]
        %v1466 = vld [vmem:[%s230 + $0x2450] sm:$0xff]
        %v1467 = vld [vmem:[%s230 + $0x2458] sm:$0xff]
        %v1468 = vld [vmem:[%s230 + $0x2460] sm:$0xff]
        %v1469 = vld [vmem:[%s230 + $0x2468] sm:$0xff]
        %v1470 = vld [vmem:[%s230 + $0x2470] sm:$0xff]
        %v1471 = vld [vmem:[%s230 + $0x2478] sm:$0xff]
        %v1472 = vld [vmem:[%s230 + $0x2480] sm:$0xff]
        %v1473 = vld [vmem:[%s230 + $0x2488] sm:$0xff]
        %v1474 = vld [vmem:[%s230 + $0x2490] sm:$0xff]
        %v1475 = vld [vmem:[%s230 + $0x2498] sm:$0xff]
        %v1476 = vld [vmem:[%s230 + $0x24a0] sm:$0xff]
        %v1477 = vld [vmem:[%s230 + $0x24a8] sm:$0xff]
        %v1478 = vld [vmem:[%s230 + $0x24b0] sm:$0xff]
        %v1479 = vld [vmem:[%s230 + $0x24b8] sm:$0xff]
        %v1480 = vld [vmem:[%s230 + $0x24c0] sm:$0xff]
        %v1481 = vld [vmem:[%s230 + $0x24c8] sm:$0xff]
        %v1482 = vld [vmem:[%s230 + $0x24d0] sm:$0xff]
        %v1483 = vld [vmem:[%s230 + $0x24d8] sm:$0xff]
        %v1484 = vld [vmem:[%s230 + $0x24e0] sm:$0xff]
        %v1485 = vld [vmem:[%s230 + $0x24e8] sm:$0xff]
        %v1486 = vld [vmem:[%s230 + $0x24f0] sm:$0xff]
        %v1487 = vld [vmem:[%s230 + $0x24f8] sm:$0xff]
        %v1488 = vld [vmem:[%s230 + $0x2500] sm:$0xff]
        %v1489 = vld [vmem:[%s230 + $0x2508] sm:$0xff]
        %v1490 = vld [vmem:[%s230 + $0x2510] sm:$0xff]
        %v1491 = vld [vmem:[%s230 + $0x2518] sm:$0xff]
        %v1492 = vld [vmem:[%s230 + $0x2520] sm:$0xff]
        %v1493 = vld [vmem:[%s230 + $0x2528] sm:$0xff]
        %v1494 = vld [vmem:[%s230 + $0x2530] sm:$0xff]
        %v1495 = vld [vmem:[%s230 + $0x2538] sm:$0xff]
        %v1496 = vld [vmem:[%s230 + $0x2540] sm:$0xff]
        %v1497 = vld [vmem:[%s230 + $0x2548] sm:$0xff]
        %v1498 = vld [vmem:[%s230 + $0x2550] sm:$0xff]
        %v1499 = vld [vmem:[%s230 + $0x2558] sm:$0xff]
        %v1500 = vld [vmem:[%s230 + $0x2560] sm:$0xff]
        %v1501 = vld [vmem:[%s230 + $0x2568] sm:$0xff]
        %v1502 = vld [vmem:[%s230 + $0x2570] sm:$0xff]
        %v1503 = vld [vmem:[%s230 + $0x2578] sm:$0xff]
        %v1504 = vld [vmem:[%s230 + $0x2580] sm:$0xff]
        %v1505 = vld [vmem:[%s230 + $0x2588] sm:$0xff]
        %v1506 = vld [vmem:[%s230 + $0x2590] sm:$0xff]
        %v1507 = vld [vmem:[%s230 + $0x2598] sm:$0xff]
        %v1508 = vld [vmem:[%s230 + $0x25a0] sm:$0xff]
        %v1509 = vld [vmem:[%s230 + $0x25a8] sm:$0xff]
        %v1510 = vld [vmem:[%s230 + $0x25b0] sm:$0xff]
        %v1511 = vld [vmem:[%s230 + $0x25b8] sm:$0xff]
        %v1512 = vld [vmem:[%s230 + $0x25c0] sm:$0xff]
        %v1513 = vld [vmem:[%s230 + $0x25c8] sm:$0xff]
        %v1514 = vld [vmem:[%s230 + $0x25d0] sm:$0xff]
        %v1515 = vld [vmem:[%s230 + $0x25d8] sm:$0xff]
        %v1516 = vld [vmem:[%s230 + $0x25e0] sm:$0xff]
        %v1517 = vld [vmem:[%s230 + $0x25e8] sm:$0xff]
        %v1518 = vld [vmem:[%s230 + $0x25f0] sm:$0xff]
        %v1519 = vld [vmem:[%s230 + $0x25f8] sm:$0xff]
        %v1520 = vld [vmem:[%s230 + $0x2600] sm:$0xff]
        %v1521 = vld [vmem:[%s230 + $0x2608] sm:$0xff]
        %v1522 = vld [vmem:[%s230 + $0x2610] sm:$0xff]
        %v1523 = vld [vmem:[%s230 + $0x2618] sm:$0xff]
        %v1524 = vld [vmem:[%s230 + $0x2620] sm:$0xff]
        %v1525 = vld [vmem:[%s230 + $0x2628] sm:$0xff]
        %v1526 = vld [vmem:[%s230 + $0x2630] sm:$0xff]
        %v1527 = vld [vmem:[%s230 + $0x2638] sm:$0xff]
        %v1528 = vld [vmem:[%s230 + $0x2640] sm:$0xff]
        %v1529 = vld [vmem:[%s230 + $0x2648] sm:$0xff]
        %v1530 = vld [vmem:[%s230 + $0x2650] sm:$0xff]
        %v1531 = vld [vmem:[%s230 + $0x2658] sm:$0xff]
        %v1532 = vld [vmem:[%s230 + $0x2660] sm:$0xff]
        %v1533 = vld [vmem:[%s230 + $0x2668] sm:$0xff]
        %v1534 = vld [vmem:[%s230 + $0x2670] sm:$0xff]
        %v1535 = vld [vmem:[%s230 + $0x2678] sm:$0xff]
        %v1536 = vld [vmem:[%s230 + $0x2680] sm:$0xff]
        %v1537 = vld [vmem:[%s230 + $0x2688] sm:$0xff]
        %v1538 = vld [vmem:[%s230 + $0x2690] sm:$0xff]
        %v1539 = vld [vmem:[%s230 + $0x2698] sm:$0xff]
        %v1540 = vld [vmem:[%s230 + $0x26a0] sm:$0xff]
        %v1541 = vld [vmem:[%s230 + $0x26a8] sm:$0xff]
        %v1542 = vld [vmem:[%s230 + $0x26b0] sm:$0xff]
        %v1543 = vld [vmem:[%s230 + $0x26b8] sm:$0xff]
        %v1544 = vld [vmem:[%s230 + $0x26c0] sm:$0xff]
        %v1545 = vld [vmem:[%s230 + $0x26c8] sm:$0xff]
        %v1546 = vld [vmem:[%s230 + $0x26d0] sm:$0xff]
        %v1547 = vld [vmem:[%s230 + $0x26d8] sm:$0xff]
        %v1548 = vld [vmem:[%s230 + $0x26e0] sm:$0xff]
        %v1549 = vld [vmem:[%s230 + $0x26e8] sm:$0xff]
        %v1550 = vld [vmem:[%s230 + $0x26f0] sm:$0xff]
        %v1551 = vld [vmem:[%s230 + $0x26f8] sm:$0xff]
        %v1552 = vld [vmem:[%s230 + $0x2700] sm:$0xff]
        %v1553 = vld [vmem:[%s230 + $0x2708] sm:$0xff]
        %v1554 = vld [vmem:[%s230 + $0x2710] sm:$0xff]
        %v1555 = vld [vmem:[%s230 + $0x2718] sm:$0xff]
        %v1556 = vld [vmem:[%s230 + $0x2720] sm:$0xff]
        %v1557 = vld [vmem:[%s230 + $0x2728] sm:$0xff]
        %v1558 = vld [vmem:[%s230 + $0x2730] sm:$0xff]
        %v1559 = vld [vmem:[%s230 + $0x2738] sm:$0xff]
        %v1560 = vld [vmem:[%s230 + $0x2740] sm:$0xff]
        %v1561 = vld [vmem:[%s230 + $0x2748] sm:$0xff]
        %v1562 = vld [vmem:[%s230 + $0x2750] sm:$0xff]
        %v1563 = vld [vmem:[%s230 + $0x2758] sm:$0xff]
        %v1564 = vld [vmem:[%s230 + $0x2760] sm:$0xff]
        %v1565 = vld [vmem:[%s230 + $0x2768] sm:$0xff]
        %v1566 = vld [vmem:[%s230 + $0x2770] sm:$0xff]
        %v1567 = vld [vmem:[%s230 + $0x2778] sm:$0xff]
        %v1568 = vld [vmem:[%s230 + $0x2780] sm:$0xff]
        %v1569 = vld [vmem:[%s230 + $0x2788] sm:$0xff]
        %v1570 = vld [vmem:[%s230 + $0x2790] sm:$0xff]
        %v1571 = vld [vmem:[%s230 + $0x2798] sm:$0xff]
        %v1572 = vld [vmem:[%s230 + $0x27a0] sm:$0xff]
        %v1573 = vld [vmem:[%s230 + $0x27a8] sm:$0xff]
        %v1574 = vld [vmem:[%s230 + $0x27b0] sm:$0xff]
        %v1575 = vld [vmem:[%s230 + $0x27b8] sm:$0xff]
        %v1576 = vld [vmem:[%s230 + $0x27c0] sm:$0xff]
        %v1577 = vld [vmem:[%s230 + $0x27c8] sm:$0xff]
        %v1578 = vld [vmem:[%s230 + $0x27d0] sm:$0xff]
        %v1579 = vld [vmem:[%s230 + $0x27d8] sm:$0xff]
        %v1580 = vld [vmem:[%s230 + $0x27e0] sm:$0xff]
        %v1581 = vld [vmem:[%s230 + $0x27e8] sm:$0xff]
        %v1582 = vld [vmem:[%s230 + $0x27f0] sm:$0xff]
        %v1583 = vld [vmem:[%s230 + $0x27f8] sm:$0xff]
        %v1584 = vld [vmem:[%s230 + $0x2800] sm:$0xff]
        %v1585 = vld [vmem:[%s230 + $0x2808] sm:$0xff]
        %v1586 = vld [vmem:[%s230 + $0x2810] sm:$0xff]
        %v1587 = vld [vmem:[%s230 + $0x2818] sm:$0xff]
        %v1588 = vld [vmem:[%s230 + $0x2820] sm:$0xff]
        %v1589 = vld [vmem:[%s230 + $0x2828] sm:$0xff]
        %v1590 = vld [vmem:[%s230 + $0x2830] sm:$0xff]
        %v1591 = vld [vmem:[%s230 + $0x2838] sm:$0xff]
        %v1592 = vld [vmem:[%s230 + $0x2840] sm:$0xff]
        %v1593 = vld [vmem:[%s230 + $0x2848] sm:$0xff]
        %v1594 = vld [vmem:[%s230 + $0x2850] sm:$0xff]
        %v1595 = vld [vmem:[%s230 + $0x2858] sm:$0xff]
        %v1596 = vld [vmem:[%s230 + $0x2860] sm:$0xff]
        %v1597 = vld [vmem:[%s230 + $0x2868] sm:$0xff]
        %v1598 = vld [vmem:[%s230 + $0x2870] sm:$0xff]
        %v1599 = vld [vmem:[%s230 + $0x2878] sm:$0xff]
        %v1600 = vld [vmem:[%s230 + $0x2880] sm:$0xff]
        %v1601 = vld [vmem:[%s230 + $0x2888] sm:$0xff]
        %v1602 = vld [vmem:[%s230 + $0x2890] sm:$0xff]
        %v1603 = vld [vmem:[%s230 + $0x2898] sm:$0xff]
        %v1604 = vld [vmem:[%s230 + $0x28a0] sm:$0xff]
        %v1605 = vld [vmem:[%s230 + $0x28a8] sm:$0xff]
        %v1606 = vld [vmem:[%s230 + $0x28b0] sm:$0xff]
        %v1607 = vld [vmem:[%s230 + $0x28b8] sm:$0xff]
        %v1608 = vld [vmem:[%s230 + $0x28c0] sm:$0xff]
        %v1609 = vld [vmem:[%s230 + $0x28c8] sm:$0xff]
        %v1610 = vld [vmem:[%s230 + $0x28d0] sm:$0xff]
        %v1611 = vld [vmem:[%s230 + $0x28d8] sm:$0xff]
        %v1612 = vld [vmem:[%s230 + $0x28e0] sm:$0xff]
        %v1613 = vld [vmem:[%s230 + $0x28e8] sm:$0xff]
        %v1614 = vld [vmem:[%s230 + $0x28f0] sm:$0xff]
        %v1615 = vld [vmem:[%s230 + $0x28f8] sm:$0xff]
        %v1616 = vld [vmem:[%s230 + $0x2900] sm:$0xff]
        %v1617 = vld [vmem:[%s230 + $0x2908] sm:$0xff]
        %v1618 = vld [vmem:[%s230 + $0x2910] sm:$0xff]
        %v1619 = vld [vmem:[%s230 + $0x2918] sm:$0xff]
        %v1620 = vld [vmem:[%s230 + $0x2920] sm:$0xff]
        %v1621 = vld [vmem:[%s230 + $0x2928] sm:$0xff]
        %v1622 = vld [vmem:[%s230 + $0x2930] sm:$0xff]
        %v1623 = vld [vmem:[%s230 + $0x2938] sm:$0xff]
        %v1624 = vld [vmem:[%s230 + $0x2940] sm:$0xff]
        %v1625 = vld [vmem:[%s230 + $0x2948] sm:$0xff]
        %v1626 = vld [vmem:[%s230 + $0x2950] sm:$0xff]
        %v1627 = vld [vmem:[%s230 + $0x2958] sm:$0xff]
        %v1628 = vld [vmem:[%s230 + $0x2960] sm:$0xff]
        %v1629 = vld [vmem:[%s230 + $0x2968] sm:$0xff]
        %v1630 = vld [vmem:[%s230 + $0x2970] sm:$0xff]
        %v1631 = vld [vmem:[%s230 + $0x2978] sm:$0xff]
        %v1632 = vld [vmem:[%s230 + $0x2980] sm:$0xff]
        %v1633 = vld [vmem:[%s230 + $0x2988] sm:$0xff]
        %v1634 = vld [vmem:[%s230 + $0x2990] sm:$0xff]
        %v1635 = vld [vmem:[%s230 + $0x2998] sm:$0xff]
        %v1636 = vld [vmem:[%s230 + $0x29a0] sm:$0xff]
        %v1637 = vld [vmem:[%s230 + $0x29a8] sm:$0xff]
        %v1638 = vld [vmem:[%s230 + $0x29b0] sm:$0xff]
        %v1639 = vld [vmem:[%s230 + $0x29b8] sm:$0xff]
        %v1640 = vld [vmem:[%s230 + $0x29c0] sm:$0xff]
        %v1641 = vld [vmem:[%s230 + $0x29c8] sm:$0xff]
        %v1642 = vld [vmem:[%s230 + $0x29d0] sm:$0xff]
        %v1643 = vld [vmem:[%s230 + $0x29d8] sm:$0xff]
        %v1644 = vld [vmem:[%s230 + $0x29e0] sm:$0xff]
        %v1645 = vld [vmem:[%s230 + $0x29e8] sm:$0xff]
        %v1646 = vld [vmem:[%s230 + $0x29f0] sm:$0xff]
        %v1647 = vld [vmem:[%s230 + $0x29f8] sm:$0xff]
        %v1648 = vld [vmem:[%s230 + $0x2a00] sm:$0xff]
        %v1649 = vld [vmem:[%s230 + $0x2a08] sm:$0xff]
        %v1650 = vld [vmem:[%s230 + $0x2a10] sm:$0xff]
        %v1651 = vld [vmem:[%s230 + $0x2a18] sm:$0xff]
        %v1652 = vld [vmem:[%s230 + $0x2a20] sm:$0xff]
        %v1653 = vld [vmem:[%s230 + $0x2a28] sm:$0xff]
        %v1654 = vld [vmem:[%s230 + $0x2a30] sm:$0xff]
        %v1655 = vld [vmem:[%s230 + $0x2a38] sm:$0xff]
        %v1656 = vld [vmem:[%s230 + $0x2a40] sm:$0xff]
        %v1657 = vld [vmem:[%s230 + $0x2a48] sm:$0xff]
        %v1658 = vld [vmem:[%s230 + $0x2a50] sm:$0xff]
        %v1659 = vld [vmem:[%s230 + $0x2a58] sm:$0xff]
        %v1660 = vld [vmem:[%s230 + $0x2a60] sm:$0xff]
        %v1661 = vld [vmem:[%s230 + $0x2a68] sm:$0xff]
        %v1662 = vld [vmem:[%s230 + $0x2a70] sm:$0xff]
        %v1663 = vld [vmem:[%s230 + $0x2a78] sm:$0xff]
        %v1664 = vld [vmem:[%s230 + $0x2a80] sm:$0xff]
        %v1665 = vld [vmem:[%s230 + $0x2a88] sm:$0xff]
        %v1666 = vld [vmem:[%s230 + $0x2a90] sm:$0xff]
        %v1667 = vld [vmem:[%s230 + $0x2a98] sm:$0xff]
        %v1668 = vld [vmem:[%s230 + $0x2aa0] sm:$0xff]
        %v1669 = vld [vmem:[%s230 + $0x2aa8] sm:$0xff]
        %v1670 = vld [vmem:[%s230 + $0x2ab0] sm:$0xff]
        %v1671 = vld [vmem:[%s230 + $0x2ab8] sm:$0xff]
        %v1672 = vld [vmem:[%s230 + $0x2ac0] sm:$0xff]
        %v1673 = vld [vmem:[%s230 + $0x2ac8] sm:$0xff]
        %v1674 = vld [vmem:[%s230 + $0x2ad0] sm:$0xff]
        %v1675 = vld [vmem:[%s230 + $0x2ad8] sm:$0xff]
        %v1676 = vld [vmem:[%s230 + $0x2ae0] sm:$0xff]
        %v1677 = vld [vmem:[%s230 + $0x2ae8] sm:$0xff]
        %v1678 = vld [vmem:[%s230 + $0x2af0] sm:$0xff]
        %v1679 = vld [vmem:[%s230 + $0x2af8] sm:$0xff]
        %v1680 = vld [vmem:[%s230 + $0x2b00] sm:$0xff]
        %v1681 = vld [vmem:[%s230 + $0x2b08] sm:$0xff]
        %v1682 = vld [vmem:[%s230 + $0x2b10] sm:$0xff]
        %v1683 = vld [vmem:[%s230 + $0x2b18] sm:$0xff]
        %v1684 = vld [vmem:[%s230 + $0x2b20] sm:$0xff]
        %v1685 = vld [vmem:[%s230 + $0x2b28] sm:$0xff]
        %v1686 = vld [vmem:[%s230 + $0x2b30] sm:$0xff]
        %v1687 = vld [vmem:[%s230 + $0x2b38] sm:$0xff]
        %v1688 = vld [vmem:[%s230 + $0x2b40] sm:$0xff]
        %v1689 = vld [vmem:[%s230 + $0x2b48] sm:$0xff]
        %v1690 = vld [vmem:[%s230 + $0x2b50] sm:$0xff]
        %v1691 = vld [vmem:[%s230 + $0x2b58] sm:$0xff]
        %v1692 = vld [vmem:[%s230 + $0x2b60] sm:$0xff]
        %v1693 = vld [vmem:[%s230 + $0x2b68] sm:$0xff]
        %v1694 = vld [vmem:[%s230 + $0x2b70] sm:$0xff]
        %v1695 = vld [vmem:[%s230 + $0x2b78] sm:$0xff]
        %v1696 = vld [vmem:[%s230 + $0x2b80] sm:$0xff]
        %v1697 = vld [vmem:[%s230 + $0x2b88] sm:$0xff]
        %v1698 = vld [vmem:[%s230 + $0x2b90] sm:$0xff]
        %v1699 = vld [vmem:[%s230 + $0x2b98] sm:$0xff]
        %v1700 = vld [vmem:[%s230 + $0x2ba0] sm:$0xff]
        %v1701 = vld [vmem:[%s230 + $0x2ba8] sm:$0xff]
        %v1702 = vld [vmem:[%s230 + $0x2bb0] sm:$0xff]
        %v1703 = vld [vmem:[%s230 + $0x2bb8] sm:$0xff]
        %v1704 = vld [vmem:[%s230 + $0x2bc0] sm:$0xff]
        %v1705 = vld [vmem:[%s230 + $0x2bc8] sm:$0xff]
        %v1706 = vld [vmem:[%s230 + $0x2bd0] sm:$0xff]
        %v1707 = vld [vmem:[%s230 + $0x2bd8] sm:$0xff]
        %v1708 = vld [vmem:[%s230 + $0x2be0] sm:$0xff]
        %v1709 = vld [vmem:[%s230 + $0x2be8] sm:$0xff]
        %v1710 = vld [vmem:[%s230 + $0x2bf0] sm:$0xff]
        %v1711 = vld [vmem:[%s230 + $0x2bf8] sm:$0xff]
        %v1712 = vld [vmem:[%s230 + $0x2c00] sm:$0xff]
        %v1713 = vld [vmem:[%s230 + $0x2c08] sm:$0xff]
        %v1714 = vld [vmem:[%s230 + $0x2c10] sm:$0xff]
        %v1715 = vld [vmem:[%s230 + $0x2c18] sm:$0xff]
        %v1716 = vld [vmem:[%s230 + $0x2c20] sm:$0xff]
        %v1717 = vld [vmem:[%s230 + $0x2c28] sm:$0xff]
        %v1718 = vld [vmem:[%s230 + $0x2c30] sm:$0xff]
        %v1719 = vld [vmem:[%s230 + $0x2c38] sm:$0xff]
        %v1720 = vld [vmem:[%s230 + $0x2c40] sm:$0xff]
        %v1721 = vld [vmem:[%s230 + $0x2c48] sm:$0xff]
        %v1722 = vld [vmem:[%s230 + $0x2c50] sm:$0xff]
        %v1723 = vld [vmem:[%s230 + $0x2c58] sm:$0xff]
        %v1724 = vld [vmem:[%s230 + $0x2c60] sm:$0xff]
        %v1725 = vld [vmem:[%s230 + $0x2c68] sm:$0xff]
        %v1726 = vld [vmem:[%s230 + $0x2c70] sm:$0xff]
        %v1727 = vld [vmem:[%s230 + $0x2c78] sm:$0xff]
        %v1728 = vld [vmem:[%s230 + $0x2c80] sm:$0xff]
        %v1729 = vld [vmem:[%s230 + $0x2c88] sm:$0xff]
        %v1730 = vld [vmem:[%s230 + $0x2c90] sm:$0xff]
        %v1731 = vld [vmem:[%s230 + $0x2c98] sm:$0xff]
        %v1732 = vld [vmem:[%s230 + $0x2ca0] sm:$0xff]
        %v1733 = vld [vmem:[%s230 + $0x2ca8] sm:$0xff]
        %v1734 = vld [vmem:[%s230 + $0x2cb0] sm:$0xff]
        %v1735 = vld [vmem:[%s230 + $0x2cb8] sm:$0xff]
        %v1736 = vld [vmem:[%s230 + $0x2cc0] sm:$0xff]
        %v1737 = vld [vmem:[%s230 + $0x2cc8] sm:$0xff]
        %v1738 = vld [vmem:[%s230 + $0x2cd0] sm:$0xff]
        %v1739 = vld [vmem:[%s230 + $0x2cd8] sm:$0xff]
        %v1740 = vld [vmem:[%s230 + $0x2ce0] sm:$0xff]
        %v1741 = vld [vmem:[%s230 + $0x2ce8] sm:$0xff]
        %v1742 = vld [vmem:[%s230 + $0x2cf0] sm:$0xff]
        %v1743 = vld [vmem:[%s230 + $0x2cf8] sm:$0xff]
        %v1744 = vld [vmem:[%s230 + $0x2d00] sm:$0xff]
        %v1745 = vld [vmem:[%s230 + $0x2d08] sm:$0xff]
        %v1746 = vld [vmem:[%s230 + $0x2d10] sm:$0xff]
        %v1747 = vld [vmem:[%s230 + $0x2d18] sm:$0xff]
        %v1748 = vld [vmem:[%s230 + $0x2d20] sm:$0xff]
        %v1749 = vld [vmem:[%s230 + $0x2d28] sm:$0xff]
        %v1750 = vld [vmem:[%s230 + $0x2d30] sm:$0xff]
        %v1751 = vld [vmem:[%s230 + $0x2d38] sm:$0xff]
        %v1752 = vld [vmem:[%s230 + $0x2d40] sm:$0xff]
        %v1753 = vld [vmem:[%s230 + $0x2d48] sm:$0xff]
        %v1754 = vld [vmem:[%s230 + $0x2d50] sm:$0xff]
        %v1755 = vld [vmem:[%s230 + $0x2d58] sm:$0xff]
        %v1756 = vld [vmem:[%s230 + $0x2d60] sm:$0xff]
        %v1757 = vld [vmem:[%s230 + $0x2d68] sm:$0xff]
        %v1758 = vld [vmem:[%s230 + $0x2d70] sm:$0xff]
        %v1759 = vld [vmem:[%s230 + $0x2d78] sm:$0xff]
        %v1760 = vld [vmem:[%s230 + $0x2d80] sm:$0xff]
        %v1761 = vld [vmem:[%s230 + $0x2d88] sm:$0xff]
        %v1762 = vld [vmem:[%s230 + $0x2d90] sm:$0xff]
        %v1763 = vld [vmem:[%s230 + $0x2d98] sm:$0xff]
        %v1764 = vld [vmem:[%s230 + $0x2da0] sm:$0xff]
        %v1765 = vld [vmem:[%s230 + $0x2da8] sm:$0xff]
        %v1766 = vld [vmem:[%s230 + $0x2db0] sm:$0xff]
        %v1767 = vld [vmem:[%s230 + $0x2db8] sm:$0xff]
        %v1768 = vld [vmem:[%s230 + $0x2dc0] sm:$0xff]
        %v1769 = vld [vmem:[%s230 + $0x2dc8] sm:$0xff]
        %v1770 = vld [vmem:[%s230 + $0x2dd0] sm:$0xff]
        %v1771 = vld [vmem:[%s230 + $0x2dd8] sm:$0xff]
        %v1772 = vld [vmem:[%s230 + $0x2de0] sm:$0xff]
        %v1773 = vld [vmem:[%s230 + $0x2de8] sm:$0xff]
        %v1774 = vld [vmem:[%s230 + $0x2df0] sm:$0xff]
        %v1775 = vld [vmem:[%s230 + $0x2df8] sm:$0xff]
        %v1776 = vld [vmem:[%s230 + $0x2e00] sm:$0xff]
        %v1777 = vld [vmem:[%s230 + $0x2e08] sm:$0xff]
        %v1778 = vld [vmem:[%s230 + $0x2e10] sm:$0xff]
        %v1779 = vld [vmem:[%s230 + $0x2e18] sm:$0xff]
        %v1780 = vld [vmem:[%s230 + $0x2e20] sm:$0xff]
        %v1781 = vld [vmem:[%s230 + $0x2e28] sm:$0xff]
        %v1782 = vld [vmem:[%s230 + $0x2e30] sm:$0xff]
        %v1783 = vld [vmem:[%s230 + $0x2e38] sm:$0xff]
        %v1784 = vld [vmem:[%s230 + $0x2e40] sm:$0xff]
        %v1785 = vld [vmem:[%s230 + $0x2e48] sm:$0xff]
        %v1786 = vld [vmem:[%s230 + $0x2e50] sm:$0xff]
        %v1787 = vld [vmem:[%s230 + $0x2e58] sm:$0xff]
        %v1788 = vld [vmem:[%s230 + $0x2e60] sm:$0xff]
        %v1789 = vld [vmem:[%s230 + $0x2e68] sm:$0xff]
        %v1790 = vld [vmem:[%s230 + $0x2e70] sm:$0xff]
        %v1791 = vld [vmem:[%s230 + $0x2e78] sm:$0xff]
        %v1792 = vld [vmem:[%s230 + $0x2e80] sm:$0xff]
        %v1793 = vld [vmem:[%s230 + $0x2e88] sm:$0xff]
        %v1794 = vld [vmem:[%s230 + $0x2e90] sm:$0xff]
        %v1795 = vld [vmem:[%s230 + $0x2e98] sm:$0xff]
        %v1796 = vld [vmem:[%s230 + $0x2ea0] sm:$0xff]
        %v1797 = vld [vmem:[%s230 + $0x2ea8] sm:$0xff]
        %v1798 = vld [vmem:[%s230 + $0x2eb0] sm:$0xff]
        %v1799 = vld [vmem:[%s230 + $0x2eb8] sm:$0xff]
        %v1800 = vld [vmem:[%s230 + $0x2ec0] sm:$0xff]
        %v1801 = vld [vmem:[%s230 + $0x2ec8] sm:$0xff]
        %v1802 = vld [vmem:[%s230 + $0x2ed0] sm:$0xff]
        %v1803 = vld [vmem:[%s230 + $0x2ed8] sm:$0xff]
        %v1804 = vld [vmem:[%s230 + $0x2ee0] sm:$0xff]
        %v1805 = vld [vmem:[%s230 + $0x2ee8] sm:$0xff]
        %v1806 = vld [vmem:[%s230 + $0x2ef0] sm:$0xff]
        %v1807 = vld [vmem:[%s230 + $0x2ef8] sm:$0xff]
        %v1808 = vld [vmem:[%s230 + $0x2f00] sm:$0xff]
        %v1809 = vld [vmem:[%s230 + $0x2f08] sm:$0xff]
        %v1810 = vld [vmem:[%s230 + $0x2f10] sm:$0xff]
        %v1811 = vld [vmem:[%s230 + $0x2f18] sm:$0xff]
        %v1812 = vld [vmem:[%s230 + $0x2f20] sm:$0xff]
        %v1813 = vld [vmem:[%s230 + $0x2f28] sm:$0xff]
        %v1814 = vld [vmem:[%s230 + $0x2f30] sm:$0xff]
        %v1815 = vld [vmem:[%s230 + $0x2f38] sm:$0xff]
        %v1816 = vld [vmem:[%s230 + $0x2f40] sm:$0xff]
        %v1817 = vld [vmem:[%s230 + $0x2f48] sm:$0xff]
        %v1818 = vld [vmem:[%s230 + $0x2f50] sm:$0xff]
        %v1819 = vld [vmem:[%s230 + $0x2f58] sm:$0xff]
        %v1820 = vld [vmem:[%s230 + $0x2f60] sm:$0xff]
        %v1821 = vld [vmem:[%s230 + $0x2f68] sm:$0xff]
        %v1822 = vld [vmem:[%s230 + $0x2f70] sm:$0xff]
        %v1823 = vld [vmem:[%s230 + $0x2f78] sm:$0xff]
        %v1824 = vld [vmem:[%s230 + $0x2f80] sm:$0xff]
        %v1825 = vld [vmem:[%s230 + $0x2f88] sm:$0xff]
        %v1826 = vld [vmem:[%s230 + $0x2f90] sm:$0xff]
        %v1827 = vld [vmem:[%s230 + $0x2f98] sm:$0xff]
        %v1828 = vld [vmem:[%s230 + $0x2fa0] sm:$0xff]
        %v1829 = vld [vmem:[%s230 + $0x2fa8] sm:$0xff]
        %v1830 = vld [vmem:[%s230 + $0x2fb0] sm:$0xff]
        %v1831 = vld [vmem:[%s230 + $0x2fb8] sm:$0xff]
        %v1832 = vld [vmem:[%s230 + $0x2fc0] sm:$0xff]
        %v1833 = vld [vmem:[%s230 + $0x2fc8] sm:$0xff]
        %v1834 = vld [vmem:[%s230 + $0x2fd0] sm:$0xff]
        %v1835 = vld [vmem:[%s230 + $0x2fd8] sm:$0xff]
        %v1836 = vld [vmem:[%s230 + $0x2fe0] sm:$0xff]
        %v1837 = vld [vmem:[%s230 + $0x2fe8] sm:$0xff]
        %v1838 = vld [vmem:[%s230 + $0x2ff0] sm:$0xff]
        %v1839 = vld [vmem:[%s230 + $0x2ff8] sm:$0xff]
        %v1840 = vld [vmem:[%s230 + $0x3000] sm:$0xff]
        %v1841 = vld [vmem:[%s230 + $0x3008] sm:$0xff]
        %v1842 = vld [vmem:[%s230 + $0x3010] sm:$0xff]
        %v1843 = vld [vmem:[%s230 + $0x3018] sm:$0xff]
        %v1844 = vld [vmem:[%s230 + $0x3020] sm:$0xff]
        %v1845 = vld [vmem:[%s230 + $0x3028] sm:$0xff]
        %v1846 = vld [vmem:[%s230 + $0x3030] sm:$0xff]
        %v1847 = vld [vmem:[%s230 + $0x3038] sm:$0xff]
        %v1848 = vld [vmem:[%s230 + $0x3040] sm:$0xff]
        %v1849 = vld [vmem:[%s230 + $0x3048] sm:$0xff]
        %v1850 = vld [vmem:[%s230 + $0x3050] sm:$0xff]
        %v1851 = vld [vmem:[%s230 + $0x3058] sm:$0xff]
        %v1852 = vld [vmem:[%s230 + $0x3060] sm:$0xff]
        %v1853 = vld [vmem:[%s230 + $0x3068] sm:$0xff]
        %v1854 = vld [vmem:[%s230 + $0x3070] sm:$0xff]
        %v1855 = vld [vmem:[%s230 + $0x3078] sm:$0xff]
        %v1856 = vld [vmem:[%s230 + $0x3080] sm:$0xff]
        %v1857 = vld [vmem:[%s230 + $0x3088] sm:$0xff]
        %v1858 = vld [vmem:[%s230 + $0x3090] sm:$0xff]
        %v1859 = vld [vmem:[%s230 + $0x3098] sm:$0xff]
        %v1860 = vld [vmem:[%s230 + $0x30a0] sm:$0xff]
        %v1861 = vld [vmem:[%s230 + $0x30a8] sm:$0xff]
        %v1862 = vld [vmem:[%s230 + $0x30b0] sm:$0xff]
        %v1863 = vld [vmem:[%s230 + $0x30b8] sm:$0xff]
        %v1864 = vld [vmem:[%s230 + $0x30c0] sm:$0xff]
        %v1865 = vld [vmem:[%s230 + $0x30c8] sm:$0xff]
        %v1866 = vld [vmem:[%s230 + $0x30d0] sm:$0xff]
        %v1867 = vld [vmem:[%s230 + $0x30d8] sm:$0xff]
        %v1868 = vld [vmem:[%s230 + $0x30e0] sm:$0xff]
        %v1869 = vld [vmem:[%s230 + $0x30e8] sm:$0xff]
        %v1870 = vld [vmem:[%s230 + $0x30f0] sm:$0xff]
        %v1871 = vld [vmem:[%s230 + $0x30f8] sm:$0xff]
        %v1872 = vld [vmem:[%s230 + $0x3100] sm:$0xff]
        %v1873 = vld [vmem:[%s230 + $0x3108] sm:$0xff]
        %v1874 = vld [vmem:[%s230 + $0x3110] sm:$0xff]
        %v1875 = vld [vmem:[%s230 + $0x3118] sm:$0xff]
        %v1876 = vld [vmem:[%s230 + $0x3120] sm:$0xff]
        %v1877 = vld [vmem:[%s230 + $0x3128] sm:$0xff]
        %v1878 = vld [vmem:[%s230 + $0x3130] sm:$0xff]
        %v1879 = vld [vmem:[%s230 + $0x3138] sm:$0xff]
        %v1880 = vld [vmem:[%s230 + $0x3140] sm:$0xff]
        %v1881 = vld [vmem:[%s230 + $0x3148] sm:$0xff]
        %v1882 = vld [vmem:[%s230 + $0x3150] sm:$0xff]
        %v1883 = vld [vmem:[%s230 + $0x3158] sm:$0xff]
        %v1884 = vld [vmem:[%s230 + $0x3160] sm:$0xff]
        %v1885 = vld [vmem:[%s230 + $0x3168] sm:$0xff]
        %v1886 = vld [vmem:[%s230 + $0x3170] sm:$0xff]
        %v1887 = vld [vmem:[%s230 + $0x3178] sm:$0xff]
        %v1888 = vld [vmem:[%s230 + $0x3180] sm:$0xff]
        %v1889 = vld [vmem:[%s230 + $0x3188] sm:$0xff]
        %v1890 = vld [vmem:[%s230 + $0x3190] sm:$0xff]
        %v1891 = vld [vmem:[%s230 + $0x3198] sm:$0xff]
        %v1892 = vld [vmem:[%s230 + $0x31a0] sm:$0xff]
        %v1893 = vld [vmem:[%s230 + $0x31a8] sm:$0xff]
        %v1894 = vld [vmem:[%s230 + $0x31b0] sm:$0xff]
        %v1895 = vld [vmem:[%s230 + $0x31b8] sm:$0xff]
        %v1896 = vld [vmem:[%s230 + $0x31c0] sm:$0xff]
        %v1897 = vld [vmem:[%s230 + $0x31c8] sm:$0xff]
        %v1898 = vld [vmem:[%s230 + $0x31d0] sm:$0xff]
        %v1899 = vld [vmem:[%s230 + $0x31d8] sm:$0xff]
        %v1900 = vld [vmem:[%s230 + $0x31e0] sm:$0xff]
        %v1901 = vld [vmem:[%s230 + $0x31e8] sm:$0xff]
        %v1902 = vld [vmem:[%s230 + $0x31f0] sm:$0xff]
        %v1903 = vld [vmem:[%s230 + $0x31f8] sm:$0xff]
        %v1904 = vld [vmem:[%s230 + $0x3200] sm:$0xff]
        %v1905 = vld [vmem:[%s230 + $0x3208] sm:$0xff]
        %v1906 = vld [vmem:[%s230 + $0x3210] sm:$0xff]
        %v1907 = vld [vmem:[%s230 + $0x3218] sm:$0xff]
        %v1908 = vld [vmem:[%s230 + $0x3220] sm:$0xff]
        %v1909 = vld [vmem:[%s230 + $0x3228] sm:$0xff]
        %v1910 = vld [vmem:[%s230 + $0x3230] sm:$0xff]
        %v1911 = vld [vmem:[%s230 + $0x3238] sm:$0xff]
        %v1912 = vld [vmem:[%s230 + $0x3240] sm:$0xff]
        %v1913 = vld [vmem:[%s230 + $0x3248] sm:$0xff]
        %v1914 = vld [vmem:[%s230 + $0x3250] sm:$0xff]
        %v1915 = vld [vmem:[%s230 + $0x3258] sm:$0xff]
        %v1916 = vld [vmem:[%s230 + $0x3260] sm:$0xff]
        %v1917 = vld [vmem:[%s230 + $0x3268] sm:$0xff]
        %v1918 = vld [vmem:[%s230 + $0x3270] sm:$0xff]
        %v1919 = vld [vmem:[%s230 + $0x3278] sm:$0xff]
        %v1920 = vld [vmem:[%s230 + $0x3280] sm:$0xff]
        %v1921 = vld [vmem:[%s230 + $0x3288] sm:$0xff]
        %v1922 = vld [vmem:[%s230 + $0x3290] sm:$0xff]
        %v1923 = vld [vmem:[%s230 + $0x3298] sm:$0xff]
        %v1924 = vld [vmem:[%s230 + $0x32a0] sm:$0xff]
        %v1925 = vld [vmem:[%s230 + $0x32a8] sm:$0xff]
        %v1926 = vld [vmem:[%s230 + $0x32b0] sm:$0xff]
        %v1927 = vld [vmem:[%s230 + $0x32b8] sm:$0xff]
        %v1928 = vld [vmem:[%s230 + $0x32c0] sm:$0xff]
        %v1929 = vld [vmem:[%s230 + $0x32c8] sm:$0xff]
        %v1930 = vld [vmem:[%s230 + $0x32d0] sm:$0xff]
        %v1931 = vld [vmem:[%s230 + $0x32d8] sm:$0xff]
        %v1932 = vld [vmem:[%s230 + $0x32e0] sm:$0xff]
        %v1933 = vld [vmem:[%s230 + $0x32e8] sm:$0xff]
        %v1934 = vld [vmem:[%s230 + $0x32f0] sm:$0xff]
        %v1935 = vld [vmem:[%s230 + $0x32f8] sm:$0xff]
        %v1936 = vld [vmem:[%s230 + $0x3300] sm:$0xff]
        %v1937 = vld [vmem:[%s230 + $0x3308] sm:$0xff]
        %v1938 = vld [vmem:[%s230 + $0x3310] sm:$0xff]
        %v1939 = vld [vmem:[%s230 + $0x3318] sm:$0xff]
        %v1940 = vld [vmem:[%s230 + $0x3320] sm:$0xff]
        %v1941 = vld [vmem:[%s230 + $0x3328] sm:$0xff]
        %v1942 = vld [vmem:[%s230 + $0x3330] sm:$0xff]
        %v1943 = vld [vmem:[%s230 + $0x3338] sm:$0xff]
        %v1944 = vld [vmem:[%s230 + $0x3340] sm:$0xff]
        %v1945 = vld [vmem:[%s230 + $0x3348] sm:$0xff]
        %v1946 = vld [vmem:[%s230 + $0x3350] sm:$0xff]
        %v1947 = vld [vmem:[%s230 + $0x3358] sm:$0xff]
        %v1948 = vld [vmem:[%s230 + $0x3360] sm:$0xff]
        %v1949 = vld [vmem:[%s230 + $0x3368] sm:$0xff]
        %v1950 = vld [vmem:[%s230 + $0x3370] sm:$0xff]
        %v1951 = vld [vmem:[%s230 + $0x3378] sm:$0xff]
        %v1952 = vld [vmem:[%s230 + $0x3380] sm:$0xff]
        %v1953 = vld [vmem:[%s230 + $0x3388] sm:$0xff]
        %v1954 = vld [vmem:[%s230 + $0x3390] sm:$0xff]
        %v1955 = vld [vmem:[%s230 + $0x3398] sm:$0xff]
        %v1956 = vld [vmem:[%s230 + $0x33a0] sm:$0xff]
        %v1957 = vld [vmem:[%s230 + $0x33a8] sm:$0xff]
        %v1958 = vld [vmem:[%s230 + $0x33b0] sm:$0xff]
        %v1959 = vld [vmem:[%s230 + $0x33b8] sm:$0xff]
        %v1960 = vld [vmem:[%s230 + $0x33c0] sm:$0xff]
        %v1961 = vld [vmem:[%s230 + $0x33c8] sm:$0xff]
        %v1962 = vld [vmem:[%s230 + $0x33d0] sm:$0xff]
        %v1963 = vld [vmem:[%s230 + $0x33d8] sm:$0xff]
        %v1964 = vld [vmem:[%s230 + $0x33e0] sm:$0xff]
        %v1965 = vld [vmem:[%s230 + $0x33e8] sm:$0xff]
        %v1966 = vld [vmem:[%s230 + $0x33f0] sm:$0xff]
        %v1967 = vld [vmem:[%s230 + $0x33f8] sm:$0xff]
        %v1968 = vld [vmem:[%s230 + $0x3400] sm:$0xff]
        %v1969 = vld [vmem:[%s230 + $0x3408] sm:$0xff]
        %v1970 = vld [vmem:[%s230 + $0x3410] sm:$0xff]
        %v1971 = vld [vmem:[%s230 + $0x3418] sm:$0xff]
        %v1972 = vld [vmem:[%s230 + $0x3420] sm:$0xff]
        %v1973 = vld [vmem:[%s230 + $0x3428] sm:$0xff]
        %v1974 = vld [vmem:[%s230 + $0x3430] sm:$0xff]
        %v1975 = vld [vmem:[%s230 + $0x3438] sm:$0xff]
        %v1976 = vld [vmem:[%s230 + $0x3440] sm:$0xff]
        %v1977 = vld [vmem:[%s230 + $0x3448] sm:$0xff]
        %v1978 = vld [vmem:[%s230 + $0x3450] sm:$0xff]
        %v1979 = vld [vmem:[%s230 + $0x3458] sm:$0xff]
        %v1980 = vld [vmem:[%s230 + $0x3460] sm:$0xff]
        %v1981 = vld [vmem:[%s230 + $0x3468] sm:$0xff]
        %v1982 = vld [vmem:[%s230 + $0x3470] sm:$0xff]
        %v1983 = vld [vmem:[%s230 + $0x3478] sm:$0xff]
        %v1984 = vld [vmem:[%s230 + $0x3480] sm:$0xff]
        %v1985 = vld [vmem:[%s230 + $0x3488] sm:$0xff]
        %v1986 = vld [vmem:[%s230 + $0x3490] sm:$0xff]
        %v1987 = vld [vmem:[%s230 + $0x3498] sm:$0xff]
        %v1988 = vld [vmem:[%s230 + $0x34a0] sm:$0xff]
        %v1989 = vld [vmem:[%s230 + $0x34a8] sm:$0xff]
        %v1990 = vld [vmem:[%s230 + $0x34b0] sm:$0xff]
        %v1991 = vld [vmem:[%s230 + $0x34b8] sm:$0xff]
        %v1992 = vld [vmem:[%s230 + $0x34c0] sm:$0xff]
        %v1993 = vld [vmem:[%s230 + $0x34c8] sm:$0xff]
        %v1994 = vld [vmem:[%s230 + $0x34d0] sm:$0xff]
        %v1995 = vld [vmem:[%s230 + $0x34d8] sm:$0xff]
        %v1996 = vld [vmem:[%s230 + $0x34e0] sm:$0xff]
        %v1997 = vld [vmem:[%s230 + $0x34e8] sm:$0xff]
        %v1998 = vld [vmem:[%s230 + $0x34f0] sm:$0xff]
        %v1999 = vld [vmem:[%s230 + $0x34f8] sm:$0xff]
        %v2000 = vld [vmem:[%s230 + $0x3500] sm:$0xff]
        %v2001 = vld [vmem:[%s230 + $0x3508] sm:$0xff]
        %v2002 = vld [vmem:[%s230 + $0x3510] sm:$0xff]
        %v2003 = vld [vmem:[%s230 + $0x3518] sm:$0xff]
        %v2004 = vld [vmem:[%s230 + $0x3520] sm:$0xff]
        %v2005 = vld [vmem:[%s230 + $0x3528] sm:$0xff]
        %v2006 = vld [vmem:[%s230 + $0x3530] sm:$0xff]
        %v2007 = vld [vmem:[%s230 + $0x3538] sm:$0xff]
        %v2008 = vld [vmem:[%s230 + $0x3540] sm:$0xff]
        %v2009 = vld [vmem:[%s230 + $0x3548] sm:$0xff]
        %v2010 = vld [vmem:[%s230 + $0x3550] sm:$0xff]
        %v2011 = vld [vmem:[%s230 + $0x3558] sm:$0xff]
        %v2012 = vld [vmem:[%s230 + $0x3560] sm:$0xff]
        %v2013 = vld [vmem:[%s230 + $0x3568] sm:$0xff]
        %v2014 = vld [vmem:[%s230 + $0x3570] sm:$0xff]
        %v2015 = vld [vmem:[%s230 + $0x3578] sm:$0xff]
        %v2016 = vld [vmem:[%s230 + $0x3580] sm:$0xff]
        %v2017 = vld [vmem:[%s230 + $0x3588] sm:$0xff]
        %v2018 = vld [vmem:[%s230 + $0x3590] sm:$0xff]
        %v2019 = vld [vmem:[%s230 + $0x3598] sm:$0xff]
        %v2020 = vld [vmem:[%s230 + $0x35a0] sm:$0xff]
        %v2021 = vld [vmem:[%s230 + $0x35a8] sm:$0xff]
        %v2022 = vld [vmem:[%s230 + $0x35b0] sm:$0xff]
        %v2023 = vld [vmem:[%s230 + $0x35b8] sm:$0xff]
        %v2024 = vld [vmem:[%s230 + $0x35c0] sm:$0xff]
        %v2025 = vld [vmem:[%s230 + $0x35c8] sm:$0xff]
        %v2026 = vld [vmem:[%s230 + $0x35d0] sm:$0xff]
        %v2027 = vld [vmem:[%s230 + $0x35d8] sm:$0xff]
        %v2028 = vld [vmem:[%s230 + $0x35e0] sm:$0xff]
        %v2029 = vld [vmem:[%s230 + $0x35e8] sm:$0xff]
        %v2030 = vld [vmem:[%s230 + $0x35f0] sm:$0xff]
        %v2031 = vld [vmem:[%s230 + $0x35f8] sm:$0xff]
        %v2032 = vld [vmem:[%s230 + $0x3600] sm:$0xff]
        %v2033 = vld [vmem:[%s230 + $0x3608] sm:$0xff]
        %v2034 = vld [vmem:[%s230 + $0x3610] sm:$0xff]
        %v2035 = vld [vmem:[%s230 + $0x3618] sm:$0xff]
        %v2036 = vld [vmem:[%s230 + $0x3620] sm:$0xff]
        %v2037 = vld [vmem:[%s230 + $0x3628] sm:$0xff]
        %v2038 = vld [vmem:[%s230 + $0x3630] sm:$0xff]
        %v2039 = vld [vmem:[%s230 + $0x3638] sm:$0xff]
        %v2040 = vld [vmem:[%s230 + $0x3640] sm:$0xff]
        %v2041 = vld [vmem:[%s230 + $0x3648] sm:$0xff]
        %v2042 = vld [vmem:[%s230 + $0x3650] sm:$0xff]
        %v2043 = vld [vmem:[%s230 + $0x3658] sm:$0xff]
        %v2044 = vld [vmem:[%s230 + $0x3660] sm:$0xff]
        %v2045 = vld [vmem:[%s230 + $0x3668] sm:$0xff]
        %v2046 = vld [vmem:[%s230 + $0x3670] sm:$0xff]
        %v2047 = vld [vmem:[%s230 + $0x3678] sm:$0xff]
        %v2048 = vld [vmem:[%s230 + $0x3680] sm:$0xff]
        %v2049 = vld [vmem:[%s230 + $0x3688] sm:$0xff]
        %v2050 = vld [vmem:[%s230 + $0x3690] sm:$0xff]
        %v2051 = vld [vmem:[%s230 + $0x3698] sm:$0xff]
        %v2052 = vld [vmem:[%s230 + $0x36a0] sm:$0xff]
        %v2053 = vld [vmem:[%s230 + $0x36a8] sm:$0xff]
        %v2054 = vld [vmem:[%s230 + $0x36b0] sm:$0xff]
        %v2055 = vld [vmem:[%s230 + $0x36b8] sm:$0xff]
        %v2056 = vld [vmem:[%s230 + $0x36c0] sm:$0xff]
        %v2057 = vld [vmem:[%s230 + $0x36c8] sm:$0xff]
        %v2058 = vld [vmem:[%s230 + $0x36d0] sm:$0xff]
        %v2059 = vld [vmem:[%s230 + $0x36d8] sm:$0xff]
        %v2060 = vld [vmem:[%s230 + $0x36e0] sm:$0xff]
        %v2061 = vld [vmem:[%s230 + $0x36e8] sm:$0xff]
        %v2062 = vld [vmem:[%s230 + $0x36f0] sm:$0xff]
        %v2063 = vld [vmem:[%s230 + $0x36f8] sm:$0xff]
        %v2064 = vld [vmem:[%s230 + $0x3700] sm:$0xff]
        %v2065 = vld [vmem:[%s230 + $0x3708] sm:$0xff]
        %v2066 = vld [vmem:[%s230 + $0x3710] sm:$0xff]
        %v2067 = vld [vmem:[%s230 + $0x3718] sm:$0xff]
        %v2068 = vld [vmem:[%s230 + $0x3720] sm:$0xff]
        %v2069 = vld [vmem:[%s230 + $0x3728] sm:$0xff]
        %v2070 = vld [vmem:[%s230 + $0x3730] sm:$0xff]
        %v2071 = vld [vmem:[%s230 + $0x3738] sm:$0xff]
        %v2072 = vld [vmem:[%s230 + $0x3740] sm:$0xff]
        %v2073 = vld [vmem:[%s230 + $0x3748] sm:$0xff]
        %v2074 = vld [vmem:[%s230 + $0x3750] sm:$0xff]
        %v2075 = vld [vmem:[%s230 + $0x3758] sm:$0xff]
        %v2076 = vld [vmem:[%s230 + $0x3760] sm:$0xff]
        %v2077 = vld [vmem:[%s230 + $0x3768] sm:$0xff]
        %v2078 = vld [vmem:[%s230 + $0x3770] sm:$0xff]
        %v2079 = vld [vmem:[%s230 + $0x3778] sm:$0xff]
        %v2080 = vld [vmem:[%s230 + $0x3780] sm:$0xff]
        %v2081 = vld [vmem:[%s230 + $0x3788] sm:$0xff]
        %v2082 = vld [vmem:[%s230 + $0x3790] sm:$0xff]
        %v2083 = vld [vmem:[%s230 + $0x3798] sm:$0xff]
        %v2084 = vld [vmem:[%s230 + $0x37a0] sm:$0xff]
        %v2085 = vld [vmem:[%s230 + $0x37a8] sm:$0xff]
        %v2086 = vld [vmem:[%s230 + $0x37b0] sm:$0xff]
        %v2087 = vld [vmem:[%s230 + $0x37b8] sm:$0xff]
        %v2088 = vld [vmem:[%s230 + $0x37c0] sm:$0xff]
        %v2089 = vld [vmem:[%s230 + $0x37c8] sm:$0xff]
        %v2090 = vld [vmem:[%s230 + $0x37d0] sm:$0xff]
        %v2091 = vld [vmem:[%s230 + $0x37d8] sm:$0xff]
        %v2092 = vld [vmem:[%s230 + $0x37e0] sm:$0xff]
        %v2093 = vld [vmem:[%s230 + $0x37e8] sm:$0xff]
        %v2094 = vld [vmem:[%s230 + $0x37f0] sm:$0xff]
        %v2095 = vld [vmem:[%s230 + $0x37f8] sm:$0xff]
        %v2096 = vld [vmem:[%s230 + $0x3800] sm:$0xff]
        %v2097 = vld [vmem:[%s230 + $0x3808] sm:$0xff]
        %v2098 = vld [vmem:[%s230 + $0x3810] sm:$0xff]
        %v2099 = vld [vmem:[%s230 + $0x3818] sm:$0xff]
        %v2100 = vld [vmem:[%s230 + $0x3820] sm:$0xff]
        %v2101 = vld [vmem:[%s230 + $0x3828] sm:$0xff]
        %v2102 = vld [vmem:[%s230 + $0x3830] sm:$0xff]
        %v2103 = vld [vmem:[%s230 + $0x3838] sm:$0xff]
        %v2104 = vld [vmem:[%s230 + $0x3840] sm:$0xff]
        %v2105 = vld [vmem:[%s230 + $0x3848] sm:$0xff]
        %v2106 = vld [vmem:[%s230 + $0x3850] sm:$0xff]
        %v2107 = vld [vmem:[%s230 + $0x3858] sm:$0xff]
        %v2108 = vld [vmem:[%s230 + $0x3860] sm:$0xff]
        %v2109 = vld [vmem:[%s230 + $0x3868] sm:$0xff]
        %v2110 = vld [vmem:[%s230 + $0x3870] sm:$0xff]
        %v2111 = vld [vmem:[%s230 + $0x3878] sm:$0xff]
        %v2112 = vld [vmem:[%s230 + $0x3880] sm:$0xff]
        %v2113 = vld [vmem:[%s230 + $0x3888] sm:$0xff]
        %v2114 = vld [vmem:[%s230 + $0x3890] sm:$0xff]
        %v2115 = vld [vmem:[%s230 + $0x3898] sm:$0xff]
        %v2116 = vld [vmem:[%s230 + $0x38a0] sm:$0xff]
        %v2117 = vld [vmem:[%s230 + $0x38a8] sm:$0xff]
        %v2118 = vld [vmem:[%s230 + $0x38b0] sm:$0xff]
        %v2119 = vld [vmem:[%s230 + $0x38b8] sm:$0xff]
        %v2120 = vld [vmem:[%s230 + $0x38c0] sm:$0xff]
        %v2121 = vld [vmem:[%s230 + $0x38c8] sm:$0xff]
        %v2122 = vld [vmem:[%s230 + $0x38d0] sm:$0xff]
        %v2123 = vld [vmem:[%s230 + $0x38d8] sm:$0xff]
        %v2124 = vld [vmem:[%s230 + $0x38e0] sm:$0xff]
        %v2125 = vld [vmem:[%s230 + $0x38e8] sm:$0xff]
        %v2126 = vld [vmem:[%s230 + $0x38f0] sm:$0xff]
        %v2127 = vld [vmem:[%s230 + $0x38f8] sm:$0xff]
        %v2128 = vld [vmem:[%s230 + $0x3900] sm:$0xff]
        %v2129 = vld [vmem:[%s230 + $0x3908] sm:$0xff]
        %v2130 = vld [vmem:[%s230 + $0x3910] sm:$0xff]
        %v2131 = vld [vmem:[%s230 + $0x3918] sm:$0xff]
        %v2132 = vld [vmem:[%s230 + $0x3920] sm:$0xff]
        %v2133 = vld [vmem:[%s230 + $0x3928] sm:$0xff]
        %v2134 = vld [vmem:[%s230 + $0x3930] sm:$0xff]
        %v2135 = vld [vmem:[%s230 + $0x3938] sm:$0xff]
        %v2136 = vld [vmem:[%s230 + $0x3940] sm:$0xff]
        %v2137 = vld [vmem:[%s230 + $0x3948] sm:$0xff]
        %v2138 = vld [vmem:[%s230 + $0x3950] sm:$0xff]
        %v2139 = vld [vmem:[%s230 + $0x3958] sm:$0xff]
        %v2140 = vld [vmem:[%s230 + $0x3960] sm:$0xff]
        %v2141 = vld [vmem:[%s230 + $0x3968] sm:$0xff]
        %v2142 = vld [vmem:[%s230 + $0x3970] sm:$0xff]
        %v2143 = vld [vmem:[%s230 + $0x3978] sm:$0xff]
        %v2144 = vld [vmem:[%s230 + $0x3980] sm:$0xff]
        %v2145 = vld [vmem:[%s230 + $0x3988] sm:$0xff]
        %v2146 = vld [vmem:[%s230 + $0x3990] sm:$0xff]
        %v2147 = vld [vmem:[%s230 + $0x3998] sm:$0xff]
        %v2148 = vld [vmem:[%s230 + $0x39a0] sm:$0xff]
        %v2149 = vld [vmem:[%s230 + $0x39a8] sm:$0xff]
        %v2150 = vld [vmem:[%s230 + $0x39b0] sm:$0xff]
        %v2151 = vld [vmem:[%s230 + $0x39b8] sm:$0xff]
        %v2152 = vld [vmem:[%s230 + $0x39c0] sm:$0xff]
        %v2153 = vld [vmem:[%s230 + $0x39c8] sm:$0xff]
        %v2154 = vld [vmem:[%s230 + $0x39d0] sm:$0xff]
        %v2155 = vld [vmem:[%s230 + $0x39d8] sm:$0xff]
        %v2156 = vld [vmem:[%s230 + $0x39e0] sm:$0xff]
        %v2157 = vld [vmem:[%s230 + $0x39e8] sm:$0xff]
        %v2158 = vld [vmem:[%s230 + $0x39f0] sm:$0xff]
        %v2159 = vld [vmem:[%s230 + $0x39f8] sm:$0xff]
        %v2160 = vld [vmem:[%s230 + $0x3a00] sm:$0xff]
        %v2161 = vld [vmem:[%s230 + $0x3a08] sm:$0xff]
        %v2162 = vld [vmem:[%s230 + $0x3a10] sm:$0xff]
        %v2163 = vld [vmem:[%s230 + $0x3a18] sm:$0xff]
        %v2164 = vld [vmem:[%s230 + $0x3a20] sm:$0xff]
        %v2165 = vld [vmem:[%s230 + $0x3a28] sm:$0xff]
        %v2166 = vld [vmem:[%s230 + $0x3a30] sm:$0xff]
        %v2167 = vld [vmem:[%s230 + $0x3a38] sm:$0xff]
        %v2168 = vld [vmem:[%s230 + $0x3a40] sm:$0xff]
        %v2169 = vld [vmem:[%s230 + $0x3a48] sm:$0xff]
        %v2170 = vld [vmem:[%s230 + $0x3a50] sm:$0xff]
        %v2171 = vld [vmem:[%s230 + $0x3a58] sm:$0xff]
        %v2172 = vld [vmem:[%s230 + $0x3a60] sm:$0xff]
        %v2173 = vld [vmem:[%s230 + $0x3a68] sm:$0xff]
        %v2174 = vld [vmem:[%s230 + $0x3a70] sm:$0xff]
        %v2175 = vld [vmem:[%s230 + $0x3a78] sm:$0xff]
        %v2176 = vld [vmem:[%s230 + $0x3a80] sm:$0xff]
        %v2177 = vld [vmem:[%s230 + $0x3a88] sm:$0xff]
        %v2178 = vld [vmem:[%s230 + $0x3a90] sm:$0xff]
        %v2179 = vld [vmem:[%s230 + $0x3a98] sm:$0xff]
        %v2180 = vld [vmem:[%s230 + $0x3aa0] sm:$0xff]
        %v2181 = vld [vmem:[%s230 + $0x3aa8] sm:$0xff]
        %v2182 = vld [vmem:[%s230 + $0x3ab0] sm:$0xff]
        %v2183 = vld [vmem:[%s230 + $0x3ab8] sm:$0xff]
        %v2184 = vld [vmem:[%s230 + $0x3ac0] sm:$0xff]
        %v2185 = vld [vmem:[%s230 + $0x3ac8] sm:$0xff]
        %v2186 = vld [vmem:[%s230 + $0x3ad0] sm:$0xff]
        %v2187 = vld [vmem:[%s230 + $0x3ad8] sm:$0xff]
        %v2188 = vld [vmem:[%s230 + $0x3ae0] sm:$0xff]
        %v2189 = vld [vmem:[%s230 + $0x3ae8] sm:$0xff]
        %v2190 = vld [vmem:[%s230 + $0x3af0] sm:$0xff]
        %v2191 = vld [vmem:[%s230 + $0x3af8] sm:$0xff]
        %v2192 = vld [vmem:[%s230 + $0x3b00] sm:$0xff]
        %v2193 = vld [vmem:[%s230 + $0x3b08] sm:$0xff]
        %v2194 = vld [vmem:[%s230 + $0x3b10] sm:$0xff]
        %v2195 = vld [vmem:[%s230 + $0x3b18] sm:$0xff]
        %v2196 = vld [vmem:[%s230 + $0x3b20] sm:$0xff]
        %v2197 = vld [vmem:[%s230 + $0x3b28] sm:$0xff]
        %v2198 = vld [vmem:[%s230 + $0x3b30] sm:$0xff]
        %v2199 = vld [vmem:[%s230 + $0x3b38] sm:$0xff]
        %v2200 = vld [vmem:[%s230 + $0x3b40] sm:$0xff]
        %v2201 = vld [vmem:[%s230 + $0x3b48] sm:$0xff]
        %v2202 = vld [vmem:[%s230 + $0x3b50] sm:$0xff]
        %v2203 = vld [vmem:[%s230 + $0x3b58] sm:$0xff]
        %v2204 = vld [vmem:[%s230 + $0x3b60] sm:$0xff]
        %v2205 = vld [vmem:[%s230 + $0x3b68] sm:$0xff]
        %v2206 = vld [vmem:[%s230 + $0x3b70] sm:$0xff]
        %v2207 = vld [vmem:[%s230 + $0x3b78] sm:$0xff]
        %v2208 = vld [vmem:[%s230 + $0x3b80] sm:$0xff]
        %v2209 = vld [vmem:[%s230 + $0x3b88] sm:$0xff]
        %v2210 = vld [vmem:[%s230 + $0x3b90] sm:$0xff]
        %v2211 = vld [vmem:[%s230 + $0x3b98] sm:$0xff]
        %v2212 = vld [vmem:[%s230 + $0x3ba0] sm:$0xff]
        %v2213 = vld [vmem:[%s230 + $0x3ba8] sm:$0xff]
        %v2214 = vld [vmem:[%s230 + $0x3bb0] sm:$0xff]
        %v2215 = vld [vmem:[%s230 + $0x3bb8] sm:$0xff]
        %v2216 = vld [vmem:[%s230 + $0x3bc0] sm:$0xff]
        %v2217 = vld [vmem:[%s230 + $0x3bc8] sm:$0xff]
        %v2218 = vld [vmem:[%s230 + $0x3bd0] sm:$0xff]
        %v2219 = vld [vmem:[%s230 + $0x3bd8] sm:$0xff]
        %v2220 = vld [vmem:[%s230 + $0x3be0] sm:$0xff]
        %v2221 = vld [vmem:[%s230 + $0x3be8] sm:$0xff]
        %v2222 = vld [vmem:[%s230 + $0x3bf0] sm:$0xff]
        %v2223 = vld [vmem:[%s230 + $0x3bf8] sm:$0xff]
        %v2224 = vld [vmem:[%s230 + $0x3c00] sm:$0xff]
        %v2225 = vld [vmem:[%s230 + $0x3c08] sm:$0xff]
        %v2226 = vld [vmem:[%s230 + $0x3c10] sm:$0xff]
        %v2227 = vld [vmem:[%s230 + $0x3c18] sm:$0xff]
        %v2228 = vld [vmem:[%s230 + $0x3c20] sm:$0xff]
        %v2229 = vld [vmem:[%s230 + $0x3c28] sm:$0xff]
        %v2230 = vld [vmem:[%s230 + $0x3c30] sm:$0xff]
        %v2231 = vld [vmem:[%s230 + $0x3c38] sm:$0xff]
        %v2232 = vld [vmem:[%s230 + $0x3c40] sm:$0xff]
        %v2233 = vld [vmem:[%s230 + $0x3c48] sm:$0xff]
        %v2234 = vld [vmem:[%s230 + $0x3c50] sm:$0xff]
        %v2235 = vld [vmem:[%s230 + $0x3c58] sm:$0xff]
        %v2236 = vld [vmem:[%s230 + $0x3c60] sm:$0xff]
        %v2237 = vld [vmem:[%s230 + $0x3c68] sm:$0xff]
        %v2238 = vld [vmem:[%s230 + $0x3c70] sm:$0xff]
        %v2239 = vld [vmem:[%s230 + $0x3c78] sm:$0xff]
        %v2240 = vld [vmem:[%s230 + $0x3c80] sm:$0xff]
        %v2241 = vld [vmem:[%s230 + $0x3c88] sm:$0xff]
        %v2242 = vld [vmem:[%s230 + $0x3c90] sm:$0xff]
        %v2243 = vld [vmem:[%s230 + $0x3c98] sm:$0xff]
        %v2244 = vld [vmem:[%s230 + $0x3ca0] sm:$0xff]
        %v2245 = vld [vmem:[%s230 + $0x3ca8] sm:$0xff]
        %v2246 = vld [vmem:[%s230 + $0x3cb0] sm:$0xff]
        %v2247 = vld [vmem:[%s230 + $0x3cb8] sm:$0xff]
        %v2248 = vld [vmem:[%s230 + $0x3cc0] sm:$0xff]
        %v2249 = vld [vmem:[%s230 + $0x3cc8] sm:$0xff]
        %v2250 = vld [vmem:[%s230 + $0x3cd0] sm:$0xff]
        %v2251 = vld [vmem:[%s230 + $0x3cd8] sm:$0xff]
        %v2252 = vld [vmem:[%s230 + $0x3ce0] sm:$0xff]
        %v2253 = vld [vmem:[%s230 + $0x3ce8] sm:$0xff]
        %v2254 = vld [vmem:[%s230 + $0x3cf0] sm:$0xff]
        %v2255 = vld [vmem:[%s230 + $0x3cf8] sm:$0xff]
        %v2256 = vld [vmem:[%s230 + $0x3d00] sm:$0xff]
        %v2257 = vld [vmem:[%s230 + $0x3d08] sm:$0xff]
        %v2258 = vld [vmem:[%s230 + $0x3d10] sm:$0xff]
        %v2259 = vld [vmem:[%s230 + $0x3d18] sm:$0xff]
        %v2260 = vld [vmem:[%s230 + $0x3d20] sm:$0xff]
        %v2261 = vld [vmem:[%s230 + $0x3d28] sm:$0xff]
        %v2262 = vld [vmem:[%s230 + $0x3d30] sm:$0xff]
        %v2263 = vld [vmem:[%s230 + $0x3d38] sm:$0xff]
        %v2264 = vld [vmem:[%s230 + $0x3d40] sm:$0xff]
        %v2265 = vld [vmem:[%s230 + $0x3d48] sm:$0xff]
        %v2266 = vld [vmem:[%s230 + $0x3d50] sm:$0xff]
        %v2267 = vld [vmem:[%s230 + $0x3d58] sm:$0xff]
        %v2268 = vld [vmem:[%s230 + $0x3d60] sm:$0xff]
        %v2269 = vld [vmem:[%s230 + $0x3d68] sm:$0xff]
        %v2270 = vld [vmem:[%s230 + $0x3d70] sm:$0xff]
        %v2271 = vld [vmem:[%s230 + $0x3d78] sm:$0xff]
        %v2272 = vld [vmem:[%s230 + $0x3d80] sm:$0xff]
        %v2273 = vld [vmem:[%s230 + $0x3d88] sm:$0xff]
        %v2274 = vld [vmem:[%s230 + $0x3d90] sm:$0xff]
        %v2275 = vld [vmem:[%s230 + $0x3d98] sm:$0xff]
        %v2276 = vld [vmem:[%s230 + $0x3da0] sm:$0xff]
        %v2277 = vld [vmem:[%s230 + $0x3da8] sm:$0xff]
        %v2278 = vld [vmem:[%s230 + $0x3db0] sm:$0xff]
        %v2279 = vld [vmem:[%s230 + $0x3db8] sm:$0xff]
        %v2280 = vld [vmem:[%s230 + $0x3dc0] sm:$0xff]
        %v2281 = vld [vmem:[%s230 + $0x3dc8] sm:$0xff]
        %v2282 = vld [vmem:[%s230 + $0x3dd0] sm:$0xff]
        %v2283 = vld [vmem:[%s230 + $0x3dd8] sm:$0xff]
        %v2284 = vld [vmem:[%s230 + $0x3de0] sm:$0xff]
        %v2285 = vld [vmem:[%s230 + $0x3de8] sm:$0xff]
        %v2286 = vld [vmem:[%s230 + $0x3df0] sm:$0xff]
        %v2287 = vld [vmem:[%s230 + $0x3df8] sm:$0xff]
        %v2288 = vld [vmem:[%s230 + $0x3e00] sm:$0xff]
        %v2289 = vld [vmem:[%s230 + $0x3e08] sm:$0xff]
        %v2290 = vld [vmem:[%s230 + $0x3e10] sm:$0xff]
        %v2291 = vld [vmem:[%s230 + $0x3e18] sm:$0xff]
        %v2292 = vld [vmem:[%s230 + $0x3e20] sm:$0xff]
        %v2293 = vld [vmem:[%s230 + $0x3e28] sm:$0xff]
        %v2294 = vld [vmem:[%s230 + $0x3e30] sm:$0xff]
        %v2295 = vld [vmem:[%s230 + $0x3e38] sm:$0xff]
        %v2296 = vld [vmem:[%s230 + $0x3e40] sm:$0xff]
        %v2297 = vld [vmem:[%s230 + $0x3e48] sm:$0xff]
        %v2298 = vld [vmem:[%s230 + $0x3e50] sm:$0xff]
        %v2299 = vld [vmem:[%s230 + $0x3e58] sm:$0xff]
        %v2300 = vld [vmem:[%s230 + $0x3e60] sm:$0xff]
        %v2301 = vld [vmem:[%s230 + $0x3e68] sm:$0xff]
        %v2302 = vld [vmem:[%s230 + $0x3e70] sm:$0xff]
        %v2303 = vld [vmem:[%s230 + $0x3e78] sm:$0xff]
        %v2304 = vld [vmem:[%s230 + $0x3e80] sm:$0xff]
        %v2305 = vld [vmem:[%s230 + $0x3e88] sm:$0xff]
        %v2306 = vld [vmem:[%s230 + $0x3e90] sm:$0xff]
        %v2307 = vld [vmem:[%s230 + $0x3e98] sm:$0xff]
        %v2308 = vld [vmem:[%s230 + $0x3ea0] sm:$0xff]
        %v2309 = vld [vmem:[%s230 + $0x3ea8] sm:$0xff]
        %v2310 = vld [vmem:[%s230 + $0x3eb0] sm:$0xff]
        %v2311 = vld [vmem:[%s230 + $0x3eb8] sm:$0xff]
        %v2312 = vld [vmem:[%s230 + $0x3ec0] sm:$0xff]
        %v2313 = vld [vmem:[%s230 + $0x3ec8] sm:$0xff]
        %v2314 = vld [vmem:[%s230 + $0x3ed0] sm:$0xff]
        %v2315 = vld [vmem:[%s230 + $0x3ed8] sm:$0xff]
        %v2316 = vld [vmem:[%s230 + $0x3ee0] sm:$0xff]
        %v2317 = vld [vmem:[%s230 + $0x3ee8] sm:$0xff]
        %v2318 = vld [vmem:[%s230 + $0x3ef0] sm:$0xff]
        %v2319 = vld [vmem:[%s230 + $0x3ef8] sm:$0xff]
        %v2320 = vld [vmem:[%s230 + $0x3f00] sm:$0xff]
        %v2321 = vld [vmem:[%s230 + $0x3f08] sm:$0xff]
        %v2322 = vld [vmem:[%s230 + $0x3f10] sm:$0xff]
        %v2323 = vld [vmem:[%s230 + $0x3f18] sm:$0xff]
        %v2324 = vld [vmem:[%s230 + $0x3f20] sm:$0xff]
        %v2325 = vld [vmem:[%s230 + $0x3f28] sm:$0xff]
        %v2326 = vld [vmem:[%s230 + $0x3f30] sm:$0xff]
        %v2327 = vld [vmem:[%s230 + $0x3f38] sm:$0xff]
        %v2328 = vld [vmem:[%s230 + $0x3f40] sm:$0xff]
        %v2329 = vld [vmem:[%s230 + $0x3f48] sm:$0xff]
        %v2330 = vld [vmem:[%s230 + $0x3f50] sm:$0xff]
        %v2331 = vld [vmem:[%s230 + $0x3f58] sm:$0xff]
        %v2332 = vld [vmem:[%s230 + $0x3f60] sm:$0xff]
        %v2333 = vld [vmem:[%s230 + $0x3f68] sm:$0xff]
        %v2334 = vld [vmem:[%s230 + $0x3f70] sm:$0xff]
        %v2335 = vld [vmem:[%s230 + $0x3f78] sm:$0xff]
        %v2336 = vld [vmem:[%s230 + $0x3f80] sm:$0xff]
        %v2337 = vld [vmem:[%s230 + $0x3f88] sm:$0xff]
        %v2338 = vld [vmem:[%s230 + $0x3f90] sm:$0xff]
        %v2339 = vld [vmem:[%s230 + $0x3f98] sm:$0xff]
        %v2340 = vld [vmem:[%s230 + $0x3fa0] sm:$0xff]
        %v2341 = vld [vmem:[%s230 + $0x3fa8] sm:$0xff]
        %v2342 = vld [vmem:[%s230 + $0x3fb0] sm:$0xff]
        %v2343 = vld [vmem:[%s230 + $0x3fb8] sm:$0xff]
        %v2344 = vld [vmem:[%s230 + $0x3fc0] sm:$0xff]
        %v2345 = vld [vmem:[%s230 + $0x3fc8] sm:$0xff]
        %v2346 = vld [vmem:[%s230 + $0x3fd0] sm:$0xff]
        %v2347 = vld [vmem:[%s230 + $0x3fd8] sm:$0xff]
        %v2348 = vld [vmem:[%s230 + $0x3fe0] sm:$0xff]
        %v2349 = vld [vmem:[%s230 + $0x3fe8] sm:$0xff]
        %v2350 = vld [vmem:[%s230 + $0x3ff0] sm:$0xff]
        %v2351 = vld [vmem:[%s230 + $0x3ff8] sm:$0xff]
        %v2352 = vld [vmem:[%s230 + $0x4000] sm:$0xff]
        %v2353 = vld [vmem:[%s230 + $0x4008] sm:$0xff]
        %v2354 = vld [vmem:[%s230 + $0x4010] sm:$0xff]
        %v2355 = vld [vmem:[%s230 + $0x4018] sm:$0xff]
        %v2356 = vld [vmem:[%s230 + $0x4020] sm:$0xff]
        %v2357 = vld [vmem:[%s230 + $0x4028] sm:$0xff]
        %v2358 = vld [vmem:[%s230 + $0x4030] sm:$0xff]
        %v2359 = vld [vmem:[%s230 + $0x4038] sm:$0xff]
        %v2360 = vld [vmem:[%s230 + $0x4040] sm:$0xff]
        %v2361 = vld [vmem:[%s230 + $0x4048] sm:$0xff]
        %v2362 = vld [vmem:[%s230 + $0x4050] sm:$0xff]
        %v2363 = vld [vmem:[%s230 + $0x4058] sm:$0xff]
        %v2364 = vld [vmem:[%s230 + $0x4060] sm:$0xff]
        %v2365 = vld [vmem:[%s230 + $0x4068] sm:$0xff]
        %v2366 = vld [vmem:[%s230 + $0x4070] sm:$0xff]
        %v2367 = vld [vmem:[%s230 + $0x4078] sm:$0xff]
        %v2368 = vld [vmem:[%s230 + $0x4080] sm:$0xff]
        %v2369 = vld [vmem:[%s230 + $0x4088] sm:$0xff]
        %v2370 = vld [vmem:[%s230 + $0x4090] sm:$0xff]
        %v2371 = vld [vmem:[%s230 + $0x4098] sm:$0xff]
        %v2372 = vld [vmem:[%s230 + $0x40a0] sm:$0xff]
        %v2373 = vld [vmem:[%s230 + $0x40a8] sm:$0xff]
        %v2374 = vld [vmem:[%s230 + $0x40b0] sm:$0xff]
        %v2375 = vld [vmem:[%s230 + $0x40b8] sm:$0xff]
        %v2376 = vld [vmem:[%s230 + $0x40c0] sm:$0xff]
        %v2377 = vld [vmem:[%s230 + $0x40c8] sm:$0xff]
        %v2378 = vld [vmem:[%s230 + $0x40d0] sm:$0xff]
        %v2379 = vld [vmem:[%s230 + $0x40d8] sm:$0xff]
        %v2380 = vld [vmem:[%s230 + $0x40e0] sm:$0xff]
        %v2381 = vld [vmem:[%s230 + $0x40e8] sm:$0xff]
        %v2382 = vld [vmem:[%s230 + $0x40f0] sm:$0xff]
        %v2383 = vld [vmem:[%s230 + $0x40f8] sm:$0xff]
        %v2384 = vld [vmem:[%s230 + $0x4100] sm:$0xff]
        %v2385 = vld [vmem:[%s230 + $0x4108] sm:$0xff]
        %v2386 = vld [vmem:[%s230 + $0x4110] sm:$0xff]
        %v2387 = vld [vmem:[%s230 + $0x4118] sm:$0xff]
        %v2388 = vld [vmem:[%s230 + $0x4120] sm:$0xff]
        %v2389 = vld [vmem:[%s230 + $0x4128] sm:$0xff]
        %v2390 = vld [vmem:[%s230 + $0x4130] sm:$0xff]
        %v2391 = vld [vmem:[%s230 + $0x4138] sm:$0xff]
        %v2392 = vld [vmem:[%s230 + $0x4140] sm:$0xff]
        %v2393 = vld [vmem:[%s230 + $0x4148] sm:$0xff]
        %v2394 = vld [vmem:[%s230 + $0x4150] sm:$0xff]
        %v2395 = vld [vmem:[%s230 + $0x4158] sm:$0xff]
        %v2396 = vld [vmem:[%s230 + $0x4160] sm:$0xff]
        %v2397 = vld [vmem:[%s230 + $0x4168] sm:$0xff]
        %v2398 = vld [vmem:[%s230 + $0x4170] sm:$0xff]
        %v2399 = vld [vmem:[%s230 + $0x4178] sm:$0xff]
        %v2400 = vld [vmem:[%s230 + $0x4180] sm:$0xff]
        %v2401 = vld [vmem:[%s230 + $0x4188] sm:$0xff]
        %v2402 = vld [vmem:[%s230 + $0x4190] sm:$0xff]
        %v2403 = vld [vmem:[%s230 + $0x4198] sm:$0xff]
        %v2404 = vld [vmem:[%s230 + $0x41a0] sm:$0xff]
        %v2405 = vld [vmem:[%s230 + $0x41a8] sm:$0xff]
        %v2406 = vld [vmem:[%s230 + $0x41b0] sm:$0xff]
        %v2407 = vld [vmem:[%s230 + $0x41b8] sm:$0xff]
        %v2408 = vld [vmem:[%s230 + $0x41c0] sm:$0xff]
        %v2409 = vld [vmem:[%s230 + $0x41c8] sm:$0xff]
        %v2410 = vld [vmem:[%s230 + $0x41d0] sm:$0xff]
        %v2411 = vld [vmem:[%s230 + $0x41d8] sm:$0xff]
        %v2412 = vld [vmem:[%s230 + $0x41e0] sm:$0xff]
        %v2413 = vld [vmem:[%s230 + $0x41e8] sm:$0xff]
        %v2414 = vld [vmem:[%s230 + $0x41f0] sm:$0xff]
        %v2415 = vld [vmem:[%s230 + $0x41f8] sm:$0xff]
        %v2416 = vld [vmem:[%s230 + $0x4200] sm:$0xff]
        %v2417 = vld [vmem:[%s230 + $0x4208] sm:$0xff]
        %v2418 = vld [vmem:[%s230 + $0x4210] sm:$0xff]
        %v2419 = vld [vmem:[%s230 + $0x4218] sm:$0xff]
        %v2420 = vld [vmem:[%s230 + $0x4220] sm:$0xff]
        %v2421 = vld [vmem:[%s230 + $0x4228] sm:$0xff]
        %v2422 = vld [vmem:[%s230 + $0x4230] sm:$0xff]
        %v2423 = vld [vmem:[%s230 + $0x4238] sm:$0xff]
        %v2424 = vld [vmem:[%s230 + $0x4240] sm:$0xff]
        %v2425 = vld [vmem:[%s230 + $0x4248] sm:$0xff]
        %v2426 = vld [vmem:[%s230 + $0x4250] sm:$0xff]
        %v2427 = vld [vmem:[%s230 + $0x4258] sm:$0xff]
        %v2428 = vld [vmem:[%s230 + $0x4260] sm:$0xff]
        %v2429 = vld [vmem:[%s230 + $0x4268] sm:$0xff]
        %v2430 = vld [vmem:[%s230 + $0x4270] sm:$0xff]
        %v2431 = vld [vmem:[%s230 + $0x4278] sm:$0xff]
        %v2432 = vld [vmem:[%s230 + $0x4280] sm:$0xff]
        %v2433 = vld [vmem:[%s230 + $0x4288] sm:$0xff]
        %v2434 = vld [vmem:[%s230 + $0x4290] sm:$0xff]
        %v2435 = vld [vmem:[%s230 + $0x4298] sm:$0xff]
        %v2436 = vld [vmem:[%s230 + $0x42a0] sm:$0xff]
        %v2437 = vld [vmem:[%s230 + $0x42a8] sm:$0xff]
        %v2438 = vld [vmem:[%s230 + $0x42b0] sm:$0xff]
        %v2439 = vld [vmem:[%s230 + $0x42b8] sm:$0xff]
        %v2440 = vld [vmem:[%s230 + $0x42c0] sm:$0xff]
        %v2441 = vld [vmem:[%s230 + $0x42c8] sm:$0xff]
        %v2442 = vld [vmem:[%s230 + $0x42d0] sm:$0xff]
        %v2443 = vld [vmem:[%s230 + $0x42d8] sm:$0xff]
        %v2444 = vld [vmem:[%s230 + $0x42e0] sm:$0xff]
        %v2445 = vld [vmem:[%s230 + $0x42e8] sm:$0xff]
        %v2446 = vld [vmem:[%s230 + $0x42f0] sm:$0xff]
        %v2447 = vld [vmem:[%s230 + $0x42f8] sm:$0xff]
        %v2448 = vld [vmem:[%s230 + $0x4300] sm:$0xff]
        %v2449 = vld [vmem:[%s230 + $0x4308] sm:$0xff]
        %v2450 = vld [vmem:[%s230 + $0x4310] sm:$0xff]
        %v2451 = vld [vmem:[%s230 + $0x4318] sm:$0xff]
        %v2452 = vld [vmem:[%s230 + $0x4320] sm:$0xff]
        %v2453 = vld [vmem:[%s230 + $0x4328] sm:$0xff]
        %v2454 = vld [vmem:[%s230 + $0x4330] sm:$0xff]
        %v2455 = vld [vmem:[%s230 + $0x4338] sm:$0xff]
        %v2456 = vld [vmem:[%s230 + $0x4340] sm:$0xff]
        %v2457 = vld [vmem:[%s230 + $0x4348] sm:$0xff]
        %v2458 = vld [vmem:[%s230 + $0x4350] sm:$0xff]
        %v2459 = vld [vmem:[%s230 + $0x4358] sm:$0xff]
        %v2460 = vld [vmem:[%s230 + $0x4360] sm:$0xff]
        %v2461 = vld [vmem:[%s230 + $0x4368] sm:$0xff]
        %v2462 = vld [vmem:[%s230 + $0x4370] sm:$0xff]
        %v2463 = vld [vmem:[%s230 + $0x4378] sm:$0xff]
        %v2464 = vld [vmem:[%s230 + $0x4380] sm:$0xff]
        %v2465 = vld [vmem:[%s230 + $0x4388] sm:$0xff]
        %v2466 = vld [vmem:[%s230 + $0x4390] sm:$0xff]
        %v2467 = vld [vmem:[%s230 + $0x4398] sm:$0xff]
        %v2468 = vld [vmem:[%s230 + $0x43a0] sm:$0xff]
        %v2469 = vld [vmem:[%s230 + $0x43a8] sm:$0xff]
        %v2470 = vld [vmem:[%s230 + $0x43b0] sm:$0xff]
        %v2471 = vld [vmem:[%s230 + $0x43b8] sm:$0xff]
        %v2472 = vld [vmem:[%s230 + $0x43c0] sm:$0xff]
        %v2473 = vld [vmem:[%s230 + $0x43c8] sm:$0xff]
        %v2474 = vld [vmem:[%s230 + $0x43d0] sm:$0xff]
        %v2475 = vld [vmem:[%s230 + $0x43d8] sm:$0xff]
        %v2476 = vld [vmem:[%s230 + $0x43e0] sm:$0xff]
        %v2477 = vld [vmem:[%s230 + $0x43e8] sm:$0xff]
        %v2478 = vld [vmem:[%s230 + $0x43f0] sm:$0xff]
        %v2479 = vld [vmem:[%s230 + $0x43f8] sm:$0xff]
        %v2480 = vld [vmem:[%s230 + $0x4400] sm:$0xff]
        %v2481 = vld [vmem:[%s230 + $0x4408] sm:$0xff]
        %v2482 = vld [vmem:[%s230 + $0x4410] sm:$0xff]
        %v2483 = vld [vmem:[%s230 + $0x4418] sm:$0xff]
        %v2484 = vld [vmem:[%s230 + $0x4420] sm:$0xff]
        %v2485 = vld [vmem:[%s230 + $0x4428] sm:$0xff]
        %v2486 = vld [vmem:[%s230 + $0x4430] sm:$0xff]
        %v2487 = vld [vmem:[%s230 + $0x4438] sm:$0xff]
        %v2488 = vld [vmem:[%s230 + $0x4440] sm:$0xff]
        %v2489 = vld [vmem:[%s230 + $0x4448] sm:$0xff]
        %v2490 = vld [vmem:[%s230 + $0x4450] sm:$0xff]
        %v2491 = vld [vmem:[%s230 + $0x4458] sm:$0xff]
        %v2492 = vld [vmem:[%s230 + $0x4460] sm:$0xff]
        %v2493 = vld [vmem:[%s230 + $0x4468] sm:$0xff]
        %v2494 = vld [vmem:[%s230 + $0x4470] sm:$0xff]
        %v2495 = vld [vmem:[%s230 + $0x4478] sm:$0xff]
        %v2496 = vld [vmem:[%s230 + $0x4480] sm:$0xff]
        %v2497 = vld [vmem:[%s230 + $0x4488] sm:$0xff]
        %v2498 = vld [vmem:[%s230 + $0x4490] sm:$0xff]
        %v2499 = vld [vmem:[%s230 + $0x4498] sm:$0xff]
        %v2500 = vld [vmem:[%s230 + $0x44a0] sm:$0xff]
        %v2501 = vld [vmem:[%s230 + $0x44a8] sm:$0xff]
        %v2502 = vld [vmem:[%s230 + $0x44b0] sm:$0xff]
        %v2503 = vld [vmem:[%s230 + $0x44b8] sm:$0xff]
        %v2504 = vld [vmem:[%s230 + $0x44c0] sm:$0xff]
        %v2505 = vld [vmem:[%s230 + $0x44c8] sm:$0xff]
        %v2506 = vld [vmem:[%s230 + $0x44d0] sm:$0xff]
        %v2507 = vld [vmem:[%s230 + $0x44d8] sm:$0xff]
        %v2508 = vld [vmem:[%s230 + $0x44e0] sm:$0xff]
        %v2509 = vld [vmem:[%s230 + $0x44e8] sm:$0xff]
        %v2510 = vld [vmem:[%s230 + $0x44f0] sm:$0xff]
        %v2511 = vld [vmem:[%s230 + $0x44f8] sm:$0xff]
        %v2512 = vld [vmem:[%s230 + $0x4500] sm:$0xff]
        %v2513 = vld [vmem:[%s230 + $0x4508] sm:$0xff]
        %v2514 = vld [vmem:[%s230 + $0x4510] sm:$0xff]
        %v2515 = vld [vmem:[%s230 + $0x4518] sm:$0xff]
        %v2516 = vld [vmem:[%s230 + $0x4520] sm:$0xff]
        %v2517 = vld [vmem:[%s230 + $0x4528] sm:$0xff]
        %v2518 = vld [vmem:[%s230 + $0x4530] sm:$0xff]
        %v2519 = vld [vmem:[%s230 + $0x4538] sm:$0xff]
        %v2520 = vld [vmem:[%s230 + $0x4540] sm:$0xff]
        %v2521 = vld [vmem:[%s230 + $0x4548] sm:$0xff]
        %v2522 = vld [vmem:[%s230 + $0x4550] sm:$0xff]
        %v2523 = vld [vmem:[%s230 + $0x4558] sm:$0xff]
        %v2524 = vld [vmem:[%s230 + $0x4560] sm:$0xff]
        %v2525 = vld [vmem:[%s230 + $0x4568] sm:$0xff]
        %v2526 = vld [vmem:[%s230 + $0x4570] sm:$0xff]
        %v2527 = vld [vmem:[%s230 + $0x4578] sm:$0xff]
        %v2528 = vld [vmem:[%s230 + $0x4580] sm:$0xff]
        %v2529 = vld [vmem:[%s230 + $0x4588] sm:$0xff]
        %v2530 = vld [vmem:[%s230 + $0x4590] sm:$0xff]
        %v2531 = vld [vmem:[%s230 + $0x4598] sm:$0xff]
        %v2532 = vld [vmem:[%s230 + $0x45a0] sm:$0xff]
        %v2533 = vld [vmem:[%s230 + $0x45a8] sm:$0xff]
        %v2534 = vld [vmem:[%s230 + $0x45b0] sm:$0xff]
        %v2535 = vld [vmem:[%s230 + $0x45b8] sm:$0xff]
        %v2536 = vld [vmem:[%s230 + $0x45c0] sm:$0xff]
        %v2537 = vld [vmem:[%s230 + $0x45c8] sm:$0xff]
        %v2538 = vld [vmem:[%s230 + $0x45d0] sm:$0xff]
        %v2539 = vld [vmem:[%s230 + $0x45d8] sm:$0xff]
        %v2540 = vld [vmem:[%s230 + $0x45e0] sm:$0xff]
        %v2541 = vld [vmem:[%s230 + $0x45e8] sm:$0xff]
        %v2542 = vld [vmem:[%s230 + $0x45f0] sm:$0xff]
        %v2543 = vld [vmem:[%s230 + $0x45f8] sm:$0xff]
        %v2544 = vld [vmem:[%s230 + $0x4600] sm:$0xff]
        %v2545 = vld [vmem:[%s230 + $0x4608] sm:$0xff]
        %v2546 = vld [vmem:[%s230 + $0x4610] sm:$0xff]
        %v2547 = vld [vmem:[%s230 + $0x4618] sm:$0xff]
        %v2548 = vld [vmem:[%s230 + $0x4620] sm:$0xff]
        %v2549 = vld [vmem:[%s230 + $0x4628] sm:$0xff]
        %v2550 = vld [vmem:[%s230 + $0x4630] sm:$0xff]
        %v2551 = vld [vmem:[%s230 + $0x4638] sm:$0xff]
        %v2552 = vld [vmem:[%s230 + $0x4640] sm:$0xff]
        %v2553 = vld [vmem:[%s230 + $0x4648] sm:$0xff]
        %v2554 = vld [vmem:[%s230 + $0x4650] sm:$0xff]
        %v2555 = vld [vmem:[%s230 + $0x4658] sm:$0xff]
        %v2556 = vld [vmem:[%s230 + $0x4660] sm:$0xff]
        %v2557 = vld [vmem:[%s230 + $0x4668] sm:$0xff]
        %v2558 = vld [vmem:[%s230 + $0x4670] sm:$0xff]
        %v2559 = vld [vmem:[%s230 + $0x4678] sm:$0xff]
        %v2560 = vld [vmem:[%s230 + $0x4680] sm:$0xff]
        %v2561 = vld [vmem:[%s230 + $0x4688] sm:$0xff]
        %v2562 = vld [vmem:[%s230 + $0x4690] sm:$0xff]
        %v2563 = vld [vmem:[%s230 + $0x4698] sm:$0xff]
        %v2564 = vld [vmem:[%s230 + $0x46a0] sm:$0xff]
        %v2565 = vld [vmem:[%s230 + $0x46a8] sm:$0xff]
        %v2566 = vld [vmem:[%s230 + $0x46b0] sm:$0xff]
        %v2567 = vld [vmem:[%s230 + $0x46b8] sm:$0xff]
        %v2568 = vld [vmem:[%s230 + $0x46c0] sm:$0xff]
        %v2569 = vld [vmem:[%s230 + $0x46c8] sm:$0xff]
        %v2570 = vld [vmem:[%s230 + $0x46d0] sm:$0xff]
        %v2571 = vld [vmem:[%s230 + $0x46d8] sm:$0xff]
        %v2572 = vld [vmem:[%s230 + $0x46e0] sm:$0xff]
        %v2573 = vld [vmem:[%s230 + $0x46e8] sm:$0xff]
        %v2574 = vld [vmem:[%s230 + $0x46f0] sm:$0xff]
        %v2575 = vld [vmem:[%s230 + $0x46f8] sm:$0xff]
        %v2576 = vld [vmem:[%s230 + $0x4700] sm:$0xff]
        %v2577 = vld [vmem:[%s230 + $0x4708] sm:$0xff]
        %v2578 = vld [vmem:[%s230 + $0x4710] sm:$0xff]
        %v2579 = vld [vmem:[%s230 + $0x4718] sm:$0xff]
        %v2580 = vld [vmem:[%s230 + $0x4720] sm:$0xff]
        %v2581 = vld [vmem:[%s230 + $0x4728] sm:$0xff]
        %v2582 = vld [vmem:[%s230 + $0x4730] sm:$0xff]
        %v2583 = vld [vmem:[%s230 + $0x4738] sm:$0xff]
        %v2584 = vld [vmem:[%s230 + $0x4740] sm:$0xff]
        %v2585 = vld [vmem:[%s230 + $0x4748] sm:$0xff]
        %v2586 = vld [vmem:[%s230 + $0x4750] sm:$0xff]
        %v2587 = vld [vmem:[%s230 + $0x4758] sm:$0xff]
        %v2588 = vld [vmem:[%s230 + $0x4760] sm:$0xff]
        %v2589 = vld [vmem:[%s230 + $0x4768] sm:$0xff]
        %v2590 = vld [vmem:[%s230 + $0x4770] sm:$0xff]
        %v2591 = vld [vmem:[%s230 + $0x4778] sm:$0xff]
        %v2592 = vld [vmem:[%s230 + $0x4780] sm:$0xff]
        %v2593 = vld [vmem:[%s230 + $0x4788] sm:$0xff]
        %v2594 = vld [vmem:[%s230 + $0x4790] sm:$0xff]
        %v2595 = vld [vmem:[%s230 + $0x4798] sm:$0xff]
        %v2596 = vld [vmem:[%s230 + $0x47a0] sm:$0xff]
        %v2597 = vld [vmem:[%s230 + $0x47a8] sm:$0xff]
        %v2598 = vld [vmem:[%s230 + $0x47b0] sm:$0xff]
        %v2599 = vld [vmem:[%s230 + $0x47b8] sm:$0xff]
        %v2600 = vld [vmem:[%s230 + $0x47c0] sm:$0xff]
        %v2601 = vld [vmem:[%s230 + $0x47c8] sm:$0xff]
        %v2602 = vld [vmem:[%s230 + $0x47d0] sm:$0xff]
        %v2603 = vld [vmem:[%s230 + $0x47d8] sm:$0xff]
        %v2604 = vld [vmem:[%s230 + $0x47e0] sm:$0xff]
        %v2605 = vld [vmem:[%s230 + $0x47e8] sm:$0xff]
        %v2606 = vld [vmem:[%s230 + $0x47f0] sm:$0xff]
        %v2607 = vld [vmem:[%s230 + $0x47f8] sm:$0xff]
        %v2608 = vld [vmem:[%s230 + $0x4800] sm:$0xff]
        %v2609 = vld [vmem:[%s230 + $0x4808] sm:$0xff]
        %v2610 = vld [vmem:[%s230 + $0x4810] sm:$0xff]
        %v2611 = vld [vmem:[%s230 + $0x4818] sm:$0xff]
        %v2612 = vld [vmem:[%s230 + $0x4820] sm:$0xff]
        %v2613 = vld [vmem:[%s230 + $0x4828] sm:$0xff]
        %v2614 = vld [vmem:[%s230 + $0x4830] sm:$0xff]
        %v2615 = vld [vmem:[%s230 + $0x4838] sm:$0xff]
        %v2616 = vld [vmem:[%s230 + $0x4840] sm:$0xff]
        %v2617 = vld [vmem:[%s230 + $0x4848] sm:$0xff]
        %v2618 = vld [vmem:[%s230 + $0x4850] sm:$0xff]
        %v2619 = vld [vmem:[%s230 + $0x4858] sm:$0xff]
        %v2620 = vld [vmem:[%s230 + $0x4860] sm:$0xff]
        %v2621 = vld [vmem:[%s230 + $0x4868] sm:$0xff]
        %v2622 = vld [vmem:[%s230 + $0x4870] sm:$0xff]
        %v2623 = vld [vmem:[%s230 + $0x4878] sm:$0xff]
        %v2624 = vld [vmem:[%s230 + $0x4880] sm:$0xff]
        %v2625 = vld [vmem:[%s230 + $0x4888] sm:$0xff]
        %v2626 = vld [vmem:[%s230 + $0x4890] sm:$0xff]
        %v2627 = vld [vmem:[%s230 + $0x4898] sm:$0xff]
        %v2628 = vld [vmem:[%s230 + $0x48a0] sm:$0xff]
        %v2629 = vld [vmem:[%s230 + $0x48a8] sm:$0xff]
        %v2630 = vld [vmem:[%s230 + $0x48b0] sm:$0xff]
        %v2631 = vld [vmem:[%s230 + $0x48b8] sm:$0xff]
        %v2632 = vld [vmem:[%s230 + $0x48c0] sm:$0xff]
        %v2633 = vld [vmem:[%s230 + $0x48c8] sm:$0xff]
        %v2634 = vld [vmem:[%s230 + $0x48d0] sm:$0xff]
        %v2635 = vld [vmem:[%s230 + $0x48d8] sm:$0xff]
        %v2636 = vld [vmem:[%s230 + $0x48e0] sm:$0xff]
        %v2637 = vld [vmem:[%s230 + $0x48e8] sm:$0xff]
        %v2638 = vld [vmem:[%s230 + $0x48f0] sm:$0xff]
        %v2639 = vld [vmem:[%s230 + $0x48f8] sm:$0xff]
        %v2640 = vld [vmem:[%s230 + $0x4900] sm:$0xff]
        %v2641 = vld [vmem:[%s230 + $0x4908] sm:$0xff]
        %v2642 = vld [vmem:[%s230 + $0x4910] sm:$0xff]
        %v2643 = vld [vmem:[%s230 + $0x4918] sm:$0xff]
        %v2644 = vld [vmem:[%s230 + $0x4920] sm:$0xff]
        %v2645 = vld [vmem:[%s230 + $0x4928] sm:$0xff]
        %v2646 = vld [vmem:[%s230 + $0x4930] sm:$0xff]
        %v2647 = vld [vmem:[%s230 + $0x4938] sm:$0xff]
        %v2648 = vld [vmem:[%s230 + $0x4940] sm:$0xff]
        %v2649 = vld [vmem:[%s230 + $0x4948] sm:$0xff]
        %v2650 = vld [vmem:[%s230 + $0x4950] sm:$0xff]
        %v2651 = vld [vmem:[%s230 + $0x4958] sm:$0xff]
        %v2652 = vld [vmem:[%s230 + $0x4960] sm:$0xff]
        %v2653 = vld [vmem:[%s230 + $0x4968] sm:$0xff]
        %v2654 = vld [vmem:[%s230 + $0x4970] sm:$0xff]
        %v2655 = vld [vmem:[%s230 + $0x4978] sm:$0xff]
        %v2656 = vld [vmem:[%s230 + $0x4980] sm:$0xff]
        %v2657 = vld [vmem:[%s230 + $0x4988] sm:$0xff]
        %v2658 = vld [vmem:[%s230 + $0x4990] sm:$0xff]
        %v2659 = vld [vmem:[%s230 + $0x4998] sm:$0xff]
        %v2660 = vld [vmem:[%s230 + $0x49a0] sm:$0xff]
        %v2661 = vld [vmem:[%s230 + $0x49a8] sm:$0xff]
        %v2662 = vld [vmem:[%s230 + $0x49b0] sm:$0xff]
        %v2663 = vld [vmem:[%s230 + $0x49b8] sm:$0xff]
        %v2664 = vld [vmem:[%s230 + $0x49c0] sm:$0xff]
        %v2665 = vld [vmem:[%s230 + $0x49c8] sm:$0xff]
        %v2666 = vld [vmem:[%s230 + $0x49d0] sm:$0xff]
        %v2667 = vld [vmem:[%s230 + $0x49d8] sm:$0xff]
        %v2668 = vld [vmem:[%s230 + $0x49e0] sm:$0xff]
        %v2669 = vld [vmem:[%s230 + $0x49e8] sm:$0xff]
        %v2670 = vld [vmem:[%s230 + $0x49f0] sm:$0xff]
        %v2671 = vld [vmem:[%s230 + $0x49f8] sm:$0xff]
        %v2672 = vld [vmem:[%s230 + $0x4a00] sm:$0xff]
        %v2673 = vld [vmem:[%s230 + $0x4a08] sm:$0xff]
        %v2674 = vld [vmem:[%s230 + $0x4a10] sm:$0xff]
        %v2675 = vld [vmem:[%s230 + $0x4a18] sm:$0xff]
        %v2676 = vld [vmem:[%s230 + $0x4a20] sm:$0xff]
        %v2677 = vld [vmem:[%s230 + $0x4a28] sm:$0xff]
        %v2678 = vld [vmem:[%s230 + $0x4a30] sm:$0xff]
        %v2679 = vld [vmem:[%s230 + $0x4a38] sm:$0xff]
        %v2680 = vld [vmem:[%s230 + $0x4a40] sm:$0xff]
        %v2681 = vld [vmem:[%s230 + $0x4a48] sm:$0xff]
        %v2682 = vld [vmem:[%s230 + $0x4a50] sm:$0xff]
        %v2683 = vld [vmem:[%s230 + $0x4a58] sm:$0xff]
        %v2684 = vld [vmem:[%s230 + $0x4a60] sm:$0xff]
        %v2685 = vld [vmem:[%s230 + $0x4a68] sm:$0xff]
        %v2686 = vld [vmem:[%s230 + $0x4a70] sm:$0xff]
        %v2687 = vld [vmem:[%s230 + $0x4a78] sm:$0xff]
        %v2688 = vld [vmem:[%s230 + $0x4a80] sm:$0xff]
        %v2689 = vld [vmem:[%s230 + $0x4a88] sm:$0xff]
        %v2690 = vld [vmem:[%s230 + $0x4a90] sm:$0xff]
        %v2691 = vld [vmem:[%s230 + $0x4a98] sm:$0xff]
        %v2692 = vld [vmem:[%s230 + $0x4aa0] sm:$0xff]
        %v2693 = vld [vmem:[%s230 + $0x4aa8] sm:$0xff]
        %v2694 = vld [vmem:[%s230 + $0x4ab0] sm:$0xff]
        %v2695 = vld [vmem:[%s230 + $0x4ab8] sm:$0xff]
        %v2696 = vld [vmem:[%s230 + $0x4ac0] sm:$0xff]
        %v2697 = vld [vmem:[%s230 + $0x4ac8] sm:$0xff]
        %v2698 = vld [vmem:[%s230 + $0x4ad0] sm:$0xff]
        %v2699 = vld [vmem:[%s230 + $0x4ad8] sm:$0xff]
        %v2700 = vld [vmem:[%s230 + $0x4ae0] sm:$0xff]
        %v2701 = vld [vmem:[%s230 + $0x4ae8] sm:$0xff]
        %v2702 = vld [vmem:[%s230 + $0x4af0] sm:$0xff]
        %v2703 = vld [vmem:[%s230 + $0x4af8] sm:$0xff]
        %v2704 = vld [vmem:[%s230 + $0x4b00] sm:$0xff]
        %v2705 = vld [vmem:[%s230 + $0x4b08] sm:$0xff]
        %v2706 = vld [vmem:[%s230 + $0x4b10] sm:$0xff]
        %v2707 = vld [vmem:[%s230 + $0x4b18] sm:$0xff]
        %v2708 = vld [vmem:[%s230 + $0x4b20] sm:$0xff]
        %v2709 = vld [vmem:[%s230 + $0x4b28] sm:$0xff]
        %v2710 = vld [vmem:[%s230 + $0x4b30] sm:$0xff]
        %v2711 = vld [vmem:[%s230 + $0x4b38] sm:$0xff]
        %v2712 = vld [vmem:[%s230 + $0x4b40] sm:$0xff]
        %v2713 = vld [vmem:[%s230 + $0x4b48] sm:$0xff]
        %v2714 = vld [vmem:[%s230 + $0x4b50] sm:$0xff]
        %v2715 = vld [vmem:[%s230 + $0x4b58] sm:$0xff]
        %v2716 = vld [vmem:[%s230 + $0x4b60] sm:$0xff]
        %v2717 = vld [vmem:[%s230 + $0x4b68] sm:$0xff]
        %v2718 = vld [vmem:[%s230 + $0x4b70] sm:$0xff]
        %v2719 = vld [vmem:[%s230 + $0x4b78] sm:$0xff]
        %v2720 = vld [vmem:[%s230 + $0x4b80] sm:$0xff]
        %v2721 = vld [vmem:[%s230 + $0x4b88] sm:$0xff]
        %v2722 = vld [vmem:[%s230 + $0x4b90] sm:$0xff]
        %v2723 = vld [vmem:[%s230 + $0x4b98] sm:$0xff]
        %v2724 = vld [vmem:[%s230 + $0x4ba0] sm:$0xff]
        %v2725 = vld [vmem:[%s230 + $0x4ba8] sm:$0xff]
        %v2726 = vld [vmem:[%s230 + $0x4bb0] sm:$0xff]
        %v2727 = vld [vmem:[%s230 + $0x4bb8] sm:$0xff]
        %v2728 = vld [vmem:[%s230 + $0x4bc0] sm:$0xff]
        %v2729 = vld [vmem:[%s230 + $0x4bc8] sm:$0xff]
        %v2730 = vld [vmem:[%s230 + $0x4bd0] sm:$0xff]
        %v2731 = vld [vmem:[%s230 + $0x4bd8] sm:$0xff]
        %v2732 = vld [vmem:[%s230 + $0x4be0] sm:$0xff]
        %v2733 = vld [vmem:[%s230 + $0x4be8] sm:$0xff]
        %v2734 = vld [vmem:[%s230 + $0x4bf0] sm:$0xff]
        %v2735 = vld [vmem:[%s230 + $0x4bf8] sm:$0xff]
        %v2736 = vld [vmem:[%s230 + $0x4c00] sm:$0xff]
        %v2737 = vld [vmem:[%s230 + $0x4c08] sm:$0xff]
        %v2738 = vld [vmem:[%s230 + $0x4c10] sm:$0xff]
        %v2739 = vld [vmem:[%s230 + $0x4c18] sm:$0xff]
        %v2740 = vld [vmem:[%s230 + $0x4c20] sm:$0xff]
        %v2741 = vld [vmem:[%s230 + $0x4c28] sm:$0xff]
        %v2742 = vld [vmem:[%s230 + $0x4c30] sm:$0xff]
        %v2743 = vld [vmem:[%s230 + $0x4c38] sm:$0xff]
        %v2744 = vld [vmem:[%s230 + $0x4c40] sm:$0xff]
        %v2745 = vld [vmem:[%s230 + $0x4c48] sm:$0xff]
        %v2746 = vld [vmem:[%s230 + $0x4c50] sm:$0xff]
        %v2747 = vld [vmem:[%s230 + $0x4c58] sm:$0xff]
        %v2748 = vld [vmem:[%s230 + $0x4c60] sm:$0xff]
        %v2749 = vld [vmem:[%s230 + $0x4c68] sm:$0xff]
        %v2750 = vld [vmem:[%s230 + $0x4c70] sm:$0xff]
        %v2751 = vld [vmem:[%s230 + $0x4c78] sm:$0xff]
        %v2752 = vld [vmem:[%s230 + $0x4c80] sm:$0xff]
        %v2753 = vld [vmem:[%s230 + $0x4c88] sm:$0xff]
        %v2754 = vld [vmem:[%s230 + $0x4c90] sm:$0xff]
        %v2755 = vld [vmem:[%s230 + $0x4c98] sm:$0xff]
        %v2756 = vld [vmem:[%s230 + $0x4ca0] sm:$0xff]
        %v2757 = vld [vmem:[%s230 + $0x4ca8] sm:$0xff]
        %v2758 = vld [vmem:[%s230 + $0x4cb0] sm:$0xff]
        %v2759 = vld [vmem:[%s230 + $0x4cb8] sm:$0xff]
        %v2760 = vld [vmem:[%s230 + $0x4cc0] sm:$0xff]
        %v2761 = vld [vmem:[%s230 + $0x4cc8] sm:$0xff]
        %v2762 = vld [vmem:[%s230 + $0x4cd0] sm:$0xff]
        %v2763 = vld [vmem:[%s230 + $0x4cd8] sm:$0xff]
        %v2764 = vld [vmem:[%s230 + $0x4ce0] sm:$0xff]
        %v2765 = vld [vmem:[%s230 + $0x4ce8] sm:$0xff]
        %v2766 = vld [vmem:[%s230 + $0x4cf0] sm:$0xff]
        %v2767 = vld [vmem:[%s230 + $0x4cf8] sm:$0xff]
        %v2768 = vld [vmem:[%s230 + $0x4d00] sm:$0xff]
        %v2769 = vld [vmem:[%s230 + $0x4d08] sm:$0xff]
        %v2770 = vld [vmem:[%s230 + $0x4d10] sm:$0xff]
        %v2771 = vld [vmem:[%s230 + $0x4d18] sm:$0xff]
        %v2772 = vld [vmem:[%s230 + $0x4d20] sm:$0xff]
        %v2773 = vld [vmem:[%s230 + $0x4d28] sm:$0xff]
        %v2774 = vld [vmem:[%s230 + $0x4d30] sm:$0xff]
        %v2775 = vld [vmem:[%s230 + $0x4d38] sm:$0xff]
        %v2776 = vld [vmem:[%s230 + $0x4d40] sm:$0xff]
        %v2777 = vld [vmem:[%s230 + $0x4d48] sm:$0xff]
        %v2778 = vld [vmem:[%s230 + $0x4d50] sm:$0xff]
        %v2779 = vld [vmem:[%s230 + $0x4d58] sm:$0xff]
        %v2780 = vld [vmem:[%s230 + $0x4d60] sm:$0xff]
        %v2781 = vld [vmem:[%s230 + $0x4d68] sm:$0xff]
        %v2782 = vld [vmem:[%s230 + $0x4d70] sm:$0xff]
        %v2783 = vld [vmem:[%s230 + $0x4d78] sm:$0xff]
        %v2784 = vld [vmem:[%s230 + $0x4d80] sm:$0xff]
        %v2785 = vld [vmem:[%s230 + $0x4d88] sm:$0xff]
        %v2786 = vld [vmem:[%s230 + $0x4d90] sm:$0xff]
        %v2787 = vld [vmem:[%s230 + $0x4d98] sm:$0xff]
        %v2788 = vld [vmem:[%s230 + $0x4da0] sm:$0xff]
        %v2789 = vld [vmem:[%s230 + $0x4da8] sm:$0xff]
        %v2790 = vld [vmem:[%s230 + $0x4db0] sm:$0xff]
        %v2791 = vld [vmem:[%s230 + $0x4db8] sm:$0xff]
        %v2792 = vld [vmem:[%s230 + $0x4dc0] sm:$0xff]
        %v2793 = vld [vmem:[%s230 + $0x4dc8] sm:$0xff]
        %v2794 = vld [vmem:[%s230 + $0x4dd0] sm:$0xff]
        %v2795 = vld [vmem:[%s230 + $0x4dd8] sm:$0xff]
        %v2796 = vld [vmem:[%s230 + $0x4de0] sm:$0xff]
        %v2797 = vld [vmem:[%s230 + $0x4de8] sm:$0xff]
        %v2798 = vld [vmem:[%s230 + $0x4df0] sm:$0xff]
        %v2799 = vld [vmem:[%s230 + $0x4df8] sm:$0xff]
        %v2800 = vld [vmem:[%s230 + $0x4e00] sm:$0xff]
        %v2801 = vld [vmem:[%s230 + $0x4e08] sm:$0xff]
        %v2802 = vld [vmem:[%s230 + $0x4e10] sm:$0xff]
        %v2803 = vld [vmem:[%s230 + $0x4e18] sm:$0xff]
        %v2804 = vld [vmem:[%s230 + $0x4e20] sm:$0xff]
        %v2805 = vld [vmem:[%s230 + $0x4e28] sm:$0xff]
        %v2806 = vld [vmem:[%s230 + $0x4e30] sm:$0xff]
        %v2807 = vld [vmem:[%s230 + $0x4e38] sm:$0xff]
        %v2808 = vld [vmem:[%s230 + $0x4e40] sm:$0xff]
        %v2809 = vld [vmem:[%s230 + $0x4e48] sm:$0xff]
        %v2810 = vld [vmem:[%s230 + $0x4e50] sm:$0xff]
        %v2811 = vld [vmem:[%s230 + $0x4e58] sm:$0xff]
        %v2812 = vld [vmem:[%s230 + $0x4e60] sm:$0xff]
        %v2813 = vld [vmem:[%s230 + $0x4e68] sm:$0xff]
        %v2814 = vld [vmem:[%s230 + $0x4e70] sm:$0xff]
        %v2815 = vld [vmem:[%s230 + $0x4e78] sm:$0xff]
        %v2816 = vld [vmem:[%s230 + $0x4e80] sm:$0xff]
        %v2817 = vld [vmem:[%s230 + $0x4e88] sm:$0xff]
        %v2818 = vld [vmem:[%s230 + $0x4e90] sm:$0xff]
        %v2819 = vld [vmem:[%s230 + $0x4e98] sm:$0xff]
        %v2820 = vld [vmem:[%s230 + $0x4ea0] sm:$0xff]
        %v2821 = vld [vmem:[%s230 + $0x4ea8] sm:$0xff]
        %v2822 = vld [vmem:[%s230 + $0x4eb0] sm:$0xff]
        %v2823 = vld [vmem:[%s230 + $0x4eb8] sm:$0xff]
        %v2824 = vld [vmem:[%s230 + $0x4ec0] sm:$0xff]
        %v2825 = vld [vmem:[%s230 + $0x4ec8] sm:$0xff]
        %v2826 = vld [vmem:[%s230 + $0x4ed0] sm:$0xff]
        %v2827 = vld [vmem:[%s230 + $0x4ed8] sm:$0xff]
        %v2828 = vld [vmem:[%s230 + $0x4ee0] sm:$0xff]
        %v2829 = vld [vmem:[%s230 + $0x4ee8] sm:$0xff]
        %v2830 = vld [vmem:[%s230 + $0x4ef0] sm:$0xff]
        %v2831 = vld [vmem:[%s230 + $0x4ef8] sm:$0xff]
        %v2832 = vld [vmem:[%s230 + $0x4f00] sm:$0xff]
        %v2833 = vld [vmem:[%s230 + $0x4f08] sm:$0xff]
        %v2834 = vld [vmem:[%s230 + $0x4f10] sm:$0xff]
        %v2835 = vld [vmem:[%s230 + $0x4f18] sm:$0xff]
        %v2836 = vld [vmem:[%s230 + $0x4f20] sm:$0xff]
        %v2837 = vld [vmem:[%s230 + $0x4f28] sm:$0xff]
        %v2838 = vld [vmem:[%s230 + $0x4f30] sm:$0xff]
        %v2839 = vld [vmem:[%s230 + $0x4f38] sm:$0xff]
        %v2840 = vld [vmem:[%s230 + $0x4f40] sm:$0xff]
        %v2841 = vld [vmem:[%s230 + $0x4f48] sm:$0xff]
        %v2842 = vld [vmem:[%s230 + $0x4f50] sm:$0xff]
        %v2843 = vld [vmem:[%s230 + $0x4f58] sm:$0xff]
        %v2844 = vld [vmem:[%s230 + $0x4f60] sm:$0xff]
        %v2845 = vld [vmem:[%s230 + $0x4f68] sm:$0xff]
        %v2846 = vld [vmem:[%s230 + $0x4f70] sm:$0xff]
        %v2847 = vld [vmem:[%s230 + $0x4f78] sm:$0xff]
        %v2848 = vld [vmem:[%s230 + $0x4f80] sm:$0xff]
        %v2849 = vld [vmem:[%s230 + $0x4f88] sm:$0xff]
        %v2850 = vld [vmem:[%s230 + $0x4f90] sm:$0xff]
        %v2851 = vld [vmem:[%s230 + $0x4f98] sm:$0xff]
        %v2852 = vld [vmem:[%s230 + $0x4fa0] sm:$0xff]
        %v2853 = vld [vmem:[%s230 + $0x4fa8] sm:$0xff]
        %v2854 = vld [vmem:[%s230 + $0x4fb0] sm:$0xff]
        %v2855 = vld [vmem:[%s230 + $0x4fb8] sm:$0xff]
        %v2856 = vld [vmem:[%s230 + $0x4fc0] sm:$0xff]
        %v2857 = vld [vmem:[%s230 + $0x4fc8] sm:$0xff]
        %v2858 = vld [vmem:[%s230 + $0x4fd0] sm:$0xff]
        %v2859 = vld [vmem:[%s230 + $0x4fd8] sm:$0xff]
        %v2860 = vld [vmem:[%s230 + $0x4fe0] sm:$0xff]
        %v2861 = vld [vmem:[%s230 + $0x4fe8] sm:$0xff]
        %v2862 = vld [vmem:[%s230 + $0x4ff0] sm:$0xff]
        %v2863 = vld [vmem:[%s230 + $0x4ff8] sm:$0xff]
        %v2864 = vld [vmem:[%s230 + $0x5000] sm:$0xff]
        %v2865 = vld [vmem:[%s230 + $0x5008] sm:$0xff]
        %v2866 = vld [vmem:[%s230 + $0x5010] sm:$0xff]
        %v2867 = vld [vmem:[%s230 + $0x5018] sm:$0xff]
        %v2868 = vld [vmem:[%s230 + $0x5020] sm:$0xff]
        %v2869 = vld [vmem:[%s230 + $0x5028] sm:$0xff]
        %v2870 = vld [vmem:[%s230 + $0x5030] sm:$0xff]
        %v2871 = vld [vmem:[%s230 + $0x5038] sm:$0xff]
        %v2872 = vld [vmem:[%s230 + $0x5040] sm:$0xff]
        %v2873 = vld [vmem:[%s230 + $0x5048] sm:$0xff]
        %v2874 = vld [vmem:[%s230 + $0x5050] sm:$0xff]
        %v2875 = vld [vmem:[%s230 + $0x5058] sm:$0xff]
        %v2876 = vld [vmem:[%s230 + $0x5060] sm:$0xff]
        %v2877 = vld [vmem:[%s230 + $0x5068] sm:$0xff]
        %v2878 = vld [vmem:[%s230 + $0x5070] sm:$0xff]
        %v2879 = vld [vmem:[%s230 + $0x5078] sm:$0xff]
        %v2880 = vld [vmem:[%s230 + $0x5080] sm:$0xff]
        %v2881 = vld [vmem:[%s230 + $0x5088] sm:$0xff]
        %v2882 = vld [vmem:[%s230 + $0x5090] sm:$0xff]
        %v2883 = vld [vmem:[%s230 + $0x5098] sm:$0xff]
        %v2884 = vld [vmem:[%s230 + $0x50a0] sm:$0xff]
        %v2885 = vld [vmem:[%s230 + $0x50a8] sm:$0xff]
        %v2886 = vld [vmem:[%s230 + $0x50b0] sm:$0xff]
        %v2887 = vld [vmem:[%s230 + $0x50b8] sm:$0xff]
        %v2888 = vld [vmem:[%s230 + $0x50c0] sm:$0xff]
        %v2889 = vld [vmem:[%s230 + $0x50c8] sm:$0xff]
        %v2890 = vld [vmem:[%s230 + $0x50d0] sm:$0xff]
        %v2891 = vld [vmem:[%s230 + $0x50d8] sm:$0xff]
        %v2892 = vld [vmem:[%s230 + $0x50e0] sm:$0xff]
        %v2893 = vld [vmem:[%s230 + $0x50e8] sm:$0xff]
        %v2894 = vld [vmem:[%s230 + $0x50f0] sm:$0xff]
        %v2895 = vld [vmem:[%s230 + $0x50f8] sm:$0xff]
        %v2896 = vld [vmem:[%s230 + $0x5100] sm:$0xff]
        %v2897 = vld [vmem:[%s230 + $0x5108] sm:$0xff]
        %v2898 = vld [vmem:[%s230 + $0x5110] sm:$0xff]
        %v2899 = vld [vmem:[%s230 + $0x5118] sm:$0xff]
        %v2900 = vld [vmem:[%s230 + $0x5120] sm:$0xff]
        %v2901 = vld [vmem:[%s230 + $0x5128] sm:$0xff]
        %v2902 = vld [vmem:[%s230 + $0x5130] sm:$0xff]
        %v2903 = vld [vmem:[%s230 + $0x5138] sm:$0xff]
        %v2904 = vld [vmem:[%s230 + $0x5140] sm:$0xff]
        %v2905 = vld [vmem:[%s230 + $0x5148] sm:$0xff]
        %v2906 = vld [vmem:[%s230 + $0x5150] sm:$0xff]
        %v2907 = vld [vmem:[%s230 + $0x5158] sm:$0xff]
        %v2908 = vld [vmem:[%s230 + $0x5160] sm:$0xff]
        %v2909 = vld [vmem:[%s230 + $0x5168] sm:$0xff]
        %v2910 = vld [vmem:[%s230 + $0x5170] sm:$0xff]
        %v2911 = vld [vmem:[%s230 + $0x5178] sm:$0xff]
        %v2912 = vld [vmem:[%s230 + $0x5180] sm:$0xff]
        %v2913 = vld [vmem:[%s230 + $0x5188] sm:$0xff]
        %v2914 = vld [vmem:[%s230 + $0x5190] sm:$0xff]
        %v2915 = vld [vmem:[%s230 + $0x5198] sm:$0xff]
        %v2916 = vld [vmem:[%s230 + $0x51a0] sm:$0xff]
        %v2917 = vld [vmem:[%s230 + $0x51a8] sm:$0xff]
        %v2918 = vld [vmem:[%s230 + $0x51b0] sm:$0xff]
        %v2919 = vld [vmem:[%s230 + $0x51b8] sm:$0xff]
        %v2920 = vld [vmem:[%s230 + $0x51c0] sm:$0xff]
        %v2921 = vld [vmem:[%s230 + $0x51c8] sm:$0xff]
        %v2922 = vld [vmem:[%s230 + $0x51d0] sm:$0xff]
        %v2923 = vld [vmem:[%s230 + $0x51d8] sm:$0xff]
        %v2924 = vld [vmem:[%s230 + $0x51e0] sm:$0xff]
        %v2925 = vld [vmem:[%s230 + $0x51e8] sm:$0xff]
        %v2926 = vld [vmem:[%s230 + $0x51f0] sm:$0xff]
        %v2927 = vld [vmem:[%s230 + $0x51f8] sm:$0xff]
        %v2928 = vld [vmem:[%s230 + $0x5200] sm:$0xff]
        %v2929 = vld [vmem:[%s230 + $0x5208] sm:$0xff]
        %v2930 = vld [vmem:[%s230 + $0x5210] sm:$0xff]
        %v2931 = vld [vmem:[%s230 + $0x5218] sm:$0xff]
        %v2932 = vld [vmem:[%s230 + $0x5220] sm:$0xff]
        %v2933 = vld [vmem:[%s230 + $0x5228] sm:$0xff]
        %v2934 = vld [vmem:[%s230 + $0x5230] sm:$0xff]
        %v2935 = vld [vmem:[%s230 + $0x5238] sm:$0xff]
        %v2936 = vld [vmem:[%s230 + $0x5240] sm:$0xff]
        %v2937 = vld [vmem:[%s230 + $0x5248] sm:$0xff]
        %v2938 = vld [vmem:[%s230 + $0x5250] sm:$0xff]
        %v2939 = vld [vmem:[%s230 + $0x5258] sm:$0xff]
        %v2940 = vld [vmem:[%s230 + $0x5260] sm:$0xff]
        %v2941 = vld [vmem:[%s230 + $0x5268] sm:$0xff]
        %v2942 = vld [vmem:[%s230 + $0x5270] sm:$0xff]
        %v2943 = vld [vmem:[%s230 + $0x5278] sm:$0xff]
        %v2944 = vld [vmem:[%s230 + $0x5280] sm:$0xff]
        %v2945 = vld [vmem:[%s230 + $0x5288] sm:$0xff]
        %v2946 = vld [vmem:[%s230 + $0x5290] sm:$0xff]
        %v2947 = vld [vmem:[%s230 + $0x5298] sm:$0xff]
        %v2948 = vld [vmem:[%s230 + $0x52a0] sm:$0xff]
        %v2949 = vld [vmem:[%s230 + $0x52a8] sm:$0xff]
        %v2950 = vld [vmem:[%s230 + $0x52b0] sm:$0xff]
        %v2951 = vld [vmem:[%s230 + $0x52b8] sm:$0xff]
        %v2952 = vld [vmem:[%s230 + $0x52c0] sm:$0xff]
        %v2953 = vld [vmem:[%s230 + $0x52c8] sm:$0xff]
        %v2954 = vld [vmem:[%s230 + $0x52d0] sm:$0xff]
        %v2955 = vld [vmem:[%s230 + $0x52d8] sm:$0xff]
        %v2956 = vld [vmem:[%s230 + $0x52e0] sm:$0xff]
        %v2957 = vld [vmem:[%s230 + $0x52e8] sm:$0xff]
        %v2958 = vld [vmem:[%s230 + $0x52f0] sm:$0xff]
        %v2959 = vld [vmem:[%s230 + $0x52f8] sm:$0xff]
        %v2960 = vld [vmem:[%s230 + $0x5300] sm:$0xff]
        %v2961 = vld [vmem:[%s230 + $0x5308] sm:$0xff]
        %v2962 = vld [vmem:[%s230 + $0x5310] sm:$0xff]
        %v2963 = vld [vmem:[%s230 + $0x5318] sm:$0xff]
        %v2964 = vld [vmem:[%s230 + $0x5320] sm:$0xff]
        %v2965 = vld [vmem:[%s230 + $0x5328] sm:$0xff]
        %v2966 = vld [vmem:[%s230 + $0x5330] sm:$0xff]
        %v2967 = vld [vmem:[%s230 + $0x5338] sm:$0xff]
        %v2968 = vld [vmem:[%s230 + $0x5340] sm:$0xff]
        %v2969 = vld [vmem:[%s230 + $0x5348] sm:$0xff]
        %v2970 = vld [vmem:[%s230 + $0x5350] sm:$0xff]
        %v2971 = vld [vmem:[%s230 + $0x5358] sm:$0xff]
        %v2972 = vld [vmem:[%s230 + $0x5360] sm:$0xff]
        %v2973 = vld [vmem:[%s230 + $0x5368] sm:$0xff]
        %v2974 = vld [vmem:[%s230 + $0x5370] sm:$0xff]
        %v2975 = vld [vmem:[%s230 + $0x5378] sm:$0xff]
        %v2976 = vld [vmem:[%s230 + $0x5380] sm:$0xff]
        %v2977 = vld [vmem:[%s230 + $0x5388] sm:$0xff]
        %v2978 = vld [vmem:[%s230 + $0x5390] sm:$0xff]
        %v2979 = vld [vmem:[%s230 + $0x5398] sm:$0xff]
        %v2980 = vld [vmem:[%s230 + $0x53a0] sm:$0xff]
        %v2981 = vld [vmem:[%s230 + $0x53a8] sm:$0xff]
        %v2982 = vld [vmem:[%s230 + $0x53b0] sm:$0xff]
        %v2983 = vld [vmem:[%s230 + $0x53b8] sm:$0xff]
        %v2984 = vld [vmem:[%s230 + $0x53c0] sm:$0xff]
        %v2985 = vld [vmem:[%s230 + $0x53c8] sm:$0xff]
        %v2986 = vld [vmem:[%s230 + $0x53d0] sm:$0xff]
        %v2987 = vld [vmem:[%s230 + $0x53d8] sm:$0xff]
        %v2988 = vld [vmem:[%s230 + $0x53e0] sm:$0xff]
        %v2989 = vld [vmem:[%s230 + $0x53e8] sm:$0xff]
        %v2990 = vld [vmem:[%s230 + $0x53f0] sm:$0xff]
        %v2991 = vld [vmem:[%s230 + $0x53f8] sm:$0xff]
        %v2992 = vld [vmem:[%s230 + $0x5400] sm:$0xff]
        %v2993 = vld [vmem:[%s230 + $0x5408] sm:$0xff]
        %v2994 = vld [vmem:[%s230 + $0x5410] sm:$0xff]
        %v2995 = vld [vmem:[%s230 + $0x5418] sm:$0xff]
        %v2996 = vld [vmem:[%s230 + $0x5420] sm:$0xff]
        %v2997 = vld [vmem:[%s230 + $0x5428] sm:$0xff]
        %v2998 = vld [vmem:[%s230 + $0x5430] sm:$0xff]
        %v2999 = vld [vmem:[%s230 + $0x5438] sm:$0xff]
        %v3000 = vld [vmem:[%s230 + $0x5440] sm:$0xff]
        %v3001 = vld [vmem:[%s230 + $0x5448] sm:$0xff]
        %v3002 = vld [vmem:[%s230 + $0x5450] sm:$0xff]
        %v3003 = vld [vmem:[%s230 + $0x5458] sm:$0xff]
        %v3004 = vld [vmem:[%s230 + $0x5460] sm:$0xff]
        %v3005 = vld [vmem:[%s230 + $0x5468] sm:$0xff]
        %v3006 = vld [vmem:[%s230 + $0x5470] sm:$0xff]
        %v3007 = vld [vmem:[%s230 + $0x5478] sm:$0xff]
        %v3008 = vld [vmem:[%s230 + $0x5480] sm:$0xff]
        %v3009 = vld [vmem:[%s230 + $0x5488] sm:$0xff]
        %v3010 = vld [vmem:[%s230 + $0x5490] sm:$0xff]
        %v3011 = vld [vmem:[%s230 + $0x5498] sm:$0xff]
        %v3012 = vld [vmem:[%s230 + $0x54a0] sm:$0xff]
        %v3013 = vld [vmem:[%s230 + $0x54a8] sm:$0xff]
        %v3014 = vld [vmem:[%s230 + $0x54b0] sm:$0xff]
        %v3015 = vld [vmem:[%s230 + $0x54b8] sm:$0xff]
        %v3016 = vld [vmem:[%s230 + $0x54c0] sm:$0xff]
        %v3017 = vld [vmem:[%s230 + $0x54c8] sm:$0xff]
        %v3018 = vld [vmem:[%s230 + $0x54d0] sm:$0xff]
        %v3019 = vld [vmem:[%s230 + $0x54d8] sm:$0xff]
        %v3020 = vld [vmem:[%s230 + $0x54e0] sm:$0xff]
        %v3021 = vld [vmem:[%s230 + $0x54e8] sm:$0xff]
        %v3022 = vld [vmem:[%s230 + $0x54f0] sm:$0xff]
        %v3023 = vld [vmem:[%s230 + $0x54f8] sm:$0xff]
        %v3024 = vld [vmem:[%s230 + $0x5500] sm:$0xff]
        %v3025 = vld [vmem:[%s230 + $0x5508] sm:$0xff]
        %v3026 = vld [vmem:[%s230 + $0x5510] sm:$0xff]
        %v3027 = vld [vmem:[%s230 + $0x5518] sm:$0xff]
        %v3028 = vld [vmem:[%s230 + $0x5520] sm:$0xff]
        %v3029 = vld [vmem:[%s230 + $0x5528] sm:$0xff]
        %v3030 = vld [vmem:[%s230 + $0x5530] sm:$0xff]
        %v3031 = vld [vmem:[%s230 + $0x5538] sm:$0xff]
        %v3032 = vld [vmem:[%s230 + $0x5540] sm:$0xff]
        %v3033 = vld [vmem:[%s230 + $0x5548] sm:$0xff]
        %v3034 = vld [vmem:[%s230 + $0x5550] sm:$0xff]
        %v3035 = vld [vmem:[%s230 + $0x5558] sm:$0xff]
        %v3036 = vld [vmem:[%s230 + $0x5560] sm:$0xff]
        %v3037 = vld [vmem:[%s230 + $0x5568] sm:$0xff]
        %v3038 = vld [vmem:[%s230 + $0x5570] sm:$0xff]
        %v3039 = vld [vmem:[%s230 + $0x5578] sm:$0xff]
        %v3040 = vld [vmem:[%s230 + $0x5580] sm:$0xff]
        %v3041 = vld [vmem:[%s230 + $0x5588] sm:$0xff]
        %v3042 = vld [vmem:[%s230 + $0x5590] sm:$0xff]
        %v3043 = vld [vmem:[%s230 + $0x5598] sm:$0xff]
        %v3044 = vld [vmem:[%s230 + $0x55a0] sm:$0xff]
        %v3045 = vld [vmem:[%s230 + $0x55a8] sm:$0xff]
        %v3046 = vld [vmem:[%s230 + $0x55b0] sm:$0xff]
        %v3047 = vld [vmem:[%s230 + $0x55b8] sm:$0xff]
        %v3048 = vld [vmem:[%s230 + $0x55c0] sm:$0xff]
        %v3049 = vld [vmem:[%s230 + $0x55c8] sm:$0xff]
        %v3050 = vld [vmem:[%s230 + $0x55d0] sm:$0xff]
        %v3051 = vld [vmem:[%s230 + $0x55d8] sm:$0xff]
        %v3052 = vld [vmem:[%s230 + $0x55e0] sm:$0xff]
        %v3053 = vld [vmem:[%s230 + $0x55e8] sm:$0xff]
        %v3054 = vld [vmem:[%s230 + $0x55f0] sm:$0xff]
        %v3055 = vld [vmem:[%s230 + $0x55f8] sm:$0xff]
        %v3056 = vld [vmem:[%s230 + $0x5600] sm:$0xff]
        %v3057 = vld [vmem:[%s230 + $0x5608] sm:$0xff]
        %v3058 = vld [vmem:[%s230 + $0x5610] sm:$0xff]
        %v3059 = vld [vmem:[%s230 + $0x5618] sm:$0xff]
        %v3060 = vld [vmem:[%s230 + $0x5620] sm:$0xff]
        %v3061 = vld [vmem:[%s230 + $0x5628] sm:$0xff]
        %v3062 = vld [vmem:[%s230 + $0x5630] sm:$0xff]
        %v3063 = vld [vmem:[%s230 + $0x5638] sm:$0xff]
        %v3064 = vld [vmem:[%s230 + $0x5640] sm:$0xff]
        %v3065 = vld [vmem:[%s230 + $0x5648] sm:$0xff]
        %v3066 = vld [vmem:[%s230 + $0x5650] sm:$0xff]
        %v3067 = vld [vmem:[%s230 + $0x5658] sm:$0xff]
        %v3068 = vld [vmem:[%s230 + $0x5660] sm:$0xff]
        %v3069 = vld [vmem:[%s230 + $0x5668] sm:$0xff]
        %v3070 = vld [vmem:[%s230 + $0x5670] sm:$0xff]
        %v3071 = vld [vmem:[%s230 + $0x5678] sm:$0xff]
        %v3072 = vld [vmem:[%s230 + $0x5680] sm:$0xff]
        %v3073 = vld [vmem:[%s230 + $0x5688] sm:$0xff]
        %v3074 = vld [vmem:[%s230 + $0x5690] sm:$0xff]
        %v3075 = vld [vmem:[%s230 + $0x5698] sm:$0xff]
        %v3076 = vld [vmem:[%s230 + $0x56a0] sm:$0xff]
        %v3077 = vld [vmem:[%s230 + $0x56a8] sm:$0xff]
        %v3078 = vld [vmem:[%s230 + $0x56b0] sm:$0xff]
        %v3079 = vld [vmem:[%s230 + $0x56b8] sm:$0xff]
        %v3080 = vld [vmem:[%s230 + $0x56c0] sm:$0xff]
        %v3081 = vld [vmem:[%s230 + $0x56c8] sm:$0xff]
        %v3082 = vld [vmem:[%s230 + $0x56d0] sm:$0xff]
        %v3083 = vld [vmem:[%s230 + $0x56d8] sm:$0xff]
        %v3084 = vld [vmem:[%s230 + $0x56e0] sm:$0xff]
        %v3085 = vld [vmem:[%s230 + $0x56e8] sm:$0xff]
        %v3086 = vld [vmem:[%s230 + $0x56f0] sm:$0xff]
        %v3087 = vld [vmem:[%s230 + $0x56f8] sm:$0xff]
        %v3088 = vld [vmem:[%s230 + $0x5700] sm:$0xff]
        %v3089 = vld [vmem:[%s230 + $0x5708] sm:$0xff]
        %v3090 = vld [vmem:[%s230 + $0x5710] sm:$0xff]
        %v3091 = vld [vmem:[%s230 + $0x5718] sm:$0xff]
        %v3092 = vld [vmem:[%s230 + $0x5720] sm:$0xff]
        %v3093 = vld [vmem:[%s230 + $0x5728] sm:$0xff]
        %v3094 = vld [vmem:[%s230 + $0x5730] sm:$0xff]
        %v3095 = vld [vmem:[%s230 + $0x5738] sm:$0xff]
        %v3096 = vld [vmem:[%s230 + $0x5740] sm:$0xff]
        %v3097 = vld [vmem:[%s230 + $0x5748] sm:$0xff]
        %v3098 = vld [vmem:[%s230 + $0x5750] sm:$0xff]
        %v3099 = vld [vmem:[%s230 + $0x5758] sm:$0xff]
        %v3100 = vld [vmem:[%s230 + $0x5760] sm:$0xff]
        %v3101 = vld [vmem:[%s230 + $0x5768] sm:$0xff]
        %v3102 = vld [vmem:[%s230 + $0x5770] sm:$0xff]
        %v3103 = vld [vmem:[%s230 + $0x5778] sm:$0xff]
        %v3104 = vld [vmem:[%s230 + $0x5780] sm:$0xff]
        %v3105 = vld [vmem:[%s230 + $0x5788] sm:$0xff]
        %v3106 = vld [vmem:[%s230 + $0x5790] sm:$0xff]
        %v3107 = vld [vmem:[%s230 + $0x5798] sm:$0xff]
        %v3108 = vld [vmem:[%s230 + $0x57a0] sm:$0xff]
        %v3109 = vld [vmem:[%s230 + $0x57a8] sm:$0xff]
        %v3110 = vld [vmem:[%s230 + $0x57b0] sm:$0xff]
        %v3111 = vld [vmem:[%s230 + $0x57b8] sm:$0xff]
        %v3112 = vld [vmem:[%s230 + $0x57c0] sm:$0xff]
        %v3113 = vld [vmem:[%s230 + $0x57c8] sm:$0xff]
        %v3114 = vld [vmem:[%s230 + $0x57d0] sm:$0xff]
        %v3115 = vld [vmem:[%s230 + $0x57d8] sm:$0xff]
        %v3116 = vld [vmem:[%s230 + $0x57e0] sm:$0xff]
        %v3117 = vld [vmem:[%s230 + $0x57e8] sm:$0xff]
        %v3118 = vld [vmem:[%s230 + $0x57f0] sm:$0xff]
        %v3119 = vld [vmem:[%s230 + $0x57f8] sm:$0xff]
        %v3120 = vld [vmem:[%s230 + $0x5800] sm:$0xff]
        %v3121 = vld [vmem:[%s230 + $0x5808] sm:$0xff]
        %v3122 = vld [vmem:[%s230 + $0x5810] sm:$0xff]
        %v3123 = vld [vmem:[%s230 + $0x5818] sm:$0xff]
        %v3124 = vld [vmem:[%s230 + $0x5820] sm:$0xff]
        %v3125 = vld [vmem:[%s230 + $0x5828] sm:$0xff]
        %v3126 = vld [vmem:[%s230 + $0x5830] sm:$0xff]
        %v3127 = vld [vmem:[%s230 + $0x5838] sm:$0xff]
        %v3128 = vld [vmem:[%s230 + $0x5840] sm:$0xff]
        %v3129 = vld [vmem:[%s230 + $0x5848] sm:$0xff]
        %v3130 = vld [vmem:[%s230 + $0x5850] sm:$0xff]
        %v3131 = vld [vmem:[%s230 + $0x5858] sm:$0xff]
        %v3132 = vld [vmem:[%s230 + $0x5860] sm:$0xff]
        %v3133 = vld [vmem:[%s230 + $0x5868] sm:$0xff]
        %v3134 = vld [vmem:[%s230 + $0x5870] sm:$0xff]
        %v3135 = vld [vmem:[%s230 + $0x5878] sm:$0xff]
        %v3136 = vld [vmem:[%s230 + $0x5880] sm:$0xff]
        %v3137 = vld [vmem:[%s230 + $0x5888] sm:$0xff]
        %v3138 = vld [vmem:[%s230 + $0x5890] sm:$0xff]
        %v3139 = vld [vmem:[%s230 + $0x5898] sm:$0xff]
        %v3140 = vld [vmem:[%s230 + $0x58a0] sm:$0xff]
        %v3141 = vld [vmem:[%s230 + $0x58a8] sm:$0xff]
        %v3142 = vld [vmem:[%s230 + $0x58b0] sm:$0xff]
        %v3143 = vld [vmem:[%s230 + $0x58b8] sm:$0xff]
        %v3144 = vld [vmem:[%s230 + $0x58c0] sm:$0xff]
        %v3145 = vld [vmem:[%s230 + $0x58c8] sm:$0xff]
        %v3146 = vld [vmem:[%s230 + $0x58d0] sm:$0xff]
        %v3147 = vld [vmem:[%s230 + $0x58d8] sm:$0xff]
        %v3148 = vld [vmem:[%s230 + $0x58e0] sm:$0xff]
        %v3149 = vld [vmem:[%s230 + $0x58e8] sm:$0xff]
        %v3150 = vld [vmem:[%s230 + $0x58f0] sm:$0xff]
        %v3151 = vld [vmem:[%s230 + $0x58f8] sm:$0xff]
        %v3152 = vld [vmem:[%s230 + $0x5900] sm:$0xff]
        %v3153 = vld [vmem:[%s230 + $0x5908] sm:$0xff]
        %v3154 = vld [vmem:[%s230 + $0x5910] sm:$0xff]
        %v3155 = vld [vmem:[%s230 + $0x5918] sm:$0xff]
        %v3156 = vld [vmem:[%s230 + $0x5920] sm:$0xff]
        %v3157 = vld [vmem:[%s230 + $0x5928] sm:$0xff]
        %v3158 = vld [vmem:[%s230 + $0x5930] sm:$0xff]
        %v3159 = vld [vmem:[%s230 + $0x5938] sm:$0xff]
        %v3160 = vld [vmem:[%s230 + $0x5940] sm:$0xff]
        %v3161 = vld [vmem:[%s230 + $0x5948] sm:$0xff]
        %v3162 = vld [vmem:[%s230 + $0x5950] sm:$0xff]
        %v3163 = vld [vmem:[%s230 + $0x5958] sm:$0xff]
        %v3164 = vld [vmem:[%s230 + $0x5960] sm:$0xff]
        %v3165 = vld [vmem:[%s230 + $0x5968] sm:$0xff]
        %v3166 = vld [vmem:[%s230 + $0x5970] sm:$0xff]
        %v3167 = vld [vmem:[%s230 + $0x5978] sm:$0xff]
        %v3168 = vld [vmem:[%s230 + $0x5980] sm:$0xff]
        %v3169 = vld [vmem:[%s230 + $0x5988] sm:$0xff]
        %v3170 = vld [vmem:[%s230 + $0x5990] sm:$0xff]
        %v3171 = vld [vmem:[%s230 + $0x5998] sm:$0xff]
        %v3172 = vld [vmem:[%s230 + $0x59a0] sm:$0xff]
        %v3173 = vld [vmem:[%s230 + $0x59a8] sm:$0xff]
        %v3174 = vld [vmem:[%s230 + $0x59b0] sm:$0xff]
        %v3175 = vld [vmem:[%s230 + $0x59b8] sm:$0xff]
        %v3176 = vld [vmem:[%s230 + $0x59c0] sm:$0xff]
        %v3177 = vld [vmem:[%s230 + $0x59c8] sm:$0xff]
        %v3178 = vld [vmem:[%s230 + $0x59d0] sm:$0xff]
        %v3179 = vld [vmem:[%s230 + $0x59d8] sm:$0xff]
        %v3180 = vld [vmem:[%s230 + $0x59e0] sm:$0xff]
        %v3181 = vld [vmem:[%s230 + $0x59e8] sm:$0xff]
        %v3182 = vld [vmem:[%s230 + $0x59f0] sm:$0xff]
        %v3183 = vld [vmem:[%s230 + $0x59f8] sm:$0xff]
        %v3184 = vld [vmem:[%s230 + $0x5a00] sm:$0xff]
        %v3185 = vld [vmem:[%s230 + $0x5a08] sm:$0xff]
        %v3186 = vld [vmem:[%s230 + $0x5a10] sm:$0xff]
        %v3187 = vld [vmem:[%s230 + $0x5a18] sm:$0xff]
        %v3188 = vld [vmem:[%s230 + $0x5a20] sm:$0xff]
        %v3189 = vld [vmem:[%s230 + $0x5a28] sm:$0xff]
        %v3190 = vld [vmem:[%s230 + $0x5a30] sm:$0xff]
        %v3191 = vld [vmem:[%s230 + $0x5a38] sm:$0xff]
        %v3192 = vld [vmem:[%s230 + $0x5a40] sm:$0xff]
        %v3193 = vld [vmem:[%s230 + $0x5a48] sm:$0xff]
        %v3194 = vld [vmem:[%s230 + $0x5a50] sm:$0xff]
        %v3195 = vld [vmem:[%s230 + $0x5a58] sm:$0xff]
        %v3196 = vld [vmem:[%s230 + $0x5a60] sm:$0xff]
        %v3197 = vld [vmem:[%s230 + $0x5a68] sm:$0xff]
        %v3198 = vld [vmem:[%s230 + $0x5a70] sm:$0xff]
        %v3199 = vld [vmem:[%s230 + $0x5a78] sm:$0xff]
        %v3200 = vld [vmem:[%s230 + $0x5a80] sm:$0xff]
        %v3201 = vld [vmem:[%s230 + $0x5a88] sm:$0xff]
        %v3202 = vld [vmem:[%s230 + $0x5a90] sm:$0xff]
        %v3203 = vld [vmem:[%s230 + $0x5a98] sm:$0xff]
        %v3204 = vld [vmem:[%s230 + $0x5aa0] sm:$0xff]
        %v3205 = vld [vmem:[%s230 + $0x5aa8] sm:$0xff]
        %v3206 = vld [vmem:[%s230 + $0x5ab0] sm:$0xff]
        %v3207 = vld [vmem:[%s230 + $0x5ab8] sm:$0xff]
        %v3208 = vld [vmem:[%s230 + $0x5ac0] sm:$0xff]
        %v3209 = vld [vmem:[%s230 + $0x5ac8] sm:$0xff]
        %v3210 = vld [vmem:[%s230 + $0x5ad0] sm:$0xff]
        %v3211 = vld [vmem:[%s230 + $0x5ad8] sm:$0xff]
        %v3212 = vld [vmem:[%s230 + $0x5ae0] sm:$0xff]
        %v3213 = vld [vmem:[%s230 + $0x5ae8] sm:$0xff]
        %v3214 = vld [vmem:[%s230 + $0x5af0] sm:$0xff]
        %v3215 = vld [vmem:[%s230 + $0x5af8] sm:$0xff]
        %v3216 = vld [vmem:[%s230 + $0x5b00] sm:$0xff]
        %v3217 = vld [vmem:[%s230 + $0x5b08] sm:$0xff]
        %v3218 = vld [vmem:[%s230 + $0x5b10] sm:$0xff]
        %v3219 = vld [vmem:[%s230 + $0x5b18] sm:$0xff]
        %v3220 = vld [vmem:[%s230 + $0x5b20] sm:$0xff]
        %v3221 = vld [vmem:[%s230 + $0x5b28] sm:$0xff]
        %v3222 = vld [vmem:[%s230 + $0x5b30] sm:$0xff]
        %v3223 = vld [vmem:[%s230 + $0x5b38] sm:$0xff]
        %v3224 = vld [vmem:[%s230 + $0x5b40] sm:$0xff]
        %v3225 = vld [vmem:[%s230 + $0x5b48] sm:$0xff]
        %v3226 = vld [vmem:[%s230 + $0x5b50] sm:$0xff]
        %v3227 = vld [vmem:[%s230 + $0x5b58] sm:$0xff]
        %v3228 = vld [vmem:[%s230 + $0x5b60] sm:$0xff]
        %v3229 = vld [vmem:[%s230 + $0x5b68] sm:$0xff]
        %v3230 = vld [vmem:[%s230 + $0x5b70] sm:$0xff]
        %v3231 = vld [vmem:[%s230 + $0x5b78] sm:$0xff]
        %v3232 = vld [vmem:[%s230 + $0x5b80] sm:$0xff]
        %v3233 = vld [vmem:[%s230 + $0x5b88] sm:$0xff]
        %v3234 = vld [vmem:[%s230 + $0x5b90] sm:$0xff]
        %v3235 = vld [vmem:[%s230 + $0x5b98] sm:$0xff]
        %v3236 = vld [vmem:[%s230 + $0x5ba0] sm:$0xff]
        %v3237 = vld [vmem:[%s230 + $0x5ba8] sm:$0xff]
        %v3238 = vld [vmem:[%s230 + $0x5bb0] sm:$0xff]
        %v3239 = vld [vmem:[%s230 + $0x5bb8] sm:$0xff]
        %v3240 = vld [vmem:[%s230 + $0x5bc0] sm:$0xff]
        %v3241 = vld [vmem:[%s230 + $0x5bc8] sm:$0xff]
        %v3242 = vld [vmem:[%s230 + $0x5bd0] sm:$0xff]
        %v3243 = vld [vmem:[%s230 + $0x5bd8] sm:$0xff]
        %v3244 = vld [vmem:[%s230 + $0x5be0] sm:$0xff]
        %v3245 = vld [vmem:[%s230 + $0x5be8] sm:$0xff]
        %v3246 = vld [vmem:[%s230 + $0x5bf0] sm:$0xff]
        %v3247 = vld [vmem:[%s230 + $0x5bf8] sm:$0xff]
        %v3248 = vld [vmem:[%s230 + $0x5c00] sm:$0xff]
        %v3249 = vld [vmem:[%s230 + $0x5c08] sm:$0xff]
        %v3250 = vld [vmem:[%s230 + $0x5c10] sm:$0xff]
        %v3251 = vld [vmem:[%s230 + $0x5c18] sm:$0xff]
        %v3252 = vld [vmem:[%s230 + $0x5c20] sm:$0xff]
        %v3253 = vld [vmem:[%s230 + $0x5c28] sm:$0xff]
        %v3254 = vld [vmem:[%s230 + $0x5c30] sm:$0xff]
        %v3255 = vld [vmem:[%s230 + $0x5c38] sm:$0xff]
        %v3256 = vld [vmem:[%s230 + $0x5c40] sm:$0xff]
        %v3257 = vld [vmem:[%s230 + $0x5c48] sm:$0xff]
        %v3258 = vld [vmem:[%s230 + $0x5c50] sm:$0xff]
        %v3259 = vld [vmem:[%s230 + $0x5c58] sm:$0xff]
        %v3260 = vld [vmem:[%s230 + $0x5c60] sm:$0xff]
        %v3261 = vld [vmem:[%s230 + $0x5c68] sm:$0xff]
        %v3262 = vld [vmem:[%s230 + $0x5c70] sm:$0xff]
        %v3263 = vld [vmem:[%s230 + $0x5c78] sm:$0xff]
        %v3264 = vld [vmem:[%s230 + $0x5c80] sm:$0xff]
        %v3265 = vld [vmem:[%s230 + $0x5c88] sm:$0xff]
        %v3266 = vld [vmem:[%s230 + $0x5c90] sm:$0xff]
        %v3267 = vld [vmem:[%s230 + $0x5c98] sm:$0xff]
        %v3268 = vld [vmem:[%s230 + $0x5ca0] sm:$0xff]
        %v3269 = vld [vmem:[%s230 + $0x5ca8] sm:$0xff]
        %v3270 = vld [vmem:[%s230 + $0x5cb0] sm:$0xff]
        %v3271 = vld [vmem:[%s230 + $0x5cb8] sm:$0xff]
        %v3272 = vld [vmem:[%s230 + $0x5cc0] sm:$0xff]
        %v3273 = vld [vmem:[%s230 + $0x5cc8] sm:$0xff]
        %v3274 = vld [vmem:[%s230 + $0x5cd0] sm:$0xff]
        %v3275 = vld [vmem:[%s230 + $0x5cd8] sm:$0xff]
        %v3276 = vld [vmem:[%s230 + $0x5ce0] sm:$0xff]
        %v3277 = vld [vmem:[%s230 + $0x5ce8] sm:$0xff]
        %v3278 = vld [vmem:[%s230 + $0x5cf0] sm:$0xff]
        %v3279 = vld [vmem:[%s230 + $0x5cf8] sm:$0xff]
        %v3280 = vld [vmem:[%s230 + $0x5d00] sm:$0xff]
        %v3281 = vld [vmem:[%s230 + $0x5d08] sm:$0xff]
        %v3282 = vld [vmem:[%s230 + $0x5d10] sm:$0xff]
        %v3283 = vld [vmem:[%s230 + $0x5d18] sm:$0xff]
        %v3284 = vld [vmem:[%s230 + $0x5d20] sm:$0xff]
        %v3285 = vld [vmem:[%s230 + $0x5d28] sm:$0xff]
        %v3286 = vld [vmem:[%s230 + $0x5d30] sm:$0xff]
        %v3287 = vld [vmem:[%s230 + $0x5d38] sm:$0xff]
        %v3288 = vld [vmem:[%s230 + $0x5d40] sm:$0xff]
        %v3289 = vld [vmem:[%s230 + $0x5d48] sm:$0xff]
        %v3290 = vld [vmem:[%s230 + $0x5d50] sm:$0xff]
        %v3291 = vld [vmem:[%s230 + $0x5d58] sm:$0xff]
        %v3292 = vld [vmem:[%s230 + $0x5d60] sm:$0xff]
        %v3293 = vld [vmem:[%s230 + $0x5d68] sm:$0xff]
        %v3294 = vld [vmem:[%s230 + $0x5d70] sm:$0xff]
        %v3295 = vld [vmem:[%s230 + $0x5d78] sm:$0xff]
        %v3296 = vld [vmem:[%s230 + $0x5d80] sm:$0xff]
        %v3297 = vld [vmem:[%s230 + $0x5d88] sm:$0xff]
        %v3298 = vld [vmem:[%s230 + $0x5d90] sm:$0xff]
        %v3299 = vld [vmem:[%s230 + $0x5d98] sm:$0xff]
        %v3300 = vld [vmem:[%s230 + $0x5da0] sm:$0xff]
        %v3301 = vld [vmem:[%s230 + $0x5da8] sm:$0xff]
        %v3302 = vld [vmem:[%s230 + $0x5db0] sm:$0xff]
        %v3303 = vld [vmem:[%s230 + $0x5db8] sm:$0xff]
        %v3304 = vld [vmem:[%s230 + $0x5dc0] sm:$0xff]
        %v3305 = vld [vmem:[%s230 + $0x5dc8] sm:$0xff]
        %v3306 = vld [vmem:[%s230 + $0x5dd0] sm:$0xff]
        %v3307 = vld [vmem:[%s230 + $0x5dd8] sm:$0xff]
        %v3308 = vld [vmem:[%s230 + $0x5de0] sm:$0xff]
        %v3309 = vld [vmem:[%s230 + $0x5de8] sm:$0xff]
        %v3310 = vld [vmem:[%s230 + $0x5df0] sm:$0xff]
        %v3311 = vld [vmem:[%s230 + $0x5df8] sm:$0xff]
        %v3312 = vld [vmem:[%s230 + $0x5e00] sm:$0xff]
        %v3313 = vld [vmem:[%s230 + $0x5e08] sm:$0xff]
        %v3314 = vld [vmem:[%s230 + $0x5e10] sm:$0xff]
        %v3315 = vld [vmem:[%s230 + $0x5e18] sm:$0xff]
        %v3316 = vld [vmem:[%s230 + $0x5e20] sm:$0xff]
        %v3317 = vld [vmem:[%s230 + $0x5e28] sm:$0xff]
        %v3318 = vld [vmem:[%s230 + $0x5e30] sm:$0xff]
        %v3319 = vld [vmem:[%s230 + $0x5e38] sm:$0xff]
        %v3320 = vld [vmem:[%s230 + $0x5e40] sm:$0xff]
        %v3321 = vld [vmem:[%s230 + $0x5e48] sm:$0xff]
        %v3322 = vld [vmem:[%s230 + $0x5e50] sm:$0xff]
        %v3323 = vld [vmem:[%s230 + $0x5e58] sm:$0xff]
        %v3324 = vld [vmem:[%s230 + $0x5e60] sm:$0xff]
        %v3325 = vld [vmem:[%s230 + $0x5e68] sm:$0xff]
        %v3326 = vld [vmem:[%s230 + $0x5e70] sm:$0xff]
        %v3327 = vld [vmem:[%s230 + $0x5e78] sm:$0xff]
        %v3328 = vld [vmem:[%s230 + $0x5e80] sm:$0xff]
        %v3329 = vld [vmem:[%s230 + $0x5e88] sm:$0xff]
        %v3330 = vld [vmem:[%s230 + $0x5e90] sm:$0xff]
        %v3331 = vld [vmem:[%s230 + $0x5e98] sm:$0xff]
        %v3332 = vld [vmem:[%s230 + $0x5ea0] sm:$0xff]
        %v3333 = vld [vmem:[%s230 + $0x5ea8] sm:$0xff]
        %v3334 = vld [vmem:[%s230 + $0x5eb0] sm:$0xff]
        %v3335 = vld [vmem:[%s230 + $0x5eb8] sm:$0xff]
        %v3336 = vld [vmem:[%s230 + $0x5ec0] sm:$0xff]
        %v3337 = vld [vmem:[%s230 + $0x5ec8] sm:$0xff]
        %v3338 = vld [vmem:[%s230 + $0x5ed0] sm:$0xff]
        %v3339 = vld [vmem:[%s230 + $0x5ed8] sm:$0xff]
        %v3340 = vld [vmem:[%s230 + $0x5ee0] sm:$0xff]
        %v3341 = vld [vmem:[%s230 + $0x5ee8] sm:$0xff]
        %v3342 = vld [vmem:[%s230 + $0x5ef0] sm:$0xff]
        %v3343 = vld [vmem:[%s230 + $0x5ef8] sm:$0xff]
        %v3344 = vld [vmem:[%s230 + $0x5f00] sm:$0xff]
        %v3345 = vld [vmem:[%s230 + $0x5f08] sm:$0xff]
        %v3346 = vld [vmem:[%s230 + $0x5f10] sm:$0xff]
        %v3347 = vld [vmem:[%s230 + $0x5f18] sm:$0xff]
        %v3348 = vld [vmem:[%s230 + $0x5f20] sm:$0xff]
        %v3349 = vld [vmem:[%s230 + $0x5f28] sm:$0xff]
        %v3350 = vld [vmem:[%s230 + $0x5f30] sm:$0xff]
        %v3351 = vld [vmem:[%s230 + $0x5f38] sm:$0xff]
        %v3352 = vld [vmem:[%s230 + $0x5f40] sm:$0xff]
        %v3353 = vld [vmem:[%s230 + $0x5f48] sm:$0xff]
        %v3354 = vld [vmem:[%s230 + $0x5f50] sm:$0xff]
        %v3355 = vld [vmem:[%s230 + $0x5f58] sm:$0xff]
        %v3356 = vld [vmem:[%s230 + $0x5f60] sm:$0xff]
        %v3357 = vld [vmem:[%s230 + $0x5f68] sm:$0xff]
        %v3358 = vld [vmem:[%s230 + $0x5f70] sm:$0xff]
        %v3359 = vld [vmem:[%s230 + $0x5f78] sm:$0xff]
        %v3360 = vld [vmem:[%s230 + $0x5f80] sm:$0xff]
        %v3361 = vld [vmem:[%s230 + $0x5f88] sm:$0xff]
        %v3362 = vld [vmem:[%s230 + $0x5f90] sm:$0xff]
        %v3363 = vld [vmem:[%s230 + $0x5f98] sm:$0xff]
        %v3364 = vld [vmem:[%s230 + $0x5fa0] sm:$0xff]
        %v3365 = vld [vmem:[%s230 + $0x5fa8] sm:$0xff]
        %v3366 = vld [vmem:[%s230 + $0x5fb0] sm:$0xff]
        %v3367 = vld [vmem:[%s230 + $0x5fb8] sm:$0xff]
        %v3368 = vld [vmem:[%s230 + $0x5fc0] sm:$0xff]
        %v3369 = vld [vmem:[%s230 + $0x5fc8] sm:$0xff]
        %v3370 = vld [vmem:[%s230 + $0x5fd0] sm:$0xff]
        %v3371 = vld [vmem:[%s230 + $0x5fd8] sm:$0xff]
        %v3372 = vld [vmem:[%s230 + $0x5fe0] sm:$0xff]
        %v3373 = vld [vmem:[%s230 + $0x5fe8] sm:$0xff]
        %v3374 = vld [vmem:[%s230 + $0x5ff0] sm:$0xff]
        %v3375 = vld [vmem:[%s230 + $0x5ff8] sm:$0xff]
        %v3376 = vld [vmem:[%s230 + $0x6000] sm:$0xff]
        %v3377 = vld [vmem:[%s230 + $0x6008] sm:$0xff]
        %v3378 = vld [vmem:[%s230 + $0x6010] sm:$0xff]
        %v3379 = vld [vmem:[%s230 + $0x6018] sm:$0xff]
        %v3380 = vld [vmem:[%s230 + $0x6020] sm:$0xff]
        %v3381 = vld [vmem:[%s230 + $0x6028] sm:$0xff]
        %v3382 = vld [vmem:[%s230 + $0x6030] sm:$0xff]
        %v3383 = vld [vmem:[%s230 + $0x6038] sm:$0xff]
        %v3384 = vld [vmem:[%s230 + $0x6040] sm:$0xff]
        %v3385 = vld [vmem:[%s230 + $0x6048] sm:$0xff]
        %v3386 = vld [vmem:[%s230 + $0x6050] sm:$0xff]
        %v3387 = vld [vmem:[%s230 + $0x6058] sm:$0xff]
        %v3388 = vld [vmem:[%s230 + $0x6060] sm:$0xff]
        %v3389 = vld [vmem:[%s230 + $0x6068] sm:$0xff]
        %v3390 = vld [vmem:[%s230 + $0x6070] sm:$0xff]
        %v3391 = vld [vmem:[%s230 + $0x6078] sm:$0xff]
        %v3392 = vld [vmem:[%s230 + $0x6080] sm:$0xff]
        %v3393 = vld [vmem:[%s230 + $0x6088] sm:$0xff]
        %v3394 = vld [vmem:[%s230 + $0x6090] sm:$0xff]
        %v3395 = vld [vmem:[%s230 + $0x6098] sm:$0xff]
        %v3396 = vld [vmem:[%s230 + $0x60a0] sm:$0xff]
        %v3397 = vld [vmem:[%s230 + $0x60a8] sm:$0xff]
        %v3398 = vld [vmem:[%s230 + $0x60b0] sm:$0xff]
        %v3399 = vld [vmem:[%s230 + $0x60b8] sm:$0xff]
        %v3400 = vld [vmem:[%s230 + $0x60c0] sm:$0xff]
        %v3401 = vld [vmem:[%s230 + $0x60c8] sm:$0xff]
        %v3402 = vld [vmem:[%s230 + $0x60d0] sm:$0xff]
        %v3403 = vld [vmem:[%s230 + $0x60d8] sm:$0xff]
        %v3404 = vld [vmem:[%s230 + $0x60e0] sm:$0xff]
        %v3405 = vld [vmem:[%s230 + $0x60e8] sm:$0xff]
        %v3406 = vld [vmem:[%s230 + $0x60f0] sm:$0xff]
        %v3407 = vld [vmem:[%s230 + $0x60f8] sm:$0xff]
        %v3408 = vld [vmem:[%s230 + $0x6100] sm:$0xff]
        %v3409 = vld [vmem:[%s230 + $0x6108] sm:$0xff]
        %v3410 = vld [vmem:[%s230 + $0x6110] sm:$0xff]
        %v3411 = vld [vmem:[%s230 + $0x6118] sm:$0xff]
        %v3412 = vld [vmem:[%s230 + $0x6120] sm:$0xff]
        %v3413 = vld [vmem:[%s230 + $0x6128] sm:$0xff]
        %v3414 = vld [vmem:[%s230 + $0x6130] sm:$0xff]
        %v3415 = vld [vmem:[%s230 + $0x6138] sm:$0xff]
        %v3416 = vld [vmem:[%s230 + $0x6140] sm:$0xff]
        %v3417 = vld [vmem:[%s230 + $0x6148] sm:$0xff]
        %v3418 = vld [vmem:[%s230 + $0x6150] sm:$0xff]
        %v3419 = vld [vmem:[%s230 + $0x6158] sm:$0xff]
        %v3420 = vld [vmem:[%s230 + $0x6160] sm:$0xff]
        %v3421 = vld [vmem:[%s230 + $0x6168] sm:$0xff]
        %v3422 = vld [vmem:[%s230 + $0x6170] sm:$0xff]
        %v3423 = vld [vmem:[%s230 + $0x6178] sm:$0xff]
        %v3424 = vld [vmem:[%s230 + $0x6180] sm:$0xff]
        %v3425 = vld [vmem:[%s230 + $0x6188] sm:$0xff]
        %v3426 = vld [vmem:[%s230 + $0x6190] sm:$0xff]
        %v3427 = vld [vmem:[%s230 + $0x6198] sm:$0xff]
        %v3428 = vld [vmem:[%s230 + $0x61a0] sm:$0xff]
        %v3429 = vld [vmem:[%s230 + $0x61a8] sm:$0xff]
        %v3430 = vld [vmem:[%s230 + $0x61b0] sm:$0xff]
        %v3431 = vld [vmem:[%s230 + $0x61b8] sm:$0xff]
        %v3432 = vld [vmem:[%s230 + $0x61c0] sm:$0xff]
        %v3433 = vld [vmem:[%s230 + $0x61c8] sm:$0xff]
        %v3434 = vld [vmem:[%s230 + $0x61d0] sm:$0xff]
        %v3435 = vld [vmem:[%s230 + $0x61d8] sm:$0xff]
        %v3436 = vld [vmem:[%s230 + $0x61e0] sm:$0xff]
        %v3437 = vld [vmem:[%s230 + $0x61e8] sm:$0xff]
        %v3438 = vld [vmem:[%s230 + $0x61f0] sm:$0xff]
        %v3439 = vld [vmem:[%s230 + $0x61f8] sm:$0xff]
        %v3440 = vld [vmem:[%s230 + $0x6200] sm:$0xff]
        %v3441 = vld [vmem:[%s230 + $0x6208] sm:$0xff]
        %v3442 = vld [vmem:[%s230 + $0x6210] sm:$0xff]
        %v3443 = vld [vmem:[%s230 + $0x6218] sm:$0xff]
        %v3444 = vld [vmem:[%s230 + $0x6220] sm:$0xff]
        %v3445 = vld [vmem:[%s230 + $0x6228] sm:$0xff]
        %v3446 = vld [vmem:[%s230 + $0x6230] sm:$0xff]
        %v3447 = vld [vmem:[%s230 + $0x6238] sm:$0xff]
        %v3448 = vld [vmem:[%s230 + $0x6240] sm:$0xff]
        %v3449 = vld [vmem:[%s230 + $0x6248] sm:$0xff]
        %v3450 = vld [vmem:[%s230 + $0x6250] sm:$0xff]
        %v3451 = vld [vmem:[%s230 + $0x6258] sm:$0xff]
        %v3452 = vld [vmem:[%s230 + $0x6260] sm:$0xff]
        %v3453 = vld [vmem:[%s230 + $0x6268] sm:$0xff]
        %v3454 = vld [vmem:[%s230 + $0x6270] sm:$0xff]
        %v3455 = vld [vmem:[%s230 + $0x6278] sm:$0xff]
        %v3456 = vld [vmem:[%s230 + $0x6280] sm:$0xff]
        %v3457 = vld [vmem:[%s230 + $0x6288] sm:$0xff]
        %v3458 = vld [vmem:[%s230 + $0x6290] sm:$0xff]
        %v3459 = vld [vmem:[%s230 + $0x6298] sm:$0xff]
        %v3460 = vld [vmem:[%s230 + $0x62a0] sm:$0xff]
        %v3461 = vld [vmem:[%s230 + $0x62a8] sm:$0xff]
        %v3462 = vld [vmem:[%s230 + $0x62b0] sm:$0xff]
        %v3463 = vld [vmem:[%s230 + $0x62b8] sm:$0xff]
        %v3464 = vld [vmem:[%s230 + $0x62c0] sm:$0xff]
        %v3465 = vld [vmem:[%s230 + $0x62c8] sm:$0xff]
        %v3466 = vld [vmem:[%s230 + $0x62d0] sm:$0xff]
        %v3467 = vld [vmem:[%s230 + $0x62d8] sm:$0xff]
        %v3468 = vld [vmem:[%s230 + $0x62e0] sm:$0xff]
        %v3469 = vld [vmem:[%s230 + $0x62e8] sm:$0xff]
        %v3470 = vld [vmem:[%s230 + $0x62f0] sm:$0xff]
        %v3471 = vld [vmem:[%s230 + $0x62f8] sm:$0xff]
        %v3472 = vld [vmem:[%s230 + $0x6300] sm:$0xff]
        %v3473 = vld [vmem:[%s230 + $0x6308] sm:$0xff]
        %v3474 = vld [vmem:[%s230 + $0x6310] sm:$0xff]
        %v3475 = vld [vmem:[%s230 + $0x6318] sm:$0xff]
        %v3476 = vld [vmem:[%s230 + $0x6320] sm:$0xff]
        %v3477 = vld [vmem:[%s230 + $0x6328] sm:$0xff]
        %v3478 = vld [vmem:[%s230 + $0x6330] sm:$0xff]
        %v3479 = vld [vmem:[%s230 + $0x6338] sm:$0xff]
        %v3480 = vld [vmem:[%s230 + $0x6340] sm:$0xff]
        %v3481 = vld [vmem:[%s230 + $0x6348] sm:$0xff]
        %v3482 = vld [vmem:[%s230 + $0x6350] sm:$0xff]
        %v3483 = vld [vmem:[%s230 + $0x6358] sm:$0xff]
        %v3484 = vld [vmem:[%s230 + $0x6360] sm:$0xff]
        %v3485 = vld [vmem:[%s230 + $0x6368] sm:$0xff]
        %v3486 = vld [vmem:[%s230 + $0x6370] sm:$0xff]
        %v3487 = vld [vmem:[%s230 + $0x6378] sm:$0xff]
        %v3488 = vld [vmem:[%s230 + $0x6380] sm:$0xff]
        %v3489 = vld [vmem:[%s230 + $0x6388] sm:$0xff]
        %v3490 = vld [vmem:[%s230 + $0x6390] sm:$0xff]
        %v3491 = vld [vmem:[%s230 + $0x6398] sm:$0xff]
        %v3492 = vld [vmem:[%s230 + $0x63a0] sm:$0xff]
        %v3493 = vld [vmem:[%s230 + $0x63a8] sm:$0xff]
        %v3494 = vld [vmem:[%s230 + $0x63b0] sm:$0xff]
        %v3495 = vld [vmem:[%s230 + $0x63b8] sm:$0xff]
        %v3496 = vld [vmem:[%s230 + $0x63c0] sm:$0xff]
        %v3497 = vld [vmem:[%s230 + $0x63c8] sm:$0xff]
        %v3498 = vld [vmem:[%s230 + $0x63d0] sm:$0xff]
        %v3499 = vld [vmem:[%s230 + $0x63d8] sm:$0xff]
        %v3500 = vld [vmem:[%s230 + $0x63e0] sm:$0xff]
        %v3501 = vld [vmem:[%s230 + $0x63e8] sm:$0xff]
        %v3502 = vld [vmem:[%s230 + $0x63f0] sm:$0xff]
        %v3503 = vld [vmem:[%s230 + $0x63f8] sm:$0xff]
        %v3504 = vld [vmem:[%s230 + $0x6400] sm:$0xff]
        %v3505 = vld [vmem:[%s230 + $0x6408] sm:$0xff]
        %v3506 = vld [vmem:[%s230 + $0x6410] sm:$0xff]
        %v3507 = vld [vmem:[%s230 + $0x6418] sm:$0xff]
        %v3508 = vld [vmem:[%s230 + $0x6420] sm:$0xff]
        %v3509 = vld [vmem:[%s230 + $0x6428] sm:$0xff]
        %v3510 = vld [vmem:[%s230 + $0x6430] sm:$0xff]
        %v3511 = vld [vmem:[%s230 + $0x6438] sm:$0xff]
        %v3512 = vld [vmem:[%s230 + $0x6440] sm:$0xff]
        %v3513 = vld [vmem:[%s230 + $0x6448] sm:$0xff]
        %v3514 = vld [vmem:[%s230 + $0x6450] sm:$0xff]
        %v3515 = vld [vmem:[%s230 + $0x6458] sm:$0xff]
        %v3516 = vld [vmem:[%s230 + $0x6460] sm:$0xff]
        %v3517 = vld [vmem:[%s230 + $0x6468] sm:$0xff]
        %v3518 = vld [vmem:[%s230 + $0x6470] sm:$0xff]
        %v3519 = vld [vmem:[%s230 + $0x6478] sm:$0xff]
        %v3520 = vld [vmem:[%s230 + $0x6480] sm:$0xff]
        %v3521 = vld [vmem:[%s230 + $0x6488] sm:$0xff]
        %v3522 = vld [vmem:[%s230 + $0x6490] sm:$0xff]
        %v3523 = vld [vmem:[%s230 + $0x6498] sm:$0xff]
        %v3524 = vld [vmem:[%s230 + $0x64a0] sm:$0xff]
        %v3525 = vld [vmem:[%s230 + $0x64a8] sm:$0xff]
        %v3526 = vld [vmem:[%s230 + $0x64b0] sm:$0xff]
        %v3527 = vld [vmem:[%s230 + $0x64b8] sm:$0xff]
        %v3528 = vld [vmem:[%s230 + $0x64c0] sm:$0xff]
        %v3529 = vld [vmem:[%s230 + $0x64c8] sm:$0xff]
        %v3530 = vld [vmem:[%s230 + $0x64d0] sm:$0xff]
        %v3531 = vld [vmem:[%s230 + $0x64d8] sm:$0xff]
        %v3532 = vld [vmem:[%s230 + $0x64e0] sm:$0xff]
        %v3533 = vld [vmem:[%s230 + $0x64e8] sm:$0xff]
        %v3534 = vld [vmem:[%s230 + $0x64f0] sm:$0xff]
        %v3535 = vld [vmem:[%s230 + $0x64f8] sm:$0xff]
        %v3536 = vld [vmem:[%s230 + $0x6500] sm:$0xff]
        %v3537 = vld [vmem:[%s230 + $0x6508] sm:$0xff]
        %v3538 = vld [vmem:[%s230 + $0x6510] sm:$0xff]
        %v3539 = vld [vmem:[%s230 + $0x6518] sm:$0xff]
        %v3540 = vld [vmem:[%s230 + $0x6520] sm:$0xff]
        %v3541 = vld [vmem:[%s230 + $0x6528] sm:$0xff]
        %v3542 = vld [vmem:[%s230 + $0x6530] sm:$0xff]
        %v3543 = vld [vmem:[%s230 + $0x6538] sm:$0xff]
        %v3544 = vld [vmem:[%s230 + $0x6540] sm:$0xff]
        %v3545 = vld [vmem:[%s230 + $0x6548] sm:$0xff]
        %v3546 = vld [vmem:[%s230 + $0x6550] sm:$0xff]
        %v3547 = vld [vmem:[%s230 + $0x6558] sm:$0xff]
        %v3548 = vld [vmem:[%s230 + $0x6560] sm:$0xff]
        %v3549 = vld [vmem:[%s230 + $0x6568] sm:$0xff]
        %v3550 = vld [vmem:[%s230 + $0x6570] sm:$0xff]
        %v3551 = vld [vmem:[%s230 + $0x6578] sm:$0xff]
        %v3552 = vld [vmem:[%s230 + $0x6580] sm:$0xff]
        %v3553 = vld [vmem:[%s230 + $0x6588] sm:$0xff]
        %v3554 = vld [vmem:[%s230 + $0x6590] sm:$0xff]
        %v3555 = vld [vmem:[%s230 + $0x6598] sm:$0xff]
        %v3556 = vld [vmem:[%s230 + $0x65a0] sm:$0xff]
        %v3557 = vld [vmem:[%s230 + $0x65a8] sm:$0xff]
        %v3558 = vld [vmem:[%s230 + $0x65b0] sm:$0xff]
        %v3559 = vld [vmem:[%s230 + $0x65b8] sm:$0xff]
        %v3560 = vld [vmem:[%s230 + $0x65c0] sm:$0xff]
        %v3561 = vld [vmem:[%s230 + $0x65c8] sm:$0xff]
        %v3562 = vld [vmem:[%s230 + $0x65d0] sm:$0xff]
        %v3563 = vld [vmem:[%s230 + $0x65d8] sm:$0xff]
        %v3564 = vld [vmem:[%s230 + $0x65e0] sm:$0xff]
        %v3565 = vld [vmem:[%s230 + $0x65e8] sm:$0xff]
        %v3566 = vld [vmem:[%s230 + $0x65f0] sm:$0xff]
        %v3567 = vld [vmem:[%s230 + $0x65f8] sm:$0xff]
        %v3568 = vld [vmem:[%s230 + $0x6600] sm:$0xff]
        %v3569 = vld [vmem:[%s230 + $0x6608] sm:$0xff]
        %v3570 = vld [vmem:[%s230 + $0x6610] sm:$0xff]
        %v3571 = vld [vmem:[%s230 + $0x6618] sm:$0xff]
        %v3572 = vld [vmem:[%s230 + $0x6620] sm:$0xff]
        %v3573 = vld [vmem:[%s230 + $0x6628] sm:$0xff]
        %v3574 = vld [vmem:[%s230 + $0x6630] sm:$0xff]
        %v3575 = vld [vmem:[%s230 + $0x6638] sm:$0xff]
        %v3576 = vld [vmem:[%s230 + $0x6640] sm:$0xff]
        %v3577 = vld [vmem:[%s230 + $0x6648] sm:$0xff]
        %v3578 = vld [vmem:[%s230 + $0x6650] sm:$0xff]
        %v3579 = vld [vmem:[%s230 + $0x6658] sm:$0xff]
        %v3580 = vld [vmem:[%s230 + $0x6660] sm:$0xff]
        %v3581 = vld [vmem:[%s230 + $0x6668] sm:$0xff]
        %v3582 = vld [vmem:[%s230 + $0x6670] sm:$0xff]
        %v3583 = vld [vmem:[%s230 + $0x6678] sm:$0xff]
        %v3584 = vld [vmem:[%s230 + $0x6680] sm:$0xff]
        %v3585 = vld [vmem:[%s230 + $0x6688] sm:$0xff]
        %v3586 = vld [vmem:[%s230 + $0x6690] sm:$0xff]
        %v3587 = vld [vmem:[%s230 + $0x6698] sm:$0xff]
        %v3588 = vld [vmem:[%s230 + $0x66a0] sm:$0xff]
        %v3589 = vld [vmem:[%s230 + $0x66a8] sm:$0xff]
        %v3590 = vld [vmem:[%s230 + $0x66b0] sm:$0xff]
        %v3591 = vld [vmem:[%s230 + $0x66b8] sm:$0xff]
        %v3592 = vld [vmem:[%s230 + $0x66c0] sm:$0xff]
        %v3593 = vld [vmem:[%s230 + $0x66c8] sm:$0xff]
        %v3594 = vld [vmem:[%s230 + $0x66d0] sm:$0xff]
        %v3595 = vld [vmem:[%s230 + $0x66d8] sm:$0xff]
        %v3596 = vld [vmem:[%s230 + $0x66e0] sm:$0xff]
        %v3597 = vld [vmem:[%s230 + $0x66e8] sm:$0xff]
        %v3598 = vld [vmem:[%s230 + $0x66f0] sm:$0xff]
        %v3599 = vld [vmem:[%s230 + $0x66f8] sm:$0xff]
        %v3600 = vld [vmem:[%s230 + $0x6700] sm:$0xff]
        %v3601 = vld [vmem:[%s230 + $0x6708] sm:$0xff]
        %v3602 = vld [vmem:[%s230 + $0x6710] sm:$0xff]
        %v3603 = vld [vmem:[%s230 + $0x6718] sm:$0xff]
        %v3604 = vld [vmem:[%s230 + $0x6720] sm:$0xff]
        %v3605 = vld [vmem:[%s230 + $0x6728] sm:$0xff]
        %v3606 = vld [vmem:[%s230 + $0x6730] sm:$0xff]
        %v3607 = vld [vmem:[%s230 + $0x6738] sm:$0xff]
        %v3608 = vld [vmem:[%s230 + $0x6740] sm:$0xff]
        %v3609 = vld [vmem:[%s230 + $0x6748] sm:$0xff]
        %v3610 = vld [vmem:[%s230 + $0x6750] sm:$0xff]
        %v3611 = vld [vmem:[%s230 + $0x6758] sm:$0xff]
        %v3612 = vld [vmem:[%s230 + $0x6760] sm:$0xff]
        %v3613 = vld [vmem:[%s230 + $0x6768] sm:$0xff]
        %v3614 = vld [vmem:[%s230 + $0x6770] sm:$0xff]
        %v3615 = vld [vmem:[%s230 + $0x6778] sm:$0xff]
        %v3616 = vld [vmem:[%s230 + $0x6780] sm:$0xff]
        %v3617 = vld [vmem:[%s230 + $0x6788] sm:$0xff]
        %v3618 = vld [vmem:[%s230 + $0x6790] sm:$0xff]
        %v3619 = vld [vmem:[%s230 + $0x6798] sm:$0xff]
        %v3620 = vld [vmem:[%s230 + $0x67a0] sm:$0xff]
        %v3621 = vld [vmem:[%s230 + $0x67a8] sm:$0xff]
        %v3622 = vld [vmem:[%s230 + $0x67b0] sm:$0xff]
        %v3623 = vld [vmem:[%s230 + $0x67b8] sm:$0xff]
        %v3624 = vld [vmem:[%s230 + $0x67c0] sm:$0xff]
        %v3625 = vld [vmem:[%s230 + $0x67c8] sm:$0xff]
        %v3626 = vld [vmem:[%s230 + $0x67d0] sm:$0xff]
        %v3627 = vld [vmem:[%s230 + $0x67d8] sm:$0xff]
        %v3628 = vld [vmem:[%s230 + $0x67e0] sm:$0xff]
        %v3629 = vld [vmem:[%s230 + $0x67e8] sm:$0xff]
        %v3630 = vld [vmem:[%s230 + $0x67f0] sm:$0xff]
        %v3631 = vld [vmem:[%s230 + $0x67f8] sm:$0xff]
        %v3632 = vld [vmem:[%s230 + $0x6800] sm:$0xff]
        %v3633 = vld [vmem:[%s230 + $0x6808] sm:$0xff]
        %v3634 = vld [vmem:[%s230 + $0x6810] sm:$0xff]
        %v3635 = vld [vmem:[%s230 + $0x6818] sm:$0xff]
        %v3636 = vld [vmem:[%s230 + $0x6820] sm:$0xff]
        %v3637 = vld [vmem:[%s230 + $0x6828] sm:$0xff]
        %v3638 = vld [vmem:[%s230 + $0x6830] sm:$0xff]
        %v3639 = vld [vmem:[%s230 + $0x6838] sm:$0xff]
        %v3640 = vld [vmem:[%s230 + $0x6840] sm:$0xff]
        %v3641 = vld [vmem:[%s230 + $0x6848] sm:$0xff]
        %v3642 = vld [vmem:[%s230 + $0x6850] sm:$0xff]
        %v3643 = vld [vmem:[%s230 + $0x6858] sm:$0xff]
        %v3644 = vld [vmem:[%s230 + $0x6860] sm:$0xff]
        %v3645 = vld [vmem:[%s230 + $0x6868] sm:$0xff]
        %v3646 = vld [vmem:[%s230 + $0x6870] sm:$0xff]
        %v3647 = vld [vmem:[%s230 + $0x6878] sm:$0xff]
        %v3648 = vld [vmem:[%s230 + $0x6880] sm:$0xff]
        %v3649 = vld [vmem:[%s230 + $0x6888] sm:$0xff]
        %v3650 = vld [vmem:[%s230 + $0x6890] sm:$0xff]
        %v3651 = vld [vmem:[%s230 + $0x6898] sm:$0xff]
        %v3652 = vld [vmem:[%s230 + $0x68a0] sm:$0xff]
        %v3653 = vld [vmem:[%s230 + $0x68a8] sm:$0xff]
        %v3654 = vld [vmem:[%s230 + $0x68b0] sm:$0xff]
        %v3655 = vld [vmem:[%s230 + $0x68b8] sm:$0xff]
        %v3656 = vld [vmem:[%s230 + $0x68c0] sm:$0xff]
        %v3657 = vld [vmem:[%s230 + $0x68c8] sm:$0xff]
        %v3658 = vld [vmem:[%s230 + $0x68d0] sm:$0xff]
        %v3659 = vld [vmem:[%s230 + $0x68d8] sm:$0xff]
        %v3660 = vld [vmem:[%s230 + $0x68e0] sm:$0xff]
        %v3661 = vld [vmem:[%s230 + $0x68e8] sm:$0xff]
        %v3662 = vld [vmem:[%s230 + $0x68f0] sm:$0xff]
        %v3663 = vld [vmem:[%s230 + $0x68f8] sm:$0xff]
        %v3664 = vld [vmem:[%s230 + $0x6900] sm:$0xff]
        %v3665 = vld [vmem:[%s230 + $0x6908] sm:$0xff]
        %v3666 = vld [vmem:[%s230 + $0x6910] sm:$0xff]
        %v3667 = vld [vmem:[%s230 + $0x6918] sm:$0xff]
        %v3668 = vld [vmem:[%s230 + $0x6920] sm:$0xff]
        %v3669 = vld [vmem:[%s230 + $0x6928] sm:$0xff]
        %v3670 = vld [vmem:[%s230 + $0x6930] sm:$0xff]
        %v3671 = vld [vmem:[%s230 + $0x6938] sm:$0xff]
        %v3672 = vld [vmem:[%s230 + $0x6940] sm:$0xff]
        %v3673 = vld [vmem:[%s230 + $0x6948] sm:$0xff]
        %v3674 = vld [vmem:[%s230 + $0x6950] sm:$0xff]
        %v3675 = vld [vmem:[%s230 + $0x6958] sm:$0xff]
        %v3676 = vld [vmem:[%s230 + $0x6960] sm:$0xff]
        %v3677 = vld [vmem:[%s230 + $0x6968] sm:$0xff]
        %v3678 = vld [vmem:[%s230 + $0x6970] sm:$0xff]
        %v3679 = vld [vmem:[%s230 + $0x6978] sm:$0xff]
        %v3680 = vld [vmem:[%s230 + $0x6980] sm:$0xff]
        %v3681 = vld [vmem:[%s230 + $0x6988] sm:$0xff]
        %v3682 = vld [vmem:[%s230 + $0x6990] sm:$0xff]
        %v3683 = vld [vmem:[%s230 + $0x6998] sm:$0xff]
        %v3684 = vld [vmem:[%s230 + $0x69a0] sm:$0xff]
        %v3685 = vld [vmem:[%s230 + $0x69a8] sm:$0xff]
        %v3686 = vld [vmem:[%s230 + $0x69b0] sm:$0xff]
        %v3687 = vld [vmem:[%s230 + $0x69b8] sm:$0xff]
        %v3688 = vld [vmem:[%s230 + $0x69c0] sm:$0xff]
        %v3689 = vld [vmem:[%s230 + $0x69c8] sm:$0xff]
        %v3690 = vld [vmem:[%s230 + $0x69d0] sm:$0xff]
        %v3691 = vld [vmem:[%s230 + $0x69d8] sm:$0xff]
        %v3692 = vld [vmem:[%s230 + $0x69e0] sm:$0xff]
        %v3693 = vld [vmem:[%s230 + $0x69e8] sm:$0xff]
        %v3694 = vld [vmem:[%s230 + $0x69f0] sm:$0xff]
        %v3695 = vld [vmem:[%s230 + $0x69f8] sm:$0xff]
        %v3696 = vld [vmem:[%s230 + $0x6a00] sm:$0xff]
        %v3697 = vld [vmem:[%s230 + $0x6a08] sm:$0xff]
        %v3698 = vld [vmem:[%s230 + $0x6a10] sm:$0xff]
        %v3699 = vld [vmem:[%s230 + $0x6a18] sm:$0xff]
        %v3700 = vld [vmem:[%s230 + $0x6a20] sm:$0xff]
        %v3701 = vld [vmem:[%s230 + $0x6a28] sm:$0xff]
        %v3702 = vld [vmem:[%s230 + $0x6a30] sm:$0xff]
        %v3703 = vld [vmem:[%s230 + $0x6a38] sm:$0xff]
        %v3704 = vld [vmem:[%s230 + $0x6a40] sm:$0xff]
        %v3705 = vld [vmem:[%s230 + $0x6a48] sm:$0xff]
        %v3706 = vld [vmem:[%s230 + $0x6a50] sm:$0xff]
        %v3707 = vld [vmem:[%s230 + $0x6a58] sm:$0xff]
        %v3708 = vld [vmem:[%s230 + $0x6a60] sm:$0xff]
        %v3709 = vld [vmem:[%s230 + $0x6a68] sm:$0xff]
        %v3710 = vld [vmem:[%s230 + $0x6a70] sm:$0xff]
        %v3711 = vld [vmem:[%s230 + $0x6a78] sm:$0xff]
        %v3712 = vld [vmem:[%s230 + $0x6a80] sm:$0xff]
        %v3713 = vld [vmem:[%s230 + $0x6a88] sm:$0xff]
        %v3714 = vld [vmem:[%s230 + $0x6a90] sm:$0xff]
        %v3715 = vld [vmem:[%s230 + $0x6a98] sm:$0xff]
        %v3716 = vld [vmem:[%s230 + $0x6aa0] sm:$0xff]
        %v3717 = vld [vmem:[%s230 + $0x6aa8] sm:$0xff]
        %v3718 = vld [vmem:[%s230 + $0x6ab0] sm:$0xff]
        %v3719 = vld [vmem:[%s230 + $0x6ab8] sm:$0xff]
        %v3720 = vld [vmem:[%s230 + $0x6ac0] sm:$0xff]
        %v3721 = vld [vmem:[%s230 + $0x6ac8] sm:$0xff]
        %v3722 = vld [vmem:[%s230 + $0x6ad0] sm:$0xff]
        %v3723 = vld [vmem:[%s230 + $0x6ad8] sm:$0xff]
        %v3724 = vld [vmem:[%s230 + $0x6ae0] sm:$0xff]
        %v3725 = vld [vmem:[%s230 + $0x6ae8] sm:$0xff]
        %v3726 = vld [vmem:[%s230 + $0x6af0] sm:$0xff]
        %v3727 = vld [vmem:[%s230 + $0x6af8] sm:$0xff]
        %v3728 = vld [vmem:[%s230 + $0x6b00] sm:$0xff]
        %v3729 = vld [vmem:[%s230 + $0x6b08] sm:$0xff]
        %v3730 = vld [vmem:[%s230 + $0x6b10] sm:$0xff]
        %v3731 = vld [vmem:[%s230 + $0x6b18] sm:$0xff]
        %v3732 = vld [vmem:[%s230 + $0x6b20] sm:$0xff]
        %v3733 = vld [vmem:[%s230 + $0x6b28] sm:$0xff]
        %v3734 = vld [vmem:[%s230 + $0x6b30] sm:$0xff]
        %v3735 = vld [vmem:[%s230 + $0x6b38] sm:$0xff]
        %v3736 = vld [vmem:[%s230 + $0x6b40] sm:$0xff]
        %v3737 = vld [vmem:[%s230 + $0x6b48] sm:$0xff]
        %v3738 = vld [vmem:[%s230 + $0x6b50] sm:$0xff]
        %v3739 = vld [vmem:[%s230 + $0x6b58] sm:$0xff]
        %v3740 = vld [vmem:[%s230 + $0x6b60] sm:$0xff]
        %v3741 = vld [vmem:[%s230 + $0x6b68] sm:$0xff]
        %v3742 = vld [vmem:[%s230 + $0x6b70] sm:$0xff]
        %v3743 = vld [vmem:[%s230 + $0x6b78] sm:$0xff]
        %v3744 = vld [vmem:[%s230 + $0x6b80] sm:$0xff]
        %v3745 = vld [vmem:[%s230 + $0x6b88] sm:$0xff]
        %v3746 = vld [vmem:[%s230 + $0x6b90] sm:$0xff]
        %v3747 = vld [vmem:[%s230 + $0x6b98] sm:$0xff]
        %v3748 = vld [vmem:[%s230 + $0x6ba0] sm:$0xff]
        %v3749 = vld [vmem:[%s230 + $0x6ba8] sm:$0xff]
        %v3750 = vld [vmem:[%s230 + $0x6bb0] sm:$0xff]
        %v3751 = vld [vmem:[%s230 + $0x6bb8] sm:$0xff]
        %v3752 = vld [vmem:[%s230 + $0x6bc0] sm:$0xff]
        %v3753 = vld [vmem:[%s230 + $0x6bc8] sm:$0xff]
        %v3754 = vld [vmem:[%s230 + $0x6bd0] sm:$0xff]
        %v3755 = vld [vmem:[%s230 + $0x6bd8] sm:$0xff]
        %v3756 = vld [vmem:[%s230 + $0x6be0] sm:$0xff]
        %v3757 = vld [vmem:[%s230 + $0x6be8] sm:$0xff]
        %v3758 = vld [vmem:[%s230 + $0x6bf0] sm:$0xff]
        %v3759 = vld [vmem:[%s230 + $0x6bf8] sm:$0xff]
        %v3760 = vld [vmem:[%s230 + $0x6c00] sm:$0xff]
        %v3761 = vld [vmem:[%s230 + $0x6c08] sm:$0xff]
        %v3762 = vld [vmem:[%s230 + $0x6c10] sm:$0xff]
        %v3763 = vld [vmem:[%s230 + $0x6c18] sm:$0xff]
        %v3764 = vld [vmem:[%s230 + $0x6c20] sm:$0xff]
        %v3765 = vld [vmem:[%s230 + $0x6c28] sm:$0xff]
        %v3766 = vld [vmem:[%s230 + $0x6c30] sm:$0xff]
        %v3767 = vld [vmem:[%s230 + $0x6c38] sm:$0xff]
        %v3768 = vld [vmem:[%s230 + $0x6c40] sm:$0xff]
        %v3769 = vld [vmem:[%s230 + $0x6c48] sm:$0xff]
        %v3770 = vld [vmem:[%s230 + $0x6c50] sm:$0xff]
        %v3771 = vld [vmem:[%s230 + $0x6c58] sm:$0xff]
        %v3772 = vld [vmem:[%s230 + $0x6c60] sm:$0xff]
        %v3773 = vld [vmem:[%s230 + $0x6c68] sm:$0xff]
        %v3774 = vld [vmem:[%s230 + $0x6c70] sm:$0xff]
        %v3775 = vld [vmem:[%s230 + $0x6c78] sm:$0xff]
        %v3776 = vld [vmem:[%s230 + $0x6c80] sm:$0xff]
        %v3777 = vld [vmem:[%s230 + $0x6c88] sm:$0xff]
        %v3778 = vld [vmem:[%s230 + $0x6c90] sm:$0xff]
        %v3779 = vld [vmem:[%s230 + $0x6c98] sm:$0xff]
        %v3780 = vld [vmem:[%s230 + $0x6ca0] sm:$0xff]
        %v3781 = vld [vmem:[%s230 + $0x6ca8] sm:$0xff]
        %v3782 = vld [vmem:[%s230 + $0x6cb0] sm:$0xff]
        %v3783 = vld [vmem:[%s230 + $0x6cb8] sm:$0xff]
        %v3784 = vld [vmem:[%s230 + $0x6cc0] sm:$0xff]
        %v3785 = vld [vmem:[%s230 + $0x6cc8] sm:$0xff]
        %v3786 = vld [vmem:[%s230 + $0x6cd0] sm:$0xff]
        %v3787 = vld [vmem:[%s230 + $0x6cd8] sm:$0xff]
        %v3788 = vld [vmem:[%s230 + $0x6ce0] sm:$0xff]
        %v3789 = vld [vmem:[%s230 + $0x6ce8] sm:$0xff]
        %v3790 = vld [vmem:[%s230 + $0x6cf0] sm:$0xff]
        %v3791 = vld [vmem:[%s230 + $0x6cf8] sm:$0xff]
        %v3792 = vld [vmem:[%s230 + $0x6d00] sm:$0xff]
        %v3793 = vld [vmem:[%s230 + $0x6d08] sm:$0xff]
        %v3794 = vld [vmem:[%s230 + $0x6d10] sm:$0xff]
        %v3795 = vld [vmem:[%s230 + $0x6d18] sm:$0xff]
        %v3796 = vld [vmem:[%s230 + $0x6d20] sm:$0xff]
        %v3797 = vld [vmem:[%s230 + $0x6d28] sm:$0xff]
        %v3798 = vld [vmem:[%s230 + $0x6d30] sm:$0xff]
        %v3799 = vld [vmem:[%s230 + $0x6d38] sm:$0xff]
        %v3800 = vld [vmem:[%s230 + $0x6d40] sm:$0xff]
        %v3801 = vld [vmem:[%s230 + $0x6d48] sm:$0xff]
        %v3802 = vld [vmem:[%s230 + $0x6d50] sm:$0xff]
        %v3803 = vld [vmem:[%s230 + $0x6d58] sm:$0xff]
        %v3804 = vld [vmem:[%s230 + $0x6d60] sm:$0xff]
        %v3805 = vld [vmem:[%s230 + $0x6d68] sm:$0xff]
        %v3806 = vld [vmem:[%s230 + $0x6d70] sm:$0xff]
        %v3807 = vld [vmem:[%s230 + $0x6d78] sm:$0xff]
        %v3808 = vld [vmem:[%s230 + $0x6d80] sm:$0xff]
        %v3809 = vld [vmem:[%s230 + $0x6d88] sm:$0xff]
        %v3810 = vld [vmem:[%s230 + $0x6d90] sm:$0xff]
        %v3811 = vld [vmem:[%s230 + $0x6d98] sm:$0xff]
        %v3812 = vld [vmem:[%s230 + $0x6da0] sm:$0xff]
        %v3813 = vld [vmem:[%s230 + $0x6da8] sm:$0xff]
        %v3814 = vld [vmem:[%s230 + $0x6db0] sm:$0xff]
        %v3815 = vld [vmem:[%s230 + $0x6db8] sm:$0xff]
        %v3816 = vld [vmem:[%s230 + $0x6dc0] sm:$0xff]
        %v3817 = vld [vmem:[%s230 + $0x6dc8] sm:$0xff]
        %v3818 = vld [vmem:[%s230 + $0x6dd0] sm:$0xff]
        %v3819 = vld [vmem:[%s230 + $0x6dd8] sm:$0xff]
        %v3820 = vld [vmem:[%s230 + $0x6de0] sm:$0xff]
        %v3821 = vld [vmem:[%s230 + $0x6de8] sm:$0xff]
        %v3822 = vld [vmem:[%s230 + $0x6df0] sm:$0xff]
        %v3823 = vld [vmem:[%s230 + $0x6df8] sm:$0xff]
        %v3824 = vld [vmem:[%s230 + $0x6e00] sm:$0xff]
        %v3825 = vld [vmem:[%s230 + $0x6e08] sm:$0xff]
        %v3826 = vld [vmem:[%s230 + $0x6e10] sm:$0xff]
        %v3827 = vld [vmem:[%s230 + $0x6e18] sm:$0xff]
        %v3828 = vld [vmem:[%s230 + $0x6e20] sm:$0xff]
        %v3829 = vld [vmem:[%s230 + $0x6e28] sm:$0xff]
        %v3830 = vld [vmem:[%s230 + $0x6e30] sm:$0xff]
        %v3831 = vld [vmem:[%s230 + $0x6e38] sm:$0xff]
        %v3832 = vld [vmem:[%s230 + $0x6e40] sm:$0xff]
        %v3833 = vld [vmem:[%s230 + $0x6e48] sm:$0xff]
        %v3834 = vld [vmem:[%s230 + $0x6e50] sm:$0xff]
        %v3835 = vld [vmem:[%s230 + $0x6e58] sm:$0xff]
        %v3836 = vld [vmem:[%s230 + $0x6e60] sm:$0xff]
        %v3837 = vld [vmem:[%s230 + $0x6e68] sm:$0xff]
        %v3838 = vld [vmem:[%s230 + $0x6e70] sm:$0xff]
        %v3839 = vld [vmem:[%s230 + $0x6e78] sm:$0xff]
        %v3840 = vld [vmem:[%s230 + $0x6e80] sm:$0xff]
        %v3841 = vld [vmem:[%s230 + $0x6e88] sm:$0xff]
        %v3842 = vld [vmem:[%s230 + $0x6e90] sm:$0xff]
        %v3843 = vld [vmem:[%s230 + $0x6e98] sm:$0xff]
        %v3844 = vld [vmem:[%s230 + $0x6ea0] sm:$0xff]
        %v3845 = vld [vmem:[%s230 + $0x6ea8] sm:$0xff]
        %v3846 = vld [vmem:[%s230 + $0x6eb0] sm:$0xff]
        %v3847 = vld [vmem:[%s230 + $0x6eb8] sm:$0xff]
        %v3848 = vld [vmem:[%s230 + $0x6ec0] sm:$0xff]
        %v3849 = vld [vmem:[%s230 + $0x6ec8] sm:$0xff]
        %v3850 = vld [vmem:[%s230 + $0x6ed0] sm:$0xff]
        %v3851 = vld [vmem:[%s230 + $0x6ed8] sm:$0xff]
        %v3852 = vld [vmem:[%s230 + $0x6ee0] sm:$0xff]
        %v3853 = vld [vmem:[%s230 + $0x6ee8] sm:$0xff]
        %v3854 = vld [vmem:[%s230 + $0x6ef0] sm:$0xff]
        %v3855 = vld [vmem:[%s230 + $0x6ef8] sm:$0xff]
        %v3856 = vld [vmem:[%s230 + $0x6f00] sm:$0xff]
        %v3857 = vld [vmem:[%s230 + $0x6f08] sm:$0xff]
        %v3858 = vld [vmem:[%s230 + $0x6f10] sm:$0xff]
        %v3859 = vld [vmem:[%s230 + $0x6f18] sm:$0xff]
        %v3860 = vld [vmem:[%s230 + $0x6f20] sm:$0xff]
        %v3861 = vld [vmem:[%s230 + $0x6f28] sm:$0xff]
        %v3862 = vld [vmem:[%s230 + $0x6f30] sm:$0xff]
        %v3863 = vld [vmem:[%s230 + $0x6f38] sm:$0xff]
        %v3864 = vld [vmem:[%s230 + $0x6f40] sm:$0xff]
        %v3865 = vld [vmem:[%s230 + $0x6f48] sm:$0xff]
        %v3866 = vld [vmem:[%s230 + $0x6f50] sm:$0xff]
        %v3867 = vld [vmem:[%s230 + $0x6f58] sm:$0xff]
        %v3868 = vld [vmem:[%s230 + $0x6f60] sm:$0xff]
        %v3869 = vld [vmem:[%s230 + $0x6f68] sm:$0xff]
        %v3870 = vld [vmem:[%s230 + $0x6f70] sm:$0xff]
        %v3871 = vld [vmem:[%s230 + $0x6f78] sm:$0xff]
        %v3872 = vld [vmem:[%s230 + $0x6f80] sm:$0xff]
        %v3873 = vld [vmem:[%s230 + $0x6f88] sm:$0xff]
        %v3874 = vld [vmem:[%s230 + $0x6f90] sm:$0xff]
        %v3875 = vld [vmem:[%s230 + $0x6f98] sm:$0xff]
        %v3876 = vld [vmem:[%s230 + $0x6fa0] sm:$0xff]
        %v3877 = vld [vmem:[%s230 + $0x6fa8] sm:$0xff]
        %v3878 = vld [vmem:[%s230 + $0x6fb0] sm:$0xff]
        %v3879 = vld [vmem:[%s230 + $0x6fb8] sm:$0xff]
        %v3880 = vld [vmem:[%s230 + $0x6fc0] sm:$0xff]
        %v3881 = vld [vmem:[%s230 + $0x6fc8] sm:$0xff]
        %v3882 = vld [vmem:[%s230 + $0x6fd0] sm:$0xff]
        %v3883 = vld [vmem:[%s230 + $0x6fd8] sm:$0xff]
        %v3884 = vld [vmem:[%s230 + $0x6fe0] sm:$0xff]
        %v3885 = vld [vmem:[%s230 + $0x6fe8] sm:$0xff]
        %v3886 = vld [vmem:[%s230 + $0x6ff0] sm:$0xff]
        %v3887 = vld [vmem:[%s230 + $0x6ff8] sm:$0xff]
        %v3888 = vld [vmem:[%s230 + $0x7000] sm:$0xff]
        %v3889 = vld [vmem:[%s230 + $0x7008] sm:$0xff]
        %v3890 = vld [vmem:[%s230 + $0x7010] sm:$0xff]
        %v3891 = vld [vmem:[%s230 + $0x7018] sm:$0xff]
        %v3892 = vld [vmem:[%s230 + $0x7020] sm:$0xff]
        %v3893 = vld [vmem:[%s230 + $0x7028] sm:$0xff]
        %v3894 = vld [vmem:[%s230 + $0x7030] sm:$0xff]
        %v3895 = vld [vmem:[%s230 + $0x7038] sm:$0xff]
        %v3896 = vld [vmem:[%s230 + $0x7040] sm:$0xff]
        %v3897 = vld [vmem:[%s230 + $0x7048] sm:$0xff]
        %v3898 = vld [vmem:[%s230 + $0x7050] sm:$0xff]
        %v3899 = vld [vmem:[%s230 + $0x7058] sm:$0xff]
        %v3900 = vld [vmem:[%s230 + $0x7060] sm:$0xff]
        %v3901 = vld [vmem:[%s230 + $0x7068] sm:$0xff]
        %v3902 = vld [vmem:[%s230 + $0x7070] sm:$0xff]
        %v3903 = vld [vmem:[%s230 + $0x7078] sm:$0xff]
        %v3904 = vld [vmem:[%s230 + $0x7080] sm:$0xff]
        %v3905 = vld [vmem:[%s230 + $0x7088] sm:$0xff]
        %v3906 = vld [vmem:[%s230 + $0x7090] sm:$0xff]
        %v3907 = vld [vmem:[%s230 + $0x7098] sm:$0xff]
        %v3908 = vld [vmem:[%s230 + $0x70a0] sm:$0xff]
        %v3909 = vld [vmem:[%s230 + $0x70a8] sm:$0xff]
        %v3910 = vld [vmem:[%s230 + $0x70b0] sm:$0xff]
        %v3911 = vld [vmem:[%s230 + $0x70b8] sm:$0xff]
        %v3912 = vld [vmem:[%s230 + $0x70c0] sm:$0xff]
        %v3913 = vld [vmem:[%s230 + $0x70c8] sm:$0xff]
        %v3914 = vld [vmem:[%s230 + $0x70d0] sm:$0xff]
        %v3915 = vld [vmem:[%s230 + $0x70d8] sm:$0xff]
        %v3916 = vld [vmem:[%s230 + $0x70e0] sm:$0xff]
        %v3917 = vld [vmem:[%s230 + $0x70e8] sm:$0xff]
        %v3918 = vld [vmem:[%s230 + $0x70f0] sm:$0xff]
        %v3919 = vld [vmem:[%s230 + $0x70f8] sm:$0xff]
        %v3920 = vld [vmem:[%s230 + $0x7100] sm:$0xff]
        %v3921 = vld [vmem:[%s230 + $0x7108] sm:$0xff]
        %v3922 = vld [vmem:[%s230 + $0x7110] sm:$0xff]
        %v3923 = vld [vmem:[%s230 + $0x7118] sm:$0xff]
        %v3924 = vld [vmem:[%s230 + $0x7120] sm:$0xff]
        %v3925 = vld [vmem:[%s230 + $0x7128] sm:$0xff]
        %v3926 = vld [vmem:[%s230 + $0x7130] sm:$0xff]
        %v3927 = vld [vmem:[%s230 + $0x7138] sm:$0xff]
        %v3928 = vld [vmem:[%s230 + $0x7140] sm:$0xff]
        %v3929 = vld [vmem:[%s230 + $0x7148] sm:$0xff]
        %v3930 = vld [vmem:[%s230 + $0x7150] sm:$0xff]
        %v3931 = vld [vmem:[%s230 + $0x7158] sm:$0xff]
        %v3932 = vld [vmem:[%s230 + $0x7160] sm:$0xff]
        %v3933 = vld [vmem:[%s230 + $0x7168] sm:$0xff]
        %v3934 = vld [vmem:[%s230 + $0x7170] sm:$0xff]
        %v3935 = vld [vmem:[%s230 + $0x7178] sm:$0xff]
        %v3936 = vld [vmem:[%s230 + $0x7180] sm:$0xff]
        %v3937 = vld [vmem:[%s230 + $0x7188] sm:$0xff]
        %v3938 = vld [vmem:[%s230 + $0x7190] sm:$0xff]
        %v3939 = vld [vmem:[%s230 + $0x7198] sm:$0xff]
        %v3940 = vld [vmem:[%s230 + $0x71a0] sm:$0xff]
        %v3941 = vld [vmem:[%s230 + $0x71a8] sm:$0xff]
        %v3942 = vld [vmem:[%s230 + $0x71b0] sm:$0xff]
        %v3943 = vld [vmem:[%s230 + $0x71b8] sm:$0xff]
        %v3944 = vld [vmem:[%s230 + $0x71c0] sm:$0xff]
        %v3945 = vld [vmem:[%s230 + $0x71c8] sm:$0xff]
        %v3946 = vld [vmem:[%s230 + $0x71d0] sm:$0xff]
        %v3947 = vld [vmem:[%s230 + $0x71d8] sm:$0xff]
        %v3948 = vld [vmem:[%s230 + $0x71e0] sm:$0xff]
        %v3949 = vld [vmem:[%s230 + $0x71e8] sm:$0xff]
        %v3950 = vld [vmem:[%s230 + $0x71f0] sm:$0xff]
        %v3951 = vld [vmem:[%s230 + $0x71f8] sm:$0xff]
        %v3952 = vld [vmem:[%s230 + $0x7200] sm:$0xff]
        %v3953 = vld [vmem:[%s230 + $0x7208] sm:$0xff]
        %v3954 = vld [vmem:[%s230 + $0x7210] sm:$0xff]
        %v3955 = vld [vmem:[%s230 + $0x7218] sm:$0xff]
        %v3956 = vld [vmem:[%s230 + $0x7220] sm:$0xff]
        %v3957 = vld [vmem:[%s230 + $0x7228] sm:$0xff]
        %v3958 = vld [vmem:[%s230 + $0x7230] sm:$0xff]
        %v3959 = vld [vmem:[%s230 + $0x7238] sm:$0xff]
        %v3960 = vld [vmem:[%s230 + $0x7240] sm:$0xff]
        %v3961 = vld [vmem:[%s230 + $0x7248] sm:$0xff]
        %v3962 = vld [vmem:[%s230 + $0x7250] sm:$0xff]
        %v3963 = vld [vmem:[%s230 + $0x7258] sm:$0xff]
        %v3964 = vld [vmem:[%s230 + $0x7260] sm:$0xff]
        %v3965 = vld [vmem:[%s230 + $0x7268] sm:$0xff]
        %v3966 = vld [vmem:[%s230 + $0x7270] sm:$0xff]
        %v3967 = vld [vmem:[%s230 + $0x7278] sm:$0xff]
        %v3968 = vld [vmem:[%s230 + $0x7280] sm:$0xff]
        %v3969 = vld [vmem:[%s230 + $0x7288] sm:$0xff]
        %v3970 = vld [vmem:[%s230 + $0x7290] sm:$0xff]
        %v3971 = vld [vmem:[%s230 + $0x7298] sm:$0xff]
        %v3972 = vld [vmem:[%s230 + $0x72a0] sm:$0xff]
        %v3973 = vld [vmem:[%s230 + $0x72a8] sm:$0xff]
        %v3974 = vld [vmem:[%s230 + $0x72b0] sm:$0xff]
        %v3975 = vld [vmem:[%s230 + $0x72b8] sm:$0xff]
        %v3976 = vld [vmem:[%s230 + $0x72c0] sm:$0xff]
        %v3977 = vld [vmem:[%s230 + $0x72c8] sm:$0xff]
        %v3978 = vld [vmem:[%s230 + $0x72d0] sm:$0xff]
        %v3979 = vld [vmem:[%s230 + $0x72d8] sm:$0xff]
        %v3980 = vld [vmem:[%s230 + $0x72e0] sm:$0xff]
        %v3981 = vld [vmem:[%s230 + $0x72e8] sm:$0xff]
        %v3982 = vld [vmem:[%s230 + $0x72f0] sm:$0xff]
        %v3983 = vld [vmem:[%s230 + $0x72f8] sm:$0xff]
        %v3984 = vld [vmem:[%s230 + $0x7300] sm:$0xff]
        %v3985 = vld [vmem:[%s230 + $0x7308] sm:$0xff]
        %v3986 = vld [vmem:[%s230 + $0x7310] sm:$0xff]
        %v3987 = vld [vmem:[%s230 + $0x7318] sm:$0xff]
        %v3988 = vld [vmem:[%s230 + $0x7320] sm:$0xff]
        %v3989 = vld [vmem:[%s230 + $0x7328] sm:$0xff]
        %v3990 = vld [vmem:[%s230 + $0x7330] sm:$0xff]
        %v3991 = vld [vmem:[%s230 + $0x7338] sm:$0xff]
        %v3992 = vld [vmem:[%s230 + $0x7340] sm:$0xff]
        %v3993 = vld [vmem:[%s230 + $0x7348] sm:$0xff]
        %v3994 = vld [vmem:[%s230 + $0x7350] sm:$0xff]
        %v3995 = vld [vmem:[%s230 + $0x7358] sm:$0xff]
        %v3996 = vld [vmem:[%s230 + $0x7360] sm:$0xff]
        %v3997 = vld [vmem:[%s230 + $0x7368] sm:$0xff]
        %v3998 = vld [vmem:[%s230 + $0x7370] sm:$0xff]
        %v3999 = vld [vmem:[%s230 + $0x7378] sm:$0xff]
        %v4000 = vld [vmem:[%s230 + $0x7380] sm:$0xff]
        %v4001 = vld [vmem:[%s230 + $0x7388] sm:$0xff]
        %v4002 = vld [vmem:[%s230 + $0x7390] sm:$0xff]
        %v4003 = vld [vmem:[%s230 + $0x7398] sm:$0xff]
        %v4004 = vld [vmem:[%s230 + $0x73a0] sm:$0xff]
        %v4005 = vld [vmem:[%s230 + $0x73a8] sm:$0xff]
        %v4006 = vld [vmem:[%s230 + $0x73b0] sm:$0xff]
        %v4007 = vld [vmem:[%s230 + $0x73b8] sm:$0xff]
        %v4008 = vld [vmem:[%s230 + $0x73c0] sm:$0xff]
        %v4009 = vld [vmem:[%s230 + $0x73c8] sm:$0xff]
        %v4010 = vld [vmem:[%s230 + $0x73d0] sm:$0xff]
        %v4011 = vld [vmem:[%s230 + $0x73d8] sm:$0xff]
        %v4012 = vld [vmem:[%s230 + $0x73e0] sm:$0xff]
        %v4013 = vld [vmem:[%s230 + $0x73e8] sm:$0xff]
        %v4014 = vld [vmem:[%s230 + $0x73f0] sm:$0xff]
        %v4015 = vld [vmem:[%s230 + $0x73f8] sm:$0xff]
        %v4016 = vld [vmem:[%s230 + $0x7400] sm:$0xff]
        %v4017 = vld [vmem:[%s230 + $0x7408] sm:$0xff]
        %v4018 = vld [vmem:[%s230 + $0x7410] sm:$0xff]
        %v4019 = vld [vmem:[%s230 + $0x7418] sm:$0xff]
        %v4020 = vld [vmem:[%s230 + $0x7420] sm:$0xff]
        %v4021 = vld [vmem:[%s230 + $0x7428] sm:$0xff]
        %v4022 = vld [vmem:[%s230 + $0x7430] sm:$0xff]
        %v4023 = vld [vmem:[%s230 + $0x7438] sm:$0xff]
        %v4024 = vld [vmem:[%s230 + $0x7440] sm:$0xff]
        %v4025 = vld [vmem:[%s230 + $0x7448] sm:$0xff]
        %v4026 = vld [vmem:[%s230 + $0x7450] sm:$0xff]
        %v4027 = vld [vmem:[%s230 + $0x7458] sm:$0xff]
        %v4028 = vld [vmem:[%s230 + $0x7460] sm:$0xff]
        %v4029 = vld [vmem:[%s230 + $0x7468] sm:$0xff]
        %v4030 = vld [vmem:[%s230 + $0x7470] sm:$0xff]
        %v4031 = vld [vmem:[%s230 + $0x7478] sm:$0xff]
        %v4032 = vld [vmem:[%s230 + $0x7480] sm:$0xff]
        %v4033 = vld [vmem:[%s230 + $0x7488] sm:$0xff]
        %v4034 = vld [vmem:[%s230 + $0x7490] sm:$0xff]
        %v4035 = vld [vmem:[%s230 + $0x7498] sm:$0xff]
        %v4036 = vld [vmem:[%s230 + $0x74a0] sm:$0xff]
        %v4037 = vld [vmem:[%s230 + $0x74a8] sm:$0xff]
        %v4038 = vld [vmem:[%s230 + $0x74b0] sm:$0xff]
        %v4039 = vld [vmem:[%s230 + $0x74b8] sm:$0xff]
        %v4040 = vld [vmem:[%s230 + $0x74c0] sm:$0xff]
        %v4041 = vld [vmem:[%s230 + $0x74c8] sm:$0xff]
        %v4042 = vld [vmem:[%s230 + $0x74d0] sm:$0xff]
        %v4043 = vld [vmem:[%s230 + $0x74d8] sm:$0xff]
        %v4044 = vld [vmem:[%s230 + $0x74e0] sm:$0xff]
        %v4045 = vld [vmem:[%s230 + $0x74e8] sm:$0xff]
        %v4046 = vld [vmem:[%s230 + $0x74f0] sm:$0xff]
        %v4047 = vld [vmem:[%s230 + $0x74f8] sm:$0xff]
        %v4048 = vld [vmem:[%s230 + $0x7500] sm:$0xff]
        %v4049 = vld [vmem:[%s230 + $0x7508] sm:$0xff]
        %v4050 = vld [vmem:[%s230 + $0x7510] sm:$0xff]
        %v4051 = vld [vmem:[%s230 + $0x7518] sm:$0xff]
        %v4052 = vld [vmem:[%s230 + $0x7520] sm:$0xff]
        %v4053 = vld [vmem:[%s230 + $0x7528] sm:$0xff]
        %v4054 = vld [vmem:[%s230 + $0x7530] sm:$0xff]
        %v4055 = vld [vmem:[%s230 + $0x7538] sm:$0xff]
        %v4056 = vld [vmem:[%s230 + $0x7540] sm:$0xff]
        %v4057 = vld [vmem:[%s230 + $0x7548] sm:$0xff]
        %v4058 = vld [vmem:[%s230 + $0x7550] sm:$0xff]
        %v4059 = vld [vmem:[%s230 + $0x7558] sm:$0xff]
        %v4060 = vld [vmem:[%s230 + $0x7560] sm:$0xff]
        %v4061 = vld [vmem:[%s230 + $0x7568] sm:$0xff]
        %v4062 = vld [vmem:[%s230 + $0x7570] sm:$0xff]
        %v4063 = vld [vmem:[%s230 + $0x7578] sm:$0xff]
        %v4064 = vld [vmem:[%s230 + $0x7580] sm:$0xff]
        %v4065 = vld [vmem:[%s230 + $0x7588] sm:$0xff]
        %v4066 = vld [vmem:[%s230 + $0x7590] sm:$0xff]
        %v4067 = vld [vmem:[%s230 + $0x7598] sm:$0xff]
        %v4068 = vld [vmem:[%s230 + $0x75a0] sm:$0xff]
        %v4069 = vld [vmem:[%s230 + $0x75a8] sm:$0xff]
        %v4070 = vld [vmem:[%s230 + $0x75b0] sm:$0xff]
        %v4071 = vld [vmem:[%s230 + $0x75b8] sm:$0xff]
        %v4072 = vld [vmem:[%s230 + $0x75c0] sm:$0xff]
        %v4073 = vld [vmem:[%s230 + $0x75c8] sm:$0xff]
        %v4074 = vld [vmem:[%s230 + $0x75d0] sm:$0xff]
        %v4075 = vld [vmem:[%s230 + $0x75d8] sm:$0xff]
        %v4076 = vld [vmem:[%s230 + $0x75e0] sm:$0xff]
        %v4077 = vld [vmem:[%s230 + $0x75e8] sm:$0xff]
        %v4078 = vld [vmem:[%s230 + $0x75f0] sm:$0xff]
        %v4079 = vld [vmem:[%s230 + $0x75f8] sm:$0xff]
        %v4080 = vld [vmem:[%s230 + $0x7600] sm:$0xff]
        %v4081 = vld [vmem:[%s230 + $0x7608] sm:$0xff]
        %v4082 = vld [vmem:[%s230 + $0x7610] sm:$0xff]
        %v4083 = vld [vmem:[%s230 + $0x7618] sm:$0xff]
        %v4084 = vld [vmem:[%s230 + $0x7620] sm:$0xff]
        %v4085 = vld [vmem:[%s230 + $0x7628] sm:$0xff]
        %v4086 = vld [vmem:[%s230 + $0x7630] sm:$0xff]
        %v4087 = vld [vmem:[%s230 + $0x7638] sm:$0xff]
        %v4088 = vld [vmem:[%s230 + $0x7640] sm:$0xff]
        %v4089 = vld [vmem:[%s230 + $0x7648] sm:$0xff]
        %v4090 = vld [vmem:[%s230 + $0x7650] sm:$0xff]
        %v4091 = vld [vmem:[%s230 + $0x7658] sm:$0xff]
        %v4092 = vld [vmem:[%s230 + $0x7660] sm:$0xff]
        %v4093 = vld [vmem:[%s230 + $0x7668] sm:$0xff]
        %v4094 = vld [vmem:[%s230 + $0x7670] sm:$0xff]
        %v4095 = vld [vmem:[%s230 + $0x7678] sm:$0xff]
        %v4096 = vld [vmem:[%s230 + $0x7680] sm:$0xff]
        %v4097 = vld [vmem:[%s230 + $0x7688] sm:$0xff]
        %v4098 = vld [vmem:[%s230 + $0x7690] sm:$0xff]
        %v4099 = vld [vmem:[%s230 + $0x7698] sm:$0xff]
        %v4100 = vld [vmem:[%s230 + $0x76a0] sm:$0xff]
        %v4101 = vld [vmem:[%s230 + $0x76a8] sm:$0xff]
        %v4102 = vld [vmem:[%s230 + $0x76b0] sm:$0xff]
        %v4103 = vld [vmem:[%s230 + $0x76b8] sm:$0xff]
        %v4104 = vld [vmem:[%s230 + $0x76c0] sm:$0xff]
        %v4105 = vld [vmem:[%s230 + $0x76c8] sm:$0xff]
        %v4106 = vld [vmem:[%s230 + $0x76d0] sm:$0xff]
        %v4107 = vld [vmem:[%s230 + $0x76d8] sm:$0xff]
        %v4108 = vld [vmem:[%s230 + $0x76e0] sm:$0xff]
        %v4109 = vld [vmem:[%s230 + $0x76e8] sm:$0xff]
        %v4110 = vld [vmem:[%s230 + $0x76f0] sm:$0xff]
        %v4111 = vld [vmem:[%s230 + $0x76f8] sm:$0xff]
        %v4112 = vld [vmem:[%s230 + $0x7700] sm:$0xff]
        %v4113 = vld [vmem:[%s230 + $0x7708] sm:$0xff]
        %v4114 = vld [vmem:[%s230 + $0x7710] sm:$0xff]
        %v4115 = vld [vmem:[%s230 + $0x7718] sm:$0xff]
        %v4116 = vld [vmem:[%s230 + $0x7720] sm:$0xff]
        %v4117 = vld [vmem:[%s230 + $0x7728] sm:$0xff]
        %v4118 = vld [vmem:[%s230 + $0x7730] sm:$0xff]
        %v4119 = vld [vmem:[%s230 + $0x7738] sm:$0xff]
        %v4120 = vld [vmem:[%s230 + $0x7740] sm:$0xff]
        %v4121 = vld [vmem:[%s230 + $0x7748] sm:$0xff]
        %v4122 = vld [vmem:[%s230 + $0x7750] sm:$0xff]
        %v4123 = vld [vmem:[%s230 + $0x7758] sm:$0xff]
        %v4124 = vld [vmem:[%s230 + $0x7760] sm:$0xff]
        %v4125 = vld [vmem:[%s230 + $0x7768] sm:$0xff]
        %v4126 = vld [vmem:[%s230 + $0x7770] sm:$0xff]
        %v4127 = vld [vmem:[%s230 + $0x7778] sm:$0xff]
        %v4128 = vld [vmem:[%s230 + $0x7780] sm:$0xff]
        %v4129 = vld [vmem:[%s230 + $0x7788] sm:$0xff]
        %v4130 = vld [vmem:[%s230 + $0x7790] sm:$0xff]
        %v4131 = vld [vmem:[%s230 + $0x7798] sm:$0xff]
        %v4132 = vld [vmem:[%s230 + $0x77a0] sm:$0xff]
        %v4133 = vld [vmem:[%s230 + $0x77a8] sm:$0xff]
        %v4134 = vld [vmem:[%s230 + $0x77b0] sm:$0xff]
        %v4135 = vld [vmem:[%s230 + $0x77b8] sm:$0xff]
        %v4136 = vld [vmem:[%s230 + $0x77c0] sm:$0xff]
        %v4137 = vld [vmem:[%s230 + $0x77c8] sm:$0xff]
        %v4138 = vld [vmem:[%s230 + $0x77d0] sm:$0xff]
        %v4139 = vld [vmem:[%s230 + $0x77d8] sm:$0xff]
        %v4140 = vld [vmem:[%s230 + $0x77e0] sm:$0xff]
        %v4141 = vld [vmem:[%s230 + $0x77e8] sm:$0xff]
        %v4142 = vld [vmem:[%s230 + $0x77f0] sm:$0xff]
        %v4143 = vld [vmem:[%s230 + $0x77f8] sm:$0xff]
        %v4144 = vld [vmem:[%s230 + $0x7800] sm:$0xff]
        %v4145 = vld [vmem:[%s230 + $0x7808] sm:$0xff]
        %v4146 = vld [vmem:[%s230 + $0x7810] sm:$0xff]
        %v4147 = vld [vmem:[%s230 + $0x7818] sm:$0xff]
        %v4148 = vld [vmem:[%s230 + $0x7820] sm:$0xff]
        %v4149 = vld [vmem:[%s230 + $0x7828] sm:$0xff]
        %v4150 = vld [vmem:[%s230 + $0x7830] sm:$0xff]
        %v4151 = vld [vmem:[%s230 + $0x7838] sm:$0xff]
        %v4152 = vld [vmem:[%s230 + $0x7840] sm:$0xff]
        %v4153 = vld [vmem:[%s230 + $0x7848] sm:$0xff]
        %v4154 = vld [vmem:[%s230 + $0x7850] sm:$0xff]
        %v4155 = vld [vmem:[%s230 + $0x7858] sm:$0xff]
        %v4156 = vld [vmem:[%s230 + $0x7860] sm:$0xff]
        %v4157 = vld [vmem:[%s230 + $0x7868] sm:$0xff]
        %v4158 = vld [vmem:[%s230 + $0x7870] sm:$0xff]
        %v4159 = vld [vmem:[%s230 + $0x7878] sm:$0xff]
        %v4160 = vld [vmem:[%s230 + $0x7880] sm:$0xff]
        %v4161 = vld [vmem:[%s230 + $0x7888] sm:$0xff]
        %v4162 = vld [vmem:[%s230 + $0x7890] sm:$0xff]
        %v4163 = vld [vmem:[%s230 + $0x7898] sm:$0xff]
        %v4164 = vld [vmem:[%s230 + $0x78a0] sm:$0xff]
        %v4165 = vld [vmem:[%s230 + $0x78a8] sm:$0xff]
        %v4166 = vld [vmem:[%s230 + $0x78b0] sm:$0xff]
        %v4167 = vld [vmem:[%s230 + $0x78b8] sm:$0xff]
        %v4168 = vld [vmem:[%s230 + $0x78c0] sm:$0xff]
        %v4169 = vld [vmem:[%s230 + $0x78c8] sm:$0xff]
        %v4170 = vld [vmem:[%s230 + $0x78d0] sm:$0xff]
        %v4171 = vld [vmem:[%s230 + $0x78d8] sm:$0xff]
        %v4172 = vld [vmem:[%s230 + $0x78e0] sm:$0xff]
        %v4173 = vld [vmem:[%s230 + $0x78e8] sm:$0xff]
        %v4174 = vld [vmem:[%s230 + $0x78f0] sm:$0xff]
        %v4175 = vld [vmem:[%s230 + $0x78f8] sm:$0xff]
        %v4176 = vld [vmem:[%s230 + $0x7900] sm:$0xff]
        %v4177 = vld [vmem:[%s230 + $0x7908] sm:$0xff]
        %v4178 = vld [vmem:[%s230 + $0x7910] sm:$0xff]
        %v4179 = vld [vmem:[%s230 + $0x7918] sm:$0xff]
        %v4180 = vld [vmem:[%s230 + $0x7920] sm:$0xff]
        %v4181 = vld [vmem:[%s230 + $0x7928] sm:$0xff]
        %v4182 = vld [vmem:[%s230 + $0x7930] sm:$0xff]
        %v4183 = vld [vmem:[%s230 + $0x7938] sm:$0xff]
        %v4184 = vld [vmem:[%s230 + $0x7940] sm:$0xff]
        %v4185 = vld [vmem:[%s230 + $0x7948] sm:$0xff]
        %v4186 = vld [vmem:[%s230 + $0x7950] sm:$0xff]
        %v4187 = vld [vmem:[%s230 + $0x7958] sm:$0xff]
        %v4188 = vld [vmem:[%s230 + $0x7960] sm:$0xff]
        %v4189 = vld [vmem:[%s230 + $0x7968] sm:$0xff]
        %v4190 = vld [vmem:[%s230 + $0x7970] sm:$0xff]
        %v4191 = vld [vmem:[%s230 + $0x7978] sm:$0xff]
        %v4192 = vld [vmem:[%s230 + $0x7980] sm:$0xff]
        %v4193 = vld [vmem:[%s230 + $0x7988] sm:$0xff]
        %v4194 = vld [vmem:[%s230 + $0x7990] sm:$0xff]
        %v4195 = vld [vmem:[%s230 + $0x7998] sm:$0xff]
        %v4196 = vld [vmem:[%s230 + $0x79a0] sm:$0xff]
        %v4197 = vld [vmem:[%s230 + $0x79a8] sm:$0xff]
        %v4198 = vld [vmem:[%s230 + $0x79b0] sm:$0xff]
        %v4199 = vld [vmem:[%s230 + $0x79b8] sm:$0xff]
        %v4200 = vld [vmem:[%s230 + $0x79c0] sm:$0xff]
        %v4201 = vld [vmem:[%s230 + $0x79c8] sm:$0xff]
        %v4202 = vld [vmem:[%s230 + $0x79d0] sm:$0xff]
        %v4203 = vld [vmem:[%s230 + $0x79d8] sm:$0xff]
        %v4204 = vld [vmem:[%s230 + $0x79e0] sm:$0xff]
        %v4205 = vld [vmem:[%s230 + $0x79e8] sm:$0xff]
        %v4206 = vld [vmem:[%s230 + $0x79f0] sm:$0xff]
        %v4207 = vld [vmem:[%s230 + $0x79f8] sm:$0xff]
        %v4208 = vld [vmem:[%s230 + $0x7a00] sm:$0xff]
        %v4209 = vld [vmem:[%s230 + $0x7a08] sm:$0xff]
        %v4210 = vld [vmem:[%s230 + $0x7a10] sm:$0xff]
        %v4211 = vld [vmem:[%s230 + $0x7a18] sm:$0xff]
        %v4212 = vld [vmem:[%s230 + $0x7a20] sm:$0xff]
        %v4213 = vld [vmem:[%s230 + $0x7a28] sm:$0xff]
        %v4214 = vld [vmem:[%s230 + $0x7a30] sm:$0xff]
        %v4215 = vld [vmem:[%s230 + $0x7a38] sm:$0xff]
        %v4216 = vld [vmem:[%s230 + $0x7a40] sm:$0xff]
        %v4217 = vld [vmem:[%s230 + $0x7a48] sm:$0xff]
        %v4218 = vld [vmem:[%s230 + $0x7a50] sm:$0xff]
        %v4219 = vld [vmem:[%s230 + $0x7a58] sm:$0xff]
        %v4220 = vld [vmem:[%s230 + $0x7a60] sm:$0xff]
        %v4221 = vld [vmem:[%s230 + $0x7a68] sm:$0xff]
        %v4222 = vld [vmem:[%s230 + $0x7a70] sm:$0xff]
        %v4223 = vld [vmem:[%s230 + $0x7a78] sm:$0xff]
        %v4224 = vld [vmem:[%s230 + $0x7a80] sm:$0xff]
        %v4225 = vld [vmem:[%s230 + $0x7a88] sm:$0xff]
        %v4226 = vld [vmem:[%s230 + $0x7a90] sm:$0xff]
        %v4227 = vld [vmem:[%s230 + $0x7a98] sm:$0xff]
        %v4228 = vld [vmem:[%s230 + $0x7aa0] sm:$0xff]
        %v4229 = vld [vmem:[%s230 + $0x7aa8] sm:$0xff]
        %v4230 = vld [vmem:[%s230 + $0x7ab0] sm:$0xff]
        %v4231 = vld [vmem:[%s230 + $0x7ab8] sm:$0xff]
        %v4232 = vld [vmem:[%s230 + $0x7ac0] sm:$0xff]
        %v4233 = vld [vmem:[%s230 + $0x7ac8] sm:$0xff]
        %v4234 = vld [vmem:[%s230 + $0x7ad0] sm:$0xff]
        %v4235 = vld [vmem:[%s230 + $0x7ad8] sm:$0xff]
        %v4236 = vld [vmem:[%s230 + $0x7ae0] sm:$0xff]
        %v4237 = vld [vmem:[%s230 + $0x7ae8] sm:$0xff]
        %v4238 = vld [vmem:[%s230 + $0x7af0] sm:$0xff]
        %v4239 = vld [vmem:[%s230 + $0x7af8] sm:$0xff]
        %v4240 = vld [vmem:[%s230 + $0x7b00] sm:$0xff]
        %v4241 = vld [vmem:[%s230 + $0x7b08] sm:$0xff]
        %v4242 = vld [vmem:[%s230 + $0x7b10] sm:$0xff]
        %v4243 = vld [vmem:[%s230 + $0x7b18] sm:$0xff]
        %v4244 = vld [vmem:[%s230 + $0x7b20] sm:$0xff]
        %v4245 = vld [vmem:[%s230 + $0x7b28] sm:$0xff]
        %v4246 = vld [vmem:[%s230 + $0x7b30] sm:$0xff]
        %v4247 = vld [vmem:[%s230 + $0x7b38] sm:$0xff]
        %v4248 = vld [vmem:[%s230 + $0x7b40] sm:$0xff]
        %v4249 = vld [vmem:[%s230 + $0x7b48] sm:$0xff]
        %v4250 = vld [vmem:[%s230 + $0x7b50] sm:$0xff]
        %v4251 = vld [vmem:[%s230 + $0x7b58] sm:$0xff]
        %v4252 = vld [vmem:[%s230 + $0x7b60] sm:$0xff]
        %v4253 = vld [vmem:[%s230 + $0x7b68] sm:$0xff]
        %v4254 = vld [vmem:[%s230 + $0x7b70] sm:$0xff]
        %v4255 = vld [vmem:[%s230 + $0x7b78] sm:$0xff]
        %v4256 = vld [vmem:[%s230 + $0x7b80] sm:$0xff]
        %v4257 = vld [vmem:[%s230 + $0x7b88] sm:$0xff]
        %v4258 = vld [vmem:[%s230 + $0x7b90] sm:$0xff]
        %v4259 = vld [vmem:[%s230 + $0x7b98] sm:$0xff]
        %v4260 = vld [vmem:[%s230 + $0x7ba0] sm:$0xff]
        %v4261 = vld [vmem:[%s230 + $0x7ba8] sm:$0xff]
        %v4262 = vld [vmem:[%s230 + $0x7bb0] sm:$0xff]
        %v4263 = vld [vmem:[%s230 + $0x7bb8] sm:$0xff]
        %v4264 = vld [vmem:[%s230 + $0x7bc0] sm:$0xff]
        %v4265 = vld [vmem:[%s230 + $0x7bc8] sm:$0xff]
        %v4266 = vld [vmem:[%s230 + $0x7bd0] sm:$0xff]
        %v4267 = vld [vmem:[%s230 + $0x7bd8] sm:$0xff]
        %v4268 = vld [vmem:[%s230 + $0x7be0] sm:$0xff]
        %v4269 = vld [vmem:[%s230 + $0x7be8] sm:$0xff]
        %v4270 = vld [vmem:[%s230 + $0x7bf0] sm:$0xff]
        %v4271 = vld [vmem:[%s230 + $0x7bf8] sm:$0xff]
        %v4272 = vld [vmem:[%s230 + $0x7c00] sm:$0xff]
        %v4273 = vld [vmem:[%s230 + $0x7c08] sm:$0xff]
        %v4274 = vld [vmem:[%s230 + $0x7c10] sm:$0xff]
        %v4275 = vld [vmem:[%s230 + $0x7c18] sm:$0xff]
        %v4276 = vld [vmem:[%s230 + $0x7c20] sm:$0xff]
        %v4277 = vld [vmem:[%s230 + $0x7c28] sm:$0xff]
        %v4278 = vld [vmem:[%s230 + $0x7c30] sm:$0xff]
        %v4279 = vld [vmem:[%s230 + $0x7c38] sm:$0xff]
        %v4280 = vld [vmem:[%s230 + $0x7c40] sm:$0xff]
        %v4281 = vld [vmem:[%s230 + $0x7c48] sm:$0xff]
        %v4282 = vld [vmem:[%s230 + $0x7c50] sm:$0xff]
        %v4283 = vld [vmem:[%s230 + $0x7c58] sm:$0xff]
        %v4284 = vld [vmem:[%s230 + $0x7c60] sm:$0xff]
        %v4285 = vld [vmem:[%s230 + $0x7c68] sm:$0xff]
        %v4286 = vld [vmem:[%s230 + $0x7c70] sm:$0xff]
        %v4287 = vld [vmem:[%s230 + $0x7c78] sm:$0xff]
        %v4288 = vld [vmem:[%s230 + $0x7c80] sm:$0xff]
        %v4289 = vld [vmem:[%s230 + $0x7c88] sm:$0xff]
        %v4290 = vld [vmem:[%s230 + $0x7c90] sm:$0xff]
        %v4291 = vld [vmem:[%s230 + $0x7c98] sm:$0xff]
        %v4292 = vld [vmem:[%s230 + $0x7ca0] sm:$0xff]
        %v4293 = vld [vmem:[%s230 + $0x7ca8] sm:$0xff]
        %v4294 = vld [vmem:[%s230 + $0x7cb0] sm:$0xff]
        %v4295 = vld [vmem:[%s230 + $0x7cb8] sm:$0xff]
        %v4296 = vld [vmem:[%s230 + $0x7cc0] sm:$0xff]
        %v4297 = vld [vmem:[%s230 + $0x7cc8] sm:$0xff]
        %v4298 = vld [vmem:[%s230 + $0x7cd0] sm:$0xff]
        %v4299 = vld [vmem:[%s230 + $0x7cd8] sm:$0xff]
        %v4300 = vld [vmem:[%s230 + $0x7ce0] sm:$0xff]
        %v4301 = vld [vmem:[%s230 + $0x7ce8] sm:$0xff]
        %v4302 = vld [vmem:[%s230 + $0x7cf0] sm:$0xff]
        %v4303 = vld [vmem:[%s230 + $0x7cf8] sm:$0xff]
        %v4304 = vld [vmem:[%s230 + $0x7d00] sm:$0xff]
        %v4305 = vld [vmem:[%s230 + $0x7d08] sm:$0xff]
        %v4306 = vld [vmem:[%s230 + $0x7d10] sm:$0xff]
        %v4307 = vld [vmem:[%s230 + $0x7d18] sm:$0xff]
        %v4308 = vld [vmem:[%s230 + $0x7d20] sm:$0xff]
        %v4309 = vld [vmem:[%s230 + $0x7d28] sm:$0xff]
        %v4310 = vld [vmem:[%s230 + $0x7d30] sm:$0xff]
        %v4311 = vld [vmem:[%s230 + $0x7d38] sm:$0xff]
        %v4312 = vld [vmem:[%s230 + $0x7d40] sm:$0xff]
        %v4313 = vld [vmem:[%s230 + $0x7d48] sm:$0xff]
        %v4314 = vld [vmem:[%s230 + $0x7d50] sm:$0xff]
        %v4315 = vld [vmem:[%s230 + $0x7d58] sm:$0xff]
        %v4316 = vld [vmem:[%s230 + $0x7d60] sm:$0xff]
        %v4317 = vld [vmem:[%s230 + $0x7d68] sm:$0xff]
        %v4318 = vld [vmem:[%s230 + $0x7d70] sm:$0xff]
        %v4319 = vld [vmem:[%s230 + $0x7d78] sm:$0xff]
        %v4320 = vld [vmem:[%s230 + $0x7d80] sm:$0xff]
        %v4321 = vld [vmem:[%s230 + $0x7d88] sm:$0xff]
        %v4322 = vld [vmem:[%s230 + $0x7d90] sm:$0xff]
        %v4323 = vld [vmem:[%s230 + $0x7d98] sm:$0xff]
        %v4324 = vld [vmem:[%s230 + $0x7da0] sm:$0xff]
        %v4325 = vld [vmem:[%s230 + $0x7da8] sm:$0xff]
        %v4326 = vld [vmem:[%s230 + $0x7db0] sm:$0xff]
        %v4327 = vld [vmem:[%s230 + $0x7db8] sm:$0xff]
        %v4328 = vld [vmem:[%s230 + $0x7dc0] sm:$0xff]
        %v4329 = vld [vmem:[%s230 + $0x7dc8] sm:$0xff]
        %v4330 = vld [vmem:[%s230 + $0x7dd0] sm:$0xff]
        %v4331 = vld [vmem:[%s230 + $0x7dd8] sm:$0xff]
        %v4332 = vld [vmem:[%s230 + $0x7de0] sm:$0xff]
        %v4333 = vld [vmem:[%s230 + $0x7de8] sm:$0xff]
        %v4334 = vld [vmem:[%s230 + $0x7df0] sm:$0xff]
        %v4335 = vld [vmem:[%s230 + $0x7df8] sm:$0xff]
        %v4336 = vld [vmem:[%s230 + $0x7e00] sm:$0xff]
        %v4337 = vld [vmem:[%s230 + $0x7e08] sm:$0xff]
        %v4338 = vld [vmem:[%s230 + $0x7e10] sm:$0xff]
        %v4339 = vld [vmem:[%s230 + $0x7e18] sm:$0xff]
        %v4340 = vld [vmem:[%s230 + $0x7e20] sm:$0xff]
        %v4341 = vld [vmem:[%s230 + $0x7e28] sm:$0xff]
        %v4342 = vld [vmem:[%s230 + $0x7e30] sm:$0xff]
        %v4343 = vld [vmem:[%s230 + $0x7e38] sm:$0xff]
        %v4344 = vld [vmem:[%s230 + $0x7e40] sm:$0xff]
        %v4345 = vld [vmem:[%s230 + $0x7e48] sm:$0xff]
        %v4346 = vld [vmem:[%s230 + $0x7e50] sm:$0xff]
        %v4347 = vld [vmem:[%s230 + $0x7e58] sm:$0xff]
        %v4348 = vld [vmem:[%s230 + $0x7e60] sm:$0xff]
        %v4349 = vld [vmem:[%s230 + $0x7e68] sm:$0xff]
        %v4350 = vld [vmem:[%s230 + $0x7e70] sm:$0xff]
        %v4351 = vld [vmem:[%s230 + $0x7e78] sm:$0xff]
        %v4352 = vld [vmem:[%s230 + $0x7e80] sm:$0xff]
        %v4353 = vld [vmem:[%s230 + $0x7e88] sm:$0xff]
        %v4354 = vld [vmem:[%s230 + $0x7e90] sm:$0xff]
        %v4355 = vld [vmem:[%s230 + $0x7e98] sm:$0xff]
        %v4356 = vld [vmem:[%s230 + $0x7ea0] sm:$0xff]
        %v4357 = vld [vmem:[%s230 + $0x7ea8] sm:$0xff]
        %v4358 = vld [vmem:[%s230 + $0x7eb0] sm:$0xff]
        %v4359 = vld [vmem:[%s230 + $0x7eb8] sm:$0xff]
        %v4360 = vld [vmem:[%s230 + $0x7ec0] sm:$0xff]
        %v4361 = vld [vmem:[%s230 + $0x7ec8] sm:$0xff]
        %v4362 = vld [vmem:[%s230 + $0x7ed0] sm:$0xff]
        %v4363 = vld [vmem:[%s230 + $0x7ed8] sm:$0xff]
        %v4364 = vld [vmem:[%s230 + $0x7ee0] sm:$0xff]
        %v4365 = vld [vmem:[%s230 + $0x7ee8] sm:$0xff]
        %v4366 = vld [vmem:[%s230 + $0x7ef0] sm:$0xff]
        %v4367 = vld [vmem:[%s230 + $0x7ef8] sm:$0xff]
        %v4368 = vld [vmem:[%s230 + $0x7f00] sm:$0xff]
        %v4369 = vld [vmem:[%s230 + $0x7f08] sm:$0xff]
        %v4370 = vld [vmem:[%s230 + $0x7f10] sm:$0xff]
        %v4371 = vld [vmem:[%s230 + $0x7f18] sm:$0xff]
        %v4372 = vld [vmem:[%s230 + $0x7f20] sm:$0xff]
        %v4373 = vld [vmem:[%s230 + $0x7f28] sm:$0xff]
        %v4374 = vld [vmem:[%s230 + $0x7f30] sm:$0xff]
        %v4375 = vld [vmem:[%s230 + $0x7f38] sm:$0xff]
        %v4376 = vld [vmem:[%s230 + $0x7f40] sm:$0xff]
        %v4377 = vld [vmem:[%s230 + $0x7f48] sm:$0xff]
        %v4378 = vld [vmem:[%s230 + $0x7f50] sm:$0xff]
        %v4379 = vld [vmem:[%s230 + $0x7f58] sm:$0xff]
        %v4380 = vld [vmem:[%s230 + $0x7f60] sm:$0xff]
        %v4381 = vld [vmem:[%s230 + $0x7f68] sm:$0xff]
        %v4382 = vld [vmem:[%s230 + $0x7f70] sm:$0xff]
        %v4383 = vld [vmem:[%s230 + $0x7f78] sm:$0xff]
        %v4384 = vld [vmem:[%s230 + $0x7f80] sm:$0xff]
        %v4385 = vld [vmem:[%s230 + $0x7f88] sm:$0xff]
        %v4386 = vld [vmem:[%s230 + $0x7f90] sm:$0xff]
        %v4387 = vld [vmem:[%s230 + $0x7f98] sm:$0xff]
        %v4388 = vld [vmem:[%s230 + $0x7fa0] sm:$0xff]
        %v4389 = vld [vmem:[%s230 + $0x7fa8] sm:$0xff]
        %v4390 = vld [vmem:[%s230 + $0x7fb0] sm:$0xff]
        %v4391 = vld [vmem:[%s230 + $0x7fb8] sm:$0xff]
        %v4392 = vld [vmem:[%s230 + $0x7fc0] sm:$0xff]
        %v4393 = vld [vmem:[%s230 + $0x7fc8] sm:$0xff]
        %v4394 = vld [vmem:[%s230 + $0x7fd0] sm:$0xff]
        %v4395 = vld [vmem:[%s230 + $0x7fd8] sm:$0xff]
        %v4396 = vld [vmem:[%s230 + $0x7fe0] sm:$0xff]
        %v4397 = vld [vmem:[%s230 + $0x7fe8] sm:$0xff]
        %v4398 = vld [vmem:[%s230 + $0x7ff0] sm:$0xff]
        %v4399 = vld [vmem:[%s230 + $0x7ff8] sm:$0xff]
        %v4400 = vld [vmem:[%s240] sm:$0xff]
        %v4401 = vld [vmem:[%s240 + $0x8] sm:$0xff]
        %v4402 = vld [vmem:[%s240 + $0x10] sm:$0xff]
        %v4403 = vld [vmem:[%s240 + $0x18] sm:$0xff]
        %v4404 = vld [vmem:[%s240 + $0x20] sm:$0xff]
        %v4405 = vld [vmem:[%s240 + $0x28] sm:$0xff]
        %v4406 = vld [vmem:[%s240 + $0x30] sm:$0xff]
        %v4407 = vld [vmem:[%s240 + $0x38] sm:$0xff]
        %4408 = vmatpush.msra.mxu0 %v424
        %4409 = vmatpush.msra.mxu0 %v416
        %4410 = vmatpush.msra.mxu0 %v408
        %4411 = vmatpush.msra.mxu0 %v400
        %4412 = vmatpush.msra.mxu0 %v392
        %4413 = vmatpush.msra.mxu0 %v384
        %4414 = vmatpush.msra.mxu0 %v376
        %4415 = vmatpush.msra.mxu0 %v368
        %4416 = vmatpush.msra.mxu0 %v360
        %4417 = vmatpush.msra.mxu0 %v352
        %4418 = vmatpush.msra.mxu0 %v344
        %4419 = vmatpush.msra.mxu0 %v336
        %4420 = vmatpush.msra.mxu0 %v328
        %4421 = vmatpush.msra.mxu0 %v320
        %4422 = vmatpush.msra.mxu0 %v312
        %4423 = vmatpush.msra.mxu0 %v304
        %4424 = vmatmul.f32.gmra.mxu0 %v272
        %v4425 = vpop.f32.mrf.mxu0
        %v4426 = vadd.f32 %v4400, %v4425
        %4427 = vdwg.mxu0
        %4428 = vmatpush.msra.mxu0 %v552
        %4429 = vmatpush.msra.mxu0 %v544
        %4430 = vmatpush.msra.mxu0 %v536
        %4431 = vmatpush.msra.mxu0 %v528
        %4432 = vmatpush.msra.mxu0 %v520
        %4433 = vmatpush.msra.mxu0 %v512
        %4434 = vmatpush.msra.mxu0 %v504
        %4435 = vmatpush.msra.mxu0 %v496
        %4436 = vmatpush.msra.mxu0 %v488
        %4437 = vmatpush.msra.mxu0 %v480
        %4438 = vmatpush.msra.mxu0 %v472
        %4439 = vmatpush.msra.mxu0 %v464
        %4440 = vmatpush.msra.mxu0 %v456
        %4441 = vmatpush.msra.mxu0 %v448
        %4442 = vmatpush.msra.mxu0 %v440
        %4443 = vmatpush.msra.mxu0 %v432
        %4444 = vmatmul.f32.gmra.mxu0 %v273
        %v4445 = vpop.f32.mrf.mxu0
        %v4446 = vadd.f32 %v4426, %v4445
        %4447 = vdwg.mxu0
        %4448 = vmatpush.msra.mxu0 %v680
        %4449 = vmatpush.msra.mxu0 %v672
        %4450 = vmatpush.msra.mxu0 %v664
        %4451 = vmatpush.msra.mxu0 %v656
        %4452 = vmatpush.msra.mxu0 %v648
        %4453 = vmatpush.msra.mxu0 %v640
        %4454 = vmatpush.msra.mxu0 %v632
        %4455 = vmatpush.msra.mxu0 %v624
        %4456 = vmatpush.msra.mxu0 %v616
        %4457 = vmatpush.msra.mxu0 %v608
        %4458 = vmatpush.msra.mxu0 %v600
        %4459 = vmatpush.msra.mxu0 %v592
        %4460 = vmatpush.msra.mxu0 %v584
        %4461 = vmatpush.msra.mxu0 %v576
        %4462 = vmatpush.msra.mxu0 %v568
        %4463 = vmatpush.msra.mxu0 %v560
        %4464 = vmatmul.f32.gmra.mxu0 %v274
        %v4465 = vpop.f32.mrf.mxu0
        %v4466 = vadd.f32 %v4446, %v4465
        %4467 = vdwg.mxu0
        %4468 = vmatpush.msra.mxu0 %v808
        %4469 = vmatpush.msra.mxu0 %v800
        %4470 = vmatpush.msra.mxu0 %v792
        %4471 = vmatpush.msra.mxu0 %v784
        %4472 = vmatpush.msra.mxu0 %v776
        %4473 = vmatpush.msra.mxu0 %v768
        %4474 = vmatpush.msra.mxu0 %v760
        %4475 = vmatpush.msra.mxu0 %v752
        %4476 = vmatpush.msra.mxu0 %v744
        %4477 = vmatpush.msra.mxu0 %v736
        %4478 = vmatpush.msra.mxu0 %v728
        %4479 = vmatpush.msra.mxu0 %v720
        %4480 = vmatpush.msra.mxu0 %v712
        %4481 = vmatpush.msra.mxu0 %v704
        %4482 = vmatpush.msra.mxu0 %v696
        %4483 = vmatpush.msra.mxu0 %v688
        %4484 = vmatmul.f32.gmra.mxu0 %v275
        %v4485 = vpop.f32.mrf.mxu0
        %v4486 = vadd.f32 %v4466, %v4485
        %4487 = vdwg.mxu0
        %4488 = vmatpush.msra.mxu0 %v936
        %4489 = vmatpush.msra.mxu0 %v928
        %4490 = vmatpush.msra.mxu0 %v920
        %4491 = vmatpush.msra.mxu0 %v912
        %4492 = vmatpush.msra.mxu0 %v904
        %4493 = vmatpush.msra.mxu0 %v896
        %4494 = vmatpush.msra.mxu0 %v888
        %4495 = vmatpush.msra.mxu0 %v880
        %4496 = vmatpush.msra.mxu0 %v872
        %4497 = vmatpush.msra.mxu0 %v864
        %4498 = vmatpush.msra.mxu0 %v856
        %4499 = vmatpush.msra.mxu0 %v848
        %4500 = vmatpush.msra.mxu0 %v840
        %4501 = vmatpush.msra.mxu0 %v832
        %4502 = vmatpush.msra.mxu0 %v824
        %4503 = vmatpush.msra.mxu0 %v816
        %4504 = vmatmul.f32.gmra.mxu0 %v276
        %v4505 = vpop.f32.mrf.mxu0
        %v4506 = vadd.f32 %v4486, %v4505
        %4507 = vdwg.mxu0
        %4508 = vmatpush.msra.mxu0 %v1064
        %4509 = vmatpush.msra.mxu0 %v1056
        %4510 = vmatpush.msra.mxu0 %v1048
        %4511 = vmatpush.msra.mxu0 %v1040
        %4512 = vmatpush.msra.mxu0 %v1032
        %4513 = vmatpush.msra.mxu0 %v1024
        %4514 = vmatpush.msra.mxu0 %v1016
        %4515 = vmatpush.msra.mxu0 %v1008
        %4516 = vmatpush.msra.mxu0 %v1000
        %4517 = vmatpush.msra.mxu0 %v992
        %4518 = vmatpush.msra.mxu0 %v984
        %4519 = vmatpush.msra.mxu0 %v976
        %4520 = vmatpush.msra.mxu0 %v968
        %4521 = vmatpush.msra.mxu0 %v960
        %4522 = vmatpush.msra.mxu0 %v952
        %4523 = vmatpush.msra.mxu0 %v944
        %4524 = vmatmul.f32.gmra.mxu0 %v277
        %v4525 = vpop.f32.mrf.mxu0
        %v4526 = vadd.f32 %v4506, %v4525
        %4527 = vdwg.mxu0
        %4528 = vmatpush.msra.mxu0 %v1192
        %4529 = vmatpush.msra.mxu0 %v1184
        %4530 = vmatpush.msra.mxu0 %v1176
        %4531 = vmatpush.msra.mxu0 %v1168
        %4532 = vmatpush.msra.mxu0 %v1160
        %4533 = vmatpush.msra.mxu0 %v1152
        %4534 = vmatpush.msra.mxu0 %v1144
        %4535 = vmatpush.msra.mxu0 %v1136
        %4536 = vmatpush.msra.mxu0 %v1128
        %4537 = vmatpush.msra.mxu0 %v1120
        %4538 = vmatpush.msra.mxu0 %v1112
        %4539 = vmatpush.msra.mxu0 %v1104
        %4540 = vmatpush.msra.mxu0 %v1096
        %4541 = vmatpush.msra.mxu0 %v1088
        %4542 = vmatpush.msra.mxu0 %v1080
        %4543 = vmatpush.msra.mxu0 %v1072
        %4544 = vmatmul.f32.gmra.mxu0 %v278
        %v4545 = vpop.f32.mrf.mxu0
        %v4546 = vadd.f32 %v4526, %v4545
        %4547 = vdwg.mxu0
        %4548 = vmatpush.msra.mxu0 %v1320
        %4549 = vmatpush.msra.mxu0 %v1312
        %4550 = vmatpush.msra.mxu0 %v1304
        %4551 = vmatpush.msra.mxu0 %v1296
        %4552 = vmatpush.msra.mxu0 %v1288
        %4553 = vmatpush.msra.mxu0 %v1280
        %4554 = vmatpush.msra.mxu0 %v1272
        %4555 = vmatpush.msra.mxu0 %v1264
        %4556 = vmatpush.msra.mxu0 %v1256
        %4557 = vmatpush.msra.mxu0 %v1248
        %4558 = vmatpush.msra.mxu0 %v1240
        %4559 = vmatpush.msra.mxu0 %v1232
        %4560 = vmatpush.msra.mxu0 %v1224
        %4561 = vmatpush.msra.mxu0 %v1216
        %4562 = vmatpush.msra.mxu0 %v1208
        %4563 = vmatpush.msra.mxu0 %v1200
        %4564 = vmatmul.f32.gmra.mxu0 %v279
        %v4565 = vpop.f32.mrf.mxu0
        %v4566 = vadd.f32 %v4546, %v4565
        %4567 = vdwg.mxu0
        %4568 = vmatpush.msra.mxu0 %v1448
        %4569 = vmatpush.msra.mxu0 %v1440
        %4570 = vmatpush.msra.mxu0 %v1432
        %4571 = vmatpush.msra.mxu0 %v1424
        %4572 = vmatpush.msra.mxu0 %v1416
        %4573 = vmatpush.msra.mxu0 %v1408
        %4574 = vmatpush.msra.mxu0 %v1400
        %4575 = vmatpush.msra.mxu0 %v1392
        %4576 = vmatpush.msra.mxu0 %v1384
        %4577 = vmatpush.msra.mxu0 %v1376
        %4578 = vmatpush.msra.mxu0 %v1368
        %4579 = vmatpush.msra.mxu0 %v1360
        %4580 = vmatpush.msra.mxu0 %v1352
        %4581 = vmatpush.msra.mxu0 %v1344
        %4582 = vmatpush.msra.mxu0 %v1336
        %4583 = vmatpush.msra.mxu0 %v1328
        %4584 = vmatmul.f32.gmra.mxu0 %v280
        %v4585 = vpop.f32.mrf.mxu0
        %v4586 = vadd.f32 %v4566, %v4585
        %4587 = vdwg.mxu0
        %4588 = vmatpush.msra.mxu0 %v1576
        %4589 = vmatpush.msra.mxu0 %v1568
        %4590 = vmatpush.msra.mxu0 %v1560
        %4591 = vmatpush.msra.mxu0 %v1552
        %4592 = vmatpush.msra.mxu0 %v1544
        %4593 = vmatpush.msra.mxu0 %v1536
        %4594 = vmatpush.msra.mxu0 %v1528
        %4595 = vmatpush.msra.mxu0 %v1520
        %4596 = vmatpush.msra.mxu0 %v1512
        %4597 = vmatpush.msra.mxu0 %v1504
        %4598 = vmatpush.msra.mxu0 %v1496
        %4599 = vmatpush.msra.mxu0 %v1488
        %4600 = vmatpush.msra.mxu0 %v1480
        %4601 = vmatpush.msra.mxu0 %v1472
        %4602 = vmatpush.msra.mxu0 %v1464
        %4603 = vmatpush.msra.mxu0 %v1456
        %4604 = vmatmul.f32.gmra.mxu0 %v281
        %v4605 = vpop.f32.mrf.mxu0
        %v4606 = vadd.f32 %v4586, %v4605
        %4607 = vdwg.mxu0
        %4608 = vmatpush.msra.mxu0 %v1704
        %4609 = vmatpush.msra.mxu0 %v1696
        %4610 = vmatpush.msra.mxu0 %v1688
        %4611 = vmatpush.msra.mxu0 %v1680
        %4612 = vmatpush.msra.mxu0 %v1672
        %4613 = vmatpush.msra.mxu0 %v1664
        %4614 = vmatpush.msra.mxu0 %v1656
        %4615 = vmatpush.msra.mxu0 %v1648
        %4616 = vmatpush.msra.mxu0 %v1640
        %4617 = vmatpush.msra.mxu0 %v1632
        %4618 = vmatpush.msra.mxu0 %v1624
        %4619 = vmatpush.msra.mxu0 %v1616
        %4620 = vmatpush.msra.mxu0 %v1608
        %4621 = vmatpush.msra.mxu0 %v1600
        %4622 = vmatpush.msra.mxu0 %v1592
        %4623 = vmatpush.msra.mxu0 %v1584
        %4624 = vmatmul.f32.gmra.mxu0 %v282
        %v4625 = vpop.f32.mrf.mxu0
        %v4626 = vadd.f32 %v4606, %v4625
        %4627 = vdwg.mxu0
        %4628 = vmatpush.msra.mxu0 %v1832
        %4629 = vmatpush.msra.mxu0 %v1824
        %4630 = vmatpush.msra.mxu0 %v1816
        %4631 = vmatpush.msra.mxu0 %v1808
        %4632 = vmatpush.msra.mxu0 %v1800
        %4633 = vmatpush.msra.mxu0 %v1792
        %4634 = vmatpush.msra.mxu0 %v1784
        %4635 = vmatpush.msra.mxu0 %v1776
        %4636 = vmatpush.msra.mxu0 %v1768
        %4637 = vmatpush.msra.mxu0 %v1760
        %4638 = vmatpush.msra.mxu0 %v1752
        %4639 = vmatpush.msra.mxu0 %v1744
        %4640 = vmatpush.msra.mxu0 %v1736
        %4641 = vmatpush.msra.mxu0 %v1728
        %4642 = vmatpush.msra.mxu0 %v1720
        %4643 = vmatpush.msra.mxu0 %v1712
        %4644 = vmatmul.f32.gmra.mxu0 %v283
        %v4645 = vpop.f32.mrf.mxu0
        %v4646 = vadd.f32 %v4626, %v4645
        %4647 = vdwg.mxu0
        %4648 = vmatpush.msra.mxu0 %v1960
        %4649 = vmatpush.msra.mxu0 %v1952
        %4650 = vmatpush.msra.mxu0 %v1944
        %4651 = vmatpush.msra.mxu0 %v1936
        %4652 = vmatpush.msra.mxu0 %v1928
        %4653 = vmatpush.msra.mxu0 %v1920
        %4654 = vmatpush.msra.mxu0 %v1912
        %4655 = vmatpush.msra.mxu0 %v1904
        %4656 = vmatpush.msra.mxu0 %v1896
        %4657 = vmatpush.msra.mxu0 %v1888
        %4658 = vmatpush.msra.mxu0 %v1880
        %4659 = vmatpush.msra.mxu0 %v1872
        %4660 = vmatpush.msra.mxu0 %v1864
        %4661 = vmatpush.msra.mxu0 %v1856
        %4662 = vmatpush.msra.mxu0 %v1848
        %4663 = vmatpush.msra.mxu0 %v1840
        %4664 = vmatmul.f32.gmra.mxu0 %v284
        %v4665 = vpop.f32.mrf.mxu0
        %v4666 = vadd.f32 %v4646, %v4665
        %4667 = vdwg.mxu0
        %4668 = vmatpush.msra.mxu0 %v2088
        %4669 = vmatpush.msra.mxu0 %v2080
        %4670 = vmatpush.msra.mxu0 %v2072
        %4671 = vmatpush.msra.mxu0 %v2064
        %4672 = vmatpush.msra.mxu0 %v2056
        %4673 = vmatpush.msra.mxu0 %v2048
        %4674 = vmatpush.msra.mxu0 %v2040
        %4675 = vmatpush.msra.mxu0 %v2032
        %4676 = vmatpush.msra.mxu0 %v2024
        %4677 = vmatpush.msra.mxu0 %v2016
        %4678 = vmatpush.msra.mxu0 %v2008
        %4679 = vmatpush.msra.mxu0 %v2000
        %4680 = vmatpush.msra.mxu0 %v1992
        %4681 = vmatpush.msra.mxu0 %v1984
        %4682 = vmatpush.msra.mxu0 %v1976
        %4683 = vmatpush.msra.mxu0 %v1968
        %4684 = vmatmul.f32.gmra.mxu0 %v285
        %v4685 = vpop.f32.mrf.mxu0
        %v4686 = vadd.f32 %v4666, %v4685
        %4687 = vdwg.mxu0
        %4688 = vmatpush.msra.mxu0 %v2216
        %4689 = vmatpush.msra.mxu0 %v2208
        %4690 = vmatpush.msra.mxu0 %v2200
        %4691 = vmatpush.msra.mxu0 %v2192
        %4692 = vmatpush.msra.mxu0 %v2184
        %4693 = vmatpush.msra.mxu0 %v2176
        %4694 = vmatpush.msra.mxu0 %v2168
        %4695 = vmatpush.msra.mxu0 %v2160
        %4696 = vmatpush.msra.mxu0 %v2152
        %4697 = vmatpush.msra.mxu0 %v2144
        %4698 = vmatpush.msra.mxu0 %v2136
        %4699 = vmatpush.msra.mxu0 %v2128
        %4700 = vmatpush.msra.mxu0 %v2120
        %4701 = vmatpush.msra.mxu0 %v2112
        %4702 = vmatpush.msra.mxu0 %v2104
        %4703 = vmatpush.msra.mxu0 %v2096
        %4704 = vmatmul.f32.gmra.mxu0 %v286
        %v4705 = vpop.f32.mrf.mxu0
        %v4706 = vadd.f32 %v4686, %v4705
        %4707 = vdwg.mxu0
        %4708 = vmatpush.msra.mxu0 %v2344
        %4709 = vmatpush.msra.mxu0 %v2336
        %4710 = vmatpush.msra.mxu0 %v2328
        %4711 = vmatpush.msra.mxu0 %v2320
        %4712 = vmatpush.msra.mxu0 %v2312
        %4713 = vmatpush.msra.mxu0 %v2304
        %4714 = vmatpush.msra.mxu0 %v2296
        %4715 = vmatpush.msra.mxu0 %v2288
        %4716 = vmatpush.msra.mxu0 %v2280
        %4717 = vmatpush.msra.mxu0 %v2272
        %4718 = vmatpush.msra.mxu0 %v2264
        %4719 = vmatpush.msra.mxu0 %v2256
        %4720 = vmatpush.msra.mxu0 %v2248
        %4721 = vmatpush.msra.mxu0 %v2240
        %4722 = vmatpush.msra.mxu0 %v2232
        %4723 = vmatpush.msra.mxu0 %v2224
        %4724 = vmatmul.f32.gmra.mxu0 %v287
        %v4725 = vpop.f32.mrf.mxu0
        %v4726 = vadd.f32 %v4706, %v4725
        %4727 = vdwg.mxu0
        %4728 = vmatpush.msra.mxu0 %v2472
        %4729 = vmatpush.msra.mxu0 %v2464
        %4730 = vmatpush.msra.mxu0 %v2456
        %4731 = vmatpush.msra.mxu0 %v2448
        %4732 = vmatpush.msra.mxu0 %v2440
        %4733 = vmatpush.msra.mxu0 %v2432
        %4734 = vmatpush.msra.mxu0 %v2424
        %4735 = vmatpush.msra.mxu0 %v2416
        %4736 = vmatpush.msra.mxu0 %v2408
        %4737 = vmatpush.msra.mxu0 %v2400
        %4738 = vmatpush.msra.mxu0 %v2392
        %4739 = vmatpush.msra.mxu0 %v2384
        %4740 = vmatpush.msra.mxu0 %v2376
        %4741 = vmatpush.msra.mxu0 %v2368
        %4742 = vmatpush.msra.mxu0 %v2360
        %4743 = vmatpush.msra.mxu0 %v2352
        %4744 = vmatmul.f32.gmra.mxu0 %v288
        %v4745 = vpop.f32.mrf.mxu0
        %v4746 = vadd.f32 %v4726, %v4745
        %4747 = vdwg.mxu0
        %4748 = vmatpush.msra.mxu0 %v2600
        %4749 = vmatpush.msra.mxu0 %v2592
        %4750 = vmatpush.msra.mxu0 %v2584
        %4751 = vmatpush.msra.mxu0 %v2576
        %4752 = vmatpush.msra.mxu0 %v2568
        %4753 = vmatpush.msra.mxu0 %v2560
        %4754 = vmatpush.msra.mxu0 %v2552
        %4755 = vmatpush.msra.mxu0 %v2544
        %4756 = vmatpush.msra.mxu0 %v2536
        %4757 = vmatpush.msra.mxu0 %v2528
        %4758 = vmatpush.msra.mxu0 %v2520
        %4759 = vmatpush.msra.mxu0 %v2512
        %4760 = vmatpush.msra.mxu0 %v2504
        %4761 = vmatpush.msra.mxu0 %v2496
        %4762 = vmatpush.msra.mxu0 %v2488
        %4763 = vmatpush.msra.mxu0 %v2480
        %4764 = vmatmul.f32.gmra.mxu0 %v289
        %v4765 = vpop.f32.mrf.mxu0
        %v4766 = vadd.f32 %v4746, %v4765
        %4767 = vdwg.mxu0
        %4768 = vmatpush.msra.mxu0 %v2728
        %4769 = vmatpush.msra.mxu0 %v2720
        %4770 = vmatpush.msra.mxu0 %v2712
        %4771 = vmatpush.msra.mxu0 %v2704
        %4772 = vmatpush.msra.mxu0 %v2696
        %4773 = vmatpush.msra.mxu0 %v2688
        %4774 = vmatpush.msra.mxu0 %v2680
        %4775 = vmatpush.msra.mxu0 %v2672
        %4776 = vmatpush.msra.mxu0 %v2664
        %4777 = vmatpush.msra.mxu0 %v2656
        %4778 = vmatpush.msra.mxu0 %v2648
        %4779 = vmatpush.msra.mxu0 %v2640
        %4780 = vmatpush.msra.mxu0 %v2632
        %4781 = vmatpush.msra.mxu0 %v2624
        %4782 = vmatpush.msra.mxu0 %v2616
        %4783 = vmatpush.msra.mxu0 %v2608
        %4784 = vmatmul.f32.gmra.mxu0 %v290
        %v4785 = vpop.f32.mrf.mxu0
        %v4786 = vadd.f32 %v4766, %v4785
        %4787 = vdwg.mxu0
        %4788 = vmatpush.msra.mxu0 %v2856
        %4789 = vmatpush.msra.mxu0 %v2848
        %4790 = vmatpush.msra.mxu0 %v2840
        %4791 = vmatpush.msra.mxu0 %v2832
        %4792 = vmatpush.msra.mxu0 %v2824
        %4793 = vmatpush.msra.mxu0 %v2816
        %4794 = vmatpush.msra.mxu0 %v2808
        %4795 = vmatpush.msra.mxu0 %v2800
        %4796 = vmatpush.msra.mxu0 %v2792
        %4797 = vmatpush.msra.mxu0 %v2784
        %4798 = vmatpush.msra.mxu0 %v2776
        %4799 = vmatpush.msra.mxu0 %v2768
        %4800 = vmatpush.msra.mxu0 %v2760
        %4801 = vmatpush.msra.mxu0 %v2752
        %4802 = vmatpush.msra.mxu0 %v2744
        %4803 = vmatpush.msra.mxu0 %v2736
        %4804 = vmatmul.f32.gmra.mxu0 %v291
        %v4805 = vpop.f32.mrf.mxu0
        %v4806 = vadd.f32 %v4786, %v4805
        %4807 = vdwg.mxu0
        %4808 = vmatpush.msra.mxu0 %v2984
        %4809 = vmatpush.msra.mxu0 %v2976
        %4810 = vmatpush.msra.mxu0 %v2968
        %4811 = vmatpush.msra.mxu0 %v2960
        %4812 = vmatpush.msra.mxu0 %v2952
        %4813 = vmatpush.msra.mxu0 %v2944
        %4814 = vmatpush.msra.mxu0 %v2936
        %4815 = vmatpush.msra.mxu0 %v2928
        %4816 = vmatpush.msra.mxu0 %v2920
        %4817 = vmatpush.msra.mxu0 %v2912
        %4818 = vmatpush.msra.mxu0 %v2904
        %4819 = vmatpush.msra.mxu0 %v2896
        %4820 = vmatpush.msra.mxu0 %v2888
        %4821 = vmatpush.msra.mxu0 %v2880
        %4822 = vmatpush.msra.mxu0 %v2872
        %4823 = vmatpush.msra.mxu0 %v2864
        %4824 = vmatmul.f32.gmra.mxu0 %v292
        %v4825 = vpop.f32.mrf.mxu0
        %v4826 = vadd.f32 %v4806, %v4825
        %4827 = vdwg.mxu0
        %4828 = vmatpush.msra.mxu0 %v3112
        %4829 = vmatpush.msra.mxu0 %v3104
        %4830 = vmatpush.msra.mxu0 %v3096
        %4831 = vmatpush.msra.mxu0 %v3088
        %4832 = vmatpush.msra.mxu0 %v3080
        %4833 = vmatpush.msra.mxu0 %v3072
        %4834 = vmatpush.msra.mxu0 %v3064
        %4835 = vmatpush.msra.mxu0 %v3056
        %4836 = vmatpush.msra.mxu0 %v3048
        %4837 = vmatpush.msra.mxu0 %v3040
        %4838 = vmatpush.msra.mxu0 %v3032
        %4839 = vmatpush.msra.mxu0 %v3024
        %4840 = vmatpush.msra.mxu0 %v3016
        %4841 = vmatpush.msra.mxu0 %v3008
        %4842 = vmatpush.msra.mxu0 %v3000
        %4843 = vmatpush.msra.mxu0 %v2992
        %4844 = vmatmul.f32.gmra.mxu0 %v293
        %v4845 = vpop.f32.mrf.mxu0
        %v4846 = vadd.f32 %v4826, %v4845
        %4847 = vdwg.mxu0
        %4848 = vmatpush.msra.mxu0 %v3240
        %4849 = vmatpush.msra.mxu0 %v3232
        %4850 = vmatpush.msra.mxu0 %v3224
        %4851 = vmatpush.msra.mxu0 %v3216
        %4852 = vmatpush.msra.mxu0 %v3208
        %4853 = vmatpush.msra.mxu0 %v3200
        %4854 = vmatpush.msra.mxu0 %v3192
        %4855 = vmatpush.msra.mxu0 %v3184
        %4856 = vmatpush.msra.mxu0 %v3176
        %4857 = vmatpush.msra.mxu0 %v3168
        %4858 = vmatpush.msra.mxu0 %v3160
        %4859 = vmatpush.msra.mxu0 %v3152
        %4860 = vmatpush.msra.mxu0 %v3144
        %4861 = vmatpush.msra.mxu0 %v3136
        %4862 = vmatpush.msra.mxu0 %v3128
        %4863 = vmatpush.msra.mxu0 %v3120
        %4864 = vmatmul.f32.gmra.mxu0 %v294
        %v4865 = vpop.f32.mrf.mxu0
        %v4866 = vadd.f32 %v4846, %v4865
        %4867 = vdwg.mxu0
        %4868 = vmatpush.msra.mxu0 %v3368
        %4869 = vmatpush.msra.mxu0 %v3360
        %4870 = vmatpush.msra.mxu0 %v3352
        %4871 = vmatpush.msra.mxu0 %v3344
        %4872 = vmatpush.msra.mxu0 %v3336
        %4873 = vmatpush.msra.mxu0 %v3328
        %4874 = vmatpush.msra.mxu0 %v3320
        %4875 = vmatpush.msra.mxu0 %v3312
        %4876 = vmatpush.msra.mxu0 %v3304
        %4877 = vmatpush.msra.mxu0 %v3296
        %4878 = vmatpush.msra.mxu0 %v3288
        %4879 = vmatpush.msra.mxu0 %v3280
        %4880 = vmatpush.msra.mxu0 %v3272
        %4881 = vmatpush.msra.mxu0 %v3264
        %4882 = vmatpush.msra.mxu0 %v3256
        %4883 = vmatpush.msra.mxu0 %v3248
        %4884 = vmatmul.f32.gmra.mxu0 %v295
        %v4885 = vpop.f32.mrf.mxu0
        %v4886 = vadd.f32 %v4866, %v4885
        %4887 = vdwg.mxu0
        %4888 = vmatpush.msra.mxu0 %v3496
        %4889 = vmatpush.msra.mxu0 %v3488
        %4890 = vmatpush.msra.mxu0 %v3480
        %4891 = vmatpush.msra.mxu0 %v3472
        %4892 = vmatpush.msra.mxu0 %v3464
        %4893 = vmatpush.msra.mxu0 %v3456
        %4894 = vmatpush.msra.mxu0 %v3448
        %4895 = vmatpush.msra.mxu0 %v3440
        %4896 = vmatpush.msra.mxu0 %v3432
        %4897 = vmatpush.msra.mxu0 %v3424
        %4898 = vmatpush.msra.mxu0 %v3416
        %4899 = vmatpush.msra.mxu0 %v3408
        %4900 = vmatpush.msra.mxu0 %v3400
        %4901 = vmatpush.msra.mxu0 %v3392
        %4902 = vmatpush.msra.mxu0 %v3384
        %4903 = vmatpush.msra.mxu0 %v3376
        %4904 = vmatmul.f32.gmra.mxu0 %v296
        %v4905 = vpop.f32.mrf.mxu0
        %v4906 = vadd.f32 %v4886, %v4905
        %4907 = vdwg.mxu0
        %4908 = vmatpush.msra.mxu0 %v3624
        %4909 = vmatpush.msra.mxu0 %v3616
        %4910 = vmatpush.msra.mxu0 %v3608
        %4911 = vmatpush.msra.mxu0 %v3600
        %4912 = vmatpush.msra.mxu0 %v3592
        %4913 = vmatpush.msra.mxu0 %v3584
        %4914 = vmatpush.msra.mxu0 %v3576
        %4915 = vmatpush.msra.mxu0 %v3568
        %4916 = vmatpush.msra.mxu0 %v3560
        %4917 = vmatpush.msra.mxu0 %v3552
        %4918 = vmatpush.msra.mxu0 %v3544
        %4919 = vmatpush.msra.mxu0 %v3536
        %4920 = vmatpush.msra.mxu0 %v3528
        %4921 = vmatpush.msra.mxu0 %v3520
        %4922 = vmatpush.msra.mxu0 %v3512
        %4923 = vmatpush.msra.mxu0 %v3504
        %4924 = vmatmul.f32.gmra.mxu0 %v297
        %v4925 = vpop.f32.mrf.mxu0
        %v4926 = vadd.f32 %v4906, %v4925
        %4927 = vdwg.mxu0
        %4928 = vmatpush.msra.mxu0 %v3752
        %4929 = vmatpush.msra.mxu0 %v3744
        %4930 = vmatpush.msra.mxu0 %v3736
        %4931 = vmatpush.msra.mxu0 %v3728
        %4932 = vmatpush.msra.mxu0 %v3720
        %4933 = vmatpush.msra.mxu0 %v3712
        %4934 = vmatpush.msra.mxu0 %v3704
        %4935 = vmatpush.msra.mxu0 %v3696
        %4936 = vmatpush.msra.mxu0 %v3688
        %4937 = vmatpush.msra.mxu0 %v3680
        %4938 = vmatpush.msra.mxu0 %v3672
        %4939 = vmatpush.msra.mxu0 %v3664
        %4940 = vmatpush.msra.mxu0 %v3656
        %4941 = vmatpush.msra.mxu0 %v3648
        %4942 = vmatpush.msra.mxu0 %v3640
        %4943 = vmatpush.msra.mxu0 %v3632
        %4944 = vmatmul.f32.gmra.mxu0 %v298
        %v4945 = vpop.f32.mrf.mxu0
        %v4946 = vadd.f32 %v4926, %v4945
        %4947 = vdwg.mxu0
        %4948 = vmatpush.msra.mxu0 %v3880
        %4949 = vmatpush.msra.mxu0 %v3872
        %4950 = vmatpush.msra.mxu0 %v3864
        %4951 = vmatpush.msra.mxu0 %v3856
        %4952 = vmatpush.msra.mxu0 %v3848
        %4953 = vmatpush.msra.mxu0 %v3840
        %4954 = vmatpush.msra.mxu0 %v3832
        %4955 = vmatpush.msra.mxu0 %v3824
        %4956 = vmatpush.msra.mxu0 %v3816
        %4957 = vmatpush.msra.mxu0 %v3808
        %4958 = vmatpush.msra.mxu0 %v3800
        %4959 = vmatpush.msra.mxu0 %v3792
        %4960 = vmatpush.msra.mxu0 %v3784
        %4961 = vmatpush.msra.mxu0 %v3776
        %4962 = vmatpush.msra.mxu0 %v3768
        %4963 = vmatpush.msra.mxu0 %v3760
        %4964 = vmatmul.f32.gmra.mxu0 %v299
        %v4965 = vpop.f32.mrf.mxu0
        %v4966 = vadd.f32 %v4946, %v4965
        %4967 = vdwg.mxu0
        %4968 = vmatpush.msra.mxu0 %v4008
        %4969 = vmatpush.msra.mxu0 %v4000
        %4970 = vmatpush.msra.mxu0 %v3992
        %4971 = vmatpush.msra.mxu0 %v3984
        %4972 = vmatpush.msra.mxu0 %v3976
        %4973 = vmatpush.msra.mxu0 %v3968
        %4974 = vmatpush.msra.mxu0 %v3960
        %4975 = vmatpush.msra.mxu0 %v3952
        %4976 = vmatpush.msra.mxu0 %v3944
        %4977 = vmatpush.msra.mxu0 %v3936
        %4978 = vmatpush.msra.mxu0 %v3928
        %4979 = vmatpush.msra.mxu0 %v3920
        %4980 = vmatpush.msra.mxu0 %v3912
        %4981 = vmatpush.msra.mxu0 %v3904
        %4982 = vmatpush.msra.mxu0 %v3896
        %4983 = vmatpush.msra.mxu0 %v3888
        %4984 = vmatmul.f32.gmra.mxu0 %v300
        %v4985 = vpop.f32.mrf.mxu0
        %v4986 = vadd.f32 %v4966, %v4985
        %4987 = vdwg.mxu0
        %4988 = vmatpush.msra.mxu0 %v4136
        %4989 = vmatpush.msra.mxu0 %v4128
        %4990 = vmatpush.msra.mxu0 %v4120
        %4991 = vmatpush.msra.mxu0 %v4112
        %4992 = vmatpush.msra.mxu0 %v4104
        %4993 = vmatpush.msra.mxu0 %v4096
        %4994 = vmatpush.msra.mxu0 %v4088
        %4995 = vmatpush.msra.mxu0 %v4080
        %4996 = vmatpush.msra.mxu0 %v4072
        %4997 = vmatpush.msra.mxu0 %v4064
        %4998 = vmatpush.msra.mxu0 %v4056
        %4999 = vmatpush.msra.mxu0 %v4048
        %5000 = vmatpush.msra.mxu0 %v4040
        %5001 = vmatpush.msra.mxu0 %v4032
        %5002 = vmatpush.msra.mxu0 %v4024
        %5003 = vmatpush.msra.mxu0 %v4016
        %5004 = vmatmul.f32.gmra.mxu0 %v301
        %v5005 = vpop.f32.mrf.mxu0
        %v5006 = vadd.f32 %v4986, %v5005
        %5007 = vdwg.mxu0
        %5008 = vmatpush.msra.mxu0 %v4264
        %5009 = vmatpush.msra.mxu0 %v4256
        %5010 = vmatpush.msra.mxu0 %v4248
        %5011 = vmatpush.msra.mxu0 %v4240
        %5012 = vmatpush.msra.mxu0 %v4232
        %5013 = vmatpush.msra.mxu0 %v4224
        %5014 = vmatpush.msra.mxu0 %v4216
        %5015 = vmatpush.msra.mxu0 %v4208
        %5016 = vmatpush.msra.mxu0 %v4200
        %5017 = vmatpush.msra.mxu0 %v4192
        %5018 = vmatpush.msra.mxu0 %v4184
        %5019 = vmatpush.msra.mxu0 %v4176
        %5020 = vmatpush.msra.mxu0 %v4168
        %5021 = vmatpush.msra.mxu0 %v4160
        %5022 = vmatpush.msra.mxu0 %v4152
        %5023 = vmatpush.msra.mxu0 %v4144
        %5024 = vmatmul.f32.gmra.mxu0 %v302
        %v5025 = vpop.f32.mrf.mxu0
        %v5026 = vadd.f32 %v5006, %v5025
        %5027 = vdwg.mxu0
        %5028 = vmatpush.msra.mxu0 %v4392
        %5029 = vmatpush.msra.mxu0 %v4384
        %5030 = vmatpush.msra.mxu0 %v4376
        %5031 = vmatpush.msra.mxu0 %v4368
        %5032 = vmatpush.msra.mxu0 %v4360
        %5033 = vmatpush.msra.mxu0 %v4352
        %5034 = vmatpush.msra.mxu0 %v4344
        %5035 = vmatpush.msra.mxu0 %v4336
        %5036 = vmatpush.msra.mxu0 %v4328
        %5037 = vmatpush.msra.mxu0 %v4320
        %5038 = vmatpush.msra.mxu0 %v4312
        %5039 = vmatpush.msra.mxu0 %v4304
        %5040 = vmatpush.msra.mxu0 %v4296
        %5041 = vmatpush.msra.mxu0 %v4288
        %5042 = vmatpush.msra.mxu0 %v4280
        %5043 = vmatpush.msra.mxu0 %v4272
        %5044 = vmatmul.f32.gmra.mxu0 %v303
        %v5045 = vpop.f32.mrf.mxu0
        %v5046 = vadd.f32 %v5026, %v5045
        %5047 = vdwg.mxu0
        %5048 = vmatpush.msra.mxu0 %v425
        %5049 = vmatpush.msra.mxu0 %v417
        %5050 = vmatpush.msra.mxu0 %v409
        %5051 = vmatpush.msra.mxu0 %v401
        %5052 = vmatpush.msra.mxu0 %v393
        %5053 = vmatpush.msra.mxu0 %v385
        %5054 = vmatpush.msra.mxu0 %v377
        %5055 = vmatpush.msra.mxu0 %v369
        %5056 = vmatpush.msra.mxu0 %v361
        %5057 = vmatpush.msra.mxu0 %v353
        %5058 = vmatpush.msra.mxu0 %v345
        %5059 = vmatpush.msra.mxu0 %v337
        %5060 = vmatpush.msra.mxu0 %v329
        %5061 = vmatpush.msra.mxu0 %v321
        %5062 = vmatpush.msra.mxu0 %v313
        %5063 = vmatpush.msra.mxu0 %v305
        %5064 = vmatmul.f32.gmra.mxu0 %v272
        %v5065 = vpop.f32.mrf.mxu0
        %v5066 = vadd.f32 %v4401, %v5065
        %5067 = vdwg.mxu0
        %5068 = vmatpush.msra.mxu0 %v553
        %5069 = vmatpush.msra.mxu0 %v545
        %5070 = vmatpush.msra.mxu0 %v537
        %5071 = vmatpush.msra.mxu0 %v529
        %5072 = vmatpush.msra.mxu0 %v521
        %5073 = vmatpush.msra.mxu0 %v513
        %5074 = vmatpush.msra.mxu0 %v505
        %5075 = vmatpush.msra.mxu0 %v497
        %5076 = vmatpush.msra.mxu0 %v489
        %5077 = vmatpush.msra.mxu0 %v481
        %5078 = vmatpush.msra.mxu0 %v473
        %5079 = vmatpush.msra.mxu0 %v465
        %5080 = vmatpush.msra.mxu0 %v457
        %5081 = vmatpush.msra.mxu0 %v449
        %5082 = vmatpush.msra.mxu0 %v441
        %5083 = vmatpush.msra.mxu0 %v433
        %5084 = vmatmul.f32.gmra.mxu0 %v273
        %v5085 = vpop.f32.mrf.mxu0
        %v5086 = vadd.f32 %v5066, %v5085
        %5087 = vdwg.mxu0
        %5088 = vmatpush.msra.mxu0 %v681
        %5089 = vmatpush.msra.mxu0 %v673
        %5090 = vmatpush.msra.mxu0 %v665
        %5091 = vmatpush.msra.mxu0 %v657
        %5092 = vmatpush.msra.mxu0 %v649
        %5093 = vmatpush.msra.mxu0 %v641
        %5094 = vmatpush.msra.mxu0 %v633
        %5095 = vmatpush.msra.mxu0 %v625
        %5096 = vmatpush.msra.mxu0 %v617
        %5097 = vmatpush.msra.mxu0 %v609
        %5098 = vmatpush.msra.mxu0 %v601
        %5099 = vmatpush.msra.mxu0 %v593
        %5100 = vmatpush.msra.mxu0 %v585
        %5101 = vmatpush.msra.mxu0 %v577
        %5102 = vmatpush.msra.mxu0 %v569
        %5103 = vmatpush.msra.mxu0 %v561
        %5104 = vmatmul.f32.gmra.mxu0 %v274
        %v5105 = vpop.f32.mrf.mxu0
        %v5106 = vadd.f32 %v5086, %v5105
        %5107 = vdwg.mxu0
        %5108 = vmatpush.msra.mxu0 %v809
        %5109 = vmatpush.msra.mxu0 %v801
        %5110 = vmatpush.msra.mxu0 %v793
        %5111 = vmatpush.msra.mxu0 %v785
        %5112 = vmatpush.msra.mxu0 %v777
        %5113 = vmatpush.msra.mxu0 %v769
        %5114 = vmatpush.msra.mxu0 %v761
        %5115 = vmatpush.msra.mxu0 %v753
        %5116 = vmatpush.msra.mxu0 %v745
        %5117 = vmatpush.msra.mxu0 %v737
        %5118 = vmatpush.msra.mxu0 %v729
        %5119 = vmatpush.msra.mxu0 %v721
        %5120 = vmatpush.msra.mxu0 %v713
        %5121 = vmatpush.msra.mxu0 %v705
        %5122 = vmatpush.msra.mxu0 %v697
        %5123 = vmatpush.msra.mxu0 %v689
        %5124 = vmatmul.f32.gmra.mxu0 %v275
        %v5125 = vpop.f32.mrf.mxu0
        %v5126 = vadd.f32 %v5106, %v5125
        %5127 = vdwg.mxu0
        %5128 = vmatpush.msra.mxu0 %v937
        %5129 = vmatpush.msra.mxu0 %v929
        %5130 = vmatpush.msra.mxu0 %v921
        %5131 = vmatpush.msra.mxu0 %v913
        %5132 = vmatpush.msra.mxu0 %v905
        %5133 = vmatpush.msra.mxu0 %v897
        %5134 = vmatpush.msra.mxu0 %v889
        %5135 = vmatpush.msra.mxu0 %v881
        %5136 = vmatpush.msra.mxu0 %v873
        %5137 = vmatpush.msra.mxu0 %v865
        %5138 = vmatpush.msra.mxu0 %v857
        %5139 = vmatpush.msra.mxu0 %v849
        %5140 = vmatpush.msra.mxu0 %v841
        %5141 = vmatpush.msra.mxu0 %v833
        %5142 = vmatpush.msra.mxu0 %v825
        %5143 = vmatpush.msra.mxu0 %v817
        %5144 = vmatmul.f32.gmra.mxu0 %v276
        %v5145 = vpop.f32.mrf.mxu0
        %v5146 = vadd.f32 %v5126, %v5145
        %5147 = vdwg.mxu0
        %5148 = vmatpush.msra.mxu0 %v1065
        %5149 = vmatpush.msra.mxu0 %v1057
        %5150 = vmatpush.msra.mxu0 %v1049
        %5151 = vmatpush.msra.mxu0 %v1041
        %5152 = vmatpush.msra.mxu0 %v1033
        %5153 = vmatpush.msra.mxu0 %v1025
        %5154 = vmatpush.msra.mxu0 %v1017
        %5155 = vmatpush.msra.mxu0 %v1009
        %5156 = vmatpush.msra.mxu0 %v1001
        %5157 = vmatpush.msra.mxu0 %v993
        %5158 = vmatpush.msra.mxu0 %v985
        %5159 = vmatpush.msra.mxu0 %v977
        %5160 = vmatpush.msra.mxu0 %v969
        %5161 = vmatpush.msra.mxu0 %v961
        %5162 = vmatpush.msra.mxu0 %v953
        %5163 = vmatpush.msra.mxu0 %v945
        %5164 = vmatmul.f32.gmra.mxu0 %v277
        %v5165 = vpop.f32.mrf.mxu0
        %v5166 = vadd.f32 %v5146, %v5165
        %5167 = vdwg.mxu0
        %5168 = vmatpush.msra.mxu0 %v1193
        %5169 = vmatpush.msra.mxu0 %v1185
        %5170 = vmatpush.msra.mxu0 %v1177
        %5171 = vmatpush.msra.mxu0 %v1169
        %5172 = vmatpush.msra.mxu0 %v1161
        %5173 = vmatpush.msra.mxu0 %v1153
        %5174 = vmatpush.msra.mxu0 %v1145
        %5175 = vmatpush.msra.mxu0 %v1137
        %5176 = vmatpush.msra.mxu0 %v1129
        %5177 = vmatpush.msra.mxu0 %v1121
        %5178 = vmatpush.msra.mxu0 %v1113
        %5179 = vmatpush.msra.mxu0 %v1105
        %5180 = vmatpush.msra.mxu0 %v1097
        %5181 = vmatpush.msra.mxu0 %v1089
        %5182 = vmatpush.msra.mxu0 %v1081
        %5183 = vmatpush.msra.mxu0 %v1073
        %5184 = vmatmul.f32.gmra.mxu0 %v278
        %v5185 = vpop.f32.mrf.mxu0
        %v5186 = vadd.f32 %v5166, %v5185
        %5187 = vdwg.mxu0
        %5188 = vmatpush.msra.mxu0 %v1321
        %5189 = vmatpush.msra.mxu0 %v1313
        %5190 = vmatpush.msra.mxu0 %v1305
        %5191 = vmatpush.msra.mxu0 %v1297
        %5192 = vmatpush.msra.mxu0 %v1289
        %5193 = vmatpush.msra.mxu0 %v1281
        %5194 = vmatpush.msra.mxu0 %v1273
        %5195 = vmatpush.msra.mxu0 %v1265
        %5196 = vmatpush.msra.mxu0 %v1257
        %5197 = vmatpush.msra.mxu0 %v1249
        %5198 = vmatpush.msra.mxu0 %v1241
        %5199 = vmatpush.msra.mxu0 %v1233
        %5200 = vmatpush.msra.mxu0 %v1225
        %5201 = vmatpush.msra.mxu0 %v1217
        %5202 = vmatpush.msra.mxu0 %v1209
        %5203 = vmatpush.msra.mxu0 %v1201
        %5204 = vmatmul.f32.gmra.mxu0 %v279
        %v5205 = vpop.f32.mrf.mxu0
        %v5206 = vadd.f32 %v5186, %v5205
        %5207 = vdwg.mxu0
        %5208 = vmatpush.msra.mxu0 %v1449
        %5209 = vmatpush.msra.mxu0 %v1441
        %5210 = vmatpush.msra.mxu0 %v1433
        %5211 = vmatpush.msra.mxu0 %v1425
        %5212 = vmatpush.msra.mxu0 %v1417
        %5213 = vmatpush.msra.mxu0 %v1409
        %5214 = vmatpush.msra.mxu0 %v1401
        %5215 = vmatpush.msra.mxu0 %v1393
        %5216 = vmatpush.msra.mxu0 %v1385
        %5217 = vmatpush.msra.mxu0 %v1377
        %5218 = vmatpush.msra.mxu0 %v1369
        %5219 = vmatpush.msra.mxu0 %v1361
        %5220 = vmatpush.msra.mxu0 %v1353
        %5221 = vmatpush.msra.mxu0 %v1345
        %5222 = vmatpush.msra.mxu0 %v1337
        %5223 = vmatpush.msra.mxu0 %v1329
        %5224 = vmatmul.f32.gmra.mxu0 %v280
        %v5225 = vpop.f32.mrf.mxu0
        %v5226 = vadd.f32 %v5206, %v5225
        %5227 = vdwg.mxu0
        %5228 = vmatpush.msra.mxu0 %v1577
        %5229 = vmatpush.msra.mxu0 %v1569
        %5230 = vmatpush.msra.mxu0 %v1561
        %5231 = vmatpush.msra.mxu0 %v1553
        %5232 = vmatpush.msra.mxu0 %v1545
        %5233 = vmatpush.msra.mxu0 %v1537
        %5234 = vmatpush.msra.mxu0 %v1529
        %5235 = vmatpush.msra.mxu0 %v1521
        %5236 = vmatpush.msra.mxu0 %v1513
        %5237 = vmatpush.msra.mxu0 %v1505
        %5238 = vmatpush.msra.mxu0 %v1497
        %5239 = vmatpush.msra.mxu0 %v1489
        %5240 = vmatpush.msra.mxu0 %v1481
        %5241 = vmatpush.msra.mxu0 %v1473
        %5242 = vmatpush.msra.mxu0 %v1465
        %5243 = vmatpush.msra.mxu0 %v1457
        %5244 = vmatmul.f32.gmra.mxu0 %v281
        %v5245 = vpop.f32.mrf.mxu0
        %v5246 = vadd.f32 %v5226, %v5245
        %5247 = vdwg.mxu0
        %5248 = vmatpush.msra.mxu0 %v1705
        %5249 = vmatpush.msra.mxu0 %v1697
        %5250 = vmatpush.msra.mxu0 %v1689
        %5251 = vmatpush.msra.mxu0 %v1681
        %5252 = vmatpush.msra.mxu0 %v1673
        %5253 = vmatpush.msra.mxu0 %v1665
        %5254 = vmatpush.msra.mxu0 %v1657
        %5255 = vmatpush.msra.mxu0 %v1649
        %5256 = vmatpush.msra.mxu0 %v1641
        %5257 = vmatpush.msra.mxu0 %v1633
        %5258 = vmatpush.msra.mxu0 %v1625
        %5259 = vmatpush.msra.mxu0 %v1617
        %5260 = vmatpush.msra.mxu0 %v1609
        %5261 = vmatpush.msra.mxu0 %v1601
        %5262 = vmatpush.msra.mxu0 %v1593
        %5263 = vmatpush.msra.mxu0 %v1585
        %5264 = vmatmul.f32.gmra.mxu0 %v282
        %v5265 = vpop.f32.mrf.mxu0
        %v5266 = vadd.f32 %v5246, %v5265
        %5267 = vdwg.mxu0
        %5268 = vmatpush.msra.mxu0 %v1833
        %5269 = vmatpush.msra.mxu0 %v1825
        %5270 = vmatpush.msra.mxu0 %v1817
        %5271 = vmatpush.msra.mxu0 %v1809
        %5272 = vmatpush.msra.mxu0 %v1801
        %5273 = vmatpush.msra.mxu0 %v1793
        %5274 = vmatpush.msra.mxu0 %v1785
        %5275 = vmatpush.msra.mxu0 %v1777
        %5276 = vmatpush.msra.mxu0 %v1769
        %5277 = vmatpush.msra.mxu0 %v1761
        %5278 = vmatpush.msra.mxu0 %v1753
        %5279 = vmatpush.msra.mxu0 %v1745
        %5280 = vmatpush.msra.mxu0 %v1737
        %5281 = vmatpush.msra.mxu0 %v1729
        %5282 = vmatpush.msra.mxu0 %v1721
        %5283 = vmatpush.msra.mxu0 %v1713
        %5284 = vmatmul.f32.gmra.mxu0 %v283
        %v5285 = vpop.f32.mrf.mxu0
        %v5286 = vadd.f32 %v5266, %v5285
        %5287 = vdwg.mxu0
        %5288 = vmatpush.msra.mxu0 %v1961
        %5289 = vmatpush.msra.mxu0 %v1953
        %5290 = vmatpush.msra.mxu0 %v1945
        %5291 = vmatpush.msra.mxu0 %v1937
        %5292 = vmatpush.msra.mxu0 %v1929
        %5293 = vmatpush.msra.mxu0 %v1921
        %5294 = vmatpush.msra.mxu0 %v1913
        %5295 = vmatpush.msra.mxu0 %v1905
        %5296 = vmatpush.msra.mxu0 %v1897
        %5297 = vmatpush.msra.mxu0 %v1889
        %5298 = vmatpush.msra.mxu0 %v1881
        %5299 = vmatpush.msra.mxu0 %v1873
        %5300 = vmatpush.msra.mxu0 %v1865
        %5301 = vmatpush.msra.mxu0 %v1857
        %5302 = vmatpush.msra.mxu0 %v1849
        %5303 = vmatpush.msra.mxu0 %v1841
        %5304 = vmatmul.f32.gmra.mxu0 %v284
        %v5305 = vpop.f32.mrf.mxu0
        %v5306 = vadd.f32 %v5286, %v5305
        %5307 = vdwg.mxu0
        %5308 = vmatpush.msra.mxu0 %v2089
        %5309 = vmatpush.msra.mxu0 %v2081
        %5310 = vmatpush.msra.mxu0 %v2073
        %5311 = vmatpush.msra.mxu0 %v2065
        %5312 = vmatpush.msra.mxu0 %v2057
        %5313 = vmatpush.msra.mxu0 %v2049
        %5314 = vmatpush.msra.mxu0 %v2041
        %5315 = vmatpush.msra.mxu0 %v2033
        %5316 = vmatpush.msra.mxu0 %v2025
        %5317 = vmatpush.msra.mxu0 %v2017
        %5318 = vmatpush.msra.mxu0 %v2009
        %5319 = vmatpush.msra.mxu0 %v2001
        %5320 = vmatpush.msra.mxu0 %v1993
        %5321 = vmatpush.msra.mxu0 %v1985
        %5322 = vmatpush.msra.mxu0 %v1977
        %5323 = vmatpush.msra.mxu0 %v1969
        %5324 = vmatmul.f32.gmra.mxu0 %v285
        %v5325 = vpop.f32.mrf.mxu0
        %v5326 = vadd.f32 %v5306, %v5325
        %5327 = vdwg.mxu0
        %5328 = vmatpush.msra.mxu0 %v2217
        %5329 = vmatpush.msra.mxu0 %v2209
        %5330 = vmatpush.msra.mxu0 %v2201
        %5331 = vmatpush.msra.mxu0 %v2193
        %5332 = vmatpush.msra.mxu0 %v2185
        %5333 = vmatpush.msra.mxu0 %v2177
        %5334 = vmatpush.msra.mxu0 %v2169
        %5335 = vmatpush.msra.mxu0 %v2161
        %5336 = vmatpush.msra.mxu0 %v2153
        %5337 = vmatpush.msra.mxu0 %v2145
        %5338 = vmatpush.msra.mxu0 %v2137
        %5339 = vmatpush.msra.mxu0 %v2129
        %5340 = vmatpush.msra.mxu0 %v2121
        %5341 = vmatpush.msra.mxu0 %v2113
        %5342 = vmatpush.msra.mxu0 %v2105
        %5343 = vmatpush.msra.mxu0 %v2097
        %5344 = vmatmul.f32.gmra.mxu0 %v286
        %v5345 = vpop.f32.mrf.mxu0
        %v5346 = vadd.f32 %v5326, %v5345
        %5347 = vdwg.mxu0
        %5348 = vmatpush.msra.mxu0 %v2345
        %5349 = vmatpush.msra.mxu0 %v2337
        %5350 = vmatpush.msra.mxu0 %v2329
        %5351 = vmatpush.msra.mxu0 %v2321
        %5352 = vmatpush.msra.mxu0 %v2313
        %5353 = vmatpush.msra.mxu0 %v2305
        %5354 = vmatpush.msra.mxu0 %v2297
        %5355 = vmatpush.msra.mxu0 %v2289
        %5356 = vmatpush.msra.mxu0 %v2281
        %5357 = vmatpush.msra.mxu0 %v2273
        %5358 = vmatpush.msra.mxu0 %v2265
        %5359 = vmatpush.msra.mxu0 %v2257
        %5360 = vmatpush.msra.mxu0 %v2249
        %5361 = vmatpush.msra.mxu0 %v2241
        %5362 = vmatpush.msra.mxu0 %v2233
        %5363 = vmatpush.msra.mxu0 %v2225
        %5364 = vmatmul.f32.gmra.mxu0 %v287
        %v5365 = vpop.f32.mrf.mxu0
        %v5366 = vadd.f32 %v5346, %v5365
        %5367 = vdwg.mxu0
        %5368 = vmatpush.msra.mxu0 %v2473
        %5369 = vmatpush.msra.mxu0 %v2465
        %5370 = vmatpush.msra.mxu0 %v2457
        %5371 = vmatpush.msra.mxu0 %v2449
        %5372 = vmatpush.msra.mxu0 %v2441
        %5373 = vmatpush.msra.mxu0 %v2433
        %5374 = vmatpush.msra.mxu0 %v2425
        %5375 = vmatpush.msra.mxu0 %v2417
        %5376 = vmatpush.msra.mxu0 %v2409
        %5377 = vmatpush.msra.mxu0 %v2401
        %5378 = vmatpush.msra.mxu0 %v2393
        %5379 = vmatpush.msra.mxu0 %v2385
        %5380 = vmatpush.msra.mxu0 %v2377
        %5381 = vmatpush.msra.mxu0 %v2369
        %5382 = vmatpush.msra.mxu0 %v2361
        %5383 = vmatpush.msra.mxu0 %v2353
        %5384 = vmatmul.f32.gmra.mxu0 %v288
        %v5385 = vpop.f32.mrf.mxu0
        %v5386 = vadd.f32 %v5366, %v5385
        %5387 = vdwg.mxu0
        %5388 = vmatpush.msra.mxu0 %v2601
        %5389 = vmatpush.msra.mxu0 %v2593
        %5390 = vmatpush.msra.mxu0 %v2585
        %5391 = vmatpush.msra.mxu0 %v2577
        %5392 = vmatpush.msra.mxu0 %v2569
        %5393 = vmatpush.msra.mxu0 %v2561
        %5394 = vmatpush.msra.mxu0 %v2553
        %5395 = vmatpush.msra.mxu0 %v2545
        %5396 = vmatpush.msra.mxu0 %v2537
        %5397 = vmatpush.msra.mxu0 %v2529
        %5398 = vmatpush.msra.mxu0 %v2521
        %5399 = vmatpush.msra.mxu0 %v2513
        %5400 = vmatpush.msra.mxu0 %v2505
        %5401 = vmatpush.msra.mxu0 %v2497
        %5402 = vmatpush.msra.mxu0 %v2489
        %5403 = vmatpush.msra.mxu0 %v2481
        %5404 = vmatmul.f32.gmra.mxu0 %v289
        %v5405 = vpop.f32.mrf.mxu0
        %v5406 = vadd.f32 %v5386, %v5405
        %5407 = vdwg.mxu0
        %5408 = vmatpush.msra.mxu0 %v2729
        %5409 = vmatpush.msra.mxu0 %v2721
        %5410 = vmatpush.msra.mxu0 %v2713
        %5411 = vmatpush.msra.mxu0 %v2705
        %5412 = vmatpush.msra.mxu0 %v2697
        %5413 = vmatpush.msra.mxu0 %v2689
        %5414 = vmatpush.msra.mxu0 %v2681
        %5415 = vmatpush.msra.mxu0 %v2673
        %5416 = vmatpush.msra.mxu0 %v2665
        %5417 = vmatpush.msra.mxu0 %v2657
        %5418 = vmatpush.msra.mxu0 %v2649
        %5419 = vmatpush.msra.mxu0 %v2641
        %5420 = vmatpush.msra.mxu0 %v2633
        %5421 = vmatpush.msra.mxu0 %v2625
        %5422 = vmatpush.msra.mxu0 %v2617
        %5423 = vmatpush.msra.mxu0 %v2609
        %5424 = vmatmul.f32.gmra.mxu0 %v290
        %v5425 = vpop.f32.mrf.mxu0
        %v5426 = vadd.f32 %v5406, %v5425
        %5427 = vdwg.mxu0
        %5428 = vmatpush.msra.mxu0 %v2857
        %5429 = vmatpush.msra.mxu0 %v2849
        %5430 = vmatpush.msra.mxu0 %v2841
        %5431 = vmatpush.msra.mxu0 %v2833
        %5432 = vmatpush.msra.mxu0 %v2825
        %5433 = vmatpush.msra.mxu0 %v2817
        %5434 = vmatpush.msra.mxu0 %v2809
        %5435 = vmatpush.msra.mxu0 %v2801
        %5436 = vmatpush.msra.mxu0 %v2793
        %5437 = vmatpush.msra.mxu0 %v2785
        %5438 = vmatpush.msra.mxu0 %v2777
        %5439 = vmatpush.msra.mxu0 %v2769
        %5440 = vmatpush.msra.mxu0 %v2761
        %5441 = vmatpush.msra.mxu0 %v2753
        %5442 = vmatpush.msra.mxu0 %v2745
        %5443 = vmatpush.msra.mxu0 %v2737
        %5444 = vmatmul.f32.gmra.mxu0 %v291
        %v5445 = vpop.f32.mrf.mxu0
        %v5446 = vadd.f32 %v5426, %v5445
        %5447 = vdwg.mxu0
        %5448 = vmatpush.msra.mxu0 %v2985
        %5449 = vmatpush.msra.mxu0 %v2977
        %5450 = vmatpush.msra.mxu0 %v2969
        %5451 = vmatpush.msra.mxu0 %v2961
        %5452 = vmatpush.msra.mxu0 %v2953
        %5453 = vmatpush.msra.mxu0 %v2945
        %5454 = vmatpush.msra.mxu0 %v2937
        %5455 = vmatpush.msra.mxu0 %v2929
        %5456 = vmatpush.msra.mxu0 %v2921
        %5457 = vmatpush.msra.mxu0 %v2913
        %5458 = vmatpush.msra.mxu0 %v2905
        %5459 = vmatpush.msra.mxu0 %v2897
        %5460 = vmatpush.msra.mxu0 %v2889
        %5461 = vmatpush.msra.mxu0 %v2881
        %5462 = vmatpush.msra.mxu0 %v2873
        %5463 = vmatpush.msra.mxu0 %v2865
        %5464 = vmatmul.f32.gmra.mxu0 %v292
        %v5465 = vpop.f32.mrf.mxu0
        %v5466 = vadd.f32 %v5446, %v5465
        %5467 = vdwg.mxu0
        %5468 = vmatpush.msra.mxu0 %v3113
        %5469 = vmatpush.msra.mxu0 %v3105
        %5470 = vmatpush.msra.mxu0 %v3097
        %5471 = vmatpush.msra.mxu0 %v3089
        %5472 = vmatpush.msra.mxu0 %v3081
        %5473 = vmatpush.msra.mxu0 %v3073
        %5474 = vmatpush.msra.mxu0 %v3065
        %5475 = vmatpush.msra.mxu0 %v3057
        %5476 = vmatpush.msra.mxu0 %v3049
        %5477 = vmatpush.msra.mxu0 %v3041
        %5478 = vmatpush.msra.mxu0 %v3033
        %5479 = vmatpush.msra.mxu0 %v3025
        %5480 = vmatpush.msra.mxu0 %v3017
        %5481 = vmatpush.msra.mxu0 %v3009
        %5482 = vmatpush.msra.mxu0 %v3001
        %5483 = vmatpush.msra.mxu0 %v2993
        %5484 = vmatmul.f32.gmra.mxu0 %v293
        %v5485 = vpop.f32.mrf.mxu0
        %v5486 = vadd.f32 %v5466, %v5485
        %5487 = vdwg.mxu0
        %5488 = vmatpush.msra.mxu0 %v3241
        %5489 = vmatpush.msra.mxu0 %v3233
        %5490 = vmatpush.msra.mxu0 %v3225
        %5491 = vmatpush.msra.mxu0 %v3217
        %5492 = vmatpush.msra.mxu0 %v3209
        %5493 = vmatpush.msra.mxu0 %v3201
        %5494 = vmatpush.msra.mxu0 %v3193
        %5495 = vmatpush.msra.mxu0 %v3185
        %5496 = vmatpush.msra.mxu0 %v3177
        %5497 = vmatpush.msra.mxu0 %v3169
        %5498 = vmatpush.msra.mxu0 %v3161
        %5499 = vmatpush.msra.mxu0 %v3153
        %5500 = vmatpush.msra.mxu0 %v3145
        %5501 = vmatpush.msra.mxu0 %v3137
        %5502 = vmatpush.msra.mxu0 %v3129
        %5503 = vmatpush.msra.mxu0 %v3121
        %5504 = vmatmul.f32.gmra.mxu0 %v294
        %v5505 = vpop.f32.mrf.mxu0
        %v5506 = vadd.f32 %v5486, %v5505
        %5507 = vdwg.mxu0
        %5508 = vmatpush.msra.mxu0 %v3369
        %5509 = vmatpush.msra.mxu0 %v3361
        %5510 = vmatpush.msra.mxu0 %v3353
        %5511 = vmatpush.msra.mxu0 %v3345
        %5512 = vmatpush.msra.mxu0 %v3337
        %5513 = vmatpush.msra.mxu0 %v3329
        %5514 = vmatpush.msra.mxu0 %v3321
        %5515 = vmatpush.msra.mxu0 %v3313
        %5516 = vmatpush.msra.mxu0 %v3305
        %5517 = vmatpush.msra.mxu0 %v3297
        %5518 = vmatpush.msra.mxu0 %v3289
        %5519 = vmatpush.msra.mxu0 %v3281
        %5520 = vmatpush.msra.mxu0 %v3273
        %5521 = vmatpush.msra.mxu0 %v3265
        %5522 = vmatpush.msra.mxu0 %v3257
        %5523 = vmatpush.msra.mxu0 %v3249
        %5524 = vmatmul.f32.gmra.mxu0 %v295
        %v5525 = vpop.f32.mrf.mxu0
        %v5526 = vadd.f32 %v5506, %v5525
        %5527 = vdwg.mxu0
        %5528 = vmatpush.msra.mxu0 %v3497
        %5529 = vmatpush.msra.mxu0 %v3489
        %5530 = vmatpush.msra.mxu0 %v3481
        %5531 = vmatpush.msra.mxu0 %v3473
        %5532 = vmatpush.msra.mxu0 %v3465
        %5533 = vmatpush.msra.mxu0 %v3457
        %5534 = vmatpush.msra.mxu0 %v3449
        %5535 = vmatpush.msra.mxu0 %v3441
        %5536 = vmatpush.msra.mxu0 %v3433
        %5537 = vmatpush.msra.mxu0 %v3425
        %5538 = vmatpush.msra.mxu0 %v3417
        %5539 = vmatpush.msra.mxu0 %v3409
        %5540 = vmatpush.msra.mxu0 %v3401
        %5541 = vmatpush.msra.mxu0 %v3393
        %5542 = vmatpush.msra.mxu0 %v3385
        %5543 = vmatpush.msra.mxu0 %v3377
        %5544 = vmatmul.f32.gmra.mxu0 %v296
        %v5545 = vpop.f32.mrf.mxu0
        %v5546 = vadd.f32 %v5526, %v5545
        %5547 = vdwg.mxu0
        %5548 = vmatpush.msra.mxu0 %v3625
        %5549 = vmatpush.msra.mxu0 %v3617
        %5550 = vmatpush.msra.mxu0 %v3609
        %5551 = vmatpush.msra.mxu0 %v3601
        %5552 = vmatpush.msra.mxu0 %v3593
        %5553 = vmatpush.msra.mxu0 %v3585
        %5554 = vmatpush.msra.mxu0 %v3577
        %5555 = vmatpush.msra.mxu0 %v3569
        %5556 = vmatpush.msra.mxu0 %v3561
        %5557 = vmatpush.msra.mxu0 %v3553
        %5558 = vmatpush.msra.mxu0 %v3545
        %5559 = vmatpush.msra.mxu0 %v3537
        %5560 = vmatpush.msra.mxu0 %v3529
        %5561 = vmatpush.msra.mxu0 %v3521
        %5562 = vmatpush.msra.mxu0 %v3513
        %5563 = vmatpush.msra.mxu0 %v3505
        %5564 = vmatmul.f32.gmra.mxu0 %v297
        %v5565 = vpop.f32.mrf.mxu0
        %v5566 = vadd.f32 %v5546, %v5565
        %5567 = vdwg.mxu0
        %5568 = vmatpush.msra.mxu0 %v3753
        %5569 = vmatpush.msra.mxu0 %v3745
        %5570 = vmatpush.msra.mxu0 %v3737
        %5571 = vmatpush.msra.mxu0 %v3729
        %5572 = vmatpush.msra.mxu0 %v3721
        %5573 = vmatpush.msra.mxu0 %v3713
        %5574 = vmatpush.msra.mxu0 %v3705
        %5575 = vmatpush.msra.mxu0 %v3697
        %5576 = vmatpush.msra.mxu0 %v3689
        %5577 = vmatpush.msra.mxu0 %v3681
        %5578 = vmatpush.msra.mxu0 %v3673
        %5579 = vmatpush.msra.mxu0 %v3665
        %5580 = vmatpush.msra.mxu0 %v3657
        %5581 = vmatpush.msra.mxu0 %v3649
        %5582 = vmatpush.msra.mxu0 %v3641
        %5583 = vmatpush.msra.mxu0 %v3633
        %5584 = vmatmul.f32.gmra.mxu0 %v298
        %v5585 = vpop.f32.mrf.mxu0
        %v5586 = vadd.f32 %v5566, %v5585
        %5587 = vdwg.mxu0
        %5588 = vmatpush.msra.mxu0 %v3881
        %5589 = vmatpush.msra.mxu0 %v3873
        %5590 = vmatpush.msra.mxu0 %v3865
        %5591 = vmatpush.msra.mxu0 %v3857
        %5592 = vmatpush.msra.mxu0 %v3849
        %5593 = vmatpush.msra.mxu0 %v3841
        %5594 = vmatpush.msra.mxu0 %v3833
        %5595 = vmatpush.msra.mxu0 %v3825
        %5596 = vmatpush.msra.mxu0 %v3817
        %5597 = vmatpush.msra.mxu0 %v3809
        %5598 = vmatpush.msra.mxu0 %v3801
        %5599 = vmatpush.msra.mxu0 %v3793
        %5600 = vmatpush.msra.mxu0 %v3785
        %5601 = vmatpush.msra.mxu0 %v3777
        %5602 = vmatpush.msra.mxu0 %v3769
        %5603 = vmatpush.msra.mxu0 %v3761
        %5604 = vmatmul.f32.gmra.mxu0 %v299
        %v5605 = vpop.f32.mrf.mxu0
        %v5606 = vadd.f32 %v5586, %v5605
        %5607 = vdwg.mxu0
        %5608 = vmatpush.msra.mxu0 %v4009
        %5609 = vmatpush.msra.mxu0 %v4001
        %5610 = vmatpush.msra.mxu0 %v3993
        %5611 = vmatpush.msra.mxu0 %v3985
        %5612 = vmatpush.msra.mxu0 %v3977
        %5613 = vmatpush.msra.mxu0 %v3969
        %5614 = vmatpush.msra.mxu0 %v3961
        %5615 = vmatpush.msra.mxu0 %v3953
        %5616 = vmatpush.msra.mxu0 %v3945
        %5617 = vmatpush.msra.mxu0 %v3937
        %5618 = vmatpush.msra.mxu0 %v3929
        %5619 = vmatpush.msra.mxu0 %v3921
        %5620 = vmatpush.msra.mxu0 %v3913
        %5621 = vmatpush.msra.mxu0 %v3905
        %5622 = vmatpush.msra.mxu0 %v3897
        %5623 = vmatpush.msra.mxu0 %v3889
        %5624 = vmatmul.f32.gmra.mxu0 %v300
        %v5625 = vpop.f32.mrf.mxu0
        %v5626 = vadd.f32 %v5606, %v5625
        %5627 = vdwg.mxu0
        %5628 = vmatpush.msra.mxu0 %v4137
        %5629 = vmatpush.msra.mxu0 %v4129
        %5630 = vmatpush.msra.mxu0 %v4121
        %5631 = vmatpush.msra.mxu0 %v4113
        %5632 = vmatpush.msra.mxu0 %v4105
        %5633 = vmatpush.msra.mxu0 %v4097
        %5634 = vmatpush.msra.mxu0 %v4089
        %5635 = vmatpush.msra.mxu0 %v4081
        %5636 = vmatpush.msra.mxu0 %v4073
        %5637 = vmatpush.msra.mxu0 %v4065
        %5638 = vmatpush.msra.mxu0 %v4057
        %5639 = vmatpush.msra.mxu0 %v4049
        %5640 = vmatpush.msra.mxu0 %v4041
        %5641 = vmatpush.msra.mxu0 %v4033
        %5642 = vmatpush.msra.mxu0 %v4025
        %5643 = vmatpush.msra.mxu0 %v4017
        %5644 = vmatmul.f32.gmra.mxu0 %v301
        %v5645 = vpop.f32.mrf.mxu0
        %v5646 = vadd.f32 %v5626, %v5645
        %5647 = vdwg.mxu0
        %5648 = vmatpush.msra.mxu0 %v4265
        %5649 = vmatpush.msra.mxu0 %v4257
        %5650 = vmatpush.msra.mxu0 %v4249
        %5651 = vmatpush.msra.mxu0 %v4241
        %5652 = vmatpush.msra.mxu0 %v4233
        %5653 = vmatpush.msra.mxu0 %v4225
        %5654 = vmatpush.msra.mxu0 %v4217
        %5655 = vmatpush.msra.mxu0 %v4209
        %5656 = vmatpush.msra.mxu0 %v4201
        %5657 = vmatpush.msra.mxu0 %v4193
        %5658 = vmatpush.msra.mxu0 %v4185
        %5659 = vmatpush.msra.mxu0 %v4177
        %5660 = vmatpush.msra.mxu0 %v4169
        %5661 = vmatpush.msra.mxu0 %v4161
        %5662 = vmatpush.msra.mxu0 %v4153
        %5663 = vmatpush.msra.mxu0 %v4145
        %5664 = vmatmul.f32.gmra.mxu0 %v302
        %v5665 = vpop.f32.mrf.mxu0
        %v5666 = vadd.f32 %v5646, %v5665
        %5667 = vdwg.mxu0
        %5668 = vmatpush.msra.mxu0 %v4393
        %5669 = vmatpush.msra.mxu0 %v4385
        %5670 = vmatpush.msra.mxu0 %v4377
        %5671 = vmatpush.msra.mxu0 %v4369
        %5672 = vmatpush.msra.mxu0 %v4361
        %5673 = vmatpush.msra.mxu0 %v4353
        %5674 = vmatpush.msra.mxu0 %v4345
        %5675 = vmatpush.msra.mxu0 %v4337
        %5676 = vmatpush.msra.mxu0 %v4329
        %5677 = vmatpush.msra.mxu0 %v4321
        %5678 = vmatpush.msra.mxu0 %v4313
        %5679 = vmatpush.msra.mxu0 %v4305
        %5680 = vmatpush.msra.mxu0 %v4297
        %5681 = vmatpush.msra.mxu0 %v4289
        %5682 = vmatpush.msra.mxu0 %v4281
        %5683 = vmatpush.msra.mxu0 %v4273
        %5684 = vmatmul.f32.gmra.mxu0 %v303
        %v5685 = vpop.f32.mrf.mxu0
        %v5686 = vadd.f32 %v5666, %v5685
        %5687 = vdwg.mxu0
        %5688 = vmatpush.msra.mxu0 %v426
        %5689 = vmatpush.msra.mxu0 %v418
        %5690 = vmatpush.msra.mxu0 %v410
        %5691 = vmatpush.msra.mxu0 %v402
        %5692 = vmatpush.msra.mxu0 %v394
        %5693 = vmatpush.msra.mxu0 %v386
        %5694 = vmatpush.msra.mxu0 %v378
        %5695 = vmatpush.msra.mxu0 %v370
        %5696 = vmatpush.msra.mxu0 %v362
        %5697 = vmatpush.msra.mxu0 %v354
        %5698 = vmatpush.msra.mxu0 %v346
        %5699 = vmatpush.msra.mxu0 %v338
        %5700 = vmatpush.msra.mxu0 %v330
        %5701 = vmatpush.msra.mxu0 %v322
        %5702 = vmatpush.msra.mxu0 %v314
        %5703 = vmatpush.msra.mxu0 %v306
        %5704 = vmatmul.f32.gmra.mxu0 %v272
        %v5705 = vpop.f32.mrf.mxu0
        %v5706 = vadd.f32 %v4402, %v5705
        %5707 = vdwg.mxu0
        %5708 = vmatpush.msra.mxu0 %v554
        %5709 = vmatpush.msra.mxu0 %v546
        %5710 = vmatpush.msra.mxu0 %v538
        %5711 = vmatpush.msra.mxu0 %v530
        %5712 = vmatpush.msra.mxu0 %v522
        %5713 = vmatpush.msra.mxu0 %v514
        %5714 = vmatpush.msra.mxu0 %v506
        %5715 = vmatpush.msra.mxu0 %v498
        %5716 = vmatpush.msra.mxu0 %v490
        %5717 = vmatpush.msra.mxu0 %v482
        %5718 = vmatpush.msra.mxu0 %v474
        %5719 = vmatpush.msra.mxu0 %v466
        %5720 = vmatpush.msra.mxu0 %v458
        %5721 = vmatpush.msra.mxu0 %v450
        %5722 = vmatpush.msra.mxu0 %v442
        %5723 = vmatpush.msra.mxu0 %v434
        %5724 = vmatmul.f32.gmra.mxu0 %v273
        %v5725 = vpop.f32.mrf.mxu0
        %v5726 = vadd.f32 %v5706, %v5725
        %5727 = vdwg.mxu0
        %5728 = vmatpush.msra.mxu0 %v682
        %5729 = vmatpush.msra.mxu0 %v674
        %5730 = vmatpush.msra.mxu0 %v666
        %5731 = vmatpush.msra.mxu0 %v658
        %5732 = vmatpush.msra.mxu0 %v650
        %5733 = vmatpush.msra.mxu0 %v642
        %5734 = vmatpush.msra.mxu0 %v634
        %5735 = vmatpush.msra.mxu0 %v626
        %5736 = vmatpush.msra.mxu0 %v618
        %5737 = vmatpush.msra.mxu0 %v610
        %5738 = vmatpush.msra.mxu0 %v602
        %5739 = vmatpush.msra.mxu0 %v594
        %5740 = vmatpush.msra.mxu0 %v586
        %5741 = vmatpush.msra.mxu0 %v578
        %5742 = vmatpush.msra.mxu0 %v570
        %5743 = vmatpush.msra.mxu0 %v562
        %5744 = vmatmul.f32.gmra.mxu0 %v274
        %v5745 = vpop.f32.mrf.mxu0
        %v5746 = vadd.f32 %v5726, %v5745
        %5747 = vdwg.mxu0
        %5748 = vmatpush.msra.mxu0 %v810
        %5749 = vmatpush.msra.mxu0 %v802
        %5750 = vmatpush.msra.mxu0 %v794
        %5751 = vmatpush.msra.mxu0 %v786
        %5752 = vmatpush.msra.mxu0 %v778
        %5753 = vmatpush.msra.mxu0 %v770
        %5754 = vmatpush.msra.mxu0 %v762
        %5755 = vmatpush.msra.mxu0 %v754
        %5756 = vmatpush.msra.mxu0 %v746
        %5757 = vmatpush.msra.mxu0 %v738
        %5758 = vmatpush.msra.mxu0 %v730
        %5759 = vmatpush.msra.mxu0 %v722
        %5760 = vmatpush.msra.mxu0 %v714
        %5761 = vmatpush.msra.mxu0 %v706
        %5762 = vmatpush.msra.mxu0 %v698
        %5763 = vmatpush.msra.mxu0 %v690
        %5764 = vmatmul.f32.gmra.mxu0 %v275
        %v5765 = vpop.f32.mrf.mxu0
        %v5766 = vadd.f32 %v5746, %v5765
        %5767 = vdwg.mxu0
        %5768 = vmatpush.msra.mxu0 %v938
        %5769 = vmatpush.msra.mxu0 %v930
        %5770 = vmatpush.msra.mxu0 %v922
        %5771 = vmatpush.msra.mxu0 %v914
        %5772 = vmatpush.msra.mxu0 %v906
        %5773 = vmatpush.msra.mxu0 %v898
        %5774 = vmatpush.msra.mxu0 %v890
        %5775 = vmatpush.msra.mxu0 %v882
        %5776 = vmatpush.msra.mxu0 %v874
        %5777 = vmatpush.msra.mxu0 %v866
        %5778 = vmatpush.msra.mxu0 %v858
        %5779 = vmatpush.msra.mxu0 %v850
        %5780 = vmatpush.msra.mxu0 %v842
        %5781 = vmatpush.msra.mxu0 %v834
        %5782 = vmatpush.msra.mxu0 %v826
        %5783 = vmatpush.msra.mxu0 %v818
        %5784 = vmatmul.f32.gmra.mxu0 %v276
        %v5785 = vpop.f32.mrf.mxu0
        %v5786 = vadd.f32 %v5766, %v5785
        %5787 = vdwg.mxu0
        %5788 = vmatpush.msra.mxu0 %v1066
        %5789 = vmatpush.msra.mxu0 %v1058
        %5790 = vmatpush.msra.mxu0 %v1050
        %5791 = vmatpush.msra.mxu0 %v1042
        %5792 = vmatpush.msra.mxu0 %v1034
        %5793 = vmatpush.msra.mxu0 %v1026
        %5794 = vmatpush.msra.mxu0 %v1018
        %5795 = vmatpush.msra.mxu0 %v1010
        %5796 = vmatpush.msra.mxu0 %v1002
        %5797 = vmatpush.msra.mxu0 %v994
        %5798 = vmatpush.msra.mxu0 %v986
        %5799 = vmatpush.msra.mxu0 %v978
        %5800 = vmatpush.msra.mxu0 %v970
        %5801 = vmatpush.msra.mxu0 %v962
        %5802 = vmatpush.msra.mxu0 %v954
        %5803 = vmatpush.msra.mxu0 %v946
        %5804 = vmatmul.f32.gmra.mxu0 %v277
        %v5805 = vpop.f32.mrf.mxu0
        %v5806 = vadd.f32 %v5786, %v5805
        %5807 = vdwg.mxu0
        %5808 = vmatpush.msra.mxu0 %v1194
        %5809 = vmatpush.msra.mxu0 %v1186
        %5810 = vmatpush.msra.mxu0 %v1178
        %5811 = vmatpush.msra.mxu0 %v1170
        %5812 = vmatpush.msra.mxu0 %v1162
        %5813 = vmatpush.msra.mxu0 %v1154
        %5814 = vmatpush.msra.mxu0 %v1146
        %5815 = vmatpush.msra.mxu0 %v1138
        %5816 = vmatpush.msra.mxu0 %v1130
        %5817 = vmatpush.msra.mxu0 %v1122
        %5818 = vmatpush.msra.mxu0 %v1114
        %5819 = vmatpush.msra.mxu0 %v1106
        %5820 = vmatpush.msra.mxu0 %v1098
        %5821 = vmatpush.msra.mxu0 %v1090
        %5822 = vmatpush.msra.mxu0 %v1082
        %5823 = vmatpush.msra.mxu0 %v1074
        %5824 = vmatmul.f32.gmra.mxu0 %v278
        %v5825 = vpop.f32.mrf.mxu0
        %v5826 = vadd.f32 %v5806, %v5825
        %5827 = vdwg.mxu0
        %5828 = vmatpush.msra.mxu0 %v1322
        %5829 = vmatpush.msra.mxu0 %v1314
        %5830 = vmatpush.msra.mxu0 %v1306
        %5831 = vmatpush.msra.mxu0 %v1298
        %5832 = vmatpush.msra.mxu0 %v1290
        %5833 = vmatpush.msra.mxu0 %v1282
        %5834 = vmatpush.msra.mxu0 %v1274
        %5835 = vmatpush.msra.mxu0 %v1266
        %5836 = vmatpush.msra.mxu0 %v1258
        %5837 = vmatpush.msra.mxu0 %v1250
        %5838 = vmatpush.msra.mxu0 %v1242
        %5839 = vmatpush.msra.mxu0 %v1234
        %5840 = vmatpush.msra.mxu0 %v1226
        %5841 = vmatpush.msra.mxu0 %v1218
        %5842 = vmatpush.msra.mxu0 %v1210
        %5843 = vmatpush.msra.mxu0 %v1202
        %5844 = vmatmul.f32.gmra.mxu0 %v279
        %v5845 = vpop.f32.mrf.mxu0
        %v5846 = vadd.f32 %v5826, %v5845
        %5847 = vdwg.mxu0
        %5848 = vmatpush.msra.mxu0 %v1450
        %5849 = vmatpush.msra.mxu0 %v1442
        %5850 = vmatpush.msra.mxu0 %v1434
        %5851 = vmatpush.msra.mxu0 %v1426
        %5852 = vmatpush.msra.mxu0 %v1418
        %5853 = vmatpush.msra.mxu0 %v1410
        %5854 = vmatpush.msra.mxu0 %v1402
        %5855 = vmatpush.msra.mxu0 %v1394
        %5856 = vmatpush.msra.mxu0 %v1386
        %5857 = vmatpush.msra.mxu0 %v1378
        %5858 = vmatpush.msra.mxu0 %v1370
        %5859 = vmatpush.msra.mxu0 %v1362
        %5860 = vmatpush.msra.mxu0 %v1354
        %5861 = vmatpush.msra.mxu0 %v1346
        %5862 = vmatpush.msra.mxu0 %v1338
        %5863 = vmatpush.msra.mxu0 %v1330
        %5864 = vmatmul.f32.gmra.mxu0 %v280
        %v5865 = vpop.f32.mrf.mxu0
        %v5866 = vadd.f32 %v5846, %v5865
        %5867 = vdwg.mxu0
        %5868 = vmatpush.msra.mxu0 %v1578
        %5869 = vmatpush.msra.mxu0 %v1570
        %5870 = vmatpush.msra.mxu0 %v1562
        %5871 = vmatpush.msra.mxu0 %v1554
        %5872 = vmatpush.msra.mxu0 %v1546
        %5873 = vmatpush.msra.mxu0 %v1538
        %5874 = vmatpush.msra.mxu0 %v1530
        %5875 = vmatpush.msra.mxu0 %v1522
        %5876 = vmatpush.msra.mxu0 %v1514
        %5877 = vmatpush.msra.mxu0 %v1506
        %5878 = vmatpush.msra.mxu0 %v1498
        %5879 = vmatpush.msra.mxu0 %v1490
        %5880 = vmatpush.msra.mxu0 %v1482
        %5881 = vmatpush.msra.mxu0 %v1474
        %5882 = vmatpush.msra.mxu0 %v1466
        %5883 = vmatpush.msra.mxu0 %v1458
        %5884 = vmatmul.f32.gmra.mxu0 %v281
        %v5885 = vpop.f32.mrf.mxu0
        %v5886 = vadd.f32 %v5866, %v5885
        %5887 = vdwg.mxu0
        %5888 = vmatpush.msra.mxu0 %v1706
        %5889 = vmatpush.msra.mxu0 %v1698
        %5890 = vmatpush.msra.mxu0 %v1690
        %5891 = vmatpush.msra.mxu0 %v1682
        %5892 = vmatpush.msra.mxu0 %v1674
        %5893 = vmatpush.msra.mxu0 %v1666
        %5894 = vmatpush.msra.mxu0 %v1658
        %5895 = vmatpush.msra.mxu0 %v1650
        %5896 = vmatpush.msra.mxu0 %v1642
        %5897 = vmatpush.msra.mxu0 %v1634
        %5898 = vmatpush.msra.mxu0 %v1626
        %5899 = vmatpush.msra.mxu0 %v1618
        %5900 = vmatpush.msra.mxu0 %v1610
        %5901 = vmatpush.msra.mxu0 %v1602
        %5902 = vmatpush.msra.mxu0 %v1594
        %5903 = vmatpush.msra.mxu0 %v1586
        %5904 = vmatmul.f32.gmra.mxu0 %v282
        %v5905 = vpop.f32.mrf.mxu0
        %v5906 = vadd.f32 %v5886, %v5905
        %5907 = vdwg.mxu0
        %5908 = vmatpush.msra.mxu0 %v1834
        %5909 = vmatpush.msra.mxu0 %v1826
        %5910 = vmatpush.msra.mxu0 %v1818
        %5911 = vmatpush.msra.mxu0 %v1810
        %5912 = vmatpush.msra.mxu0 %v1802
        %5913 = vmatpush.msra.mxu0 %v1794
        %5914 = vmatpush.msra.mxu0 %v1786
        %5915 = vmatpush.msra.mxu0 %v1778
        %5916 = vmatpush.msra.mxu0 %v1770
        %5917 = vmatpush.msra.mxu0 %v1762
        %5918 = vmatpush.msra.mxu0 %v1754
        %5919 = vmatpush.msra.mxu0 %v1746
        %5920 = vmatpush.msra.mxu0 %v1738
        %5921 = vmatpush.msra.mxu0 %v1730
        %5922 = vmatpush.msra.mxu0 %v1722
        %5923 = vmatpush.msra.mxu0 %v1714
        %5924 = vmatmul.f32.gmra.mxu0 %v283
        %v5925 = vpop.f32.mrf.mxu0
        %v5926 = vadd.f32 %v5906, %v5925
        %5927 = vdwg.mxu0
        %5928 = vmatpush.msra.mxu0 %v1962
        %5929 = vmatpush.msra.mxu0 %v1954
        %5930 = vmatpush.msra.mxu0 %v1946
        %5931 = vmatpush.msra.mxu0 %v1938
        %5932 = vmatpush.msra.mxu0 %v1930
        %5933 = vmatpush.msra.mxu0 %v1922
        %5934 = vmatpush.msra.mxu0 %v1914
        %5935 = vmatpush.msra.mxu0 %v1906
        %5936 = vmatpush.msra.mxu0 %v1898
        %5937 = vmatpush.msra.mxu0 %v1890
        %5938 = vmatpush.msra.mxu0 %v1882
        %5939 = vmatpush.msra.mxu0 %v1874
        %5940 = vmatpush.msra.mxu0 %v1866
        %5941 = vmatpush.msra.mxu0 %v1858
        %5942 = vmatpush.msra.mxu0 %v1850
        %5943 = vmatpush.msra.mxu0 %v1842
        %5944 = vmatmul.f32.gmra.mxu0 %v284
        %v5945 = vpop.f32.mrf.mxu0
        %v5946 = vadd.f32 %v5926, %v5945
        %5947 = vdwg.mxu0
        %5948 = vmatpush.msra.mxu0 %v2090
        %5949 = vmatpush.msra.mxu0 %v2082
        %5950 = vmatpush.msra.mxu0 %v2074
        %5951 = vmatpush.msra.mxu0 %v2066
        %5952 = vmatpush.msra.mxu0 %v2058
        %5953 = vmatpush.msra.mxu0 %v2050
        %5954 = vmatpush.msra.mxu0 %v2042
        %5955 = vmatpush.msra.mxu0 %v2034
        %5956 = vmatpush.msra.mxu0 %v2026
        %5957 = vmatpush.msra.mxu0 %v2018
        %5958 = vmatpush.msra.mxu0 %v2010
        %5959 = vmatpush.msra.mxu0 %v2002
        %5960 = vmatpush.msra.mxu0 %v1994
        %5961 = vmatpush.msra.mxu0 %v1986
        %5962 = vmatpush.msra.mxu0 %v1978
        %5963 = vmatpush.msra.mxu0 %v1970
        %5964 = vmatmul.f32.gmra.mxu0 %v285
        %v5965 = vpop.f32.mrf.mxu0
        %v5966 = vadd.f32 %v5946, %v5965
        %5967 = vdwg.mxu0
        %5968 = vmatpush.msra.mxu0 %v2218
        %5969 = vmatpush.msra.mxu0 %v2210
        %5970 = vmatpush.msra.mxu0 %v2202
        %5971 = vmatpush.msra.mxu0 %v2194
        %5972 = vmatpush.msra.mxu0 %v2186
        %5973 = vmatpush.msra.mxu0 %v2178
        %5974 = vmatpush.msra.mxu0 %v2170
        %5975 = vmatpush.msra.mxu0 %v2162
        %5976 = vmatpush.msra.mxu0 %v2154
        %5977 = vmatpush.msra.mxu0 %v2146
        %5978 = vmatpush.msra.mxu0 %v2138
        %5979 = vmatpush.msra.mxu0 %v2130
        %5980 = vmatpush.msra.mxu0 %v2122
        %5981 = vmatpush.msra.mxu0 %v2114
        %5982 = vmatpush.msra.mxu0 %v2106
        %5983 = vmatpush.msra.mxu0 %v2098
        %5984 = vmatmul.f32.gmra.mxu0 %v286
        %v5985 = vpop.f32.mrf.mxu0
        %v5986 = vadd.f32 %v5966, %v5985
        %5987 = vdwg.mxu0
        %5988 = vmatpush.msra.mxu0 %v2346
        %5989 = vmatpush.msra.mxu0 %v2338
        %5990 = vmatpush.msra.mxu0 %v2330
        %5991 = vmatpush.msra.mxu0 %v2322
        %5992 = vmatpush.msra.mxu0 %v2314
        %5993 = vmatpush.msra.mxu0 %v2306
        %5994 = vmatpush.msra.mxu0 %v2298
        %5995 = vmatpush.msra.mxu0 %v2290
        %5996 = vmatpush.msra.mxu0 %v2282
        %5997 = vmatpush.msra.mxu0 %v2274
        %5998 = vmatpush.msra.mxu0 %v2266
        %5999 = vmatpush.msra.mxu0 %v2258
        %6000 = vmatpush.msra.mxu0 %v2250
        %6001 = vmatpush.msra.mxu0 %v2242
        %6002 = vmatpush.msra.mxu0 %v2234
        %6003 = vmatpush.msra.mxu0 %v2226
        %6004 = vmatmul.f32.gmra.mxu0 %v287
        %v6005 = vpop.f32.mrf.mxu0
        %v6006 = vadd.f32 %v5986, %v6005
        %6007 = vdwg.mxu0
        %6008 = vmatpush.msra.mxu0 %v2474
        %6009 = vmatpush.msra.mxu0 %v2466
        %6010 = vmatpush.msra.mxu0 %v2458
        %6011 = vmatpush.msra.mxu0 %v2450
        %6012 = vmatpush.msra.mxu0 %v2442
        %6013 = vmatpush.msra.mxu0 %v2434
        %6014 = vmatpush.msra.mxu0 %v2426
        %6015 = vmatpush.msra.mxu0 %v2418
        %6016 = vmatpush.msra.mxu0 %v2410
        %6017 = vmatpush.msra.mxu0 %v2402
        %6018 = vmatpush.msra.mxu0 %v2394
        %6019 = vmatpush.msra.mxu0 %v2386
        %6020 = vmatpush.msra.mxu0 %v2378
        %6021 = vmatpush.msra.mxu0 %v2370
        %6022 = vmatpush.msra.mxu0 %v2362
        %6023 = vmatpush.msra.mxu0 %v2354
        %6024 = vmatmul.f32.gmra.mxu0 %v288
        %v6025 = vpop.f32.mrf.mxu0
        %v6026 = vadd.f32 %v6006, %v6025
        %6027 = vdwg.mxu0
        %6028 = vmatpush.msra.mxu0 %v2602
        %6029 = vmatpush.msra.mxu0 %v2594
        %6030 = vmatpush.msra.mxu0 %v2586
        %6031 = vmatpush.msra.mxu0 %v2578
        %6032 = vmatpush.msra.mxu0 %v2570
        %6033 = vmatpush.msra.mxu0 %v2562
        %6034 = vmatpush.msra.mxu0 %v2554
        %6035 = vmatpush.msra.mxu0 %v2546
        %6036 = vmatpush.msra.mxu0 %v2538
        %6037 = vmatpush.msra.mxu0 %v2530
        %6038 = vmatpush.msra.mxu0 %v2522
        %6039 = vmatpush.msra.mxu0 %v2514
        %6040 = vmatpush.msra.mxu0 %v2506
        %6041 = vmatpush.msra.mxu0 %v2498
        %6042 = vmatpush.msra.mxu0 %v2490
        %6043 = vmatpush.msra.mxu0 %v2482
        %6044 = vmatmul.f32.gmra.mxu0 %v289
        %v6045 = vpop.f32.mrf.mxu0
        %v6046 = vadd.f32 %v6026, %v6045
        %6047 = vdwg.mxu0
        %6048 = vmatpush.msra.mxu0 %v2730
        %6049 = vmatpush.msra.mxu0 %v2722
        %6050 = vmatpush.msra.mxu0 %v2714
        %6051 = vmatpush.msra.mxu0 %v2706
        %6052 = vmatpush.msra.mxu0 %v2698
        %6053 = vmatpush.msra.mxu0 %v2690
        %6054 = vmatpush.msra.mxu0 %v2682
        %6055 = vmatpush.msra.mxu0 %v2674
        %6056 = vmatpush.msra.mxu0 %v2666
        %6057 = vmatpush.msra.mxu0 %v2658
        %6058 = vmatpush.msra.mxu0 %v2650
        %6059 = vmatpush.msra.mxu0 %v2642
        %6060 = vmatpush.msra.mxu0 %v2634
        %6061 = vmatpush.msra.mxu0 %v2626
        %6062 = vmatpush.msra.mxu0 %v2618
        %6063 = vmatpush.msra.mxu0 %v2610
        %6064 = vmatmul.f32.gmra.mxu0 %v290
        %v6065 = vpop.f32.mrf.mxu0
        %v6066 = vadd.f32 %v6046, %v6065
        %6067 = vdwg.mxu0
        %6068 = vmatpush.msra.mxu0 %v2858
        %6069 = vmatpush.msra.mxu0 %v2850
        %6070 = vmatpush.msra.mxu0 %v2842
        %6071 = vmatpush.msra.mxu0 %v2834
        %6072 = vmatpush.msra.mxu0 %v2826
        %6073 = vmatpush.msra.mxu0 %v2818
        %6074 = vmatpush.msra.mxu0 %v2810
        %6075 = vmatpush.msra.mxu0 %v2802
        %6076 = vmatpush.msra.mxu0 %v2794
        %6077 = vmatpush.msra.mxu0 %v2786
        %6078 = vmatpush.msra.mxu0 %v2778
        %6079 = vmatpush.msra.mxu0 %v2770
        %6080 = vmatpush.msra.mxu0 %v2762
        %6081 = vmatpush.msra.mxu0 %v2754
        %6082 = vmatpush.msra.mxu0 %v2746
        %6083 = vmatpush.msra.mxu0 %v2738
        %6084 = vmatmul.f32.gmra.mxu0 %v291
        %v6085 = vpop.f32.mrf.mxu0
        %v6086 = vadd.f32 %v6066, %v6085
        %6087 = vdwg.mxu0
        %6088 = vmatpush.msra.mxu0 %v2986
        %6089 = vmatpush.msra.mxu0 %v2978
        %6090 = vmatpush.msra.mxu0 %v2970
        %6091 = vmatpush.msra.mxu0 %v2962
        %6092 = vmatpush.msra.mxu0 %v2954
        %6093 = vmatpush.msra.mxu0 %v2946
        %6094 = vmatpush.msra.mxu0 %v2938
        %6095 = vmatpush.msra.mxu0 %v2930
        %6096 = vmatpush.msra.mxu0 %v2922
        %6097 = vmatpush.msra.mxu0 %v2914
        %6098 = vmatpush.msra.mxu0 %v2906
        %6099 = vmatpush.msra.mxu0 %v2898
        %6100 = vmatpush.msra.mxu0 %v2890
        %6101 = vmatpush.msra.mxu0 %v2882
        %6102 = vmatpush.msra.mxu0 %v2874
        %6103 = vmatpush.msra.mxu0 %v2866
        %6104 = vmatmul.f32.gmra.mxu0 %v292
        %v6105 = vpop.f32.mrf.mxu0
        %v6106 = vadd.f32 %v6086, %v6105
        %6107 = vdwg.mxu0
        %6108 = vmatpush.msra.mxu0 %v3114
        %6109 = vmatpush.msra.mxu0 %v3106
        %6110 = vmatpush.msra.mxu0 %v3098
        %6111 = vmatpush.msra.mxu0 %v3090
        %6112 = vmatpush.msra.mxu0 %v3082
        %6113 = vmatpush.msra.mxu0 %v3074
        %6114 = vmatpush.msra.mxu0 %v3066
        %6115 = vmatpush.msra.mxu0 %v3058
        %6116 = vmatpush.msra.mxu0 %v3050
        %6117 = vmatpush.msra.mxu0 %v3042
        %6118 = vmatpush.msra.mxu0 %v3034
        %6119 = vmatpush.msra.mxu0 %v3026
        %6120 = vmatpush.msra.mxu0 %v3018
        %6121 = vmatpush.msra.mxu0 %v3010
        %6122 = vmatpush.msra.mxu0 %v3002
        %6123 = vmatpush.msra.mxu0 %v2994
        %6124 = vmatmul.f32.gmra.mxu0 %v293
        %v6125 = vpop.f32.mrf.mxu0
        %v6126 = vadd.f32 %v6106, %v6125
        %6127 = vdwg.mxu0
        %6128 = vmatpush.msra.mxu0 %v3242
        %6129 = vmatpush.msra.mxu0 %v3234
        %6130 = vmatpush.msra.mxu0 %v3226
        %6131 = vmatpush.msra.mxu0 %v3218
        %6132 = vmatpush.msra.mxu0 %v3210
        %6133 = vmatpush.msra.mxu0 %v3202
        %6134 = vmatpush.msra.mxu0 %v3194
        %6135 = vmatpush.msra.mxu0 %v3186
        %6136 = vmatpush.msra.mxu0 %v3178
        %6137 = vmatpush.msra.mxu0 %v3170
        %6138 = vmatpush.msra.mxu0 %v3162
        %6139 = vmatpush.msra.mxu0 %v3154
        %6140 = vmatpush.msra.mxu0 %v3146
        %6141 = vmatpush.msra.mxu0 %v3138
        %6142 = vmatpush.msra.mxu0 %v3130
        %6143 = vmatpush.msra.mxu0 %v3122
        %6144 = vmatmul.f32.gmra.mxu0 %v294
        %v6145 = vpop.f32.mrf.mxu0
        %v6146 = vadd.f32 %v6126, %v6145
        %6147 = vdwg.mxu0
        %6148 = vmatpush.msra.mxu0 %v3370
        %6149 = vmatpush.msra.mxu0 %v3362
        %6150 = vmatpush.msra.mxu0 %v3354
        %6151 = vmatpush.msra.mxu0 %v3346
        %6152 = vmatpush.msra.mxu0 %v3338
        %6153 = vmatpush.msra.mxu0 %v3330
        %6154 = vmatpush.msra.mxu0 %v3322
        %6155 = vmatpush.msra.mxu0 %v3314
        %6156 = vmatpush.msra.mxu0 %v3306
        %6157 = vmatpush.msra.mxu0 %v3298
        %6158 = vmatpush.msra.mxu0 %v3290
        %6159 = vmatpush.msra.mxu0 %v3282
        %6160 = vmatpush.msra.mxu0 %v3274
        %6161 = vmatpush.msra.mxu0 %v3266
        %6162 = vmatpush.msra.mxu0 %v3258
        %6163 = vmatpush.msra.mxu0 %v3250
        %6164 = vmatmul.f32.gmra.mxu0 %v295
        %v6165 = vpop.f32.mrf.mxu0
        %v6166 = vadd.f32 %v6146, %v6165
        %6167 = vdwg.mxu0
        %6168 = vmatpush.msra.mxu0 %v3498
        %6169 = vmatpush.msra.mxu0 %v3490
        %6170 = vmatpush.msra.mxu0 %v3482
        %6171 = vmatpush.msra.mxu0 %v3474
        %6172 = vmatpush.msra.mxu0 %v3466
        %6173 = vmatpush.msra.mxu0 %v3458
        %6174 = vmatpush.msra.mxu0 %v3450
        %6175 = vmatpush.msra.mxu0 %v3442
        %6176 = vmatpush.msra.mxu0 %v3434
        %6177 = vmatpush.msra.mxu0 %v3426
        %6178 = vmatpush.msra.mxu0 %v3418
        %6179 = vmatpush.msra.mxu0 %v3410
        %6180 = vmatpush.msra.mxu0 %v3402
        %6181 = vmatpush.msra.mxu0 %v3394
        %6182 = vmatpush.msra.mxu0 %v3386
        %6183 = vmatpush.msra.mxu0 %v3378
        %6184 = vmatmul.f32.gmra.mxu0 %v296
        %v6185 = vpop.f32.mrf.mxu0
        %v6186 = vadd.f32 %v6166, %v6185
        %6187 = vdwg.mxu0
        %6188 = vmatpush.msra.mxu0 %v3626
        %6189 = vmatpush.msra.mxu0 %v3618
        %6190 = vmatpush.msra.mxu0 %v3610
        %6191 = vmatpush.msra.mxu0 %v3602
        %6192 = vmatpush.msra.mxu0 %v3594
        %6193 = vmatpush.msra.mxu0 %v3586
        %6194 = vmatpush.msra.mxu0 %v3578
        %6195 = vmatpush.msra.mxu0 %v3570
        %6196 = vmatpush.msra.mxu0 %v3562
        %6197 = vmatpush.msra.mxu0 %v3554
        %6198 = vmatpush.msra.mxu0 %v3546
        %6199 = vmatpush.msra.mxu0 %v3538
        %6200 = vmatpush.msra.mxu0 %v3530
        %6201 = vmatpush.msra.mxu0 %v3522
        %6202 = vmatpush.msra.mxu0 %v3514
        %6203 = vmatpush.msra.mxu0 %v3506
        %6204 = vmatmul.f32.gmra.mxu0 %v297
        %v6205 = vpop.f32.mrf.mxu0
        %v6206 = vadd.f32 %v6186, %v6205
        %6207 = vdwg.mxu0
        %6208 = vmatpush.msra.mxu0 %v3754
        %6209 = vmatpush.msra.mxu0 %v3746
        %6210 = vmatpush.msra.mxu0 %v3738
        %6211 = vmatpush.msra.mxu0 %v3730
        %6212 = vmatpush.msra.mxu0 %v3722
        %6213 = vmatpush.msra.mxu0 %v3714
        %6214 = vmatpush.msra.mxu0 %v3706
        %6215 = vmatpush.msra.mxu0 %v3698
        %6216 = vmatpush.msra.mxu0 %v3690
        %6217 = vmatpush.msra.mxu0 %v3682
        %6218 = vmatpush.msra.mxu0 %v3674
        %6219 = vmatpush.msra.mxu0 %v3666
        %6220 = vmatpush.msra.mxu0 %v3658
        %6221 = vmatpush.msra.mxu0 %v3650
        %6222 = vmatpush.msra.mxu0 %v3642
        %6223 = vmatpush.msra.mxu0 %v3634
        %6224 = vmatmul.f32.gmra.mxu0 %v298
        %v6225 = vpop.f32.mrf.mxu0
        %v6226 = vadd.f32 %v6206, %v6225
        %6227 = vdwg.mxu0
        %6228 = vmatpush.msra.mxu0 %v3882
        %6229 = vmatpush.msra.mxu0 %v3874
        %6230 = vmatpush.msra.mxu0 %v3866
        %6231 = vmatpush.msra.mxu0 %v3858
        %6232 = vmatpush.msra.mxu0 %v3850
        %6233 = vmatpush.msra.mxu0 %v3842
        %6234 = vmatpush.msra.mxu0 %v3834
        %6235 = vmatpush.msra.mxu0 %v3826
        %6236 = vmatpush.msra.mxu0 %v3818
        %6237 = vmatpush.msra.mxu0 %v3810
        %6238 = vmatpush.msra.mxu0 %v3802
        %6239 = vmatpush.msra.mxu0 %v3794
        %6240 = vmatpush.msra.mxu0 %v3786
        %6241 = vmatpush.msra.mxu0 %v3778
        %6242 = vmatpush.msra.mxu0 %v3770
        %6243 = vmatpush.msra.mxu0 %v3762
        %6244 = vmatmul.f32.gmra.mxu0 %v299
        %v6245 = vpop.f32.mrf.mxu0
        %v6246 = vadd.f32 %v6226, %v6245
        %6247 = vdwg.mxu0
        %6248 = vmatpush.msra.mxu0 %v4010
        %6249 = vmatpush.msra.mxu0 %v4002
        %6250 = vmatpush.msra.mxu0 %v3994
        %6251 = vmatpush.msra.mxu0 %v3986
        %6252 = vmatpush.msra.mxu0 %v3978
        %6253 = vmatpush.msra.mxu0 %v3970
        %6254 = vmatpush.msra.mxu0 %v3962
        %6255 = vmatpush.msra.mxu0 %v3954
        %6256 = vmatpush.msra.mxu0 %v3946
        %6257 = vmatpush.msra.mxu0 %v3938
        %6258 = vmatpush.msra.mxu0 %v3930
        %6259 = vmatpush.msra.mxu0 %v3922
        %6260 = vmatpush.msra.mxu0 %v3914
        %6261 = vmatpush.msra.mxu0 %v3906
        %6262 = vmatpush.msra.mxu0 %v3898
        %6263 = vmatpush.msra.mxu0 %v3890
        %6264 = vmatmul.f32.gmra.mxu0 %v300
        %v6265 = vpop.f32.mrf.mxu0
        %v6266 = vadd.f32 %v6246, %v6265
        %6267 = vdwg.mxu0
        %6268 = vmatpush.msra.mxu0 %v4138
        %6269 = vmatpush.msra.mxu0 %v4130
        %6270 = vmatpush.msra.mxu0 %v4122
        %6271 = vmatpush.msra.mxu0 %v4114
        %6272 = vmatpush.msra.mxu0 %v4106
        %6273 = vmatpush.msra.mxu0 %v4098
        %6274 = vmatpush.msra.mxu0 %v4090
        %6275 = vmatpush.msra.mxu0 %v4082
        %6276 = vmatpush.msra.mxu0 %v4074
        %6277 = vmatpush.msra.mxu0 %v4066
        %6278 = vmatpush.msra.mxu0 %v4058
        %6279 = vmatpush.msra.mxu0 %v4050
        %6280 = vmatpush.msra.mxu0 %v4042
        %6281 = vmatpush.msra.mxu0 %v4034
        %6282 = vmatpush.msra.mxu0 %v4026
        %6283 = vmatpush.msra.mxu0 %v4018
        %6284 = vmatmul.f32.gmra.mxu0 %v301
        %v6285 = vpop.f32.mrf.mxu0
        %v6286 = vadd.f32 %v6266, %v6285
        %6287 = vdwg.mxu0
        %6288 = vmatpush.msra.mxu0 %v4266
        %6289 = vmatpush.msra.mxu0 %v4258
        %6290 = vmatpush.msra.mxu0 %v4250
        %6291 = vmatpush.msra.mxu0 %v4242
        %6292 = vmatpush.msra.mxu0 %v4234
        %6293 = vmatpush.msra.mxu0 %v4226
        %6294 = vmatpush.msra.mxu0 %v4218
        %6295 = vmatpush.msra.mxu0 %v4210
        %6296 = vmatpush.msra.mxu0 %v4202
        %6297 = vmatpush.msra.mxu0 %v4194
        %6298 = vmatpush.msra.mxu0 %v4186
        %6299 = vmatpush.msra.mxu0 %v4178
        %6300 = vmatpush.msra.mxu0 %v4170
        %6301 = vmatpush.msra.mxu0 %v4162
        %6302 = vmatpush.msra.mxu0 %v4154
        %6303 = vmatpush.msra.mxu0 %v4146
        %6304 = vmatmul.f32.gmra.mxu0 %v302
        %v6305 = vpop.f32.mrf.mxu0
        %v6306 = vadd.f32 %v6286, %v6305
        %6307 = vdwg.mxu0
        %6308 = vmatpush.msra.mxu0 %v4394
        %6309 = vmatpush.msra.mxu0 %v4386
        %6310 = vmatpush.msra.mxu0 %v4378
        %6311 = vmatpush.msra.mxu0 %v4370
        %6312 = vmatpush.msra.mxu0 %v4362
        %6313 = vmatpush.msra.mxu0 %v4354
        %6314 = vmatpush.msra.mxu0 %v4346
        %6315 = vmatpush.msra.mxu0 %v4338
        %6316 = vmatpush.msra.mxu0 %v4330
        %6317 = vmatpush.msra.mxu0 %v4322
        %6318 = vmatpush.msra.mxu0 %v4314
        %6319 = vmatpush.msra.mxu0 %v4306
        %6320 = vmatpush.msra.mxu0 %v4298
        %6321 = vmatpush.msra.mxu0 %v4290
        %6322 = vmatpush.msra.mxu0 %v4282
        %6323 = vmatpush.msra.mxu0 %v4274
        %6324 = vmatmul.f32.gmra.mxu0 %v303
        %v6325 = vpop.f32.mrf.mxu0
        %v6326 = vadd.f32 %v6306, %v6325
        %6327 = vdwg.mxu0
        %6328 = vmatpush.msra.mxu0 %v427
        %6329 = vmatpush.msra.mxu0 %v419
        %6330 = vmatpush.msra.mxu0 %v411
        %6331 = vmatpush.msra.mxu0 %v403
        %6332 = vmatpush.msra.mxu0 %v395
        %6333 = vmatpush.msra.mxu0 %v387
        %6334 = vmatpush.msra.mxu0 %v379
        %6335 = vmatpush.msra.mxu0 %v371
        %6336 = vmatpush.msra.mxu0 %v363
        %6337 = vmatpush.msra.mxu0 %v355
        %6338 = vmatpush.msra.mxu0 %v347
        %6339 = vmatpush.msra.mxu0 %v339
        %6340 = vmatpush.msra.mxu0 %v331
        %6341 = vmatpush.msra.mxu0 %v323
        %6342 = vmatpush.msra.mxu0 %v315
        %6343 = vmatpush.msra.mxu0 %v307
        %6344 = vmatmul.f32.gmra.mxu0 %v272
        %v6345 = vpop.f32.mrf.mxu0
        %v6346 = vadd.f32 %v4403, %v6345
        %6347 = vdwg.mxu0
        %6348 = vmatpush.msra.mxu0 %v555
        %6349 = vmatpush.msra.mxu0 %v547
        %6350 = vmatpush.msra.mxu0 %v539
        %6351 = vmatpush.msra.mxu0 %v531
        %6352 = vmatpush.msra.mxu0 %v523
        %6353 = vmatpush.msra.mxu0 %v515
        %6354 = vmatpush.msra.mxu0 %v507
        %6355 = vmatpush.msra.mxu0 %v499
        %6356 = vmatpush.msra.mxu0 %v491
        %6357 = vmatpush.msra.mxu0 %v483
        %6358 = vmatpush.msra.mxu0 %v475
        %6359 = vmatpush.msra.mxu0 %v467
        %6360 = vmatpush.msra.mxu0 %v459
        %6361 = vmatpush.msra.mxu0 %v451
        %6362 = vmatpush.msra.mxu0 %v443
        %6363 = vmatpush.msra.mxu0 %v435
        %6364 = vmatmul.f32.gmra.mxu0 %v273
        %v6365 = vpop.f32.mrf.mxu0
        %v6366 = vadd.f32 %v6346, %v6365
        %6367 = vdwg.mxu0
        %6368 = vmatpush.msra.mxu0 %v683
        %6369 = vmatpush.msra.mxu0 %v675
        %6370 = vmatpush.msra.mxu0 %v667
        %6371 = vmatpush.msra.mxu0 %v659
        %6372 = vmatpush.msra.mxu0 %v651
        %6373 = vmatpush.msra.mxu0 %v643
        %6374 = vmatpush.msra.mxu0 %v635
        %6375 = vmatpush.msra.mxu0 %v627
        %6376 = vmatpush.msra.mxu0 %v619
        %6377 = vmatpush.msra.mxu0 %v611
        %6378 = vmatpush.msra.mxu0 %v603
        %6379 = vmatpush.msra.mxu0 %v595
        %6380 = vmatpush.msra.mxu0 %v587
        %6381 = vmatpush.msra.mxu0 %v579
        %6382 = vmatpush.msra.mxu0 %v571
        %6383 = vmatpush.msra.mxu0 %v563
        %6384 = vmatmul.f32.gmra.mxu0 %v274
        %v6385 = vpop.f32.mrf.mxu0
        %v6386 = vadd.f32 %v6366, %v6385
        %6387 = vdwg.mxu0
        %6388 = vmatpush.msra.mxu0 %v811
        %6389 = vmatpush.msra.mxu0 %v803
        %6390 = vmatpush.msra.mxu0 %v795
        %6391 = vmatpush.msra.mxu0 %v787
        %6392 = vmatpush.msra.mxu0 %v779
        %6393 = vmatpush.msra.mxu0 %v771
        %6394 = vmatpush.msra.mxu0 %v763
        %6395 = vmatpush.msra.mxu0 %v755
        %6396 = vmatpush.msra.mxu0 %v747
        %6397 = vmatpush.msra.mxu0 %v739
        %6398 = vmatpush.msra.mxu0 %v731
        %6399 = vmatpush.msra.mxu0 %v723
        %6400 = vmatpush.msra.mxu0 %v715
        %6401 = vmatpush.msra.mxu0 %v707
        %6402 = vmatpush.msra.mxu0 %v699
        %6403 = vmatpush.msra.mxu0 %v691
        %6404 = vmatmul.f32.gmra.mxu0 %v275
        %v6405 = vpop.f32.mrf.mxu0
        %v6406 = vadd.f32 %v6386, %v6405
        %6407 = vdwg.mxu0
        %6408 = vmatpush.msra.mxu0 %v939
        %6409 = vmatpush.msra.mxu0 %v931
        %6410 = vmatpush.msra.mxu0 %v923
        %6411 = vmatpush.msra.mxu0 %v915
        %6412 = vmatpush.msra.mxu0 %v907
        %6413 = vmatpush.msra.mxu0 %v899
        %6414 = vmatpush.msra.mxu0 %v891
        %6415 = vmatpush.msra.mxu0 %v883
        %6416 = vmatpush.msra.mxu0 %v875
        %6417 = vmatpush.msra.mxu0 %v867
        %6418 = vmatpush.msra.mxu0 %v859
        %6419 = vmatpush.msra.mxu0 %v851
        %6420 = vmatpush.msra.mxu0 %v843
        %6421 = vmatpush.msra.mxu0 %v835
        %6422 = vmatpush.msra.mxu0 %v827
        %6423 = vmatpush.msra.mxu0 %v819
        %6424 = vmatmul.f32.gmra.mxu0 %v276
        %v6425 = vpop.f32.mrf.mxu0
        %v6426 = vadd.f32 %v6406, %v6425
        %6427 = vdwg.mxu0
        %6428 = vmatpush.msra.mxu0 %v1067
        %6429 = vmatpush.msra.mxu0 %v1059
        %6430 = vmatpush.msra.mxu0 %v1051
        %6431 = vmatpush.msra.mxu0 %v1043
        %6432 = vmatpush.msra.mxu0 %v1035
        %6433 = vmatpush.msra.mxu0 %v1027
        %6434 = vmatpush.msra.mxu0 %v1019
        %6435 = vmatpush.msra.mxu0 %v1011
        %6436 = vmatpush.msra.mxu0 %v1003
        %6437 = vmatpush.msra.mxu0 %v995
        %6438 = vmatpush.msra.mxu0 %v987
        %6439 = vmatpush.msra.mxu0 %v979
        %6440 = vmatpush.msra.mxu0 %v971
        %6441 = vmatpush.msra.mxu0 %v963
        %6442 = vmatpush.msra.mxu0 %v955
        %6443 = vmatpush.msra.mxu0 %v947
        %6444 = vmatmul.f32.gmra.mxu0 %v277
        %v6445 = vpop.f32.mrf.mxu0
        %v6446 = vadd.f32 %v6426, %v6445
        %6447 = vdwg.mxu0
        %6448 = vmatpush.msra.mxu0 %v1195
        %6449 = vmatpush.msra.mxu0 %v1187
        %6450 = vmatpush.msra.mxu0 %v1179
        %6451 = vmatpush.msra.mxu0 %v1171
        %6452 = vmatpush.msra.mxu0 %v1163
        %6453 = vmatpush.msra.mxu0 %v1155
        %6454 = vmatpush.msra.mxu0 %v1147
        %6455 = vmatpush.msra.mxu0 %v1139
        %6456 = vmatpush.msra.mxu0 %v1131
        %6457 = vmatpush.msra.mxu0 %v1123
        %6458 = vmatpush.msra.mxu0 %v1115
        %6459 = vmatpush.msra.mxu0 %v1107
        %6460 = vmatpush.msra.mxu0 %v1099
        %6461 = vmatpush.msra.mxu0 %v1091
        %6462 = vmatpush.msra.mxu0 %v1083
        %6463 = vmatpush.msra.mxu0 %v1075
        %6464 = vmatmul.f32.gmra.mxu0 %v278
        %v6465 = vpop.f32.mrf.mxu0
        %v6466 = vadd.f32 %v6446, %v6465
        %6467 = vdwg.mxu0
        %6468 = vmatpush.msra.mxu0 %v1323
        %6469 = vmatpush.msra.mxu0 %v1315
        %6470 = vmatpush.msra.mxu0 %v1307
        %6471 = vmatpush.msra.mxu0 %v1299
        %6472 = vmatpush.msra.mxu0 %v1291
        %6473 = vmatpush.msra.mxu0 %v1283
        %6474 = vmatpush.msra.mxu0 %v1275
        %6475 = vmatpush.msra.mxu0 %v1267
        %6476 = vmatpush.msra.mxu0 %v1259
        %6477 = vmatpush.msra.mxu0 %v1251
        %6478 = vmatpush.msra.mxu0 %v1243
        %6479 = vmatpush.msra.mxu0 %v1235
        %6480 = vmatpush.msra.mxu0 %v1227
        %6481 = vmatpush.msra.mxu0 %v1219
        %6482 = vmatpush.msra.mxu0 %v1211
        %6483 = vmatpush.msra.mxu0 %v1203
        %6484 = vmatmul.f32.gmra.mxu0 %v279
        %v6485 = vpop.f32.mrf.mxu0
        %v6486 = vadd.f32 %v6466, %v6485
        %6487 = vdwg.mxu0
        %6488 = vmatpush.msra.mxu0 %v1451
        %6489 = vmatpush.msra.mxu0 %v1443
        %6490 = vmatpush.msra.mxu0 %v1435
        %6491 = vmatpush.msra.mxu0 %v1427
        %6492 = vmatpush.msra.mxu0 %v1419
        %6493 = vmatpush.msra.mxu0 %v1411
        %6494 = vmatpush.msra.mxu0 %v1403
        %6495 = vmatpush.msra.mxu0 %v1395
        %6496 = vmatpush.msra.mxu0 %v1387
        %6497 = vmatpush.msra.mxu0 %v1379
        %6498 = vmatpush.msra.mxu0 %v1371
        %6499 = vmatpush.msra.mxu0 %v1363
        %6500 = vmatpush.msra.mxu0 %v1355
        %6501 = vmatpush.msra.mxu0 %v1347
        %6502 = vmatpush.msra.mxu0 %v1339
        %6503 = vmatpush.msra.mxu0 %v1331
        %6504 = vmatmul.f32.gmra.mxu0 %v280
        %v6505 = vpop.f32.mrf.mxu0
        %v6506 = vadd.f32 %v6486, %v6505
        %6507 = vdwg.mxu0
        %6508 = vmatpush.msra.mxu0 %v1579
        %6509 = vmatpush.msra.mxu0 %v1571
        %6510 = vmatpush.msra.mxu0 %v1563
        %6511 = vmatpush.msra.mxu0 %v1555
        %6512 = vmatpush.msra.mxu0 %v1547
        %6513 = vmatpush.msra.mxu0 %v1539
        %6514 = vmatpush.msra.mxu0 %v1531
        %6515 = vmatpush.msra.mxu0 %v1523
        %6516 = vmatpush.msra.mxu0 %v1515
        %6517 = vmatpush.msra.mxu0 %v1507
        %6518 = vmatpush.msra.mxu0 %v1499
        %6519 = vmatpush.msra.mxu0 %v1491
        %6520 = vmatpush.msra.mxu0 %v1483
        %6521 = vmatpush.msra.mxu0 %v1475
        %6522 = vmatpush.msra.mxu0 %v1467
        %6523 = vmatpush.msra.mxu0 %v1459
        %6524 = vmatmul.f32.gmra.mxu0 %v281
        %v6525 = vpop.f32.mrf.mxu0
        %v6526 = vadd.f32 %v6506, %v6525
        %6527 = vdwg.mxu0
        %6528 = vmatpush.msra.mxu0 %v1707
        %6529 = vmatpush.msra.mxu0 %v1699
        %6530 = vmatpush.msra.mxu0 %v1691
        %6531 = vmatpush.msra.mxu0 %v1683
        %6532 = vmatpush.msra.mxu0 %v1675
        %6533 = vmatpush.msra.mxu0 %v1667
        %6534 = vmatpush.msra.mxu0 %v1659
        %6535 = vmatpush.msra.mxu0 %v1651
        %6536 = vmatpush.msra.mxu0 %v1643
        %6537 = vmatpush.msra.mxu0 %v1635
        %6538 = vmatpush.msra.mxu0 %v1627
        %6539 = vmatpush.msra.mxu0 %v1619
        %6540 = vmatpush.msra.mxu0 %v1611
        %6541 = vmatpush.msra.mxu0 %v1603
        %6542 = vmatpush.msra.mxu0 %v1595
        %6543 = vmatpush.msra.mxu0 %v1587
        %6544 = vmatmul.f32.gmra.mxu0 %v282
        %v6545 = vpop.f32.mrf.mxu0
        %v6546 = vadd.f32 %v6526, %v6545
        %6547 = vdwg.mxu0
        %6548 = vmatpush.msra.mxu0 %v1835
        %6549 = vmatpush.msra.mxu0 %v1827
        %6550 = vmatpush.msra.mxu0 %v1819
        %6551 = vmatpush.msra.mxu0 %v1811
        %6552 = vmatpush.msra.mxu0 %v1803
        %6553 = vmatpush.msra.mxu0 %v1795
        %6554 = vmatpush.msra.mxu0 %v1787
        %6555 = vmatpush.msra.mxu0 %v1779
        %6556 = vmatpush.msra.mxu0 %v1771
        %6557 = vmatpush.msra.mxu0 %v1763
        %6558 = vmatpush.msra.mxu0 %v1755
        %6559 = vmatpush.msra.mxu0 %v1747
        %6560 = vmatpush.msra.mxu0 %v1739
        %6561 = vmatpush.msra.mxu0 %v1731
        %6562 = vmatpush.msra.mxu0 %v1723
        %6563 = vmatpush.msra.mxu0 %v1715
        %6564 = vmatmul.f32.gmra.mxu0 %v283
        %v6565 = vpop.f32.mrf.mxu0
        %v6566 = vadd.f32 %v6546, %v6565
        %6567 = vdwg.mxu0
        %6568 = vmatpush.msra.mxu0 %v1963
        %6569 = vmatpush.msra.mxu0 %v1955
        %6570 = vmatpush.msra.mxu0 %v1947
        %6571 = vmatpush.msra.mxu0 %v1939
        %6572 = vmatpush.msra.mxu0 %v1931
        %6573 = vmatpush.msra.mxu0 %v1923
        %6574 = vmatpush.msra.mxu0 %v1915
        %6575 = vmatpush.msra.mxu0 %v1907
        %6576 = vmatpush.msra.mxu0 %v1899
        %6577 = vmatpush.msra.mxu0 %v1891
        %6578 = vmatpush.msra.mxu0 %v1883
        %6579 = vmatpush.msra.mxu0 %v1875
        %6580 = vmatpush.msra.mxu0 %v1867
        %6581 = vmatpush.msra.mxu0 %v1859
        %6582 = vmatpush.msra.mxu0 %v1851
        %6583 = vmatpush.msra.mxu0 %v1843
        %6584 = vmatmul.f32.gmra.mxu0 %v284
        %v6585 = vpop.f32.mrf.mxu0
        %v6586 = vadd.f32 %v6566, %v6585
        %6587 = vdwg.mxu0
        %6588 = vmatpush.msra.mxu0 %v2091
        %6589 = vmatpush.msra.mxu0 %v2083
        %6590 = vmatpush.msra.mxu0 %v2075
        %6591 = vmatpush.msra.mxu0 %v2067
        %6592 = vmatpush.msra.mxu0 %v2059
        %6593 = vmatpush.msra.mxu0 %v2051
        %6594 = vmatpush.msra.mxu0 %v2043
        %6595 = vmatpush.msra.mxu0 %v2035
        %6596 = vmatpush.msra.mxu0 %v2027
        %6597 = vmatpush.msra.mxu0 %v2019
        %6598 = vmatpush.msra.mxu0 %v2011
        %6599 = vmatpush.msra.mxu0 %v2003
        %6600 = vmatpush.msra.mxu0 %v1995
        %6601 = vmatpush.msra.mxu0 %v1987
        %6602 = vmatpush.msra.mxu0 %v1979
        %6603 = vmatpush.msra.mxu0 %v1971
        %6604 = vmatmul.f32.gmra.mxu0 %v285
        %v6605 = vpop.f32.mrf.mxu0
        %v6606 = vadd.f32 %v6586, %v6605
        %6607 = vdwg.mxu0
        %6608 = vmatpush.msra.mxu0 %v2219
        %6609 = vmatpush.msra.mxu0 %v2211
        %6610 = vmatpush.msra.mxu0 %v2203
        %6611 = vmatpush.msra.mxu0 %v2195
        %6612 = vmatpush.msra.mxu0 %v2187
        %6613 = vmatpush.msra.mxu0 %v2179
        %6614 = vmatpush.msra.mxu0 %v2171
        %6615 = vmatpush.msra.mxu0 %v2163
        %6616 = vmatpush.msra.mxu0 %v2155
        %6617 = vmatpush.msra.mxu0 %v2147
        %6618 = vmatpush.msra.mxu0 %v2139
        %6619 = vmatpush.msra.mxu0 %v2131
        %6620 = vmatpush.msra.mxu0 %v2123
        %6621 = vmatpush.msra.mxu0 %v2115
        %6622 = vmatpush.msra.mxu0 %v2107
        %6623 = vmatpush.msra.mxu0 %v2099
        %6624 = vmatmul.f32.gmra.mxu0 %v286
        %v6625 = vpop.f32.mrf.mxu0
        %v6626 = vadd.f32 %v6606, %v6625
        %6627 = vdwg.mxu0
        %6628 = vmatpush.msra.mxu0 %v2347
        %6629 = vmatpush.msra.mxu0 %v2339
        %6630 = vmatpush.msra.mxu0 %v2331
        %6631 = vmatpush.msra.mxu0 %v2323
        %6632 = vmatpush.msra.mxu0 %v2315
        %6633 = vmatpush.msra.mxu0 %v2307
        %6634 = vmatpush.msra.mxu0 %v2299
        %6635 = vmatpush.msra.mxu0 %v2291
        %6636 = vmatpush.msra.mxu0 %v2283
        %6637 = vmatpush.msra.mxu0 %v2275
        %6638 = vmatpush.msra.mxu0 %v2267
        %6639 = vmatpush.msra.mxu0 %v2259
        %6640 = vmatpush.msra.mxu0 %v2251
        %6641 = vmatpush.msra.mxu0 %v2243
        %6642 = vmatpush.msra.mxu0 %v2235
        %6643 = vmatpush.msra.mxu0 %v2227
        %6644 = vmatmul.f32.gmra.mxu0 %v287
        %v6645 = vpop.f32.mrf.mxu0
        %v6646 = vadd.f32 %v6626, %v6645
        %6647 = vdwg.mxu0
        %6648 = vmatpush.msra.mxu0 %v2475
        %6649 = vmatpush.msra.mxu0 %v2467
        %6650 = vmatpush.msra.mxu0 %v2459
        %6651 = vmatpush.msra.mxu0 %v2451
        %6652 = vmatpush.msra.mxu0 %v2443
        %6653 = vmatpush.msra.mxu0 %v2435
        %6654 = vmatpush.msra.mxu0 %v2427
        %6655 = vmatpush.msra.mxu0 %v2419
        %6656 = vmatpush.msra.mxu0 %v2411
        %6657 = vmatpush.msra.mxu0 %v2403
        %6658 = vmatpush.msra.mxu0 %v2395
        %6659 = vmatpush.msra.mxu0 %v2387
        %6660 = vmatpush.msra.mxu0 %v2379
        %6661 = vmatpush.msra.mxu0 %v2371
        %6662 = vmatpush.msra.mxu0 %v2363
        %6663 = vmatpush.msra.mxu0 %v2355
        %6664 = vmatmul.f32.gmra.mxu0 %v288
        %v6665 = vpop.f32.mrf.mxu0
        %v6666 = vadd.f32 %v6646, %v6665
        %6667 = vdwg.mxu0
        %6668 = vmatpush.msra.mxu0 %v2603
        %6669 = vmatpush.msra.mxu0 %v2595
        %6670 = vmatpush.msra.mxu0 %v2587
        %6671 = vmatpush.msra.mxu0 %v2579
        %6672 = vmatpush.msra.mxu0 %v2571
        %6673 = vmatpush.msra.mxu0 %v2563
        %6674 = vmatpush.msra.mxu0 %v2555
        %6675 = vmatpush.msra.mxu0 %v2547
        %6676 = vmatpush.msra.mxu0 %v2539
        %6677 = vmatpush.msra.mxu0 %v2531
        %6678 = vmatpush.msra.mxu0 %v2523
        %6679 = vmatpush.msra.mxu0 %v2515
        %6680 = vmatpush.msra.mxu0 %v2507
        %6681 = vmatpush.msra.mxu0 %v2499
        %6682 = vmatpush.msra.mxu0 %v2491
        %6683 = vmatpush.msra.mxu0 %v2483
        %6684 = vmatmul.f32.gmra.mxu0 %v289
        %v6685 = vpop.f32.mrf.mxu0
        %v6686 = vadd.f32 %v6666, %v6685
        %6687 = vdwg.mxu0
        %6688 = vmatpush.msra.mxu0 %v2731
        %6689 = vmatpush.msra.mxu0 %v2723
        %6690 = vmatpush.msra.mxu0 %v2715
        %6691 = vmatpush.msra.mxu0 %v2707
        %6692 = vmatpush.msra.mxu0 %v2699
        %6693 = vmatpush.msra.mxu0 %v2691
        %6694 = vmatpush.msra.mxu0 %v2683
        %6695 = vmatpush.msra.mxu0 %v2675
        %6696 = vmatpush.msra.mxu0 %v2667
        %6697 = vmatpush.msra.mxu0 %v2659
        %6698 = vmatpush.msra.mxu0 %v2651
        %6699 = vmatpush.msra.mxu0 %v2643
        %6700 = vmatpush.msra.mxu0 %v2635
        %6701 = vmatpush.msra.mxu0 %v2627
        %6702 = vmatpush.msra.mxu0 %v2619
        %6703 = vmatpush.msra.mxu0 %v2611
        %6704 = vmatmul.f32.gmra.mxu0 %v290
        %v6705 = vpop.f32.mrf.mxu0
        %v6706 = vadd.f32 %v6686, %v6705
        %6707 = vdwg.mxu0
        %6708 = vmatpush.msra.mxu0 %v2859
        %6709 = vmatpush.msra.mxu0 %v2851
        %6710 = vmatpush.msra.mxu0 %v2843
        %6711 = vmatpush.msra.mxu0 %v2835
        %6712 = vmatpush.msra.mxu0 %v2827
        %6713 = vmatpush.msra.mxu0 %v2819
        %6714 = vmatpush.msra.mxu0 %v2811
        %6715 = vmatpush.msra.mxu0 %v2803
        %6716 = vmatpush.msra.mxu0 %v2795
        %6717 = vmatpush.msra.mxu0 %v2787
        %6718 = vmatpush.msra.mxu0 %v2779
        %6719 = vmatpush.msra.mxu0 %v2771
        %6720 = vmatpush.msra.mxu0 %v2763
        %6721 = vmatpush.msra.mxu0 %v2755
        %6722 = vmatpush.msra.mxu0 %v2747
        %6723 = vmatpush.msra.mxu0 %v2739
        %6724 = vmatmul.f32.gmra.mxu0 %v291
        %v6725 = vpop.f32.mrf.mxu0
        %v6726 = vadd.f32 %v6706, %v6725
        %6727 = vdwg.mxu0
        %6728 = vmatpush.msra.mxu0 %v2987
        %6729 = vmatpush.msra.mxu0 %v2979
        %6730 = vmatpush.msra.mxu0 %v2971
        %6731 = vmatpush.msra.mxu0 %v2963
        %6732 = vmatpush.msra.mxu0 %v2955
        %6733 = vmatpush.msra.mxu0 %v2947
        %6734 = vmatpush.msra.mxu0 %v2939
        %6735 = vmatpush.msra.mxu0 %v2931
        %6736 = vmatpush.msra.mxu0 %v2923
        %6737 = vmatpush.msra.mxu0 %v2915
        %6738 = vmatpush.msra.mxu0 %v2907
        %6739 = vmatpush.msra.mxu0 %v2899
        %6740 = vmatpush.msra.mxu0 %v2891
        %6741 = vmatpush.msra.mxu0 %v2883
        %6742 = vmatpush.msra.mxu0 %v2875
        %6743 = vmatpush.msra.mxu0 %v2867
        %6744 = vmatmul.f32.gmra.mxu0 %v292
        %v6745 = vpop.f32.mrf.mxu0
        %v6746 = vadd.f32 %v6726, %v6745
        %6747 = vdwg.mxu0
        %6748 = vmatpush.msra.mxu0 %v3115
        %6749 = vmatpush.msra.mxu0 %v3107
        %6750 = vmatpush.msra.mxu0 %v3099
        %6751 = vmatpush.msra.mxu0 %v3091
        %6752 = vmatpush.msra.mxu0 %v3083
        %6753 = vmatpush.msra.mxu0 %v3075
        %6754 = vmatpush.msra.mxu0 %v3067
        %6755 = vmatpush.msra.mxu0 %v3059
        %6756 = vmatpush.msra.mxu0 %v3051
        %6757 = vmatpush.msra.mxu0 %v3043
        %6758 = vmatpush.msra.mxu0 %v3035
        %6759 = vmatpush.msra.mxu0 %v3027
        %6760 = vmatpush.msra.mxu0 %v3019
        %6761 = vmatpush.msra.mxu0 %v3011
        %6762 = vmatpush.msra.mxu0 %v3003
        %6763 = vmatpush.msra.mxu0 %v2995
        %6764 = vmatmul.f32.gmra.mxu0 %v293
        %v6765 = vpop.f32.mrf.mxu0
        %v6766 = vadd.f32 %v6746, %v6765
        %6767 = vdwg.mxu0
        %6768 = vmatpush.msra.mxu0 %v3243
        %6769 = vmatpush.msra.mxu0 %v3235
        %6770 = vmatpush.msra.mxu0 %v3227
        %6771 = vmatpush.msra.mxu0 %v3219
        %6772 = vmatpush.msra.mxu0 %v3211
        %6773 = vmatpush.msra.mxu0 %v3203
        %6774 = vmatpush.msra.mxu0 %v3195
        %6775 = vmatpush.msra.mxu0 %v3187
        %6776 = vmatpush.msra.mxu0 %v3179
        %6777 = vmatpush.msra.mxu0 %v3171
        %6778 = vmatpush.msra.mxu0 %v3163
        %6779 = vmatpush.msra.mxu0 %v3155
        %6780 = vmatpush.msra.mxu0 %v3147
        %6781 = vmatpush.msra.mxu0 %v3139
        %6782 = vmatpush.msra.mxu0 %v3131
        %6783 = vmatpush.msra.mxu0 %v3123
        %6784 = vmatmul.f32.gmra.mxu0 %v294
        %v6785 = vpop.f32.mrf.mxu0
        %v6786 = vadd.f32 %v6766, %v6785
        %6787 = vdwg.mxu0
        %6788 = vmatpush.msra.mxu0 %v3371
        %6789 = vmatpush.msra.mxu0 %v3363
        %6790 = vmatpush.msra.mxu0 %v3355
        %6791 = vmatpush.msra.mxu0 %v3347
        %6792 = vmatpush.msra.mxu0 %v3339
        %6793 = vmatpush.msra.mxu0 %v3331
        %6794 = vmatpush.msra.mxu0 %v3323
        %6795 = vmatpush.msra.mxu0 %v3315
        %6796 = vmatpush.msra.mxu0 %v3307
        %6797 = vmatpush.msra.mxu0 %v3299
        %6798 = vmatpush.msra.mxu0 %v3291
        %6799 = vmatpush.msra.mxu0 %v3283
        %6800 = vmatpush.msra.mxu0 %v3275
        %6801 = vmatpush.msra.mxu0 %v3267
        %6802 = vmatpush.msra.mxu0 %v3259
        %6803 = vmatpush.msra.mxu0 %v3251
        %6804 = vmatmul.f32.gmra.mxu0 %v295
        %v6805 = vpop.f32.mrf.mxu0
        %v6806 = vadd.f32 %v6786, %v6805
        %6807 = vdwg.mxu0
        %6808 = vmatpush.msra.mxu0 %v3499
        %6809 = vmatpush.msra.mxu0 %v3491
        %6810 = vmatpush.msra.mxu0 %v3483
        %6811 = vmatpush.msra.mxu0 %v3475
        %6812 = vmatpush.msra.mxu0 %v3467
        %6813 = vmatpush.msra.mxu0 %v3459
        %6814 = vmatpush.msra.mxu0 %v3451
        %6815 = vmatpush.msra.mxu0 %v3443
        %6816 = vmatpush.msra.mxu0 %v3435
        %6817 = vmatpush.msra.mxu0 %v3427
        %6818 = vmatpush.msra.mxu0 %v3419
        %6819 = vmatpush.msra.mxu0 %v3411
        %6820 = vmatpush.msra.mxu0 %v3403
        %6821 = vmatpush.msra.mxu0 %v3395
        %6822 = vmatpush.msra.mxu0 %v3387
        %6823 = vmatpush.msra.mxu0 %v3379
        %6824 = vmatmul.f32.gmra.mxu0 %v296
        %v6825 = vpop.f32.mrf.mxu0
        %v6826 = vadd.f32 %v6806, %v6825
        %6827 = vdwg.mxu0
        %6828 = vmatpush.msra.mxu0 %v3627
        %6829 = vmatpush.msra.mxu0 %v3619
        %6830 = vmatpush.msra.mxu0 %v3611
        %6831 = vmatpush.msra.mxu0 %v3603
        %6832 = vmatpush.msra.mxu0 %v3595
        %6833 = vmatpush.msra.mxu0 %v3587
        %6834 = vmatpush.msra.mxu0 %v3579
        %6835 = vmatpush.msra.mxu0 %v3571
        %6836 = vmatpush.msra.mxu0 %v3563
        %6837 = vmatpush.msra.mxu0 %v3555
        %6838 = vmatpush.msra.mxu0 %v3547
        %6839 = vmatpush.msra.mxu0 %v3539
        %6840 = vmatpush.msra.mxu0 %v3531
        %6841 = vmatpush.msra.mxu0 %v3523
        %6842 = vmatpush.msra.mxu0 %v3515
        %6843 = vmatpush.msra.mxu0 %v3507
        %6844 = vmatmul.f32.gmra.mxu0 %v297
        %v6845 = vpop.f32.mrf.mxu0
        %v6846 = vadd.f32 %v6826, %v6845
        %6847 = vdwg.mxu0
        %6848 = vmatpush.msra.mxu0 %v3755
        %6849 = vmatpush.msra.mxu0 %v3747
        %6850 = vmatpush.msra.mxu0 %v3739
        %6851 = vmatpush.msra.mxu0 %v3731
        %6852 = vmatpush.msra.mxu0 %v3723
        %6853 = vmatpush.msra.mxu0 %v3715
        %6854 = vmatpush.msra.mxu0 %v3707
        %6855 = vmatpush.msra.mxu0 %v3699
        %6856 = vmatpush.msra.mxu0 %v3691
        %6857 = vmatpush.msra.mxu0 %v3683
        %6858 = vmatpush.msra.mxu0 %v3675
        %6859 = vmatpush.msra.mxu0 %v3667
        %6860 = vmatpush.msra.mxu0 %v3659
        %6861 = vmatpush.msra.mxu0 %v3651
        %6862 = vmatpush.msra.mxu0 %v3643
        %6863 = vmatpush.msra.mxu0 %v3635
        %6864 = vmatmul.f32.gmra.mxu0 %v298
        %v6865 = vpop.f32.mrf.mxu0
        %v6866 = vadd.f32 %v6846, %v6865
        %6867 = vdwg.mxu0
        %6868 = vmatpush.msra.mxu0 %v3883
        %6869 = vmatpush.msra.mxu0 %v3875
        %6870 = vmatpush.msra.mxu0 %v3867
        %6871 = vmatpush.msra.mxu0 %v3859
        %6872 = vmatpush.msra.mxu0 %v3851
        %6873 = vmatpush.msra.mxu0 %v3843
        %6874 = vmatpush.msra.mxu0 %v3835
        %6875 = vmatpush.msra.mxu0 %v3827
        %6876 = vmatpush.msra.mxu0 %v3819
        %6877 = vmatpush.msra.mxu0 %v3811
        %6878 = vmatpush.msra.mxu0 %v3803
        %6879 = vmatpush.msra.mxu0 %v3795
        %6880 = vmatpush.msra.mxu0 %v3787
        %6881 = vmatpush.msra.mxu0 %v3779
        %6882 = vmatpush.msra.mxu0 %v3771
        %6883 = vmatpush.msra.mxu0 %v3763
        %6884 = vmatmul.f32.gmra.mxu0 %v299
        %v6885 = vpop.f32.mrf.mxu0
        %v6886 = vadd.f32 %v6866, %v6885
        %6887 = vdwg.mxu0
        %6888 = vmatpush.msra.mxu0 %v4011
        %6889 = vmatpush.msra.mxu0 %v4003
        %6890 = vmatpush.msra.mxu0 %v3995
        %6891 = vmatpush.msra.mxu0 %v3987
        %6892 = vmatpush.msra.mxu0 %v3979
        %6893 = vmatpush.msra.mxu0 %v3971
        %6894 = vmatpush.msra.mxu0 %v3963
        %6895 = vmatpush.msra.mxu0 %v3955
        %6896 = vmatpush.msra.mxu0 %v3947
        %6897 = vmatpush.msra.mxu0 %v3939
        %6898 = vmatpush.msra.mxu0 %v3931
        %6899 = vmatpush.msra.mxu0 %v3923
        %6900 = vmatpush.msra.mxu0 %v3915
        %6901 = vmatpush.msra.mxu0 %v3907
        %6902 = vmatpush.msra.mxu0 %v3899
        %6903 = vmatpush.msra.mxu0 %v3891
        %6904 = vmatmul.f32.gmra.mxu0 %v300
        %v6905 = vpop.f32.mrf.mxu0
        %v6906 = vadd.f32 %v6886, %v6905
        %6907 = vdwg.mxu0
        %6908 = vmatpush.msra.mxu0 %v4139
        %6909 = vmatpush.msra.mxu0 %v4131
        %6910 = vmatpush.msra.mxu0 %v4123
        %6911 = vmatpush.msra.mxu0 %v4115
        %6912 = vmatpush.msra.mxu0 %v4107
        %6913 = vmatpush.msra.mxu0 %v4099
        %6914 = vmatpush.msra.mxu0 %v4091
        %6915 = vmatpush.msra.mxu0 %v4083
        %6916 = vmatpush.msra.mxu0 %v4075
        %6917 = vmatpush.msra.mxu0 %v4067
        %6918 = vmatpush.msra.mxu0 %v4059
        %6919 = vmatpush.msra.mxu0 %v4051
        %6920 = vmatpush.msra.mxu0 %v4043
        %6921 = vmatpush.msra.mxu0 %v4035
        %6922 = vmatpush.msra.mxu0 %v4027
        %6923 = vmatpush.msra.mxu0 %v4019
        %6924 = vmatmul.f32.gmra.mxu0 %v301
        %v6925 = vpop.f32.mrf.mxu0
        %v6926 = vadd.f32 %v6906, %v6925
        %6927 = vdwg.mxu0
        %6928 = vmatpush.msra.mxu0 %v4267
        %6929 = vmatpush.msra.mxu0 %v4259
        %6930 = vmatpush.msra.mxu0 %v4251
        %6931 = vmatpush.msra.mxu0 %v4243
        %6932 = vmatpush.msra.mxu0 %v4235
        %6933 = vmatpush.msra.mxu0 %v4227
        %6934 = vmatpush.msra.mxu0 %v4219
        %6935 = vmatpush.msra.mxu0 %v4211
        %6936 = vmatpush.msra.mxu0 %v4203
        %6937 = vmatpush.msra.mxu0 %v4195
        %6938 = vmatpush.msra.mxu0 %v4187
        %6939 = vmatpush.msra.mxu0 %v4179
        %6940 = vmatpush.msra.mxu0 %v4171
        %6941 = vmatpush.msra.mxu0 %v4163
        %6942 = vmatpush.msra.mxu0 %v4155
        %6943 = vmatpush.msra.mxu0 %v4147
        %6944 = vmatmul.f32.gmra.mxu0 %v302
        %v6945 = vpop.f32.mrf.mxu0
        %v6946 = vadd.f32 %v6926, %v6945
        %6947 = vdwg.mxu0
        %6948 = vmatpush.msra.mxu0 %v4395
        %6949 = vmatpush.msra.mxu0 %v4387
        %6950 = vmatpush.msra.mxu0 %v4379
        %6951 = vmatpush.msra.mxu0 %v4371
        %6952 = vmatpush.msra.mxu0 %v4363
        %6953 = vmatpush.msra.mxu0 %v4355
        %6954 = vmatpush.msra.mxu0 %v4347
        %6955 = vmatpush.msra.mxu0 %v4339
        %6956 = vmatpush.msra.mxu0 %v4331
        %6957 = vmatpush.msra.mxu0 %v4323
        %6958 = vmatpush.msra.mxu0 %v4315
        %6959 = vmatpush.msra.mxu0 %v4307
        %6960 = vmatpush.msra.mxu0 %v4299
        %6961 = vmatpush.msra.mxu0 %v4291
        %6962 = vmatpush.msra.mxu0 %v4283
        %6963 = vmatpush.msra.mxu0 %v4275
        %6964 = vmatmul.f32.gmra.mxu0 %v303
        %v6965 = vpop.f32.mrf.mxu0
        %v6966 = vadd.f32 %v6946, %v6965
        %6967 = vdwg.mxu0
        %6968 = vmatpush.msra.mxu0 %v428
        %6969 = vmatpush.msra.mxu0 %v420
        %6970 = vmatpush.msra.mxu0 %v412
        %6971 = vmatpush.msra.mxu0 %v404
        %6972 = vmatpush.msra.mxu0 %v396
        %6973 = vmatpush.msra.mxu0 %v388
        %6974 = vmatpush.msra.mxu0 %v380
        %6975 = vmatpush.msra.mxu0 %v372
        %6976 = vmatpush.msra.mxu0 %v364
        %6977 = vmatpush.msra.mxu0 %v356
        %6978 = vmatpush.msra.mxu0 %v348
        %6979 = vmatpush.msra.mxu0 %v340
        %6980 = vmatpush.msra.mxu0 %v332
        %6981 = vmatpush.msra.mxu0 %v324
        %6982 = vmatpush.msra.mxu0 %v316
        %6983 = vmatpush.msra.mxu0 %v308
        %6984 = vmatmul.f32.gmra.mxu0 %v272
        %v6985 = vpop.f32.mrf.mxu0
        %v6986 = vadd.f32 %v4404, %v6985
        %6987 = vdwg.mxu0
        %6988 = vmatpush.msra.mxu0 %v556
        %6989 = vmatpush.msra.mxu0 %v548
        %6990 = vmatpush.msra.mxu0 %v540
        %6991 = vmatpush.msra.mxu0 %v532
        %6992 = vmatpush.msra.mxu0 %v524
        %6993 = vmatpush.msra.mxu0 %v516
        %6994 = vmatpush.msra.mxu0 %v508
        %6995 = vmatpush.msra.mxu0 %v500
        %6996 = vmatpush.msra.mxu0 %v492
        %6997 = vmatpush.msra.mxu0 %v484
        %6998 = vmatpush.msra.mxu0 %v476
        %6999 = vmatpush.msra.mxu0 %v468
        %7000 = vmatpush.msra.mxu0 %v460
        %7001 = vmatpush.msra.mxu0 %v452
        %7002 = vmatpush.msra.mxu0 %v444
        %7003 = vmatpush.msra.mxu0 %v436
        %7004 = vmatmul.f32.gmra.mxu0 %v273
        %v7005 = vpop.f32.mrf.mxu0
        %v7006 = vadd.f32 %v6986, %v7005
        %7007 = vdwg.mxu0
        %7008 = vmatpush.msra.mxu0 %v684
        %7009 = vmatpush.msra.mxu0 %v676
        %7010 = vmatpush.msra.mxu0 %v668
        %7011 = vmatpush.msra.mxu0 %v660
        %7012 = vmatpush.msra.mxu0 %v652
        %7013 = vmatpush.msra.mxu0 %v644
        %7014 = vmatpush.msra.mxu0 %v636
        %7015 = vmatpush.msra.mxu0 %v628
        %7016 = vmatpush.msra.mxu0 %v620
        %7017 = vmatpush.msra.mxu0 %v612
        %7018 = vmatpush.msra.mxu0 %v604
        %7019 = vmatpush.msra.mxu0 %v596
        %7020 = vmatpush.msra.mxu0 %v588
        %7021 = vmatpush.msra.mxu0 %v580
        %7022 = vmatpush.msra.mxu0 %v572
        %7023 = vmatpush.msra.mxu0 %v564
        %7024 = vmatmul.f32.gmra.mxu0 %v274
        %v7025 = vpop.f32.mrf.mxu0
        %v7026 = vadd.f32 %v7006, %v7025
        %7027 = vdwg.mxu0
        %7028 = vmatpush.msra.mxu0 %v812
        %7029 = vmatpush.msra.mxu0 %v804
        %7030 = vmatpush.msra.mxu0 %v796
        %7031 = vmatpush.msra.mxu0 %v788
        %7032 = vmatpush.msra.mxu0 %v780
        %7033 = vmatpush.msra.mxu0 %v772
        %7034 = vmatpush.msra.mxu0 %v764
        %7035 = vmatpush.msra.mxu0 %v756
        %7036 = vmatpush.msra.mxu0 %v748
        %7037 = vmatpush.msra.mxu0 %v740
        %7038 = vmatpush.msra.mxu0 %v732
        %7039 = vmatpush.msra.mxu0 %v724
        %7040 = vmatpush.msra.mxu0 %v716
        %7041 = vmatpush.msra.mxu0 %v708
        %7042 = vmatpush.msra.mxu0 %v700
        %7043 = vmatpush.msra.mxu0 %v692
        %7044 = vmatmul.f32.gmra.mxu0 %v275
        %v7045 = vpop.f32.mrf.mxu0
        %v7046 = vadd.f32 %v7026, %v7045
        %7047 = vdwg.mxu0
        %7048 = vmatpush.msra.mxu0 %v940
        %7049 = vmatpush.msra.mxu0 %v932
        %7050 = vmatpush.msra.mxu0 %v924
        %7051 = vmatpush.msra.mxu0 %v916
        %7052 = vmatpush.msra.mxu0 %v908
        %7053 = vmatpush.msra.mxu0 %v900
        %7054 = vmatpush.msra.mxu0 %v892
        %7055 = vmatpush.msra.mxu0 %v884
        %7056 = vmatpush.msra.mxu0 %v876
        %7057 = vmatpush.msra.mxu0 %v868
        %7058 = vmatpush.msra.mxu0 %v860
        %7059 = vmatpush.msra.mxu0 %v852
        %7060 = vmatpush.msra.mxu0 %v844
        %7061 = vmatpush.msra.mxu0 %v836
        %7062 = vmatpush.msra.mxu0 %v828
        %7063 = vmatpush.msra.mxu0 %v820
        %7064 = vmatmul.f32.gmra.mxu0 %v276
        %v7065 = vpop.f32.mrf.mxu0
        %v7066 = vadd.f32 %v7046, %v7065
        %7067 = vdwg.mxu0
        %7068 = vmatpush.msra.mxu0 %v1068
        %7069 = vmatpush.msra.mxu0 %v1060
        %7070 = vmatpush.msra.mxu0 %v1052
        %7071 = vmatpush.msra.mxu0 %v1044
        %7072 = vmatpush.msra.mxu0 %v1036
        %7073 = vmatpush.msra.mxu0 %v1028
        %7074 = vmatpush.msra.mxu0 %v1020
        %7075 = vmatpush.msra.mxu0 %v1012
        %7076 = vmatpush.msra.mxu0 %v1004
        %7077 = vmatpush.msra.mxu0 %v996
        %7078 = vmatpush.msra.mxu0 %v988
        %7079 = vmatpush.msra.mxu0 %v980
        %7080 = vmatpush.msra.mxu0 %v972
        %7081 = vmatpush.msra.mxu0 %v964
        %7082 = vmatpush.msra.mxu0 %v956
        %7083 = vmatpush.msra.mxu0 %v948
        %7084 = vmatmul.f32.gmra.mxu0 %v277
        %v7085 = vpop.f32.mrf.mxu0
        %v7086 = vadd.f32 %v7066, %v7085
        %7087 = vdwg.mxu0
        %7088 = vmatpush.msra.mxu0 %v1196
        %7089 = vmatpush.msra.mxu0 %v1188
        %7090 = vmatpush.msra.mxu0 %v1180
        %7091 = vmatpush.msra.mxu0 %v1172
        %7092 = vmatpush.msra.mxu0 %v1164
        %7093 = vmatpush.msra.mxu0 %v1156
        %7094 = vmatpush.msra.mxu0 %v1148
        %7095 = vmatpush.msra.mxu0 %v1140
        %7096 = vmatpush.msra.mxu0 %v1132
        %7097 = vmatpush.msra.mxu0 %v1124
        %7098 = vmatpush.msra.mxu0 %v1116
        %7099 = vmatpush.msra.mxu0 %v1108
        %7100 = vmatpush.msra.mxu0 %v1100
        %7101 = vmatpush.msra.mxu0 %v1092
        %7102 = vmatpush.msra.mxu0 %v1084
        %7103 = vmatpush.msra.mxu0 %v1076
        %7104 = vmatmul.f32.gmra.mxu0 %v278
        %v7105 = vpop.f32.mrf.mxu0
        %v7106 = vadd.f32 %v7086, %v7105
        %7107 = vdwg.mxu0
        %7108 = vmatpush.msra.mxu0 %v1324
        %7109 = vmatpush.msra.mxu0 %v1316
        %7110 = vmatpush.msra.mxu0 %v1308
        %7111 = vmatpush.msra.mxu0 %v1300
        %7112 = vmatpush.msra.mxu0 %v1292
        %7113 = vmatpush.msra.mxu0 %v1284
        %7114 = vmatpush.msra.mxu0 %v1276
        %7115 = vmatpush.msra.mxu0 %v1268
        %7116 = vmatpush.msra.mxu0 %v1260
        %7117 = vmatpush.msra.mxu0 %v1252
        %7118 = vmatpush.msra.mxu0 %v1244
        %7119 = vmatpush.msra.mxu0 %v1236
        %7120 = vmatpush.msra.mxu0 %v1228
        %7121 = vmatpush.msra.mxu0 %v1220
        %7122 = vmatpush.msra.mxu0 %v1212
        %7123 = vmatpush.msra.mxu0 %v1204
        %7124 = vmatmul.f32.gmra.mxu0 %v279
        %v7125 = vpop.f32.mrf.mxu0
        %v7126 = vadd.f32 %v7106, %v7125
        %7127 = vdwg.mxu0
        %7128 = vmatpush.msra.mxu0 %v1452
        %7129 = vmatpush.msra.mxu0 %v1444
        %7130 = vmatpush.msra.mxu0 %v1436
        %7131 = vmatpush.msra.mxu0 %v1428
        %7132 = vmatpush.msra.mxu0 %v1420
        %7133 = vmatpush.msra.mxu0 %v1412
        %7134 = vmatpush.msra.mxu0 %v1404
        %7135 = vmatpush.msra.mxu0 %v1396
        %7136 = vmatpush.msra.mxu0 %v1388
        %7137 = vmatpush.msra.mxu0 %v1380
        %7138 = vmatpush.msra.mxu0 %v1372
        %7139 = vmatpush.msra.mxu0 %v1364
        %7140 = vmatpush.msra.mxu0 %v1356
        %7141 = vmatpush.msra.mxu0 %v1348
        %7142 = vmatpush.msra.mxu0 %v1340
        %7143 = vmatpush.msra.mxu0 %v1332
        %7144 = vmatmul.f32.gmra.mxu0 %v280
        %v7145 = vpop.f32.mrf.mxu0
        %v7146 = vadd.f32 %v7126, %v7145
        %7147 = vdwg.mxu0
        %7148 = vmatpush.msra.mxu0 %v1580
        %7149 = vmatpush.msra.mxu0 %v1572
        %7150 = vmatpush.msra.mxu0 %v1564
        %7151 = vmatpush.msra.mxu0 %v1556
        %7152 = vmatpush.msra.mxu0 %v1548
        %7153 = vmatpush.msra.mxu0 %v1540
        %7154 = vmatpush.msra.mxu0 %v1532
        %7155 = vmatpush.msra.mxu0 %v1524
        %7156 = vmatpush.msra.mxu0 %v1516
        %7157 = vmatpush.msra.mxu0 %v1508
        %7158 = vmatpush.msra.mxu0 %v1500
        %7159 = vmatpush.msra.mxu0 %v1492
        %7160 = vmatpush.msra.mxu0 %v1484
        %7161 = vmatpush.msra.mxu0 %v1476
        %7162 = vmatpush.msra.mxu0 %v1468
        %7163 = vmatpush.msra.mxu0 %v1460
        %7164 = vmatmul.f32.gmra.mxu0 %v281
        %v7165 = vpop.f32.mrf.mxu0
        %v7166 = vadd.f32 %v7146, %v7165
        %7167 = vdwg.mxu0
        %7168 = vmatpush.msra.mxu0 %v1708
        %7169 = vmatpush.msra.mxu0 %v1700
        %7170 = vmatpush.msra.mxu0 %v1692
        %7171 = vmatpush.msra.mxu0 %v1684
        %7172 = vmatpush.msra.mxu0 %v1676
        %7173 = vmatpush.msra.mxu0 %v1668
        %7174 = vmatpush.msra.mxu0 %v1660
        %7175 = vmatpush.msra.mxu0 %v1652
        %7176 = vmatpush.msra.mxu0 %v1644
        %7177 = vmatpush.msra.mxu0 %v1636
        %7178 = vmatpush.msra.mxu0 %v1628
        %7179 = vmatpush.msra.mxu0 %v1620
        %7180 = vmatpush.msra.mxu0 %v1612
        %7181 = vmatpush.msra.mxu0 %v1604
        %7182 = vmatpush.msra.mxu0 %v1596
        %7183 = vmatpush.msra.mxu0 %v1588
        %7184 = vmatmul.f32.gmra.mxu0 %v282
        %v7185 = vpop.f32.mrf.mxu0
        %v7186 = vadd.f32 %v7166, %v7185
        %7187 = vdwg.mxu0
        %7188 = vmatpush.msra.mxu0 %v1836
        %7189 = vmatpush.msra.mxu0 %v1828
        %7190 = vmatpush.msra.mxu0 %v1820
        %7191 = vmatpush.msra.mxu0 %v1812
        %7192 = vmatpush.msra.mxu0 %v1804
        %7193 = vmatpush.msra.mxu0 %v1796
        %7194 = vmatpush.msra.mxu0 %v1788
        %7195 = vmatpush.msra.mxu0 %v1780
        %7196 = vmatpush.msra.mxu0 %v1772
        %7197 = vmatpush.msra.mxu0 %v1764
        %7198 = vmatpush.msra.mxu0 %v1756
        %7199 = vmatpush.msra.mxu0 %v1748
        %7200 = vmatpush.msra.mxu0 %v1740
        %7201 = vmatpush.msra.mxu0 %v1732
        %7202 = vmatpush.msra.mxu0 %v1724
        %7203 = vmatpush.msra.mxu0 %v1716
        %7204 = vmatmul.f32.gmra.mxu0 %v283
        %v7205 = vpop.f32.mrf.mxu0
        %v7206 = vadd.f32 %v7186, %v7205
        %7207 = vdwg.mxu0
        %7208 = vmatpush.msra.mxu0 %v1964
        %7209 = vmatpush.msra.mxu0 %v1956
        %7210 = vmatpush.msra.mxu0 %v1948
        %7211 = vmatpush.msra.mxu0 %v1940
        %7212 = vmatpush.msra.mxu0 %v1932
        %7213 = vmatpush.msra.mxu0 %v1924
        %7214 = vmatpush.msra.mxu0 %v1916
        %7215 = vmatpush.msra.mxu0 %v1908
        %7216 = vmatpush.msra.mxu0 %v1900
        %7217 = vmatpush.msra.mxu0 %v1892
        %7218 = vmatpush.msra.mxu0 %v1884
        %7219 = vmatpush.msra.mxu0 %v1876
        %7220 = vmatpush.msra.mxu0 %v1868
        %7221 = vmatpush.msra.mxu0 %v1860
        %7222 = vmatpush.msra.mxu0 %v1852
        %7223 = vmatpush.msra.mxu0 %v1844
        %7224 = vmatmul.f32.gmra.mxu0 %v284
        %v7225 = vpop.f32.mrf.mxu0
        %v7226 = vadd.f32 %v7206, %v7225
        %7227 = vdwg.mxu0
        %7228 = vmatpush.msra.mxu0 %v2092
        %7229 = vmatpush.msra.mxu0 %v2084
        %7230 = vmatpush.msra.mxu0 %v2076
        %7231 = vmatpush.msra.mxu0 %v2068
        %7232 = vmatpush.msra.mxu0 %v2060
        %7233 = vmatpush.msra.mxu0 %v2052
        %7234 = vmatpush.msra.mxu0 %v2044
        %7235 = vmatpush.msra.mxu0 %v2036
        %7236 = vmatpush.msra.mxu0 %v2028
        %7237 = vmatpush.msra.mxu0 %v2020
        %7238 = vmatpush.msra.mxu0 %v2012
        %7239 = vmatpush.msra.mxu0 %v2004
        %7240 = vmatpush.msra.mxu0 %v1996
        %7241 = vmatpush.msra.mxu0 %v1988
        %7242 = vmatpush.msra.mxu0 %v1980
        %7243 = vmatpush.msra.mxu0 %v1972
        %7244 = vmatmul.f32.gmra.mxu0 %v285
        %v7245 = vpop.f32.mrf.mxu0
        %v7246 = vadd.f32 %v7226, %v7245
        %7247 = vdwg.mxu0
        %7248 = vmatpush.msra.mxu0 %v2220
        %7249 = vmatpush.msra.mxu0 %v2212
        %7250 = vmatpush.msra.mxu0 %v2204
        %7251 = vmatpush.msra.mxu0 %v2196
        %7252 = vmatpush.msra.mxu0 %v2188
        %7253 = vmatpush.msra.mxu0 %v2180
        %7254 = vmatpush.msra.mxu0 %v2172
        %7255 = vmatpush.msra.mxu0 %v2164
        %7256 = vmatpush.msra.mxu0 %v2156
        %7257 = vmatpush.msra.mxu0 %v2148
        %7258 = vmatpush.msra.mxu0 %v2140
        %7259 = vmatpush.msra.mxu0 %v2132
        %7260 = vmatpush.msra.mxu0 %v2124
        %7261 = vmatpush.msra.mxu0 %v2116
        %7262 = vmatpush.msra.mxu0 %v2108
        %7263 = vmatpush.msra.mxu0 %v2100
        %7264 = vmatmul.f32.gmra.mxu0 %v286
        %v7265 = vpop.f32.mrf.mxu0
        %v7266 = vadd.f32 %v7246, %v7265
        %7267 = vdwg.mxu0
        %7268 = vmatpush.msra.mxu0 %v2348
        %7269 = vmatpush.msra.mxu0 %v2340
        %7270 = vmatpush.msra.mxu0 %v2332
        %7271 = vmatpush.msra.mxu0 %v2324
        %7272 = vmatpush.msra.mxu0 %v2316
        %7273 = vmatpush.msra.mxu0 %v2308
        %7274 = vmatpush.msra.mxu0 %v2300
        %7275 = vmatpush.msra.mxu0 %v2292
        %7276 = vmatpush.msra.mxu0 %v2284
        %7277 = vmatpush.msra.mxu0 %v2276
        %7278 = vmatpush.msra.mxu0 %v2268
        %7279 = vmatpush.msra.mxu0 %v2260
        %7280 = vmatpush.msra.mxu0 %v2252
        %7281 = vmatpush.msra.mxu0 %v2244
        %7282 = vmatpush.msra.mxu0 %v2236
        %7283 = vmatpush.msra.mxu0 %v2228
        %7284 = vmatmul.f32.gmra.mxu0 %v287
        %v7285 = vpop.f32.mrf.mxu0
        %v7286 = vadd.f32 %v7266, %v7285
        %7287 = vdwg.mxu0
        %7288 = vmatpush.msra.mxu0 %v2476
        %7289 = vmatpush.msra.mxu0 %v2468
        %7290 = vmatpush.msra.mxu0 %v2460
        %7291 = vmatpush.msra.mxu0 %v2452
        %7292 = vmatpush.msra.mxu0 %v2444
        %7293 = vmatpush.msra.mxu0 %v2436
        %7294 = vmatpush.msra.mxu0 %v2428
        %7295 = vmatpush.msra.mxu0 %v2420
        %7296 = vmatpush.msra.mxu0 %v2412
        %7297 = vmatpush.msra.mxu0 %v2404
        %7298 = vmatpush.msra.mxu0 %v2396
        %7299 = vmatpush.msra.mxu0 %v2388
        %7300 = vmatpush.msra.mxu0 %v2380
        %7301 = vmatpush.msra.mxu0 %v2372
        %7302 = vmatpush.msra.mxu0 %v2364
        %7303 = vmatpush.msra.mxu0 %v2356
        %7304 = vmatmul.f32.gmra.mxu0 %v288
        %v7305 = vpop.f32.mrf.mxu0
        %v7306 = vadd.f32 %v7286, %v7305
        %7307 = vdwg.mxu0
        %7308 = vmatpush.msra.mxu0 %v2604
        %7309 = vmatpush.msra.mxu0 %v2596
        %7310 = vmatpush.msra.mxu0 %v2588
        %7311 = vmatpush.msra.mxu0 %v2580
        %7312 = vmatpush.msra.mxu0 %v2572
        %7313 = vmatpush.msra.mxu0 %v2564
        %7314 = vmatpush.msra.mxu0 %v2556
        %7315 = vmatpush.msra.mxu0 %v2548
        %7316 = vmatpush.msra.mxu0 %v2540
        %7317 = vmatpush.msra.mxu0 %v2532
        %7318 = vmatpush.msra.mxu0 %v2524
        %7319 = vmatpush.msra.mxu0 %v2516
        %7320 = vmatpush.msra.mxu0 %v2508
        %7321 = vmatpush.msra.mxu0 %v2500
        %7322 = vmatpush.msra.mxu0 %v2492
        %7323 = vmatpush.msra.mxu0 %v2484
        %7324 = vmatmul.f32.gmra.mxu0 %v289
        %v7325 = vpop.f32.mrf.mxu0
        %v7326 = vadd.f32 %v7306, %v7325
        %7327 = vdwg.mxu0
        %7328 = vmatpush.msra.mxu0 %v2732
        %7329 = vmatpush.msra.mxu0 %v2724
        %7330 = vmatpush.msra.mxu0 %v2716
        %7331 = vmatpush.msra.mxu0 %v2708
        %7332 = vmatpush.msra.mxu0 %v2700
        %7333 = vmatpush.msra.mxu0 %v2692
        %7334 = vmatpush.msra.mxu0 %v2684
        %7335 = vmatpush.msra.mxu0 %v2676
        %7336 = vmatpush.msra.mxu0 %v2668
        %7337 = vmatpush.msra.mxu0 %v2660
        %7338 = vmatpush.msra.mxu0 %v2652
        %7339 = vmatpush.msra.mxu0 %v2644
        %7340 = vmatpush.msra.mxu0 %v2636
        %7341 = vmatpush.msra.mxu0 %v2628
        %7342 = vmatpush.msra.mxu0 %v2620
        %7343 = vmatpush.msra.mxu0 %v2612
        %7344 = vmatmul.f32.gmra.mxu0 %v290
        %v7345 = vpop.f32.mrf.mxu0
        %v7346 = vadd.f32 %v7326, %v7345
        %7347 = vdwg.mxu0
        %7348 = vmatpush.msra.mxu0 %v2860
        %7349 = vmatpush.msra.mxu0 %v2852
        %7350 = vmatpush.msra.mxu0 %v2844
        %7351 = vmatpush.msra.mxu0 %v2836
        %7352 = vmatpush.msra.mxu0 %v2828
        %7353 = vmatpush.msra.mxu0 %v2820
        %7354 = vmatpush.msra.mxu0 %v2812
        %7355 = vmatpush.msra.mxu0 %v2804
        %7356 = vmatpush.msra.mxu0 %v2796
        %7357 = vmatpush.msra.mxu0 %v2788
        %7358 = vmatpush.msra.mxu0 %v2780
        %7359 = vmatpush.msra.mxu0 %v2772
        %7360 = vmatpush.msra.mxu0 %v2764
        %7361 = vmatpush.msra.mxu0 %v2756
        %7362 = vmatpush.msra.mxu0 %v2748
        %7363 = vmatpush.msra.mxu0 %v2740
        %7364 = vmatmul.f32.gmra.mxu0 %v291
        %v7365 = vpop.f32.mrf.mxu0
        %v7366 = vadd.f32 %v7346, %v7365
        %7367 = vdwg.mxu0
        %7368 = vmatpush.msra.mxu0 %v2988
        %7369 = vmatpush.msra.mxu0 %v2980
        %7370 = vmatpush.msra.mxu0 %v2972
        %7371 = vmatpush.msra.mxu0 %v2964
        %7372 = vmatpush.msra.mxu0 %v2956
        %7373 = vmatpush.msra.mxu0 %v2948
        %7374 = vmatpush.msra.mxu0 %v2940
        %7375 = vmatpush.msra.mxu0 %v2932
        %7376 = vmatpush.msra.mxu0 %v2924
        %7377 = vmatpush.msra.mxu0 %v2916
        %7378 = vmatpush.msra.mxu0 %v2908
        %7379 = vmatpush.msra.mxu0 %v2900
        %7380 = vmatpush.msra.mxu0 %v2892
        %7381 = vmatpush.msra.mxu0 %v2884
        %7382 = vmatpush.msra.mxu0 %v2876
        %7383 = vmatpush.msra.mxu0 %v2868
        %7384 = vmatmul.f32.gmra.mxu0 %v292
        %v7385 = vpop.f32.mrf.mxu0
        %v7386 = vadd.f32 %v7366, %v7385
        %7387 = vdwg.mxu0
        %7388 = vmatpush.msra.mxu0 %v3116
        %7389 = vmatpush.msra.mxu0 %v3108
        %7390 = vmatpush.msra.mxu0 %v3100
        %7391 = vmatpush.msra.mxu0 %v3092
        %7392 = vmatpush.msra.mxu0 %v3084
        %7393 = vmatpush.msra.mxu0 %v3076
        %7394 = vmatpush.msra.mxu0 %v3068
        %7395 = vmatpush.msra.mxu0 %v3060
        %7396 = vmatpush.msra.mxu0 %v3052
        %7397 = vmatpush.msra.mxu0 %v3044
        %7398 = vmatpush.msra.mxu0 %v3036
        %7399 = vmatpush.msra.mxu0 %v3028
        %7400 = vmatpush.msra.mxu0 %v3020
        %7401 = vmatpush.msra.mxu0 %v3012
        %7402 = vmatpush.msra.mxu0 %v3004
        %7403 = vmatpush.msra.mxu0 %v2996
        %7404 = vmatmul.f32.gmra.mxu0 %v293
        %v7405 = vpop.f32.mrf.mxu0
        %v7406 = vadd.f32 %v7386, %v7405
        %7407 = vdwg.mxu0
        %7408 = vmatpush.msra.mxu0 %v3244
        %7409 = vmatpush.msra.mxu0 %v3236
        %7410 = vmatpush.msra.mxu0 %v3228
        %7411 = vmatpush.msra.mxu0 %v3220
        %7412 = vmatpush.msra.mxu0 %v3212
        %7413 = vmatpush.msra.mxu0 %v3204
        %7414 = vmatpush.msra.mxu0 %v3196
        %7415 = vmatpush.msra.mxu0 %v3188
        %7416 = vmatpush.msra.mxu0 %v3180
        %7417 = vmatpush.msra.mxu0 %v3172
        %7418 = vmatpush.msra.mxu0 %v3164
        %7419 = vmatpush.msra.mxu0 %v3156
        %7420 = vmatpush.msra.mxu0 %v3148
        %7421 = vmatpush.msra.mxu0 %v3140
        %7422 = vmatpush.msra.mxu0 %v3132
        %7423 = vmatpush.msra.mxu0 %v3124
        %7424 = vmatmul.f32.gmra.mxu0 %v294
        %v7425 = vpop.f32.mrf.mxu0
        %v7426 = vadd.f32 %v7406, %v7425
        %7427 = vdwg.mxu0
        %7428 = vmatpush.msra.mxu0 %v3372
        %7429 = vmatpush.msra.mxu0 %v3364
        %7430 = vmatpush.msra.mxu0 %v3356
        %7431 = vmatpush.msra.mxu0 %v3348
        %7432 = vmatpush.msra.mxu0 %v3340
        %7433 = vmatpush.msra.mxu0 %v3332
        %7434 = vmatpush.msra.mxu0 %v3324
        %7435 = vmatpush.msra.mxu0 %v3316
        %7436 = vmatpush.msra.mxu0 %v3308
        %7437 = vmatpush.msra.mxu0 %v3300
        %7438 = vmatpush.msra.mxu0 %v3292
        %7439 = vmatpush.msra.mxu0 %v3284
        %7440 = vmatpush.msra.mxu0 %v3276
        %7441 = vmatpush.msra.mxu0 %v3268
        %7442 = vmatpush.msra.mxu0 %v3260
        %7443 = vmatpush.msra.mxu0 %v3252
        %7444 = vmatmul.f32.gmra.mxu0 %v295
        %v7445 = vpop.f32.mrf.mxu0
        %v7446 = vadd.f32 %v7426, %v7445
        %7447 = vdwg.mxu0
        %7448 = vmatpush.msra.mxu0 %v3500
        %7449 = vmatpush.msra.mxu0 %v3492
        %7450 = vmatpush.msra.mxu0 %v3484
        %7451 = vmatpush.msra.mxu0 %v3476
        %7452 = vmatpush.msra.mxu0 %v3468
        %7453 = vmatpush.msra.mxu0 %v3460
        %7454 = vmatpush.msra.mxu0 %v3452
        %7455 = vmatpush.msra.mxu0 %v3444
        %7456 = vmatpush.msra.mxu0 %v3436
        %7457 = vmatpush.msra.mxu0 %v3428
        %7458 = vmatpush.msra.mxu0 %v3420
        %7459 = vmatpush.msra.mxu0 %v3412
        %7460 = vmatpush.msra.mxu0 %v3404
        %7461 = vmatpush.msra.mxu0 %v3396
        %7462 = vmatpush.msra.mxu0 %v3388
        %7463 = vmatpush.msra.mxu0 %v3380
        %7464 = vmatmul.f32.gmra.mxu0 %v296
        %v7465 = vpop.f32.mrf.mxu0
        %v7466 = vadd.f32 %v7446, %v7465
        %7467 = vdwg.mxu0
        %7468 = vmatpush.msra.mxu0 %v3628
        %7469 = vmatpush.msra.mxu0 %v3620
        %7470 = vmatpush.msra.mxu0 %v3612
        %7471 = vmatpush.msra.mxu0 %v3604
        %7472 = vmatpush.msra.mxu0 %v3596
        %7473 = vmatpush.msra.mxu0 %v3588
        %7474 = vmatpush.msra.mxu0 %v3580
        %7475 = vmatpush.msra.mxu0 %v3572
        %7476 = vmatpush.msra.mxu0 %v3564
        %7477 = vmatpush.msra.mxu0 %v3556
        %7478 = vmatpush.msra.mxu0 %v3548
        %7479 = vmatpush.msra.mxu0 %v3540
        %7480 = vmatpush.msra.mxu0 %v3532
        %7481 = vmatpush.msra.mxu0 %v3524
        %7482 = vmatpush.msra.mxu0 %v3516
        %7483 = vmatpush.msra.mxu0 %v3508
        %7484 = vmatmul.f32.gmra.mxu0 %v297
        %v7485 = vpop.f32.mrf.mxu0
        %v7486 = vadd.f32 %v7466, %v7485
        %7487 = vdwg.mxu0
        %7488 = vmatpush.msra.mxu0 %v3756
        %7489 = vmatpush.msra.mxu0 %v3748
        %7490 = vmatpush.msra.mxu0 %v3740
        %7491 = vmatpush.msra.mxu0 %v3732
        %7492 = vmatpush.msra.mxu0 %v3724
        %7493 = vmatpush.msra.mxu0 %v3716
        %7494 = vmatpush.msra.mxu0 %v3708
        %7495 = vmatpush.msra.mxu0 %v3700
        %7496 = vmatpush.msra.mxu0 %v3692
        %7497 = vmatpush.msra.mxu0 %v3684
        %7498 = vmatpush.msra.mxu0 %v3676
        %7499 = vmatpush.msra.mxu0 %v3668
        %7500 = vmatpush.msra.mxu0 %v3660
        %7501 = vmatpush.msra.mxu0 %v3652
        %7502 = vmatpush.msra.mxu0 %v3644
        %7503 = vmatpush.msra.mxu0 %v3636
        %7504 = vmatmul.f32.gmra.mxu0 %v298
        %v7505 = vpop.f32.mrf.mxu0
        %v7506 = vadd.f32 %v7486, %v7505
        %7507 = vdwg.mxu0
        %7508 = vmatpush.msra.mxu0 %v3884
        %7509 = vmatpush.msra.mxu0 %v3876
        %7510 = vmatpush.msra.mxu0 %v3868
        %7511 = vmatpush.msra.mxu0 %v3860
        %7512 = vmatpush.msra.mxu0 %v3852
        %7513 = vmatpush.msra.mxu0 %v3844
        %7514 = vmatpush.msra.mxu0 %v3836
        %7515 = vmatpush.msra.mxu0 %v3828
        %7516 = vmatpush.msra.mxu0 %v3820
        %7517 = vmatpush.msra.mxu0 %v3812
        %7518 = vmatpush.msra.mxu0 %v3804
        %7519 = vmatpush.msra.mxu0 %v3796
        %7520 = vmatpush.msra.mxu0 %v3788
        %7521 = vmatpush.msra.mxu0 %v3780
        %7522 = vmatpush.msra.mxu0 %v3772
        %7523 = vmatpush.msra.mxu0 %v3764
        %7524 = vmatmul.f32.gmra.mxu0 %v299
        %v7525 = vpop.f32.mrf.mxu0
        %v7526 = vadd.f32 %v7506, %v7525
        %7527 = vdwg.mxu0
        %7528 = vmatpush.msra.mxu0 %v4012
        %7529 = vmatpush.msra.mxu0 %v4004
        %7530 = vmatpush.msra.mxu0 %v3996
        %7531 = vmatpush.msra.mxu0 %v3988
        %7532 = vmatpush.msra.mxu0 %v3980
        %7533 = vmatpush.msra.mxu0 %v3972
        %7534 = vmatpush.msra.mxu0 %v3964
        %7535 = vmatpush.msra.mxu0 %v3956
        %7536 = vmatpush.msra.mxu0 %v3948
        %7537 = vmatpush.msra.mxu0 %v3940
        %7538 = vmatpush.msra.mxu0 %v3932
        %7539 = vmatpush.msra.mxu0 %v3924
        %7540 = vmatpush.msra.mxu0 %v3916
        %7541 = vmatpush.msra.mxu0 %v3908
        %7542 = vmatpush.msra.mxu0 %v3900
        %7543 = vmatpush.msra.mxu0 %v3892
        %7544 = vmatmul.f32.gmra.mxu0 %v300
        %v7545 = vpop.f32.mrf.mxu0
        %v7546 = vadd.f32 %v7526, %v7545
        %7547 = vdwg.mxu0
        %7548 = vmatpush.msra.mxu0 %v4140
        %7549 = vmatpush.msra.mxu0 %v4132
        %7550 = vmatpush.msra.mxu0 %v4124
        %7551 = vmatpush.msra.mxu0 %v4116
        %7552 = vmatpush.msra.mxu0 %v4108
        %7553 = vmatpush.msra.mxu0 %v4100
        %7554 = vmatpush.msra.mxu0 %v4092
        %7555 = vmatpush.msra.mxu0 %v4084
        %7556 = vmatpush.msra.mxu0 %v4076
        %7557 = vmatpush.msra.mxu0 %v4068
        %7558 = vmatpush.msra.mxu0 %v4060
        %7559 = vmatpush.msra.mxu0 %v4052
        %7560 = vmatpush.msra.mxu0 %v4044
        %7561 = vmatpush.msra.mxu0 %v4036
        %7562 = vmatpush.msra.mxu0 %v4028
        %7563 = vmatpush.msra.mxu0 %v4020
        %7564 = vmatmul.f32.gmra.mxu0 %v301
        %v7565 = vpop.f32.mrf.mxu0
        %v7566 = vadd.f32 %v7546, %v7565
        %7567 = vdwg.mxu0
        %7568 = vmatpush.msra.mxu0 %v4268
        %7569 = vmatpush.msra.mxu0 %v4260
        %7570 = vmatpush.msra.mxu0 %v4252
        %7571 = vmatpush.msra.mxu0 %v4244
        %7572 = vmatpush.msra.mxu0 %v4236
        %7573 = vmatpush.msra.mxu0 %v4228
        %7574 = vmatpush.msra.mxu0 %v4220
        %7575 = vmatpush.msra.mxu0 %v4212
        %7576 = vmatpush.msra.mxu0 %v4204
        %7577 = vmatpush.msra.mxu0 %v4196
        %7578 = vmatpush.msra.mxu0 %v4188
        %7579 = vmatpush.msra.mxu0 %v4180
        %7580 = vmatpush.msra.mxu0 %v4172
        %7581 = vmatpush.msra.mxu0 %v4164
        %7582 = vmatpush.msra.mxu0 %v4156
        %7583 = vmatpush.msra.mxu0 %v4148
        %7584 = vmatmul.f32.gmra.mxu0 %v302
        %v7585 = vpop.f32.mrf.mxu0
        %v7586 = vadd.f32 %v7566, %v7585
        %7587 = vdwg.mxu0
        %7588 = vmatpush.msra.mxu0 %v4396
        %7589 = vmatpush.msra.mxu0 %v4388
        %7590 = vmatpush.msra.mxu0 %v4380
        %7591 = vmatpush.msra.mxu0 %v4372
        %7592 = vmatpush.msra.mxu0 %v4364
        %7593 = vmatpush.msra.mxu0 %v4356
        %7594 = vmatpush.msra.mxu0 %v4348
        %7595 = vmatpush.msra.mxu0 %v4340
        %7596 = vmatpush.msra.mxu0 %v4332
        %7597 = vmatpush.msra.mxu0 %v4324
        %7598 = vmatpush.msra.mxu0 %v4316
        %7599 = vmatpush.msra.mxu0 %v4308
        %7600 = vmatpush.msra.mxu0 %v4300
        %7601 = vmatpush.msra.mxu0 %v4292
        %7602 = vmatpush.msra.mxu0 %v4284
        %7603 = vmatpush.msra.mxu0 %v4276
        %7604 = vmatmul.f32.gmra.mxu0 %v303
        %v7605 = vpop.f32.mrf.mxu0
        %v7606 = vadd.f32 %v7586, %v7605
        %7607 = vdwg.mxu0
        %7608 = vmatpush.msra.mxu0 %v429
        %7609 = vmatpush.msra.mxu0 %v421
        %7610 = vmatpush.msra.mxu0 %v413
        %7611 = vmatpush.msra.mxu0 %v405
        %7612 = vmatpush.msra.mxu0 %v397
        %7613 = vmatpush.msra.mxu0 %v389
        %7614 = vmatpush.msra.mxu0 %v381
        %7615 = vmatpush.msra.mxu0 %v373
        %7616 = vmatpush.msra.mxu0 %v365
        %7617 = vmatpush.msra.mxu0 %v357
        %7618 = vmatpush.msra.mxu0 %v349
        %7619 = vmatpush.msra.mxu0 %v341
        %7620 = vmatpush.msra.mxu0 %v333
        %7621 = vmatpush.msra.mxu0 %v325
        %7622 = vmatpush.msra.mxu0 %v317
        %7623 = vmatpush.msra.mxu0 %v309
        %7624 = vmatmul.f32.gmra.mxu0 %v272
        %v7625 = vpop.f32.mrf.mxu0
        %v7626 = vadd.f32 %v4405, %v7625
        %7627 = vdwg.mxu0
        %7628 = vmatpush.msra.mxu0 %v557
        %7629 = vmatpush.msra.mxu0 %v549
        %7630 = vmatpush.msra.mxu0 %v541
        %7631 = vmatpush.msra.mxu0 %v533
        %7632 = vmatpush.msra.mxu0 %v525
        %7633 = vmatpush.msra.mxu0 %v517
        %7634 = vmatpush.msra.mxu0 %v509
        %7635 = vmatpush.msra.mxu0 %v501
        %7636 = vmatpush.msra.mxu0 %v493
        %7637 = vmatpush.msra.mxu0 %v485
        %7638 = vmatpush.msra.mxu0 %v477
        %7639 = vmatpush.msra.mxu0 %v469
        %7640 = vmatpush.msra.mxu0 %v461
        %7641 = vmatpush.msra.mxu0 %v453
        %7642 = vmatpush.msra.mxu0 %v445
        %7643 = vmatpush.msra.mxu0 %v437
        %7644 = vmatmul.f32.gmra.mxu0 %v273
        %v7645 = vpop.f32.mrf.mxu0
        %v7646 = vadd.f32 %v7626, %v7645
        %7647 = vdwg.mxu0
        %7648 = vmatpush.msra.mxu0 %v685
        %7649 = vmatpush.msra.mxu0 %v677
        %7650 = vmatpush.msra.mxu0 %v669
        %7651 = vmatpush.msra.mxu0 %v661
        %7652 = vmatpush.msra.mxu0 %v653
        %7653 = vmatpush.msra.mxu0 %v645
        %7654 = vmatpush.msra.mxu0 %v637
        %7655 = vmatpush.msra.mxu0 %v629
        %7656 = vmatpush.msra.mxu0 %v621
        %7657 = vmatpush.msra.mxu0 %v613
        %7658 = vmatpush.msra.mxu0 %v605
        %7659 = vmatpush.msra.mxu0 %v597
        %7660 = vmatpush.msra.mxu0 %v589
        %7661 = vmatpush.msra.mxu0 %v581
        %7662 = vmatpush.msra.mxu0 %v573
        %7663 = vmatpush.msra.mxu0 %v565
        %7664 = vmatmul.f32.gmra.mxu0 %v274
        %v7665 = vpop.f32.mrf.mxu0
        %v7666 = vadd.f32 %v7646, %v7665
        %7667 = vdwg.mxu0
        %7668 = vmatpush.msra.mxu0 %v813
        %7669 = vmatpush.msra.mxu0 %v805
        %7670 = vmatpush.msra.mxu0 %v797
        %7671 = vmatpush.msra.mxu0 %v789
        %7672 = vmatpush.msra.mxu0 %v781
        %7673 = vmatpush.msra.mxu0 %v773
        %7674 = vmatpush.msra.mxu0 %v765
        %7675 = vmatpush.msra.mxu0 %v757
        %7676 = vmatpush.msra.mxu0 %v749
        %7677 = vmatpush.msra.mxu0 %v741
        %7678 = vmatpush.msra.mxu0 %v733
        %7679 = vmatpush.msra.mxu0 %v725
        %7680 = vmatpush.msra.mxu0 %v717
        %7681 = vmatpush.msra.mxu0 %v709
        %7682 = vmatpush.msra.mxu0 %v701
        %7683 = vmatpush.msra.mxu0 %v693
        %7684 = vmatmul.f32.gmra.mxu0 %v275
        %v7685 = vpop.f32.mrf.mxu0
        %v7686 = vadd.f32 %v7666, %v7685
        %7687 = vdwg.mxu0
        %7688 = vmatpush.msra.mxu0 %v941
        %7689 = vmatpush.msra.mxu0 %v933
        %7690 = vmatpush.msra.mxu0 %v925
        %7691 = vmatpush.msra.mxu0 %v917
        %7692 = vmatpush.msra.mxu0 %v909
        %7693 = vmatpush.msra.mxu0 %v901
        %7694 = vmatpush.msra.mxu0 %v893
        %7695 = vmatpush.msra.mxu0 %v885
        %7696 = vmatpush.msra.mxu0 %v877
        %7697 = vmatpush.msra.mxu0 %v869
        %7698 = vmatpush.msra.mxu0 %v861
        %7699 = vmatpush.msra.mxu0 %v853
        %7700 = vmatpush.msra.mxu0 %v845
        %7701 = vmatpush.msra.mxu0 %v837
        %7702 = vmatpush.msra.mxu0 %v829
        %7703 = vmatpush.msra.mxu0 %v821
        %7704 = vmatmul.f32.gmra.mxu0 %v276
        %v7705 = vpop.f32.mrf.mxu0
        %v7706 = vadd.f32 %v7686, %v7705
        %7707 = vdwg.mxu0
        %7708 = vmatpush.msra.mxu0 %v1069
        %7709 = vmatpush.msra.mxu0 %v1061
        %7710 = vmatpush.msra.mxu0 %v1053
        %7711 = vmatpush.msra.mxu0 %v1045
        %7712 = vmatpush.msra.mxu0 %v1037
        %7713 = vmatpush.msra.mxu0 %v1029
        %7714 = vmatpush.msra.mxu0 %v1021
        %7715 = vmatpush.msra.mxu0 %v1013
        %7716 = vmatpush.msra.mxu0 %v1005
        %7717 = vmatpush.msra.mxu0 %v997
        %7718 = vmatpush.msra.mxu0 %v989
        %7719 = vmatpush.msra.mxu0 %v981
        %7720 = vmatpush.msra.mxu0 %v973
        %7721 = vmatpush.msra.mxu0 %v965
        %7722 = vmatpush.msra.mxu0 %v957
        %7723 = vmatpush.msra.mxu0 %v949
        %7724 = vmatmul.f32.gmra.mxu0 %v277
        %v7725 = vpop.f32.mrf.mxu0
        %v7726 = vadd.f32 %v7706, %v7725
        %7727 = vdwg.mxu0
        %7728 = vmatpush.msra.mxu0 %v1197
        %7729 = vmatpush.msra.mxu0 %v1189
        %7730 = vmatpush.msra.mxu0 %v1181
        %7731 = vmatpush.msra.mxu0 %v1173
        %7732 = vmatpush.msra.mxu0 %v1165
        %7733 = vmatpush.msra.mxu0 %v1157
        %7734 = vmatpush.msra.mxu0 %v1149
        %7735 = vmatpush.msra.mxu0 %v1141
        %7736 = vmatpush.msra.mxu0 %v1133
        %7737 = vmatpush.msra.mxu0 %v1125
        %7738 = vmatpush.msra.mxu0 %v1117
        %7739 = vmatpush.msra.mxu0 %v1109
        %7740 = vmatpush.msra.mxu0 %v1101
        %7741 = vmatpush.msra.mxu0 %v1093
        %7742 = vmatpush.msra.mxu0 %v1085
        %7743 = vmatpush.msra.mxu0 %v1077
        %7744 = vmatmul.f32.gmra.mxu0 %v278
        %v7745 = vpop.f32.mrf.mxu0
        %v7746 = vadd.f32 %v7726, %v7745
        %7747 = vdwg.mxu0
        %7748 = vmatpush.msra.mxu0 %v1325
        %7749 = vmatpush.msra.mxu0 %v1317
        %7750 = vmatpush.msra.mxu0 %v1309
        %7751 = vmatpush.msra.mxu0 %v1301
        %7752 = vmatpush.msra.mxu0 %v1293
        %7753 = vmatpush.msra.mxu0 %v1285
        %7754 = vmatpush.msra.mxu0 %v1277
        %7755 = vmatpush.msra.mxu0 %v1269
        %7756 = vmatpush.msra.mxu0 %v1261
        %7757 = vmatpush.msra.mxu0 %v1253
        %7758 = vmatpush.msra.mxu0 %v1245
        %7759 = vmatpush.msra.mxu0 %v1237
        %7760 = vmatpush.msra.mxu0 %v1229
        %7761 = vmatpush.msra.mxu0 %v1221
        %7762 = vmatpush.msra.mxu0 %v1213
        %7763 = vmatpush.msra.mxu0 %v1205
        %7764 = vmatmul.f32.gmra.mxu0 %v279
        %v7765 = vpop.f32.mrf.mxu0
        %v7766 = vadd.f32 %v7746, %v7765
        %7767 = vdwg.mxu0
        %7768 = vmatpush.msra.mxu0 %v1453
        %7769 = vmatpush.msra.mxu0 %v1445
        %7770 = vmatpush.msra.mxu0 %v1437
        %7771 = vmatpush.msra.mxu0 %v1429
        %7772 = vmatpush.msra.mxu0 %v1421
        %7773 = vmatpush.msra.mxu0 %v1413
        %7774 = vmatpush.msra.mxu0 %v1405
        %7775 = vmatpush.msra.mxu0 %v1397
        %7776 = vmatpush.msra.mxu0 %v1389
        %7777 = vmatpush.msra.mxu0 %v1381
        %7778 = vmatpush.msra.mxu0 %v1373
        %7779 = vmatpush.msra.mxu0 %v1365
        %7780 = vmatpush.msra.mxu0 %v1357
        %7781 = vmatpush.msra.mxu0 %v1349
        %7782 = vmatpush.msra.mxu0 %v1341
        %7783 = vmatpush.msra.mxu0 %v1333
        %7784 = vmatmul.f32.gmra.mxu0 %v280
        %v7785 = vpop.f32.mrf.mxu0
        %v7786 = vadd.f32 %v7766, %v7785
        %7787 = vdwg.mxu0
        %7788 = vmatpush.msra.mxu0 %v1581
        %7789 = vmatpush.msra.mxu0 %v1573
        %7790 = vmatpush.msra.mxu0 %v1565
        %7791 = vmatpush.msra.mxu0 %v1557
        %7792 = vmatpush.msra.mxu0 %v1549
        %7793 = vmatpush.msra.mxu0 %v1541
        %7794 = vmatpush.msra.mxu0 %v1533
        %7795 = vmatpush.msra.mxu0 %v1525
        %7796 = vmatpush.msra.mxu0 %v1517
        %7797 = vmatpush.msra.mxu0 %v1509
        %7798 = vmatpush.msra.mxu0 %v1501
        %7799 = vmatpush.msra.mxu0 %v1493
        %7800 = vmatpush.msra.mxu0 %v1485
        %7801 = vmatpush.msra.mxu0 %v1477
        %7802 = vmatpush.msra.mxu0 %v1469
        %7803 = vmatpush.msra.mxu0 %v1461
        %7804 = vmatmul.f32.gmra.mxu0 %v281
        %v7805 = vpop.f32.mrf.mxu0
        %v7806 = vadd.f32 %v7786, %v7805
        %7807 = vdwg.mxu0
        %7808 = vmatpush.msra.mxu0 %v1709
        %7809 = vmatpush.msra.mxu0 %v1701
        %7810 = vmatpush.msra.mxu0 %v1693
        %7811 = vmatpush.msra.mxu0 %v1685
        %7812 = vmatpush.msra.mxu0 %v1677
        %7813 = vmatpush.msra.mxu0 %v1669
        %7814 = vmatpush.msra.mxu0 %v1661
        %7815 = vmatpush.msra.mxu0 %v1653
        %7816 = vmatpush.msra.mxu0 %v1645
        %7817 = vmatpush.msra.mxu0 %v1637
        %7818 = vmatpush.msra.mxu0 %v1629
        %7819 = vmatpush.msra.mxu0 %v1621
        %7820 = vmatpush.msra.mxu0 %v1613
        %7821 = vmatpush.msra.mxu0 %v1605
        %7822 = vmatpush.msra.mxu0 %v1597
        %7823 = vmatpush.msra.mxu0 %v1589
        %7824 = vmatmul.f32.gmra.mxu0 %v282
        %v7825 = vpop.f32.mrf.mxu0
        %v7826 = vadd.f32 %v7806, %v7825
        %7827 = vdwg.mxu0
        %7828 = vmatpush.msra.mxu0 %v1837
        %7829 = vmatpush.msra.mxu0 %v1829
        %7830 = vmatpush.msra.mxu0 %v1821
        %7831 = vmatpush.msra.mxu0 %v1813
        %7832 = vmatpush.msra.mxu0 %v1805
        %7833 = vmatpush.msra.mxu0 %v1797
        %7834 = vmatpush.msra.mxu0 %v1789
        %7835 = vmatpush.msra.mxu0 %v1781
        %7836 = vmatpush.msra.mxu0 %v1773
        %7837 = vmatpush.msra.mxu0 %v1765
        %7838 = vmatpush.msra.mxu0 %v1757
        %7839 = vmatpush.msra.mxu0 %v1749
        %7840 = vmatpush.msra.mxu0 %v1741
        %7841 = vmatpush.msra.mxu0 %v1733
        %7842 = vmatpush.msra.mxu0 %v1725
        %7843 = vmatpush.msra.mxu0 %v1717
        %7844 = vmatmul.f32.gmra.mxu0 %v283
        %v7845 = vpop.f32.mrf.mxu0
        %v7846 = vadd.f32 %v7826, %v7845
        %7847 = vdwg.mxu0
        %7848 = vmatpush.msra.mxu0 %v1965
        %7849 = vmatpush.msra.mxu0 %v1957
        %7850 = vmatpush.msra.mxu0 %v1949
        %7851 = vmatpush.msra.mxu0 %v1941
        %7852 = vmatpush.msra.mxu0 %v1933
        %7853 = vmatpush.msra.mxu0 %v1925
        %7854 = vmatpush.msra.mxu0 %v1917
        %7855 = vmatpush.msra.mxu0 %v1909
        %7856 = vmatpush.msra.mxu0 %v1901
        %7857 = vmatpush.msra.mxu0 %v1893
        %7858 = vmatpush.msra.mxu0 %v1885
        %7859 = vmatpush.msra.mxu0 %v1877
        %7860 = vmatpush.msra.mxu0 %v1869
        %7861 = vmatpush.msra.mxu0 %v1861
        %7862 = vmatpush.msra.mxu0 %v1853
        %7863 = vmatpush.msra.mxu0 %v1845
        %7864 = vmatmul.f32.gmra.mxu0 %v284
        %v7865 = vpop.f32.mrf.mxu0
        %v7866 = vadd.f32 %v7846, %v7865
        %7867 = vdwg.mxu0
        %7868 = vmatpush.msra.mxu0 %v2093
        %7869 = vmatpush.msra.mxu0 %v2085
        %7870 = vmatpush.msra.mxu0 %v2077
        %7871 = vmatpush.msra.mxu0 %v2069
        %7872 = vmatpush.msra.mxu0 %v2061
        %7873 = vmatpush.msra.mxu0 %v2053
        %7874 = vmatpush.msra.mxu0 %v2045
        %7875 = vmatpush.msra.mxu0 %v2037
        %7876 = vmatpush.msra.mxu0 %v2029
        %7877 = vmatpush.msra.mxu0 %v2021
        %7878 = vmatpush.msra.mxu0 %v2013
        %7879 = vmatpush.msra.mxu0 %v2005
        %7880 = vmatpush.msra.mxu0 %v1997
        %7881 = vmatpush.msra.mxu0 %v1989
        %7882 = vmatpush.msra.mxu0 %v1981
        %7883 = vmatpush.msra.mxu0 %v1973
        %7884 = vmatmul.f32.gmra.mxu0 %v285
        %v7885 = vpop.f32.mrf.mxu0
        %v7886 = vadd.f32 %v7866, %v7885
        %7887 = vdwg.mxu0
        %7888 = vmatpush.msra.mxu0 %v2221
        %7889 = vmatpush.msra.mxu0 %v2213
        %7890 = vmatpush.msra.mxu0 %v2205
        %7891 = vmatpush.msra.mxu0 %v2197
        %7892 = vmatpush.msra.mxu0 %v2189
        %7893 = vmatpush.msra.mxu0 %v2181
        %7894 = vmatpush.msra.mxu0 %v2173
        %7895 = vmatpush.msra.mxu0 %v2165
        %7896 = vmatpush.msra.mxu0 %v2157
        %7897 = vmatpush.msra.mxu0 %v2149
        %7898 = vmatpush.msra.mxu0 %v2141
        %7899 = vmatpush.msra.mxu0 %v2133
        %7900 = vmatpush.msra.mxu0 %v2125
        %7901 = vmatpush.msra.mxu0 %v2117
        %7902 = vmatpush.msra.mxu0 %v2109
        %7903 = vmatpush.msra.mxu0 %v2101
        %7904 = vmatmul.f32.gmra.mxu0 %v286
        %v7905 = vpop.f32.mrf.mxu0
        %v7906 = vadd.f32 %v7886, %v7905
        %7907 = vdwg.mxu0
        %7908 = vmatpush.msra.mxu0 %v2349
        %7909 = vmatpush.msra.mxu0 %v2341
        %7910 = vmatpush.msra.mxu0 %v2333
        %7911 = vmatpush.msra.mxu0 %v2325
        %7912 = vmatpush.msra.mxu0 %v2317
        %7913 = vmatpush.msra.mxu0 %v2309
        %7914 = vmatpush.msra.mxu0 %v2301
        %7915 = vmatpush.msra.mxu0 %v2293
        %7916 = vmatpush.msra.mxu0 %v2285
        %7917 = vmatpush.msra.mxu0 %v2277
        %7918 = vmatpush.msra.mxu0 %v2269
        %7919 = vmatpush.msra.mxu0 %v2261
        %7920 = vmatpush.msra.mxu0 %v2253
        %7921 = vmatpush.msra.mxu0 %v2245
        %7922 = vmatpush.msra.mxu0 %v2237
        %7923 = vmatpush.msra.mxu0 %v2229
        %7924 = vmatmul.f32.gmra.mxu0 %v287
        %v7925 = vpop.f32.mrf.mxu0
        %v7926 = vadd.f32 %v7906, %v7925
        %7927 = vdwg.mxu0
        %7928 = vmatpush.msra.mxu0 %v2477
        %7929 = vmatpush.msra.mxu0 %v2469
        %7930 = vmatpush.msra.mxu0 %v2461
        %7931 = vmatpush.msra.mxu0 %v2453
        %7932 = vmatpush.msra.mxu0 %v2445
        %7933 = vmatpush.msra.mxu0 %v2437
        %7934 = vmatpush.msra.mxu0 %v2429
        %7935 = vmatpush.msra.mxu0 %v2421
        %7936 = vmatpush.msra.mxu0 %v2413
        %7937 = vmatpush.msra.mxu0 %v2405
        %7938 = vmatpush.msra.mxu0 %v2397
        %7939 = vmatpush.msra.mxu0 %v2389
        %7940 = vmatpush.msra.mxu0 %v2381
        %7941 = vmatpush.msra.mxu0 %v2373
        %7942 = vmatpush.msra.mxu0 %v2365
        %7943 = vmatpush.msra.mxu0 %v2357
        %7944 = vmatmul.f32.gmra.mxu0 %v288
        %v7945 = vpop.f32.mrf.mxu0
        %v7946 = vadd.f32 %v7926, %v7945
        %7947 = vdwg.mxu0
        %7948 = vmatpush.msra.mxu0 %v2605
        %7949 = vmatpush.msra.mxu0 %v2597
        %7950 = vmatpush.msra.mxu0 %v2589
        %7951 = vmatpush.msra.mxu0 %v2581
        %7952 = vmatpush.msra.mxu0 %v2573
        %7953 = vmatpush.msra.mxu0 %v2565
        %7954 = vmatpush.msra.mxu0 %v2557
        %7955 = vmatpush.msra.mxu0 %v2549
        %7956 = vmatpush.msra.mxu0 %v2541
        %7957 = vmatpush.msra.mxu0 %v2533
        %7958 = vmatpush.msra.mxu0 %v2525
        %7959 = vmatpush.msra.mxu0 %v2517
        %7960 = vmatpush.msra.mxu0 %v2509
        %7961 = vmatpush.msra.mxu0 %v2501
        %7962 = vmatpush.msra.mxu0 %v2493
        %7963 = vmatpush.msra.mxu0 %v2485
        %7964 = vmatmul.f32.gmra.mxu0 %v289
        %v7965 = vpop.f32.mrf.mxu0
        %v7966 = vadd.f32 %v7946, %v7965
        %7967 = vdwg.mxu0
        %7968 = vmatpush.msra.mxu0 %v2733
        %7969 = vmatpush.msra.mxu0 %v2725
        %7970 = vmatpush.msra.mxu0 %v2717
        %7971 = vmatpush.msra.mxu0 %v2709
        %7972 = vmatpush.msra.mxu0 %v2701
        %7973 = vmatpush.msra.mxu0 %v2693
        %7974 = vmatpush.msra.mxu0 %v2685
        %7975 = vmatpush.msra.mxu0 %v2677
        %7976 = vmatpush.msra.mxu0 %v2669
        %7977 = vmatpush.msra.mxu0 %v2661
        %7978 = vmatpush.msra.mxu0 %v2653
        %7979 = vmatpush.msra.mxu0 %v2645
        %7980 = vmatpush.msra.mxu0 %v2637
        %7981 = vmatpush.msra.mxu0 %v2629
        %7982 = vmatpush.msra.mxu0 %v2621
        %7983 = vmatpush.msra.mxu0 %v2613
        %7984 = vmatmul.f32.gmra.mxu0 %v290
        %v7985 = vpop.f32.mrf.mxu0
        %v7986 = vadd.f32 %v7966, %v7985
        %7987 = vdwg.mxu0
        %7988 = vmatpush.msra.mxu0 %v2861
        %7989 = vmatpush.msra.mxu0 %v2853
        %7990 = vmatpush.msra.mxu0 %v2845
        %7991 = vmatpush.msra.mxu0 %v2837
        %7992 = vmatpush.msra.mxu0 %v2829
        %7993 = vmatpush.msra.mxu0 %v2821
        %7994 = vmatpush.msra.mxu0 %v2813
        %7995 = vmatpush.msra.mxu0 %v2805
        %7996 = vmatpush.msra.mxu0 %v2797
        %7997 = vmatpush.msra.mxu0 %v2789
        %7998 = vmatpush.msra.mxu0 %v2781
        %7999 = vmatpush.msra.mxu0 %v2773
        %8000 = vmatpush.msra.mxu0 %v2765
        %8001 = vmatpush.msra.mxu0 %v2757
        %8002 = vmatpush.msra.mxu0 %v2749
        %8003 = vmatpush.msra.mxu0 %v2741
        %8004 = vmatmul.f32.gmra.mxu0 %v291
        %v8005 = vpop.f32.mrf.mxu0
        %v8006 = vadd.f32 %v7986, %v8005
        %8007 = vdwg.mxu0
        %8008 = vmatpush.msra.mxu0 %v2989
        %8009 = vmatpush.msra.mxu0 %v2981
        %8010 = vmatpush.msra.mxu0 %v2973
        %8011 = vmatpush.msra.mxu0 %v2965
        %8012 = vmatpush.msra.mxu0 %v2957
        %8013 = vmatpush.msra.mxu0 %v2949
        %8014 = vmatpush.msra.mxu0 %v2941
        %8015 = vmatpush.msra.mxu0 %v2933
        %8016 = vmatpush.msra.mxu0 %v2925
        %8017 = vmatpush.msra.mxu0 %v2917
        %8018 = vmatpush.msra.mxu0 %v2909
        %8019 = vmatpush.msra.mxu0 %v2901
        %8020 = vmatpush.msra.mxu0 %v2893
        %8021 = vmatpush.msra.mxu0 %v2885
        %8022 = vmatpush.msra.mxu0 %v2877
        %8023 = vmatpush.msra.mxu0 %v2869
        %8024 = vmatmul.f32.gmra.mxu0 %v292
        %v8025 = vpop.f32.mrf.mxu0
        %v8026 = vadd.f32 %v8006, %v8025
        %8027 = vdwg.mxu0
        %8028 = vmatpush.msra.mxu0 %v3117
        %8029 = vmatpush.msra.mxu0 %v3109
        %8030 = vmatpush.msra.mxu0 %v3101
        %8031 = vmatpush.msra.mxu0 %v3093
        %8032 = vmatpush.msra.mxu0 %v3085
        %8033 = vmatpush.msra.mxu0 %v3077
        %8034 = vmatpush.msra.mxu0 %v3069
        %8035 = vmatpush.msra.mxu0 %v3061
        %8036 = vmatpush.msra.mxu0 %v3053
        %8037 = vmatpush.msra.mxu0 %v3045
        %8038 = vmatpush.msra.mxu0 %v3037
        %8039 = vmatpush.msra.mxu0 %v3029
        %8040 = vmatpush.msra.mxu0 %v3021
        %8041 = vmatpush.msra.mxu0 %v3013
        %8042 = vmatpush.msra.mxu0 %v3005
        %8043 = vmatpush.msra.mxu0 %v2997
        %8044 = vmatmul.f32.gmra.mxu0 %v293
        %v8045 = vpop.f32.mrf.mxu0
        %v8046 = vadd.f32 %v8026, %v8045
        %8047 = vdwg.mxu0
        %8048 = vmatpush.msra.mxu0 %v3245
        %8049 = vmatpush.msra.mxu0 %v3237
        %8050 = vmatpush.msra.mxu0 %v3229
        %8051 = vmatpush.msra.mxu0 %v3221
        %8052 = vmatpush.msra.mxu0 %v3213
        %8053 = vmatpush.msra.mxu0 %v3205
        %8054 = vmatpush.msra.mxu0 %v3197
        %8055 = vmatpush.msra.mxu0 %v3189
        %8056 = vmatpush.msra.mxu0 %v3181
        %8057 = vmatpush.msra.mxu0 %v3173
        %8058 = vmatpush.msra.mxu0 %v3165
        %8059 = vmatpush.msra.mxu0 %v3157
        %8060 = vmatpush.msra.mxu0 %v3149
        %8061 = vmatpush.msra.mxu0 %v3141
        %8062 = vmatpush.msra.mxu0 %v3133
        %8063 = vmatpush.msra.mxu0 %v3125
        %8064 = vmatmul.f32.gmra.mxu0 %v294
        %v8065 = vpop.f32.mrf.mxu0
        %v8066 = vadd.f32 %v8046, %v8065
        %8067 = vdwg.mxu0
        %8068 = vmatpush.msra.mxu0 %v3373
        %8069 = vmatpush.msra.mxu0 %v3365
        %8070 = vmatpush.msra.mxu0 %v3357
        %8071 = vmatpush.msra.mxu0 %v3349
        %8072 = vmatpush.msra.mxu0 %v3341
        %8073 = vmatpush.msra.mxu0 %v3333
        %8074 = vmatpush.msra.mxu0 %v3325
        %8075 = vmatpush.msra.mxu0 %v3317
        %8076 = vmatpush.msra.mxu0 %v3309
        %8077 = vmatpush.msra.mxu0 %v3301
        %8078 = vmatpush.msra.mxu0 %v3293
        %8079 = vmatpush.msra.mxu0 %v3285
        %8080 = vmatpush.msra.mxu0 %v3277
        %8081 = vmatpush.msra.mxu0 %v3269
        %8082 = vmatpush.msra.mxu0 %v3261
        %8083 = vmatpush.msra.mxu0 %v3253
        %8084 = vmatmul.f32.gmra.mxu0 %v295
        %v8085 = vpop.f32.mrf.mxu0
        %v8086 = vadd.f32 %v8066, %v8085
        %8087 = vdwg.mxu0
        %8088 = vmatpush.msra.mxu0 %v3501
        %8089 = vmatpush.msra.mxu0 %v3493
        %8090 = vmatpush.msra.mxu0 %v3485
        %8091 = vmatpush.msra.mxu0 %v3477
        %8092 = vmatpush.msra.mxu0 %v3469
        %8093 = vmatpush.msra.mxu0 %v3461
        %8094 = vmatpush.msra.mxu0 %v3453
        %8095 = vmatpush.msra.mxu0 %v3445
        %8096 = vmatpush.msra.mxu0 %v3437
        %8097 = vmatpush.msra.mxu0 %v3429
        %8098 = vmatpush.msra.mxu0 %v3421
        %8099 = vmatpush.msra.mxu0 %v3413
        %8100 = vmatpush.msra.mxu0 %v3405
        %8101 = vmatpush.msra.mxu0 %v3397
        %8102 = vmatpush.msra.mxu0 %v3389
        %8103 = vmatpush.msra.mxu0 %v3381
        %8104 = vmatmul.f32.gmra.mxu0 %v296
        %v8105 = vpop.f32.mrf.mxu0
        %v8106 = vadd.f32 %v8086, %v8105
        %8107 = vdwg.mxu0
        %8108 = vmatpush.msra.mxu0 %v3629
        %8109 = vmatpush.msra.mxu0 %v3621
        %8110 = vmatpush.msra.mxu0 %v3613
        %8111 = vmatpush.msra.mxu0 %v3605
        %8112 = vmatpush.msra.mxu0 %v3597
        %8113 = vmatpush.msra.mxu0 %v3589
        %8114 = vmatpush.msra.mxu0 %v3581
        %8115 = vmatpush.msra.mxu0 %v3573
        %8116 = vmatpush.msra.mxu0 %v3565
        %8117 = vmatpush.msra.mxu0 %v3557
        %8118 = vmatpush.msra.mxu0 %v3549
        %8119 = vmatpush.msra.mxu0 %v3541
        %8120 = vmatpush.msra.mxu0 %v3533
        %8121 = vmatpush.msra.mxu0 %v3525
        %8122 = vmatpush.msra.mxu0 %v3517
        %8123 = vmatpush.msra.mxu0 %v3509
        %8124 = vmatmul.f32.gmra.mxu0 %v297
        %v8125 = vpop.f32.mrf.mxu0
        %v8126 = vadd.f32 %v8106, %v8125
        %8127 = vdwg.mxu0
        %8128 = vmatpush.msra.mxu0 %v3757
        %8129 = vmatpush.msra.mxu0 %v3749
        %8130 = vmatpush.msra.mxu0 %v3741
        %8131 = vmatpush.msra.mxu0 %v3733
        %8132 = vmatpush.msra.mxu0 %v3725
        %8133 = vmatpush.msra.mxu0 %v3717
        %8134 = vmatpush.msra.mxu0 %v3709
        %8135 = vmatpush.msra.mxu0 %v3701
        %8136 = vmatpush.msra.mxu0 %v3693
        %8137 = vmatpush.msra.mxu0 %v3685
        %8138 = vmatpush.msra.mxu0 %v3677
        %8139 = vmatpush.msra.mxu0 %v3669
        %8140 = vmatpush.msra.mxu0 %v3661
        %8141 = vmatpush.msra.mxu0 %v3653
        %8142 = vmatpush.msra.mxu0 %v3645
        %8143 = vmatpush.msra.mxu0 %v3637
        %8144 = vmatmul.f32.gmra.mxu0 %v298
        %v8145 = vpop.f32.mrf.mxu0
        %v8146 = vadd.f32 %v8126, %v8145
        %8147 = vdwg.mxu0
        %8148 = vmatpush.msra.mxu0 %v3885
        %8149 = vmatpush.msra.mxu0 %v3877
        %8150 = vmatpush.msra.mxu0 %v3869
        %8151 = vmatpush.msra.mxu0 %v3861
        %8152 = vmatpush.msra.mxu0 %v3853
        %8153 = vmatpush.msra.mxu0 %v3845
        %8154 = vmatpush.msra.mxu0 %v3837
        %8155 = vmatpush.msra.mxu0 %v3829
        %8156 = vmatpush.msra.mxu0 %v3821
        %8157 = vmatpush.msra.mxu0 %v3813
        %8158 = vmatpush.msra.mxu0 %v3805
        %8159 = vmatpush.msra.mxu0 %v3797
        %8160 = vmatpush.msra.mxu0 %v3789
        %8161 = vmatpush.msra.mxu0 %v3781
        %8162 = vmatpush.msra.mxu0 %v3773
        %8163 = vmatpush.msra.mxu0 %v3765
        %8164 = vmatmul.f32.gmra.mxu0 %v299
        %v8165 = vpop.f32.mrf.mxu0
        %v8166 = vadd.f32 %v8146, %v8165
        %8167 = vdwg.mxu0
        %8168 = vmatpush.msra.mxu0 %v4013
        %8169 = vmatpush.msra.mxu0 %v4005
        %8170 = vmatpush.msra.mxu0 %v3997
        %8171 = vmatpush.msra.mxu0 %v3989
        %8172 = vmatpush.msra.mxu0 %v3981
        %8173 = vmatpush.msra.mxu0 %v3973
        %8174 = vmatpush.msra.mxu0 %v3965
        %8175 = vmatpush.msra.mxu0 %v3957
        %8176 = vmatpush.msra.mxu0 %v3949
        %8177 = vmatpush.msra.mxu0 %v3941
        %8178 = vmatpush.msra.mxu0 %v3933
        %8179 = vmatpush.msra.mxu0 %v3925
        %8180 = vmatpush.msra.mxu0 %v3917
        %8181 = vmatpush.msra.mxu0 %v3909
        %8182 = vmatpush.msra.mxu0 %v3901
        %8183 = vmatpush.msra.mxu0 %v3893
        %8184 = vmatmul.f32.gmra.mxu0 %v300
        %v8185 = vpop.f32.mrf.mxu0
        %v8186 = vadd.f32 %v8166, %v8185
        %8187 = vdwg.mxu0
        %8188 = vmatpush.msra.mxu0 %v4141
        %8189 = vmatpush.msra.mxu0 %v4133
        %8190 = vmatpush.msra.mxu0 %v4125
        %8191 = vmatpush.msra.mxu0 %v4117
        %8192 = vmatpush.msra.mxu0 %v4109
        %8193 = vmatpush.msra.mxu0 %v4101
        %8194 = vmatpush.msra.mxu0 %v4093
        %8195 = vmatpush.msra.mxu0 %v4085
        %8196 = vmatpush.msra.mxu0 %v4077
        %8197 = vmatpush.msra.mxu0 %v4069
        %8198 = vmatpush.msra.mxu0 %v4061
        %8199 = vmatpush.msra.mxu0 %v4053
        %8200 = vmatpush.msra.mxu0 %v4045
        %8201 = vmatpush.msra.mxu0 %v4037
        %8202 = vmatpush.msra.mxu0 %v4029
        %8203 = vmatpush.msra.mxu0 %v4021
        %8204 = vmatmul.f32.gmra.mxu0 %v301
        %v8205 = vpop.f32.mrf.mxu0
        %v8206 = vadd.f32 %v8186, %v8205
        %8207 = vdwg.mxu0
        %8208 = vmatpush.msra.mxu0 %v4269
        %8209 = vmatpush.msra.mxu0 %v4261
        %8210 = vmatpush.msra.mxu0 %v4253
        %8211 = vmatpush.msra.mxu0 %v4245
        %8212 = vmatpush.msra.mxu0 %v4237
        %8213 = vmatpush.msra.mxu0 %v4229
        %8214 = vmatpush.msra.mxu0 %v4221
        %8215 = vmatpush.msra.mxu0 %v4213
        %8216 = vmatpush.msra.mxu0 %v4205
        %8217 = vmatpush.msra.mxu0 %v4197
        %8218 = vmatpush.msra.mxu0 %v4189
        %8219 = vmatpush.msra.mxu0 %v4181
        %8220 = vmatpush.msra.mxu0 %v4173
        %8221 = vmatpush.msra.mxu0 %v4165
        %8222 = vmatpush.msra.mxu0 %v4157
        %8223 = vmatpush.msra.mxu0 %v4149
        %8224 = vmatmul.f32.gmra.mxu0 %v302
        %v8225 = vpop.f32.mrf.mxu0
        %v8226 = vadd.f32 %v8206, %v8225
        %8227 = vdwg.mxu0
        %8228 = vmatpush.msra.mxu0 %v4397
        %8229 = vmatpush.msra.mxu0 %v4389
        %8230 = vmatpush.msra.mxu0 %v4381
        %8231 = vmatpush.msra.mxu0 %v4373
        %8232 = vmatpush.msra.mxu0 %v4365
        %8233 = vmatpush.msra.mxu0 %v4357
        %8234 = vmatpush.msra.mxu0 %v4349
        %8235 = vmatpush.msra.mxu0 %v4341
        %8236 = vmatpush.msra.mxu0 %v4333
        %8237 = vmatpush.msra.mxu0 %v4325
        %8238 = vmatpush.msra.mxu0 %v4317
        %8239 = vmatpush.msra.mxu0 %v4309
        %8240 = vmatpush.msra.mxu0 %v4301
        %8241 = vmatpush.msra.mxu0 %v4293
        %8242 = vmatpush.msra.mxu0 %v4285
        %8243 = vmatpush.msra.mxu0 %v4277
        %8244 = vmatmul.f32.gmra.mxu0 %v303
        %v8245 = vpop.f32.mrf.mxu0
        %v8246 = vadd.f32 %v8226, %v8245
        %8247 = vdwg.mxu0
        %8248 = vmatpush.msra.mxu0 %v430
        %8249 = vmatpush.msra.mxu0 %v422
        %8250 = vmatpush.msra.mxu0 %v414
        %8251 = vmatpush.msra.mxu0 %v406
        %8252 = vmatpush.msra.mxu0 %v398
        %8253 = vmatpush.msra.mxu0 %v390
        %8254 = vmatpush.msra.mxu0 %v382
        %8255 = vmatpush.msra.mxu0 %v374
        %8256 = vmatpush.msra.mxu0 %v366
        %8257 = vmatpush.msra.mxu0 %v358
        %8258 = vmatpush.msra.mxu0 %v350
        %8259 = vmatpush.msra.mxu0 %v342
        %8260 = vmatpush.msra.mxu0 %v334
        %8261 = vmatpush.msra.mxu0 %v326
        %8262 = vmatpush.msra.mxu0 %v318
        %8263 = vmatpush.msra.mxu0 %v310
        %8264 = vmatmul.f32.gmra.mxu0 %v272
        %v8265 = vpop.f32.mrf.mxu0
        %v8266 = vadd.f32 %v4406, %v8265
        %8267 = vdwg.mxu0
        %8268 = vmatpush.msra.mxu0 %v558
        %8269 = vmatpush.msra.mxu0 %v550
        %8270 = vmatpush.msra.mxu0 %v542
        %8271 = vmatpush.msra.mxu0 %v534
        %8272 = vmatpush.msra.mxu0 %v526
        %8273 = vmatpush.msra.mxu0 %v518
        %8274 = vmatpush.msra.mxu0 %v510
        %8275 = vmatpush.msra.mxu0 %v502
        %8276 = vmatpush.msra.mxu0 %v494
        %8277 = vmatpush.msra.mxu0 %v486
        %8278 = vmatpush.msra.mxu0 %v478
        %8279 = vmatpush.msra.mxu0 %v470
        %8280 = vmatpush.msra.mxu0 %v462
        %8281 = vmatpush.msra.mxu0 %v454
        %8282 = vmatpush.msra.mxu0 %v446
        %8283 = vmatpush.msra.mxu0 %v438
        %8284 = vmatmul.f32.gmra.mxu0 %v273
        %v8285 = vpop.f32.mrf.mxu0
        %v8286 = vadd.f32 %v8266, %v8285
        %8287 = vdwg.mxu0
        %8288 = vmatpush.msra.mxu0 %v686
        %8289 = vmatpush.msra.mxu0 %v678
        %8290 = vmatpush.msra.mxu0 %v670
        %8291 = vmatpush.msra.mxu0 %v662
        %8292 = vmatpush.msra.mxu0 %v654
        %8293 = vmatpush.msra.mxu0 %v646
        %8294 = vmatpush.msra.mxu0 %v638
        %8295 = vmatpush.msra.mxu0 %v630
        %8296 = vmatpush.msra.mxu0 %v622
        %8297 = vmatpush.msra.mxu0 %v614
        %8298 = vmatpush.msra.mxu0 %v606
        %8299 = vmatpush.msra.mxu0 %v598
        %8300 = vmatpush.msra.mxu0 %v590
        %8301 = vmatpush.msra.mxu0 %v582
        %8302 = vmatpush.msra.mxu0 %v574
        %8303 = vmatpush.msra.mxu0 %v566
        %8304 = vmatmul.f32.gmra.mxu0 %v274
        %v8305 = vpop.f32.mrf.mxu0
        %v8306 = vadd.f32 %v8286, %v8305
        %8307 = vdwg.mxu0
        %8308 = vmatpush.msra.mxu0 %v814
        %8309 = vmatpush.msra.mxu0 %v806
        %8310 = vmatpush.msra.mxu0 %v798
        %8311 = vmatpush.msra.mxu0 %v790
        %8312 = vmatpush.msra.mxu0 %v782
        %8313 = vmatpush.msra.mxu0 %v774
        %8314 = vmatpush.msra.mxu0 %v766
        %8315 = vmatpush.msra.mxu0 %v758
        %8316 = vmatpush.msra.mxu0 %v750
        %8317 = vmatpush.msra.mxu0 %v742
        %8318 = vmatpush.msra.mxu0 %v734
        %8319 = vmatpush.msra.mxu0 %v726
        %8320 = vmatpush.msra.mxu0 %v718
        %8321 = vmatpush.msra.mxu0 %v710
        %8322 = vmatpush.msra.mxu0 %v702
        %8323 = vmatpush.msra.mxu0 %v694
        %8324 = vmatmul.f32.gmra.mxu0 %v275
        %v8325 = vpop.f32.mrf.mxu0
        %v8326 = vadd.f32 %v8306, %v8325
        %8327 = vdwg.mxu0
        %8328 = vmatpush.msra.mxu0 %v942
        %8329 = vmatpush.msra.mxu0 %v934
        %8330 = vmatpush.msra.mxu0 %v926
        %8331 = vmatpush.msra.mxu0 %v918
        %8332 = vmatpush.msra.mxu0 %v910
        %8333 = vmatpush.msra.mxu0 %v902
        %8334 = vmatpush.msra.mxu0 %v894
        %8335 = vmatpush.msra.mxu0 %v886
        %8336 = vmatpush.msra.mxu0 %v878
        %8337 = vmatpush.msra.mxu0 %v870
        %8338 = vmatpush.msra.mxu0 %v862
        %8339 = vmatpush.msra.mxu0 %v854
        %8340 = vmatpush.msra.mxu0 %v846
        %8341 = vmatpush.msra.mxu0 %v838
        %8342 = vmatpush.msra.mxu0 %v830
        %8343 = vmatpush.msra.mxu0 %v822
        %8344 = vmatmul.f32.gmra.mxu0 %v276
        %v8345 = vpop.f32.mrf.mxu0
        %v8346 = vadd.f32 %v8326, %v8345
        %8347 = vdwg.mxu0
        %8348 = vmatpush.msra.mxu0 %v1070
        %8349 = vmatpush.msra.mxu0 %v1062
        %8350 = vmatpush.msra.mxu0 %v1054
        %8351 = vmatpush.msra.mxu0 %v1046
        %8352 = vmatpush.msra.mxu0 %v1038
        %8353 = vmatpush.msra.mxu0 %v1030
        %8354 = vmatpush.msra.mxu0 %v1022
        %8355 = vmatpush.msra.mxu0 %v1014
        %8356 = vmatpush.msra.mxu0 %v1006
        %8357 = vmatpush.msra.mxu0 %v998
        %8358 = vmatpush.msra.mxu0 %v990
        %8359 = vmatpush.msra.mxu0 %v982
        %8360 = vmatpush.msra.mxu0 %v974
        %8361 = vmatpush.msra.mxu0 %v966
        %8362 = vmatpush.msra.mxu0 %v958
        %8363 = vmatpush.msra.mxu0 %v950
        %8364 = vmatmul.f32.gmra.mxu0 %v277
        %v8365 = vpop.f32.mrf.mxu0
        %v8366 = vadd.f32 %v8346, %v8365
        %8367 = vdwg.mxu0
        %8368 = vmatpush.msra.mxu0 %v1198
        %8369 = vmatpush.msra.mxu0 %v1190
        %8370 = vmatpush.msra.mxu0 %v1182
        %8371 = vmatpush.msra.mxu0 %v1174
        %8372 = vmatpush.msra.mxu0 %v1166
        %8373 = vmatpush.msra.mxu0 %v1158
        %8374 = vmatpush.msra.mxu0 %v1150
        %8375 = vmatpush.msra.mxu0 %v1142
        %8376 = vmatpush.msra.mxu0 %v1134
        %8377 = vmatpush.msra.mxu0 %v1126
        %8378 = vmatpush.msra.mxu0 %v1118
        %8379 = vmatpush.msra.mxu0 %v1110
        %8380 = vmatpush.msra.mxu0 %v1102
        %8381 = vmatpush.msra.mxu0 %v1094
        %8382 = vmatpush.msra.mxu0 %v1086
        %8383 = vmatpush.msra.mxu0 %v1078
        %8384 = vmatmul.f32.gmra.mxu0 %v278
        %v8385 = vpop.f32.mrf.mxu0
        %v8386 = vadd.f32 %v8366, %v8385
        %8387 = vdwg.mxu0
        %8388 = vmatpush.msra.mxu0 %v1326
        %8389 = vmatpush.msra.mxu0 %v1318
        %8390 = vmatpush.msra.mxu0 %v1310
        %8391 = vmatpush.msra.mxu0 %v1302
        %8392 = vmatpush.msra.mxu0 %v1294
        %8393 = vmatpush.msra.mxu0 %v1286
        %8394 = vmatpush.msra.mxu0 %v1278
        %8395 = vmatpush.msra.mxu0 %v1270
        %8396 = vmatpush.msra.mxu0 %v1262
        %8397 = vmatpush.msra.mxu0 %v1254
        %8398 = vmatpush.msra.mxu0 %v1246
        %8399 = vmatpush.msra.mxu0 %v1238
        %8400 = vmatpush.msra.mxu0 %v1230
        %8401 = vmatpush.msra.mxu0 %v1222
        %8402 = vmatpush.msra.mxu0 %v1214
        %8403 = vmatpush.msra.mxu0 %v1206
        %8404 = vmatmul.f32.gmra.mxu0 %v279
        %v8405 = vpop.f32.mrf.mxu0
        %v8406 = vadd.f32 %v8386, %v8405
        %8407 = vdwg.mxu0
        %8408 = vmatpush.msra.mxu0 %v1454
        %8409 = vmatpush.msra.mxu0 %v1446
        %8410 = vmatpush.msra.mxu0 %v1438
        %8411 = vmatpush.msra.mxu0 %v1430
        %8412 = vmatpush.msra.mxu0 %v1422
        %8413 = vmatpush.msra.mxu0 %v1414
        %8414 = vmatpush.msra.mxu0 %v1406
        %8415 = vmatpush.msra.mxu0 %v1398
        %8416 = vmatpush.msra.mxu0 %v1390
        %8417 = vmatpush.msra.mxu0 %v1382
        %8418 = vmatpush.msra.mxu0 %v1374
        %8419 = vmatpush.msra.mxu0 %v1366
        %8420 = vmatpush.msra.mxu0 %v1358
        %8421 = vmatpush.msra.mxu0 %v1350
        %8422 = vmatpush.msra.mxu0 %v1342
        %8423 = vmatpush.msra.mxu0 %v1334
        %8424 = vmatmul.f32.gmra.mxu0 %v280
        %v8425 = vpop.f32.mrf.mxu0
        %v8426 = vadd.f32 %v8406, %v8425
        %8427 = vdwg.mxu0
        %8428 = vmatpush.msra.mxu0 %v1582
        %8429 = vmatpush.msra.mxu0 %v1574
        %8430 = vmatpush.msra.mxu0 %v1566
        %8431 = vmatpush.msra.mxu0 %v1558
        %8432 = vmatpush.msra.mxu0 %v1550
        %8433 = vmatpush.msra.mxu0 %v1542
        %8434 = vmatpush.msra.mxu0 %v1534
        %8435 = vmatpush.msra.mxu0 %v1526
        %8436 = vmatpush.msra.mxu0 %v1518
        %8437 = vmatpush.msra.mxu0 %v1510
        %8438 = vmatpush.msra.mxu0 %v1502
        %8439 = vmatpush.msra.mxu0 %v1494
        %8440 = vmatpush.msra.mxu0 %v1486
        %8441 = vmatpush.msra.mxu0 %v1478
        %8442 = vmatpush.msra.mxu0 %v1470
        %8443 = vmatpush.msra.mxu0 %v1462
        %8444 = vmatmul.f32.gmra.mxu0 %v281
        %v8445 = vpop.f32.mrf.mxu0
        %v8446 = vadd.f32 %v8426, %v8445
        %8447 = vdwg.mxu0
        %8448 = vmatpush.msra.mxu0 %v1710
        %8449 = vmatpush.msra.mxu0 %v1702
        %8450 = vmatpush.msra.mxu0 %v1694
        %8451 = vmatpush.msra.mxu0 %v1686
        %8452 = vmatpush.msra.mxu0 %v1678
        %8453 = vmatpush.msra.mxu0 %v1670
        %8454 = vmatpush.msra.mxu0 %v1662
        %8455 = vmatpush.msra.mxu0 %v1654
        %8456 = vmatpush.msra.mxu0 %v1646
        %8457 = vmatpush.msra.mxu0 %v1638
        %8458 = vmatpush.msra.mxu0 %v1630
        %8459 = vmatpush.msra.mxu0 %v1622
        %8460 = vmatpush.msra.mxu0 %v1614
        %8461 = vmatpush.msra.mxu0 %v1606
        %8462 = vmatpush.msra.mxu0 %v1598
        %8463 = vmatpush.msra.mxu0 %v1590
        %8464 = vmatmul.f32.gmra.mxu0 %v282
        %v8465 = vpop.f32.mrf.mxu0
        %v8466 = vadd.f32 %v8446, %v8465
        %8467 = vdwg.mxu0
        %8468 = vmatpush.msra.mxu0 %v1838
        %8469 = vmatpush.msra.mxu0 %v1830
        %8470 = vmatpush.msra.mxu0 %v1822
        %8471 = vmatpush.msra.mxu0 %v1814
        %8472 = vmatpush.msra.mxu0 %v1806
        %8473 = vmatpush.msra.mxu0 %v1798
        %8474 = vmatpush.msra.mxu0 %v1790
        %8475 = vmatpush.msra.mxu0 %v1782
        %8476 = vmatpush.msra.mxu0 %v1774
        %8477 = vmatpush.msra.mxu0 %v1766
        %8478 = vmatpush.msra.mxu0 %v1758
        %8479 = vmatpush.msra.mxu0 %v1750
        %8480 = vmatpush.msra.mxu0 %v1742
        %8481 = vmatpush.msra.mxu0 %v1734
        %8482 = vmatpush.msra.mxu0 %v1726
        %8483 = vmatpush.msra.mxu0 %v1718
        %8484 = vmatmul.f32.gmra.mxu0 %v283
        %v8485 = vpop.f32.mrf.mxu0
        %v8486 = vadd.f32 %v8466, %v8485
        %8487 = vdwg.mxu0
        %8488 = vmatpush.msra.mxu0 %v1966
        %8489 = vmatpush.msra.mxu0 %v1958
        %8490 = vmatpush.msra.mxu0 %v1950
        %8491 = vmatpush.msra.mxu0 %v1942
        %8492 = vmatpush.msra.mxu0 %v1934
        %8493 = vmatpush.msra.mxu0 %v1926
        %8494 = vmatpush.msra.mxu0 %v1918
        %8495 = vmatpush.msra.mxu0 %v1910
        %8496 = vmatpush.msra.mxu0 %v1902
        %8497 = vmatpush.msra.mxu0 %v1894
        %8498 = vmatpush.msra.mxu0 %v1886
        %8499 = vmatpush.msra.mxu0 %v1878
        %8500 = vmatpush.msra.mxu0 %v1870
        %8501 = vmatpush.msra.mxu0 %v1862
        %8502 = vmatpush.msra.mxu0 %v1854
        %8503 = vmatpush.msra.mxu0 %v1846
        %8504 = vmatmul.f32.gmra.mxu0 %v284
        %v8505 = vpop.f32.mrf.mxu0
        %v8506 = vadd.f32 %v8486, %v8505
        %8507 = vdwg.mxu0
        %8508 = vmatpush.msra.mxu0 %v2094
        %8509 = vmatpush.msra.mxu0 %v2086
        %8510 = vmatpush.msra.mxu0 %v2078
        %8511 = vmatpush.msra.mxu0 %v2070
        %8512 = vmatpush.msra.mxu0 %v2062
        %8513 = vmatpush.msra.mxu0 %v2054
        %8514 = vmatpush.msra.mxu0 %v2046
        %8515 = vmatpush.msra.mxu0 %v2038
        %8516 = vmatpush.msra.mxu0 %v2030
        %8517 = vmatpush.msra.mxu0 %v2022
        %8518 = vmatpush.msra.mxu0 %v2014
        %8519 = vmatpush.msra.mxu0 %v2006
        %8520 = vmatpush.msra.mxu0 %v1998
        %8521 = vmatpush.msra.mxu0 %v1990
        %8522 = vmatpush.msra.mxu0 %v1982
        %8523 = vmatpush.msra.mxu0 %v1974
        %8524 = vmatmul.f32.gmra.mxu0 %v285
        %v8525 = vpop.f32.mrf.mxu0
        %v8526 = vadd.f32 %v8506, %v8525
        %8527 = vdwg.mxu0
        %8528 = vmatpush.msra.mxu0 %v2222
        %8529 = vmatpush.msra.mxu0 %v2214
        %8530 = vmatpush.msra.mxu0 %v2206
        %8531 = vmatpush.msra.mxu0 %v2198
        %8532 = vmatpush.msra.mxu0 %v2190
        %8533 = vmatpush.msra.mxu0 %v2182
        %8534 = vmatpush.msra.mxu0 %v2174
        %8535 = vmatpush.msra.mxu0 %v2166
        %8536 = vmatpush.msra.mxu0 %v2158
        %8537 = vmatpush.msra.mxu0 %v2150
        %8538 = vmatpush.msra.mxu0 %v2142
        %8539 = vmatpush.msra.mxu0 %v2134
        %8540 = vmatpush.msra.mxu0 %v2126
        %8541 = vmatpush.msra.mxu0 %v2118
        %8542 = vmatpush.msra.mxu0 %v2110
        %8543 = vmatpush.msra.mxu0 %v2102
        %8544 = vmatmul.f32.gmra.mxu0 %v286
        %v8545 = vpop.f32.mrf.mxu0
        %v8546 = vadd.f32 %v8526, %v8545
        %8547 = vdwg.mxu0
        %8548 = vmatpush.msra.mxu0 %v2350
        %8549 = vmatpush.msra.mxu0 %v2342
        %8550 = vmatpush.msra.mxu0 %v2334
        %8551 = vmatpush.msra.mxu0 %v2326
        %8552 = vmatpush.msra.mxu0 %v2318
        %8553 = vmatpush.msra.mxu0 %v2310
        %8554 = vmatpush.msra.mxu0 %v2302
        %8555 = vmatpush.msra.mxu0 %v2294
        %8556 = vmatpush.msra.mxu0 %v2286
        %8557 = vmatpush.msra.mxu0 %v2278
        %8558 = vmatpush.msra.mxu0 %v2270
        %8559 = vmatpush.msra.mxu0 %v2262
        %8560 = vmatpush.msra.mxu0 %v2254
        %8561 = vmatpush.msra.mxu0 %v2246
        %8562 = vmatpush.msra.mxu0 %v2238
        %8563 = vmatpush.msra.mxu0 %v2230
        %8564 = vmatmul.f32.gmra.mxu0 %v287
        %v8565 = vpop.f32.mrf.mxu0
        %v8566 = vadd.f32 %v8546, %v8565
        %8567 = vdwg.mxu0
        %8568 = vmatpush.msra.mxu0 %v2478
        %8569 = vmatpush.msra.mxu0 %v2470
        %8570 = vmatpush.msra.mxu0 %v2462
        %8571 = vmatpush.msra.mxu0 %v2454
        %8572 = vmatpush.msra.mxu0 %v2446
        %8573 = vmatpush.msra.mxu0 %v2438
        %8574 = vmatpush.msra.mxu0 %v2430
        %8575 = vmatpush.msra.mxu0 %v2422
        %8576 = vmatpush.msra.mxu0 %v2414
        %8577 = vmatpush.msra.mxu0 %v2406
        %8578 = vmatpush.msra.mxu0 %v2398
        %8579 = vmatpush.msra.mxu0 %v2390
        %8580 = vmatpush.msra.mxu0 %v2382
        %8581 = vmatpush.msra.mxu0 %v2374
        %8582 = vmatpush.msra.mxu0 %v2366
        %8583 = vmatpush.msra.mxu0 %v2358
        %8584 = vmatmul.f32.gmra.mxu0 %v288
        %v8585 = vpop.f32.mrf.mxu0
        %v8586 = vadd.f32 %v8566, %v8585
        %8587 = vdwg.mxu0
        %8588 = vmatpush.msra.mxu0 %v2606
        %8589 = vmatpush.msra.mxu0 %v2598
        %8590 = vmatpush.msra.mxu0 %v2590
        %8591 = vmatpush.msra.mxu0 %v2582
        %8592 = vmatpush.msra.mxu0 %v2574
        %8593 = vmatpush.msra.mxu0 %v2566
        %8594 = vmatpush.msra.mxu0 %v2558
        %8595 = vmatpush.msra.mxu0 %v2550
        %8596 = vmatpush.msra.mxu0 %v2542
        %8597 = vmatpush.msra.mxu0 %v2534
        %8598 = vmatpush.msra.mxu0 %v2526
        %8599 = vmatpush.msra.mxu0 %v2518
        %8600 = vmatpush.msra.mxu0 %v2510
        %8601 = vmatpush.msra.mxu0 %v2502
        %8602 = vmatpush.msra.mxu0 %v2494
        %8603 = vmatpush.msra.mxu0 %v2486
        %8604 = vmatmul.f32.gmra.mxu0 %v289
        %v8605 = vpop.f32.mrf.mxu0
        %v8606 = vadd.f32 %v8586, %v8605
        %8607 = vdwg.mxu0
        %8608 = vmatpush.msra.mxu0 %v2734
        %8609 = vmatpush.msra.mxu0 %v2726
        %8610 = vmatpush.msra.mxu0 %v2718
        %8611 = vmatpush.msra.mxu0 %v2710
        %8612 = vmatpush.msra.mxu0 %v2702
        %8613 = vmatpush.msra.mxu0 %v2694
        %8614 = vmatpush.msra.mxu0 %v2686
        %8615 = vmatpush.msra.mxu0 %v2678
        %8616 = vmatpush.msra.mxu0 %v2670
        %8617 = vmatpush.msra.mxu0 %v2662
        %8618 = vmatpush.msra.mxu0 %v2654
        %8619 = vmatpush.msra.mxu0 %v2646
        %8620 = vmatpush.msra.mxu0 %v2638
        %8621 = vmatpush.msra.mxu0 %v2630
        %8622 = vmatpush.msra.mxu0 %v2622
        %8623 = vmatpush.msra.mxu0 %v2614
        %8624 = vmatmul.f32.gmra.mxu0 %v290
        %v8625 = vpop.f32.mrf.mxu0
        %v8626 = vadd.f32 %v8606, %v8625
        %8627 = vdwg.mxu0
        %8628 = vmatpush.msra.mxu0 %v2862
        %8629 = vmatpush.msra.mxu0 %v2854
        %8630 = vmatpush.msra.mxu0 %v2846
        %8631 = vmatpush.msra.mxu0 %v2838
        %8632 = vmatpush.msra.mxu0 %v2830
        %8633 = vmatpush.msra.mxu0 %v2822
        %8634 = vmatpush.msra.mxu0 %v2814
        %8635 = vmatpush.msra.mxu0 %v2806
        %8636 = vmatpush.msra.mxu0 %v2798
        %8637 = vmatpush.msra.mxu0 %v2790
        %8638 = vmatpush.msra.mxu0 %v2782
        %8639 = vmatpush.msra.mxu0 %v2774
        %8640 = vmatpush.msra.mxu0 %v2766
        %8641 = vmatpush.msra.mxu0 %v2758
        %8642 = vmatpush.msra.mxu0 %v2750
        %8643 = vmatpush.msra.mxu0 %v2742
        %8644 = vmatmul.f32.gmra.mxu0 %v291
        %v8645 = vpop.f32.mrf.mxu0
        %v8646 = vadd.f32 %v8626, %v8645
        %8647 = vdwg.mxu0
        %8648 = vmatpush.msra.mxu0 %v2990
        %8649 = vmatpush.msra.mxu0 %v2982
        %8650 = vmatpush.msra.mxu0 %v2974
        %8651 = vmatpush.msra.mxu0 %v2966
        %8652 = vmatpush.msra.mxu0 %v2958
        %8653 = vmatpush.msra.mxu0 %v2950
        %8654 = vmatpush.msra.mxu0 %v2942
        %8655 = vmatpush.msra.mxu0 %v2934
        %8656 = vmatpush.msra.mxu0 %v2926
        %8657 = vmatpush.msra.mxu0 %v2918
        %8658 = vmatpush.msra.mxu0 %v2910
        %8659 = vmatpush.msra.mxu0 %v2902
        %8660 = vmatpush.msra.mxu0 %v2894
        %8661 = vmatpush.msra.mxu0 %v2886
        %8662 = vmatpush.msra.mxu0 %v2878
        %8663 = vmatpush.msra.mxu0 %v2870
        %8664 = vmatmul.f32.gmra.mxu0 %v292
        %v8665 = vpop.f32.mrf.mxu0
        %v8666 = vadd.f32 %v8646, %v8665
        %8667 = vdwg.mxu0
        %8668 = vmatpush.msra.mxu0 %v3118
        %8669 = vmatpush.msra.mxu0 %v3110
        %8670 = vmatpush.msra.mxu0 %v3102
        %8671 = vmatpush.msra.mxu0 %v3094
        %8672 = vmatpush.msra.mxu0 %v3086
        %8673 = vmatpush.msra.mxu0 %v3078
        %8674 = vmatpush.msra.mxu0 %v3070
        %8675 = vmatpush.msra.mxu0 %v3062
        %8676 = vmatpush.msra.mxu0 %v3054
        %8677 = vmatpush.msra.mxu0 %v3046
        %8678 = vmatpush.msra.mxu0 %v3038
        %8679 = vmatpush.msra.mxu0 %v3030
        %8680 = vmatpush.msra.mxu0 %v3022
        %8681 = vmatpush.msra.mxu0 %v3014
        %8682 = vmatpush.msra.mxu0 %v3006
        %8683 = vmatpush.msra.mxu0 %v2998
        %8684 = vmatmul.f32.gmra.mxu0 %v293
        %v8685 = vpop.f32.mrf.mxu0
        %v8686 = vadd.f32 %v8666, %v8685
        %8687 = vdwg.mxu0
        %8688 = vmatpush.msra.mxu0 %v3246
        %8689 = vmatpush.msra.mxu0 %v3238
        %8690 = vmatpush.msra.mxu0 %v3230
        %8691 = vmatpush.msra.mxu0 %v3222
        %8692 = vmatpush.msra.mxu0 %v3214
        %8693 = vmatpush.msra.mxu0 %v3206
        %8694 = vmatpush.msra.mxu0 %v3198
        %8695 = vmatpush.msra.mxu0 %v3190
        %8696 = vmatpush.msra.mxu0 %v3182
        %8697 = vmatpush.msra.mxu0 %v3174
        %8698 = vmatpush.msra.mxu0 %v3166
        %8699 = vmatpush.msra.mxu0 %v3158
        %8700 = vmatpush.msra.mxu0 %v3150
        %8701 = vmatpush.msra.mxu0 %v3142
        %8702 = vmatpush.msra.mxu0 %v3134
        %8703 = vmatpush.msra.mxu0 %v3126
        %8704 = vmatmul.f32.gmra.mxu0 %v294
        %v8705 = vpop.f32.mrf.mxu0
        %v8706 = vadd.f32 %v8686, %v8705
        %8707 = vdwg.mxu0
        %8708 = vmatpush.msra.mxu0 %v3374
        %8709 = vmatpush.msra.mxu0 %v3366
        %8710 = vmatpush.msra.mxu0 %v3358
        %8711 = vmatpush.msra.mxu0 %v3350
        %8712 = vmatpush.msra.mxu0 %v3342
        %8713 = vmatpush.msra.mxu0 %v3334
        %8714 = vmatpush.msra.mxu0 %v3326
        %8715 = vmatpush.msra.mxu0 %v3318
        %8716 = vmatpush.msra.mxu0 %v3310
        %8717 = vmatpush.msra.mxu0 %v3302
        %8718 = vmatpush.msra.mxu0 %v3294
        %8719 = vmatpush.msra.mxu0 %v3286
        %8720 = vmatpush.msra.mxu0 %v3278
        %8721 = vmatpush.msra.mxu0 %v3270
        %8722 = vmatpush.msra.mxu0 %v3262
        %8723 = vmatpush.msra.mxu0 %v3254
        %8724 = vmatmul.f32.gmra.mxu0 %v295
        %v8725 = vpop.f32.mrf.mxu0
        %v8726 = vadd.f32 %v8706, %v8725
        %8727 = vdwg.mxu0
        %8728 = vmatpush.msra.mxu0 %v3502
        %8729 = vmatpush.msra.mxu0 %v3494
        %8730 = vmatpush.msra.mxu0 %v3486
        %8731 = vmatpush.msra.mxu0 %v3478
        %8732 = vmatpush.msra.mxu0 %v3470
        %8733 = vmatpush.msra.mxu0 %v3462
        %8734 = vmatpush.msra.mxu0 %v3454
        %8735 = vmatpush.msra.mxu0 %v3446
        %8736 = vmatpush.msra.mxu0 %v3438
        %8737 = vmatpush.msra.mxu0 %v3430
        %8738 = vmatpush.msra.mxu0 %v3422
        %8739 = vmatpush.msra.mxu0 %v3414
        %8740 = vmatpush.msra.mxu0 %v3406
        %8741 = vmatpush.msra.mxu0 %v3398
        %8742 = vmatpush.msra.mxu0 %v3390
        %8743 = vmatpush.msra.mxu0 %v3382
        %8744 = vmatmul.f32.gmra.mxu0 %v296
        %v8745 = vpop.f32.mrf.mxu0
        %v8746 = vadd.f32 %v8726, %v8745
        %8747 = vdwg.mxu0
        %8748 = vmatpush.msra.mxu0 %v3630
        %8749 = vmatpush.msra.mxu0 %v3622
        %8750 = vmatpush.msra.mxu0 %v3614
        %8751 = vmatpush.msra.mxu0 %v3606
        %8752 = vmatpush.msra.mxu0 %v3598
        %8753 = vmatpush.msra.mxu0 %v3590
        %8754 = vmatpush.msra.mxu0 %v3582
        %8755 = vmatpush.msra.mxu0 %v3574
        %8756 = vmatpush.msra.mxu0 %v3566
        %8757 = vmatpush.msra.mxu0 %v3558
        %8758 = vmatpush.msra.mxu0 %v3550
        %8759 = vmatpush.msra.mxu0 %v3542
        %8760 = vmatpush.msra.mxu0 %v3534
        %8761 = vmatpush.msra.mxu0 %v3526
        %8762 = vmatpush.msra.mxu0 %v3518
        %8763 = vmatpush.msra.mxu0 %v3510
        %8764 = vmatmul.f32.gmra.mxu0 %v297
        %v8765 = vpop.f32.mrf.mxu0
        %v8766 = vadd.f32 %v8746, %v8765
        %8767 = vdwg.mxu0
        %8768 = vmatpush.msra.mxu0 %v3758
        %8769 = vmatpush.msra.mxu0 %v3750
        %8770 = vmatpush.msra.mxu0 %v3742
        %8771 = vmatpush.msra.mxu0 %v3734
        %8772 = vmatpush.msra.mxu0 %v3726
        %8773 = vmatpush.msra.mxu0 %v3718
        %8774 = vmatpush.msra.mxu0 %v3710
        %8775 = vmatpush.msra.mxu0 %v3702
        %8776 = vmatpush.msra.mxu0 %v3694
        %8777 = vmatpush.msra.mxu0 %v3686
        %8778 = vmatpush.msra.mxu0 %v3678
        %8779 = vmatpush.msra.mxu0 %v3670
        %8780 = vmatpush.msra.mxu0 %v3662
        %8781 = vmatpush.msra.mxu0 %v3654
        %8782 = vmatpush.msra.mxu0 %v3646
        %8783 = vmatpush.msra.mxu0 %v3638
        %8784 = vmatmul.f32.gmra.mxu0 %v298
        %v8785 = vpop.f32.mrf.mxu0
        %v8786 = vadd.f32 %v8766, %v8785
        %8787 = vdwg.mxu0
        %8788 = vmatpush.msra.mxu0 %v3886
        %8789 = vmatpush.msra.mxu0 %v3878
        %8790 = vmatpush.msra.mxu0 %v3870
        %8791 = vmatpush.msra.mxu0 %v3862
        %8792 = vmatpush.msra.mxu0 %v3854
        %8793 = vmatpush.msra.mxu0 %v3846
        %8794 = vmatpush.msra.mxu0 %v3838
        %8795 = vmatpush.msra.mxu0 %v3830
        %8796 = vmatpush.msra.mxu0 %v3822
        %8797 = vmatpush.msra.mxu0 %v3814
        %8798 = vmatpush.msra.mxu0 %v3806
        %8799 = vmatpush.msra.mxu0 %v3798
        %8800 = vmatpush.msra.mxu0 %v3790
        %8801 = vmatpush.msra.mxu0 %v3782
        %8802 = vmatpush.msra.mxu0 %v3774
        %8803 = vmatpush.msra.mxu0 %v3766
        %8804 = vmatmul.f32.gmra.mxu0 %v299
        %v8805 = vpop.f32.mrf.mxu0
        %v8806 = vadd.f32 %v8786, %v8805
        %8807 = vdwg.mxu0
        %8808 = vmatpush.msra.mxu0 %v4014
        %8809 = vmatpush.msra.mxu0 %v4006
        %8810 = vmatpush.msra.mxu0 %v3998
        %8811 = vmatpush.msra.mxu0 %v3990
        %8812 = vmatpush.msra.mxu0 %v3982
        %8813 = vmatpush.msra.mxu0 %v3974
        %8814 = vmatpush.msra.mxu0 %v3966
        %8815 = vmatpush.msra.mxu0 %v3958
        %8816 = vmatpush.msra.mxu0 %v3950
        %8817 = vmatpush.msra.mxu0 %v3942
        %8818 = vmatpush.msra.mxu0 %v3934
        %8819 = vmatpush.msra.mxu0 %v3926
        %8820 = vmatpush.msra.mxu0 %v3918
        %8821 = vmatpush.msra.mxu0 %v3910
        %8822 = vmatpush.msra.mxu0 %v3902
        %8823 = vmatpush.msra.mxu0 %v3894
        %8824 = vmatmul.f32.gmra.mxu0 %v300
        %v8825 = vpop.f32.mrf.mxu0
        %v8826 = vadd.f32 %v8806, %v8825
        %8827 = vdwg.mxu0
        %8828 = vmatpush.msra.mxu0 %v4142
        %8829 = vmatpush.msra.mxu0 %v4134
        %8830 = vmatpush.msra.mxu0 %v4126
        %8831 = vmatpush.msra.mxu0 %v4118
        %8832 = vmatpush.msra.mxu0 %v4110
        %8833 = vmatpush.msra.mxu0 %v4102
        %8834 = vmatpush.msra.mxu0 %v4094
        %8835 = vmatpush.msra.mxu0 %v4086
        %8836 = vmatpush.msra.mxu0 %v4078
        %8837 = vmatpush.msra.mxu0 %v4070
        %8838 = vmatpush.msra.mxu0 %v4062
        %8839 = vmatpush.msra.mxu0 %v4054
        %8840 = vmatpush.msra.mxu0 %v4046
        %8841 = vmatpush.msra.mxu0 %v4038
        %8842 = vmatpush.msra.mxu0 %v4030
        %8843 = vmatpush.msra.mxu0 %v4022
        %8844 = vmatmul.f32.gmra.mxu0 %v301
        %v8845 = vpop.f32.mrf.mxu0
        %v8846 = vadd.f32 %v8826, %v8845
        %8847 = vdwg.mxu0
        %8848 = vmatpush.msra.mxu0 %v4270
        %8849 = vmatpush.msra.mxu0 %v4262
        %8850 = vmatpush.msra.mxu0 %v4254
        %8851 = vmatpush.msra.mxu0 %v4246
        %8852 = vmatpush.msra.mxu0 %v4238
        %8853 = vmatpush.msra.mxu0 %v4230
        %8854 = vmatpush.msra.mxu0 %v4222
        %8855 = vmatpush.msra.mxu0 %v4214
        %8856 = vmatpush.msra.mxu0 %v4206
        %8857 = vmatpush.msra.mxu0 %v4198
        %8858 = vmatpush.msra.mxu0 %v4190
        %8859 = vmatpush.msra.mxu0 %v4182
        %8860 = vmatpush.msra.mxu0 %v4174
        %8861 = vmatpush.msra.mxu0 %v4166
        %8862 = vmatpush.msra.mxu0 %v4158
        %8863 = vmatpush.msra.mxu0 %v4150
        %8864 = vmatmul.f32.gmra.mxu0 %v302
        %v8865 = vpop.f32.mrf.mxu0
        %v8866 = vadd.f32 %v8846, %v8865
        %8867 = vdwg.mxu0
        %8868 = vmatpush.msra.mxu0 %v4398
        %8869 = vmatpush.msra.mxu0 %v4390
        %8870 = vmatpush.msra.mxu0 %v4382
        %8871 = vmatpush.msra.mxu0 %v4374
        %8872 = vmatpush.msra.mxu0 %v4366
        %8873 = vmatpush.msra.mxu0 %v4358
        %8874 = vmatpush.msra.mxu0 %v4350
        %8875 = vmatpush.msra.mxu0 %v4342
        %8876 = vmatpush.msra.mxu0 %v4334
        %8877 = vmatpush.msra.mxu0 %v4326
        %8878 = vmatpush.msra.mxu0 %v4318
        %8879 = vmatpush.msra.mxu0 %v4310
        %8880 = vmatpush.msra.mxu0 %v4302
        %8881 = vmatpush.msra.mxu0 %v4294
        %8882 = vmatpush.msra.mxu0 %v4286
        %8883 = vmatpush.msra.mxu0 %v4278
        %8884 = vmatmul.f32.gmra.mxu0 %v303
        %v8885 = vpop.f32.mrf.mxu0
        %v8886 = vadd.f32 %v8866, %v8885
        %8887 = vdwg.mxu0
        %8888 = vmatpush.msra.mxu0 %v431
        %8889 = vmatpush.msra.mxu0 %v423
        %8890 = vmatpush.msra.mxu0 %v415
        %8891 = vmatpush.msra.mxu0 %v407
        %8892 = vmatpush.msra.mxu0 %v399
        %8893 = vmatpush.msra.mxu0 %v391
        %8894 = vmatpush.msra.mxu0 %v383
        %8895 = vmatpush.msra.mxu0 %v375
        %8896 = vmatpush.msra.mxu0 %v367
        %8897 = vmatpush.msra.mxu0 %v359
        %8898 = vmatpush.msra.mxu0 %v351
        %8899 = vmatpush.msra.mxu0 %v343
        %8900 = vmatpush.msra.mxu0 %v335
        %8901 = vmatpush.msra.mxu0 %v327
        %8902 = vmatpush.msra.mxu0 %v319
        %8903 = vmatpush.msra.mxu0 %v311
        %8904 = vmatmul.f32.gmra.mxu0 %v272
        %v8905 = vpop.f32.mrf.mxu0
        %v8906 = vadd.f32 %v4407, %v8905
        %8907 = vdwg.mxu0
        %8908 = vmatpush.msra.mxu0 %v559
        %8909 = vmatpush.msra.mxu0 %v551
        %8910 = vmatpush.msra.mxu0 %v543
        %8911 = vmatpush.msra.mxu0 %v535
        %8912 = vmatpush.msra.mxu0 %v527
        %8913 = vmatpush.msra.mxu0 %v519
        %8914 = vmatpush.msra.mxu0 %v511
        %8915 = vmatpush.msra.mxu0 %v503
        %8916 = vmatpush.msra.mxu0 %v495
        %8917 = vmatpush.msra.mxu0 %v487
        %8918 = vmatpush.msra.mxu0 %v479
        %8919 = vmatpush.msra.mxu0 %v471
        %8920 = vmatpush.msra.mxu0 %v463
        %8921 = vmatpush.msra.mxu0 %v455
        %8922 = vmatpush.msra.mxu0 %v447
        %8923 = vmatpush.msra.mxu0 %v439
        %8924 = vmatmul.f32.gmra.mxu0 %v273
        %v8925 = vpop.f32.mrf.mxu0
        %v8926 = vadd.f32 %v8906, %v8925
        %8927 = vdwg.mxu0
        %8928 = vmatpush.msra.mxu0 %v687
        %8929 = vmatpush.msra.mxu0 %v679
        %8930 = vmatpush.msra.mxu0 %v671
        %8931 = vmatpush.msra.mxu0 %v663
        %8932 = vmatpush.msra.mxu0 %v655
        %8933 = vmatpush.msra.mxu0 %v647
        %8934 = vmatpush.msra.mxu0 %v639
        %8935 = vmatpush.msra.mxu0 %v631
        %8936 = vmatpush.msra.mxu0 %v623
        %8937 = vmatpush.msra.mxu0 %v615
        %8938 = vmatpush.msra.mxu0 %v607
        %8939 = vmatpush.msra.mxu0 %v599
        %8940 = vmatpush.msra.mxu0 %v591
        %8941 = vmatpush.msra.mxu0 %v583
        %8942 = vmatpush.msra.mxu0 %v575
        %8943 = vmatpush.msra.mxu0 %v567
        %8944 = vmatmul.f32.gmra.mxu0 %v274
        %v8945 = vpop.f32.mrf.mxu0
        %v8946 = vadd.f32 %v8926, %v8945
        %8947 = vdwg.mxu0
        %8948 = vmatpush.msra.mxu0 %v815
        %8949 = vmatpush.msra.mxu0 %v807
        %8950 = vmatpush.msra.mxu0 %v799
        %8951 = vmatpush.msra.mxu0 %v791
        %8952 = vmatpush.msra.mxu0 %v783
        %8953 = vmatpush.msra.mxu0 %v775
        %8954 = vmatpush.msra.mxu0 %v767
        %8955 = vmatpush.msra.mxu0 %v759
        %8956 = vmatpush.msra.mxu0 %v751
        %8957 = vmatpush.msra.mxu0 %v743
        %8958 = vmatpush.msra.mxu0 %v735
        %8959 = vmatpush.msra.mxu0 %v727
        %8960 = vmatpush.msra.mxu0 %v719
        %8961 = vmatpush.msra.mxu0 %v711
        %8962 = vmatpush.msra.mxu0 %v703
        %8963 = vmatpush.msra.mxu0 %v695
        %8964 = vmatmul.f32.gmra.mxu0 %v275
        %v8965 = vpop.f32.mrf.mxu0
        %v8966 = vadd.f32 %v8946, %v8965
        %8967 = vdwg.mxu0
        %8968 = vmatpush.msra.mxu0 %v943
        %8969 = vmatpush.msra.mxu0 %v935
        %8970 = vmatpush.msra.mxu0 %v927
        %8971 = vmatpush.msra.mxu0 %v919
        %8972 = vmatpush.msra.mxu0 %v911
        %8973 = vmatpush.msra.mxu0 %v903
        %8974 = vmatpush.msra.mxu0 %v895
        %8975 = vmatpush.msra.mxu0 %v887
        %8976 = vmatpush.msra.mxu0 %v879
        %8977 = vmatpush.msra.mxu0 %v871
        %8978 = vmatpush.msra.mxu0 %v863
        %8979 = vmatpush.msra.mxu0 %v855
        %8980 = vmatpush.msra.mxu0 %v847
        %8981 = vmatpush.msra.mxu0 %v839
        %8982 = vmatpush.msra.mxu0 %v831
        %8983 = vmatpush.msra.mxu0 %v823
        %8984 = vmatmul.f32.gmra.mxu0 %v276
        %v8985 = vpop.f32.mrf.mxu0
        %v8986 = vadd.f32 %v8966, %v8985
        %8987 = vdwg.mxu0
        %8988 = vmatpush.msra.mxu0 %v1071
        %8989 = vmatpush.msra.mxu0 %v1063
        %8990 = vmatpush.msra.mxu0 %v1055
        %8991 = vmatpush.msra.mxu0 %v1047
        %8992 = vmatpush.msra.mxu0 %v1039
        %8993 = vmatpush.msra.mxu0 %v1031
        %8994 = vmatpush.msra.mxu0 %v1023
        %8995 = vmatpush.msra.mxu0 %v1015
        %8996 = vmatpush.msra.mxu0 %v1007
        %8997 = vmatpush.msra.mxu0 %v999
        %8998 = vmatpush.msra.mxu0 %v991
        %8999 = vmatpush.msra.mxu0 %v983
        %9000 = vmatpush.msra.mxu0 %v975
        %9001 = vmatpush.msra.mxu0 %v967
        %9002 = vmatpush.msra.mxu0 %v959
        %9003 = vmatpush.msra.mxu0 %v951
        %9004 = vmatmul.f32.gmra.mxu0 %v277
        %v9005 = vpop.f32.mrf.mxu0
        %v9006 = vadd.f32 %v8986, %v9005
        %9007 = vdwg.mxu0
        %9008 = vmatpush.msra.mxu0 %v1199
        %9009 = vmatpush.msra.mxu0 %v1191
        %9010 = vmatpush.msra.mxu0 %v1183
        %9011 = vmatpush.msra.mxu0 %v1175
        %9012 = vmatpush.msra.mxu0 %v1167
        %9013 = vmatpush.msra.mxu0 %v1159
        %9014 = vmatpush.msra.mxu0 %v1151
        %9015 = vmatpush.msra.mxu0 %v1143
        %9016 = vmatpush.msra.mxu0 %v1135
        %9017 = vmatpush.msra.mxu0 %v1127
        %9018 = vmatpush.msra.mxu0 %v1119
        %9019 = vmatpush.msra.mxu0 %v1111
        %9020 = vmatpush.msra.mxu0 %v1103
        %9021 = vmatpush.msra.mxu0 %v1095
        %9022 = vmatpush.msra.mxu0 %v1087
        %9023 = vmatpush.msra.mxu0 %v1079
        %9024 = vmatmul.f32.gmra.mxu0 %v278
        %v9025 = vpop.f32.mrf.mxu0
        %v9026 = vadd.f32 %v9006, %v9025
        %9027 = vdwg.mxu0
        %9028 = vmatpush.msra.mxu0 %v1327
        %9029 = vmatpush.msra.mxu0 %v1319
        %9030 = vmatpush.msra.mxu0 %v1311
        %9031 = vmatpush.msra.mxu0 %v1303
        %9032 = vmatpush.msra.mxu0 %v1295
        %9033 = vmatpush.msra.mxu0 %v1287
        %9034 = vmatpush.msra.mxu0 %v1279
        %9035 = vmatpush.msra.mxu0 %v1271
        %9036 = vmatpush.msra.mxu0 %v1263
        %9037 = vmatpush.msra.mxu0 %v1255
        %9038 = vmatpush.msra.mxu0 %v1247
        %9039 = vmatpush.msra.mxu0 %v1239
        %9040 = vmatpush.msra.mxu0 %v1231
        %9041 = vmatpush.msra.mxu0 %v1223
        %9042 = vmatpush.msra.mxu0 %v1215
        %9043 = vmatpush.msra.mxu0 %v1207
        %9044 = vmatmul.f32.gmra.mxu0 %v279
        %v9045 = vpop.f32.mrf.mxu0
        %v9046 = vadd.f32 %v9026, %v9045
        %9047 = vdwg.mxu0
        %9048 = vmatpush.msra.mxu0 %v1455
        %9049 = vmatpush.msra.mxu0 %v1447
        %9050 = vmatpush.msra.mxu0 %v1439
        %9051 = vmatpush.msra.mxu0 %v1431
        %9052 = vmatpush.msra.mxu0 %v1423
        %9053 = vmatpush.msra.mxu0 %v1415
        %9054 = vmatpush.msra.mxu0 %v1407
        %9055 = vmatpush.msra.mxu0 %v1399
        %9056 = vmatpush.msra.mxu0 %v1391
        %9057 = vmatpush.msra.mxu0 %v1383
        %9058 = vmatpush.msra.mxu0 %v1375
        %9059 = vmatpush.msra.mxu0 %v1367
        %9060 = vmatpush.msra.mxu0 %v1359
        %9061 = vmatpush.msra.mxu0 %v1351
        %9062 = vmatpush.msra.mxu0 %v1343
        %9063 = vmatpush.msra.mxu0 %v1335
        %9064 = vmatmul.f32.gmra.mxu0 %v280
        %v9065 = vpop.f32.mrf.mxu0
        %v9066 = vadd.f32 %v9046, %v9065
        %9067 = vdwg.mxu0
        %9068 = vmatpush.msra.mxu0 %v1583
        %9069 = vmatpush.msra.mxu0 %v1575
        %9070 = vmatpush.msra.mxu0 %v1567
        %9071 = vmatpush.msra.mxu0 %v1559
        %9072 = vmatpush.msra.mxu0 %v1551
        %9073 = vmatpush.msra.mxu0 %v1543
        %9074 = vmatpush.msra.mxu0 %v1535
        %9075 = vmatpush.msra.mxu0 %v1527
        %9076 = vmatpush.msra.mxu0 %v1519
        %9077 = vmatpush.msra.mxu0 %v1511
        %9078 = vmatpush.msra.mxu0 %v1503
        %9079 = vmatpush.msra.mxu0 %v1495
        %9080 = vmatpush.msra.mxu0 %v1487
        %9081 = vmatpush.msra.mxu0 %v1479
        %9082 = vmatpush.msra.mxu0 %v1471
        %9083 = vmatpush.msra.mxu0 %v1463
        %9084 = vmatmul.f32.gmra.mxu0 %v281
        %v9085 = vpop.f32.mrf.mxu0
        %v9086 = vadd.f32 %v9066, %v9085
        %9087 = vdwg.mxu0
        %9088 = vmatpush.msra.mxu0 %v1711
        %9089 = vmatpush.msra.mxu0 %v1703
        %9090 = vmatpush.msra.mxu0 %v1695
        %9091 = vmatpush.msra.mxu0 %v1687
        %9092 = vmatpush.msra.mxu0 %v1679
        %9093 = vmatpush.msra.mxu0 %v1671
        %9094 = vmatpush.msra.mxu0 %v1663
        %9095 = vmatpush.msra.mxu0 %v1655
        %9096 = vmatpush.msra.mxu0 %v1647
        %9097 = vmatpush.msra.mxu0 %v1639
        %9098 = vmatpush.msra.mxu0 %v1631
        %9099 = vmatpush.msra.mxu0 %v1623
        %9100 = vmatpush.msra.mxu0 %v1615
        %9101 = vmatpush.msra.mxu0 %v1607
        %9102 = vmatpush.msra.mxu0 %v1599
        %9103 = vmatpush.msra.mxu0 %v1591
        %9104 = vmatmul.f32.gmra.mxu0 %v282
        %v9105 = vpop.f32.mrf.mxu0
        %v9106 = vadd.f32 %v9086, %v9105
        %9107 = vdwg.mxu0
        %9108 = vmatpush.msra.mxu0 %v1839
        %9109 = vmatpush.msra.mxu0 %v1831
        %9110 = vmatpush.msra.mxu0 %v1823
        %9111 = vmatpush.msra.mxu0 %v1815
        %9112 = vmatpush.msra.mxu0 %v1807
        %9113 = vmatpush.msra.mxu0 %v1799
        %9114 = vmatpush.msra.mxu0 %v1791
        %9115 = vmatpush.msra.mxu0 %v1783
        %9116 = vmatpush.msra.mxu0 %v1775
        %9117 = vmatpush.msra.mxu0 %v1767
        %9118 = vmatpush.msra.mxu0 %v1759
        %9119 = vmatpush.msra.mxu0 %v1751
        %9120 = vmatpush.msra.mxu0 %v1743
        %9121 = vmatpush.msra.mxu0 %v1735
        %9122 = vmatpush.msra.mxu0 %v1727
        %9123 = vmatpush.msra.mxu0 %v1719
        %9124 = vmatmul.f32.gmra.mxu0 %v283
        %v9125 = vpop.f32.mrf.mxu0
        %v9126 = vadd.f32 %v9106, %v9125
        %9127 = vdwg.mxu0
        %9128 = vmatpush.msra.mxu0 %v1967
        %9129 = vmatpush.msra.mxu0 %v1959
        %9130 = vmatpush.msra.mxu0 %v1951
        %9131 = vmatpush.msra.mxu0 %v1943
        %9132 = vmatpush.msra.mxu0 %v1935
        %9133 = vmatpush.msra.mxu0 %v1927
        %9134 = vmatpush.msra.mxu0 %v1919
        %9135 = vmatpush.msra.mxu0 %v1911
        %9136 = vmatpush.msra.mxu0 %v1903
        %9137 = vmatpush.msra.mxu0 %v1895
        %9138 = vmatpush.msra.mxu0 %v1887
        %9139 = vmatpush.msra.mxu0 %v1879
        %9140 = vmatpush.msra.mxu0 %v1871
        %9141 = vmatpush.msra.mxu0 %v1863
        %9142 = vmatpush.msra.mxu0 %v1855
        %9143 = vmatpush.msra.mxu0 %v1847
        %9144 = vmatmul.f32.gmra.mxu0 %v284
        %v9145 = vpop.f32.mrf.mxu0
        %v9146 = vadd.f32 %v9126, %v9145
        %9147 = vdwg.mxu0
        %9148 = vmatpush.msra.mxu0 %v2095
        %9149 = vmatpush.msra.mxu0 %v2087
        %9150 = vmatpush.msra.mxu0 %v2079
        %9151 = vmatpush.msra.mxu0 %v2071
        %9152 = vmatpush.msra.mxu0 %v2063
        %9153 = vmatpush.msra.mxu0 %v2055
        %9154 = vmatpush.msra.mxu0 %v2047
        %9155 = vmatpush.msra.mxu0 %v2039
        %9156 = vmatpush.msra.mxu0 %v2031
        %9157 = vmatpush.msra.mxu0 %v2023
        %9158 = vmatpush.msra.mxu0 %v2015
        %9159 = vmatpush.msra.mxu0 %v2007
        %9160 = vmatpush.msra.mxu0 %v1999
        %9161 = vmatpush.msra.mxu0 %v1991
        %9162 = vmatpush.msra.mxu0 %v1983
        %9163 = vmatpush.msra.mxu0 %v1975
        %9164 = vmatmul.f32.gmra.mxu0 %v285
        %v9165 = vpop.f32.mrf.mxu0
        %v9166 = vadd.f32 %v9146, %v9165
        %9167 = vdwg.mxu0
        %9168 = vmatpush.msra.mxu0 %v2223
        %9169 = vmatpush.msra.mxu0 %v2215
        %9170 = vmatpush.msra.mxu0 %v2207
        %9171 = vmatpush.msra.mxu0 %v2199
        %9172 = vmatpush.msra.mxu0 %v2191
        %9173 = vmatpush.msra.mxu0 %v2183
        %9174 = vmatpush.msra.mxu0 %v2175
        %9175 = vmatpush.msra.mxu0 %v2167
        %9176 = vmatpush.msra.mxu0 %v2159
        %9177 = vmatpush.msra.mxu0 %v2151
        %9178 = vmatpush.msra.mxu0 %v2143
        %9179 = vmatpush.msra.mxu0 %v2135
        %9180 = vmatpush.msra.mxu0 %v2127
        %9181 = vmatpush.msra.mxu0 %v2119
        %9182 = vmatpush.msra.mxu0 %v2111
        %9183 = vmatpush.msra.mxu0 %v2103
        %9184 = vmatmul.f32.gmra.mxu0 %v286
        %v9185 = vpop.f32.mrf.mxu0
        %v9186 = vadd.f32 %v9166, %v9185
        %9187 = vdwg.mxu0
        %9188 = vmatpush.msra.mxu0 %v2351
        %9189 = vmatpush.msra.mxu0 %v2343
        %9190 = vmatpush.msra.mxu0 %v2335
        %9191 = vmatpush.msra.mxu0 %v2327
        %9192 = vmatpush.msra.mxu0 %v2319
        %9193 = vmatpush.msra.mxu0 %v2311
        %9194 = vmatpush.msra.mxu0 %v2303
        %9195 = vmatpush.msra.mxu0 %v2295
        %9196 = vmatpush.msra.mxu0 %v2287
        %9197 = vmatpush.msra.mxu0 %v2279
        %9198 = vmatpush.msra.mxu0 %v2271
        %9199 = vmatpush.msra.mxu0 %v2263
        %9200 = vmatpush.msra.mxu0 %v2255
        %9201 = vmatpush.msra.mxu0 %v2247
        %9202 = vmatpush.msra.mxu0 %v2239
        %9203 = vmatpush.msra.mxu0 %v2231
        %9204 = vmatmul.f32.gmra.mxu0 %v287
        %v9205 = vpop.f32.mrf.mxu0
        %v9206 = vadd.f32 %v9186, %v9205
        %9207 = vdwg.mxu0
        %9208 = vmatpush.msra.mxu0 %v2479
        %9209 = vmatpush.msra.mxu0 %v2471
        %9210 = vmatpush.msra.mxu0 %v2463
        %9211 = vmatpush.msra.mxu0 %v2455
        %9212 = vmatpush.msra.mxu0 %v2447
        %9213 = vmatpush.msra.mxu0 %v2439
        %9214 = vmatpush.msra.mxu0 %v2431
        %9215 = vmatpush.msra.mxu0 %v2423
        %9216 = vmatpush.msra.mxu0 %v2415
        %9217 = vmatpush.msra.mxu0 %v2407
        %9218 = vmatpush.msra.mxu0 %v2399
        %9219 = vmatpush.msra.mxu0 %v2391
        %9220 = vmatpush.msra.mxu0 %v2383
        %9221 = vmatpush.msra.mxu0 %v2375
        %9222 = vmatpush.msra.mxu0 %v2367
        %9223 = vmatpush.msra.mxu0 %v2359
        %9224 = vmatmul.f32.gmra.mxu0 %v288
        %v9225 = vpop.f32.mrf.mxu0
        %v9226 = vadd.f32 %v9206, %v9225
        %9227 = vdwg.mxu0
        %9228 = vmatpush.msra.mxu0 %v2607
        %9229 = vmatpush.msra.mxu0 %v2599
        %9230 = vmatpush.msra.mxu0 %v2591
        %9231 = vmatpush.msra.mxu0 %v2583
        %9232 = vmatpush.msra.mxu0 %v2575
        %9233 = vmatpush.msra.mxu0 %v2567
        %9234 = vmatpush.msra.mxu0 %v2559
        %9235 = vmatpush.msra.mxu0 %v2551
        %9236 = vmatpush.msra.mxu0 %v2543
        %9237 = vmatpush.msra.mxu0 %v2535
        %9238 = vmatpush.msra.mxu0 %v2527
        %9239 = vmatpush.msra.mxu0 %v2519
        %9240 = vmatpush.msra.mxu0 %v2511
        %9241 = vmatpush.msra.mxu0 %v2503
        %9242 = vmatpush.msra.mxu0 %v2495
        %9243 = vmatpush.msra.mxu0 %v2487
        %9244 = vmatmul.f32.gmra.mxu0 %v289
        %v9245 = vpop.f32.mrf.mxu0
        %v9246 = vadd.f32 %v9226, %v9245
        %9247 = vdwg.mxu0
        %9248 = vmatpush.msra.mxu0 %v2735
        %9249 = vmatpush.msra.mxu0 %v2727
        %9250 = vmatpush.msra.mxu0 %v2719
        %9251 = vmatpush.msra.mxu0 %v2711
        %9252 = vmatpush.msra.mxu0 %v2703
        %9253 = vmatpush.msra.mxu0 %v2695
        %9254 = vmatpush.msra.mxu0 %v2687
        %9255 = vmatpush.msra.mxu0 %v2679
        %9256 = vmatpush.msra.mxu0 %v2671
        %9257 = vmatpush.msra.mxu0 %v2663
        %9258 = vmatpush.msra.mxu0 %v2655
        %9259 = vmatpush.msra.mxu0 %v2647
        %9260 = vmatpush.msra.mxu0 %v2639
        %9261 = vmatpush.msra.mxu0 %v2631
        %9262 = vmatpush.msra.mxu0 %v2623
        %9263 = vmatpush.msra.mxu0 %v2615
        %9264 = vmatmul.f32.gmra.mxu0 %v290
        %v9265 = vpop.f32.mrf.mxu0
        %v9266 = vadd.f32 %v9246, %v9265
        %9267 = vdwg.mxu0
        %9268 = vmatpush.msra.mxu0 %v2863
        %9269 = vmatpush.msra.mxu0 %v2855
        %9270 = vmatpush.msra.mxu0 %v2847
        %9271 = vmatpush.msra.mxu0 %v2839
        %9272 = vmatpush.msra.mxu0 %v2831
        %9273 = vmatpush.msra.mxu0 %v2823
        %9274 = vmatpush.msra.mxu0 %v2815
        %9275 = vmatpush.msra.mxu0 %v2807
        %9276 = vmatpush.msra.mxu0 %v2799
        %9277 = vmatpush.msra.mxu0 %v2791
        %9278 = vmatpush.msra.mxu0 %v2783
        %9279 = vmatpush.msra.mxu0 %v2775
        %9280 = vmatpush.msra.mxu0 %v2767
        %9281 = vmatpush.msra.mxu0 %v2759
        %9282 = vmatpush.msra.mxu0 %v2751
        %9283 = vmatpush.msra.mxu0 %v2743
        %9284 = vmatmul.f32.gmra.mxu0 %v291
        %v9285 = vpop.f32.mrf.mxu0
        %v9286 = vadd.f32 %v9266, %v9285
        %9287 = vdwg.mxu0
        %9288 = vmatpush.msra.mxu0 %v2991
        %9289 = vmatpush.msra.mxu0 %v2983
        %9290 = vmatpush.msra.mxu0 %v2975
        %9291 = vmatpush.msra.mxu0 %v2967
        %9292 = vmatpush.msra.mxu0 %v2959
        %9293 = vmatpush.msra.mxu0 %v2951
        %9294 = vmatpush.msra.mxu0 %v2943
        %9295 = vmatpush.msra.mxu0 %v2935
        %9296 = vmatpush.msra.mxu0 %v2927
        %9297 = vmatpush.msra.mxu0 %v2919
        %9298 = vmatpush.msra.mxu0 %v2911
        %9299 = vmatpush.msra.mxu0 %v2903
        %9300 = vmatpush.msra.mxu0 %v2895
        %9301 = vmatpush.msra.mxu0 %v2887
        %9302 = vmatpush.msra.mxu0 %v2879
        %9303 = vmatpush.msra.mxu0 %v2871
        %9304 = vmatmul.f32.gmra.mxu0 %v292
        %v9305 = vpop.f32.mrf.mxu0
        %v9306 = vadd.f32 %v9286, %v9305
        %9307 = vdwg.mxu0
        %9308 = vmatpush.msra.mxu0 %v3119
        %9309 = vmatpush.msra.mxu0 %v3111
        %9310 = vmatpush.msra.mxu0 %v3103
        %9311 = vmatpush.msra.mxu0 %v3095
        %9312 = vmatpush.msra.mxu0 %v3087
        %9313 = vmatpush.msra.mxu0 %v3079
        %9314 = vmatpush.msra.mxu0 %v3071
        %9315 = vmatpush.msra.mxu0 %v3063
        %9316 = vmatpush.msra.mxu0 %v3055
        %9317 = vmatpush.msra.mxu0 %v3047
        %9318 = vmatpush.msra.mxu0 %v3039
        %9319 = vmatpush.msra.mxu0 %v3031
        %9320 = vmatpush.msra.mxu0 %v3023
        %9321 = vmatpush.msra.mxu0 %v3015
        %9322 = vmatpush.msra.mxu0 %v3007
        %9323 = vmatpush.msra.mxu0 %v2999
        %9324 = vmatmul.f32.gmra.mxu0 %v293
        %v9325 = vpop.f32.mrf.mxu0
        %v9326 = vadd.f32 %v9306, %v9325
        %9327 = vdwg.mxu0
        %9328 = vmatpush.msra.mxu0 %v3247
        %9329 = vmatpush.msra.mxu0 %v3239
        %9330 = vmatpush.msra.mxu0 %v3231
        %9331 = vmatpush.msra.mxu0 %v3223
        %9332 = vmatpush.msra.mxu0 %v3215
        %9333 = vmatpush.msra.mxu0 %v3207
        %9334 = vmatpush.msra.mxu0 %v3199
        %9335 = vmatpush.msra.mxu0 %v3191
        %9336 = vmatpush.msra.mxu0 %v3183
        %9337 = vmatpush.msra.mxu0 %v3175
        %9338 = vmatpush.msra.mxu0 %v3167
        %9339 = vmatpush.msra.mxu0 %v3159
        %9340 = vmatpush.msra.mxu0 %v3151
        %9341 = vmatpush.msra.mxu0 %v3143
        %9342 = vmatpush.msra.mxu0 %v3135
        %9343 = vmatpush.msra.mxu0 %v3127
        %9344 = vmatmul.f32.gmra.mxu0 %v294
        %v9345 = vpop.f32.mrf.mxu0
        %v9346 = vadd.f32 %v9326, %v9345
        %9347 = vdwg.mxu0
        %9348 = vmatpush.msra.mxu0 %v3375
        %9349 = vmatpush.msra.mxu0 %v3367
        %9350 = vmatpush.msra.mxu0 %v3359
        %9351 = vmatpush.msra.mxu0 %v3351
        %9352 = vmatpush.msra.mxu0 %v3343
        %9353 = vmatpush.msra.mxu0 %v3335
        %9354 = vmatpush.msra.mxu0 %v3327
        %9355 = vmatpush.msra.mxu0 %v3319
        %9356 = vmatpush.msra.mxu0 %v3311
        %9357 = vmatpush.msra.mxu0 %v3303
        %9358 = vmatpush.msra.mxu0 %v3295
        %9359 = vmatpush.msra.mxu0 %v3287
        %9360 = vmatpush.msra.mxu0 %v3279
        %9361 = vmatpush.msra.mxu0 %v3271
        %9362 = vmatpush.msra.mxu0 %v3263
        %9363 = vmatpush.msra.mxu0 %v3255
        %9364 = vmatmul.f32.gmra.mxu0 %v295
        %v9365 = vpop.f32.mrf.mxu0
        %v9366 = vadd.f32 %v9346, %v9365
        %9367 = vdwg.mxu0
        %9368 = vmatpush.msra.mxu0 %v3503
        %9369 = vmatpush.msra.mxu0 %v3495
        %9370 = vmatpush.msra.mxu0 %v3487
        %9371 = vmatpush.msra.mxu0 %v3479
        %9372 = vmatpush.msra.mxu0 %v3471
        %9373 = vmatpush.msra.mxu0 %v3463
        %9374 = vmatpush.msra.mxu0 %v3455
        %9375 = vmatpush.msra.mxu0 %v3447
        %9376 = vmatpush.msra.mxu0 %v3439
        %9377 = vmatpush.msra.mxu0 %v3431
        %9378 = vmatpush.msra.mxu0 %v3423
        %9379 = vmatpush.msra.mxu0 %v3415
        %9380 = vmatpush.msra.mxu0 %v3407
        %9381 = vmatpush.msra.mxu0 %v3399
        %9382 = vmatpush.msra.mxu0 %v3391
        %9383 = vmatpush.msra.mxu0 %v3383
        %9384 = vmatmul.f32.gmra.mxu0 %v296
        %v9385 = vpop.f32.mrf.mxu0
        %v9386 = vadd.f32 %v9366, %v9385
        %9387 = vdwg.mxu0
        %9388 = vmatpush.msra.mxu0 %v3631
        %9389 = vmatpush.msra.mxu0 %v3623
        %9390 = vmatpush.msra.mxu0 %v3615
        %9391 = vmatpush.msra.mxu0 %v3607
        %9392 = vmatpush.msra.mxu0 %v3599
        %9393 = vmatpush.msra.mxu0 %v3591
        %9394 = vmatpush.msra.mxu0 %v3583
        %9395 = vmatpush.msra.mxu0 %v3575
        %9396 = vmatpush.msra.mxu0 %v3567
        %9397 = vmatpush.msra.mxu0 %v3559
        %9398 = vmatpush.msra.mxu0 %v3551
        %9399 = vmatpush.msra.mxu0 %v3543
        %9400 = vmatpush.msra.mxu0 %v3535
        %9401 = vmatpush.msra.mxu0 %v3527
        %9402 = vmatpush.msra.mxu0 %v3519
        %9403 = vmatpush.msra.mxu0 %v3511
        %9404 = vmatmul.f32.gmra.mxu0 %v297
        %v9405 = vpop.f32.mrf.mxu0
        %v9406 = vadd.f32 %v9386, %v9405
        %9407 = vdwg.mxu0
        %9408 = vmatpush.msra.mxu0 %v3759
        %9409 = vmatpush.msra.mxu0 %v3751
        %9410 = vmatpush.msra.mxu0 %v3743
        %9411 = vmatpush.msra.mxu0 %v3735
        %9412 = vmatpush.msra.mxu0 %v3727
        %9413 = vmatpush.msra.mxu0 %v3719
        %9414 = vmatpush.msra.mxu0 %v3711
        %9415 = vmatpush.msra.mxu0 %v3703
        %9416 = vmatpush.msra.mxu0 %v3695
        %9417 = vmatpush.msra.mxu0 %v3687
        %9418 = vmatpush.msra.mxu0 %v3679
        %9419 = vmatpush.msra.mxu0 %v3671
        %9420 = vmatpush.msra.mxu0 %v3663
        %9421 = vmatpush.msra.mxu0 %v3655
        %9422 = vmatpush.msra.mxu0 %v3647
        %9423 = vmatpush.msra.mxu0 %v3639
        %9424 = vmatmul.f32.gmra.mxu0 %v298
        %v9425 = vpop.f32.mrf.mxu0
        %v9426 = vadd.f32 %v9406, %v9425
        %9427 = vdwg.mxu0
        %9428 = vmatpush.msra.mxu0 %v3887
        %9429 = vmatpush.msra.mxu0 %v3879
        %9430 = vmatpush.msra.mxu0 %v3871
        %9431 = vmatpush.msra.mxu0 %v3863
        %9432 = vmatpush.msra.mxu0 %v3855
        %9433 = vmatpush.msra.mxu0 %v3847
        %9434 = vmatpush.msra.mxu0 %v3839
        %9435 = vmatpush.msra.mxu0 %v3831
        %9436 = vmatpush.msra.mxu0 %v3823
        %9437 = vmatpush.msra.mxu0 %v3815
        %9438 = vmatpush.msra.mxu0 %v3807
        %9439 = vmatpush.msra.mxu0 %v3799
        %9440 = vmatpush.msra.mxu0 %v3791
        %9441 = vmatpush.msra.mxu0 %v3783
        %9442 = vmatpush.msra.mxu0 %v3775
        %9443 = vmatpush.msra.mxu0 %v3767
        %9444 = vmatmul.f32.gmra.mxu0 %v299
        %v9445 = vpop.f32.mrf.mxu0
        %v9446 = vadd.f32 %v9426, %v9445
        %9447 = vdwg.mxu0
        %9448 = vmatpush.msra.mxu0 %v4015
        %9449 = vmatpush.msra.mxu0 %v4007
        %9450 = vmatpush.msra.mxu0 %v3999
        %9451 = vmatpush.msra.mxu0 %v3991
        %9452 = vmatpush.msra.mxu0 %v3983
        %9453 = vmatpush.msra.mxu0 %v3975
        %9454 = vmatpush.msra.mxu0 %v3967
        %9455 = vmatpush.msra.mxu0 %v3959
        %9456 = vmatpush.msra.mxu0 %v3951
        %9457 = vmatpush.msra.mxu0 %v3943
        %9458 = vmatpush.msra.mxu0 %v3935
        %9459 = vmatpush.msra.mxu0 %v3927
        %9460 = vmatpush.msra.mxu0 %v3919
        %9461 = vmatpush.msra.mxu0 %v3911
        %9462 = vmatpush.msra.mxu0 %v3903
        %9463 = vmatpush.msra.mxu0 %v3895
        %9464 = vmatmul.f32.gmra.mxu0 %v300
        %v9465 = vpop.f32.mrf.mxu0
        %v9466 = vadd.f32 %v9446, %v9465
        %9467 = vdwg.mxu0
        %9468 = vmatpush.msra.mxu0 %v4143
        %9469 = vmatpush.msra.mxu0 %v4135
        %9470 = vmatpush.msra.mxu0 %v4127
        %9471 = vmatpush.msra.mxu0 %v4119
        %9472 = vmatpush.msra.mxu0 %v4111
        %9473 = vmatpush.msra.mxu0 %v4103
        %9474 = vmatpush.msra.mxu0 %v4095
        %9475 = vmatpush.msra.mxu0 %v4087
        %9476 = vmatpush.msra.mxu0 %v4079
        %9477 = vmatpush.msra.mxu0 %v4071
        %9478 = vmatpush.msra.mxu0 %v4063
        %9479 = vmatpush.msra.mxu0 %v4055
        %9480 = vmatpush.msra.mxu0 %v4047
        %9481 = vmatpush.msra.mxu0 %v4039
        %9482 = vmatpush.msra.mxu0 %v4031
        %9483 = vmatpush.msra.mxu0 %v4023
        %9484 = vmatmul.f32.gmra.mxu0 %v301
        %v9485 = vpop.f32.mrf.mxu0
        %v9486 = vadd.f32 %v9466, %v9485
        %9487 = vdwg.mxu0
        %9488 = vmatpush.msra.mxu0 %v4271
        %9489 = vmatpush.msra.mxu0 %v4263
        %9490 = vmatpush.msra.mxu0 %v4255
        %9491 = vmatpush.msra.mxu0 %v4247
        %9492 = vmatpush.msra.mxu0 %v4239
        %9493 = vmatpush.msra.mxu0 %v4231
        %9494 = vmatpush.msra.mxu0 %v4223
        %9495 = vmatpush.msra.mxu0 %v4215
        %9496 = vmatpush.msra.mxu0 %v4207
        %9497 = vmatpush.msra.mxu0 %v4199
        %9498 = vmatpush.msra.mxu0 %v4191
        %9499 = vmatpush.msra.mxu0 %v4183
        %9500 = vmatpush.msra.mxu0 %v4175
        %9501 = vmatpush.msra.mxu0 %v4167
        %9502 = vmatpush.msra.mxu0 %v4159
        %9503 = vmatpush.msra.mxu0 %v4151
        %9504 = vmatmul.f32.gmra.mxu0 %v302
        %v9505 = vpop.f32.mrf.mxu0
        %v9506 = vadd.f32 %v9486, %v9505
        %9507 = vdwg.mxu0
        %9508 = vmatpush.msra.mxu0 %v4399
        %9509 = vmatpush.msra.mxu0 %v4391
        %9510 = vmatpush.msra.mxu0 %v4383
        %9511 = vmatpush.msra.mxu0 %v4375
        %9512 = vmatpush.msra.mxu0 %v4367
        %9513 = vmatpush.msra.mxu0 %v4359
        %9514 = vmatpush.msra.mxu0 %v4351
        %9515 = vmatpush.msra.mxu0 %v4343
        %9516 = vmatpush.msra.mxu0 %v4335
        %9517 = vmatpush.msra.mxu0 %v4327
        %9518 = vmatpush.msra.mxu0 %v4319
        %9519 = vmatpush.msra.mxu0 %v4311
        %9520 = vmatpush.msra.mxu0 %v4303
        %9521 = vmatpush.msra.mxu0 %v4295
        %9522 = vmatpush.msra.mxu0 %v4287
        %9523 = vmatpush.msra.mxu0 %v4279
        %9524 = vmatmul.f32.gmra.mxu0 %v303
        %v9525 = vpop.f32.mrf.mxu0
        %v9526 = vadd.f32 %v9506, %v9525
        %9527 = vdwg.mxu0
        %9528 = vst [vmem:[%s268] sm:$0xff] %v5046
        %9529 = vst [vmem:[%s268 + $0x8] sm:$0xff] %v5686
        %9530 = vst [vmem:[%s268 + $0x10] sm:$0xff] %v6326
        %9531 = vst [vmem:[%s268 + $0x18] sm:$0xff] %v6966
        %9532 = vst [vmem:[%s268 + $0x20] sm:$0xff] %v7606
        %9533 = vst [vmem:[%s268 + $0x28] sm:$0xff] %v8246
        %9534 = vst [vmem:[%s268 + $0x30] sm:$0xff] %v8886
        %9535 = vst [vmem:[%s268 + $0x38] sm:$0xff] %v9526
        %s9536 = sand.u32 %s123, 1
        %s9537 = scalar_lea.sflag [#allocation4], %s9536
        %s9538 = sand.u32 %s123, 1
        %s9539 = smul.addr %s9538, 64
        %s9540 = scalar_lea.vmem [#allocation8], %s9539
        // Predicated region
        $region45: #{linear_add.1} parent=31 // pred_check
          %p9541 = pneg %p133
        $region46: #{linear_add.1} parent=31 // pred_check_branch
          %9543 = sbr.rel (%p9541) target = $region48
        $region47: #{linear_add.1} parent=31 // pred_region
          %s9544 = smul.u32 8, %s26
          %9546 = vsyncadd %s9537, 0
          %s9547 = smul.addr %s25, 32
          %s9548 = sadd.s32 %s9544, %s9547
          %s9549 = smul.addr %s9548, 8
          %s9550 = scalar_lea.hbm %s3, %s9549
          %s9552 = sshll.u32 %s9540, 4
          %s9553 = int_to_ptr.vmem [resolvable:$true] %s9552
          %s9554 = sshll.u32 %s9550, 4
          %s9555 = int_to_ptr.hbm [resolvable:$true] %s9554
          %9557 = dma.vmem_to_hbm [thread:$0]  %s9553, 1024, %s9555, %s9537
        $region48: #{linear_add.1} parent=31 // pred_fallthru
          _
      $region32: #{linear_add.1} parent=5 // pred_fallthru
        _
      %p9558 = scmp.le.s32.totalorder 2, %s16
      // Predicated region
      $region49: #{linear_add.1} parent=5 // pred_check
        %p9559 = pneg %p9558
      $region50: #{linear_add.1} parent=5 // pred_check_branch
        %9561 = sbr.rel (%p9559) target = $region52
      $region51: #{linear_add.1} parent=5 // pred_region
        %s9562 = ssub.s32 %s16, 2
        // Predicated region
        $region53: #{linear_add.1} parent=51 // pred_check
          %p9563 = pneg %p139
        $region54: #{linear_add.1} parent=51 // pred_check_branch
          %9565 = sbr.rel (%p9563) target = $region56
        $region55: #{linear_add.1} parent=51 // pred_region
          %s9566 = sand.u32 %s124, 1
          %s9567 = scalar_lea.sflag [#allocation4], %s9566
          %s9568 = sand.u32 %s124, 1
          %s9569 = smul.addr %s9568, 64
          %s9570 = scalar_lea.vmem [#allocation8], %s9569
          %9572 = dma.done %s9567, 1024
        $region56: #{linear_add.1} parent=51 // pred_fallthru
          _
      $region52: #{linear_add.1} parent=5 // pred_fallthru
        _
    $region6: #{linear_add.1} parent=1 // loop_footer
      %s20 = sadd.s32 1, %s16
    $region7: #{linear_add.1} parent=1 // loop_footer_branch
      %15 = sbr.rel target = $region3
    $region8: #{linear_add.1} parent=1 // loop_exit
      _
    %9573 = vsyncpa [#allocation3], 1
    %s9574 = scalar_lea.sflag [#allocation3], 1
    %9575 = vsyncpa %s9574, 1
    %9576 = vsyncpa [#allocation6], 1
    %s9577 = scalar_lea.sflag [#allocation6], 1
    %9578 = vsyncpa %s9577, 1
    %9579 = vsyncpa [#allocation4], 1
    %s9580 = scalar_lea.sflag [#allocation4], 1
    %9581 = vsyncpa %s9580, 1

</llo_original>
